<compile_context>
chip_gen: v6e
topology: v6e:2x2x1
jax: 0.10.0
libtpu: 0.0.40
codegen_flags: <defaults>
</compile_context>

<pallas_src>
import functools

import jax
import jax.numpy as jnp
from jax import lax
from jax.experimental import pallas as pl
from jax.experimental.pallas import tpu as pltpu

PARAM_ORDER = ("wq", "bq", "wk", "bk", "wv", "bv", "wo", "bo",
               "ln1_g", "ln1_b", "w1", "b1", "w2", "b2", "ln2_g", "ln2_b")
MATMUL_WEIGHTS = ("wq", "wk", "wv", "wo", "w1", "w2")


# --------------------- Pallas kernel (fused encoder stack) -------------------
def encoder_stack_kernel(x_ref, wq, bq, wk, bk, wv, bv, wo, bo,
                         g1, be1, w1, b1, w2, b2, g2, be2,
                         o_ref, *, n_heads, seq_len, matmul_dtype,
                         params_resident):
    layer = pl.program_id(1)
    # Resident params: refs hold all L layers, index the layer axis dynamically.
    # Streamed params: refs hold one layer (block index l), so index 0.
    li = layer if params_resident else 0

    # Layer 0: bring the embedded input into the resident output block; later
    # layers read the previous layer's result straight from VMEM (o_ref stays
    # resident across the "arbitrary" layer axis — no HBM round trip).
    @pl.when(layer == 0)
    def _():
        o_ref[...] = x_ref[...]

    rows, E = o_ref.shape            # rows = Bb * S
    S = seq_len
    Bb = rows // S
    H = n_heads
    D = E // H
    inv_scale = 1.0 / (E ** 0.5)     # torch code scales energies by sqrt(embed_dim)

    x = o_ref[...]                                    # (Bb*S, E) f32
    xm = x.astype(matmul_dtype)

    # ---------------- multi-head self-attention ------------------------------
    # QKV projections: M = Bb*S rows, K = E — dense MXU matmuls.  Softmax scale
    # folded into Q (includes bias so energies match (QK^T)/sqrt(E) exactly).
    q = (jnp.dot(xm, wq[li], preferred_element_type=jnp.float32) + bq[li]) * inv_scale
    k = jnp.dot(xm, wk[li], preferred_element_type=jnp.float32) + bk[li]
    v = jnp.dot(xm, wv[li], preferred_element_type=jnp.float32) + bv[li]

    # Head split: (Bb*S, E) -> (H*Bb, S, D).  Static lane slices + leading-dim
    # reshape (S is a sublane multiple), so attention is ONE batched matmul.
    def split_heads(t):
        return jnp.concatenate(
            [t[:, h * D:(h + 1) * D].reshape(Bb, S, D) for h in range(H)], axis=0)

    qh = split_heads(q).astype(matmul_dtype)
    kh = split_heads(k).astype(matmul_dtype)
    vh = split_heads(v).astype(matmul_dtype)

    energy = jnp.einsum("nqd,nkd->nqk", qh, kh,
                        preferred_element_type=jnp.float32)    # (H*Bb, S, S) f32
    m = jnp.max(energy, axis=-1, keepdims=True)
    p = jnp.exp(energy - m)
    att = p / jnp.sum(p, axis=-1, keepdims=True)               # exact softmax

    ctx = jnp.einsum("nqk,nkd->nqd", att.astype(matmul_dtype), vh,
                     preferred_element_type=jnp.float32)       # (H*Bb, S, D)

    # Re-merge heads to (Bb*S, E) and do ONE dense K=E output projection
    # (instead of an H-way K=D batched matmul).
    ctx2 = jnp.concatenate([ctx[h * Bb:(h + 1) * Bb] for h in range(H)],
                           axis=-1).reshape(Bb * S, E)
    mha = jnp.dot(ctx2.astype(matmul_dtype), wo[li],
                  preferred_element_type=jnp.float32) + bo[li]

    # ---------------- residual + LayerNorm 1 (f32 stats, eps=1e-5) -----------
    y = x + mha
    mu = jnp.mean(y, axis=-1, keepdims=True)
    var = jnp.mean(jnp.square(y - mu), axis=-1, keepdims=True)
    ln1 = (y - mu) * lax.rsqrt(var + 1e-5) * g1[li] + be1[li]

    # ---------------- position-wise feed-forward (ReLU) ----------------------
    h1 = jnp.maximum(
        jnp.dot(ln1.astype(matmul_dtype), w1[li],
                preferred_element_type=jnp.float32) + b1[li], 0.0)
    ff = jnp.dot(h1.astype(matmul_dtype), w2[li],
                 preferred_element_type=jnp.float32) + b2[li]

    # ---------------- residual + LayerNorm 2 ---------------------------------
    z = ln1 + ff
    mu2 = jnp.mean(z, axis=-1, keepdims=True)
    var2 = jnp.mean(jnp.square(z - mu2), axis=-1, keepdims=True)
    ln2 = (z - mu2) * lax.rsqrt(var2 + 1e-5) * g2[li] + be2[li]

    o_ref[...] = ln2.astype(o_ref.dtype)


# ------------------------------- wrappers ------------------------------------
def stack_params(layer_params, matmul_dtype):
    """Stack per-layer params along a leading layer axis; bf16-cast matmul weights."""
    stacked = {}
    for name in PARAM_ORDER:
        arr = jnp.stack([p[name] for p in layer_params], axis=0)   # (L, ...)
        if arr.ndim == 2:                        # biases / LN params -> (L, 1, dim)
            arr = arr[:, None, :]
        if name in MATMUL_WEIGHTS:
            arr = arr.astype(matmul_dtype)       # bf16 weights halve DMA/VMEM
        stacked[name] = arr
    return stacked


def choose_batch_block(B, S, target_rows=256):
    """Largest Bb dividing B with Bb*S <= target_rows and >=2 blocks (v7x 2 TCs)."""
    best = 1
    for bb in range(1, B + 1):
        if B % bb:
            continue
        n_blocks = B // bb
        if B >= 2 and n_blocks < 2:
            continue
        if bb * S <= target_rows:
            best = bb
    return best


def encoder_stack_pallas(x2, stacked, n_heads, seq_len, batch_block, matmul_dtype):
    BS, E = x2.shape
    B = BS // seq_len
    L = stacked["wq"].shape[0]
    Bb = batch_block
    assert B % Bb == 0, "batch_block must divide batch size"
    NB = B // Bb
    rows = Bb * seq_len

    # Keep ALL layers' weights VMEM-resident (loaded once for the whole grid) if
    # they fit; otherwise stream per layer.  v7x has only 64 MiB physical VMEM.
    pbytes = sum(int(a.size) * a.dtype.itemsize for a in stacked.values())
    params_resident = pbytes <= (16 << 20)

    if params_resident:
        def param_spec(arr):
            zeros = (0,) * arr.ndim
            return pl.BlockSpec(arr.shape, lambda b, l, _z=zeros: _z)
    else:
        # TODO(synk): for very large E/P also tile w1/w2 along K/N (extra
        # "arbitrary" grid axis) so double-buffered streaming fits v7x VMEM.
        def param_spec(arr):
            nd = arr.ndim
            return pl.BlockSpec((1,) + arr.shape[1:],
                                lambda b, l, _nd=nd: (l,) + (0,) * (_nd - 1))

    in_specs = [pl.BlockSpec((rows, E), lambda b, l: (b, 0))]
    in_specs += [param_spec(stacked[name]) for name in PARAM_ORDER]

    act_bytes = rows * E * 4
    vmem_limit = int(min(max(2 * pbytes + 8 * act_bytes + (8 << 20), 32 << 20),
                         48 << 20))   # stay under v7x's 64 MiB physical VMEM

    kernel = functools.partial(encoder_stack_kernel,
                               n_heads=n_heads, seq_len=seq_len,
                               matmul_dtype=matmul_dtype,
                               params_resident=params_resident)

    return pl.pallas_call(
        kernel,
        out_shape=jax.ShapeDtypeStruct((BS, E), jnp.float32),
        grid=(NB, L),
        in_specs=in_specs,
        out_specs=pl.BlockSpec((rows, E), lambda b, l: (b, 0)),
        compiler_params=pltpu.CompilerParams(
            # batch-block axis -> megacore parallel, layer axis -> sequential carry
            dimension_semantics=("parallel", "arbitrary"),
            vmem_limit_bytes=vmem_limit),
    )(x2, *[stacked[name] for name in PARAM_ORDER])


def encoder_forward_pallas(X, emb_w, layer_params, n_heads,
                           matmul_dtype=jnp.bfloat16, batch_block=None):
    B, S = X.shape
    E = emb_w.shape[1]
    # Embedding gather + sqrt(E) scale + positional add: a single XLA gather
    # (data-dependent, left to XLA); the whole n_layers transformer stack runs
    # in ONE pallas_call so activations never round-trip HBM between layers.
    x = jnp.take(emb_w, X, axis=0) * (E ** 0.5)
    pos = jnp.broadcast_to(jnp.arange(S, dtype=jnp.float32)[:, None], (S, E))
    x = (x + pos[None]).astype(jnp.float32).reshape(B * S, E)
    if batch_block is None:
        batch_block = choose_batch_block(B, S)
    stacked = stack_params(layer_params, matmul_dtype)
    out = encoder_stack_pallas(x, stacked, n_heads, S, batch_block, matmul_dtype)
    return out.reshape(B, S, E)


# -------------------- pure-JAX reference (same precision policy) -------------
def encoder_forward_ref(X, emb_w, layer_params, n_heads, matmul_dtype=jnp.float32):
    B, S = X.shape
    E = emb_w.shape[1]
    H, D = n_heads, E // n_heads
    inv_scale = 1.0 / (E ** 0.5)

    c = lambda a: a.astype(matmul_dtype)

    def mm(a, w):
        return jnp.dot(c(a), c(w), preferred_element_type=jnp.float32)

    def ln_f(a, g, b):
        mu = a.mean(-1, keepdims=True)
        var = ((a - mu) ** 2).mean(-1, keepdims=True)
        return (a - mu) / jnp.sqrt(var + 1e-5) * g + b

    x = jnp.take(emb_w, X, axis=0) * (E ** 0.5)
    pos = jnp.broadcast_to(jnp.arange(S, dtype=jnp.float32)[:, None], (S, E))
    x = x + pos[None]

    for p in layer_params:
        q = (mm(x, p["wq"]) + p["bq"]) * inv_scale
        k = mm(x, p["wk"]) + p["bk"]
        v = mm(x, p["wv"]) + p["bv"]
        qh = q.reshape(B, S, H, D).transpose(0, 2, 1, 3)
        kh = k.reshape(B, S, H, D).transpose(0, 2, 1, 3)
        vh = v.reshape(B, S, H, D).transpose(0, 2, 1, 3)
        energy = jnp.einsum("bhqd,bhkd->bhqk", c(qh), c(kh),
                            preferred_element_type=jnp.float32)
        att = jax.nn.softmax(energy, axis=-1)
        ctx = jnp.einsum("bhqk,bhkd->bhqd", c(att), c(vh),
                         preferred_element_type=jnp.float32)
        ctx = ctx.transpose(0, 2, 1, 3).reshape(B, S, E)
        mha = mm(ctx, p["wo"]) + p["bo"]
        y = ln_f(x + mha, p["ln1_g"], p["ln1_b"])
        ff = mm(jax.nn.relu(mm(y, p["w1"]) + p["b1"]), p["w2"]) + p["b2"]
        x = ln_f(y + ff, p["ln2_g"], p["ln2_b"])
    return x


# --------------------------------- setup -------------------------------------
def init_layer_params(key, embed_dim, posff_dim):
    ks = jax.random.split(key, 16)
    E, P = embed_dim, posff_dim

    def rnd(k, shape, scale):
        return (scale * jax.random.normal(k, shape)).astype(jnp.float32)

    return {
        "wq": rnd(ks[0], (E, E), 0.05), "bq": rnd(ks[1], (E,), 0.02),
        "wk": rnd(ks[2], (E, E), 0.05), "bk": rnd(ks[3], (E,), 0.02),
        "wv": rnd(ks[4], (E, E), 0.05), "bv": rnd(ks[5], (E,), 0.02),
        "wo": rnd(ks[6], (E, E), 0.05), "bo": rnd(ks[7], (E,), 0.02),
        "ln1_g": 1.0 + rnd(ks[8], (E,), 0.1), "ln1_b": rnd(ks[9], (E,), 0.1),
        "w1": rnd(ks[10], (E, P), 0.05), "b1": rnd(ks[11], (P,), 0.02),
        "w2": rnd(ks[12], (P, E), 0.05), "b2": rnd(ks[13], (E,), 0.02),
        "ln2_g": 1.0 + rnd(ks[14], (E,), 0.1), "ln2_b": rnd(ks[15], (E,), 0.1),
    }


if __name__ == "__main__":
    vocab_size = 50
    # E = 128 keeps the lane (last) dim dense; head_dim = 32, posff = 256.
    # B = 16, S = 16 with batch_block = 8 -> two parallel blocks of M = 128 rows.
    B, S, E, H, P, n_layers = 16, 16, 128, 4, 256, 2

    key = jax.random.PRNGKey(0)
    k_emb, k_x, *k_layers = jax.random.split(key, 2 + n_layers)

    emb_w = jax.random.normal(k_emb, (vocab_size, E), dtype=jnp.float32)
    layer_params = [init_layer_params(k, E, P) for k in k_layers]
    X = jax.random.randint(k_x, (B, S), 0, vocab_size, dtype=jnp.int32)

    # 1) f32 MXU operands: matches the PyTorch (f32) module semantics
    #    (softmax uses an exact divide, so the tolerance is tight).
    fwd_f32 = jax.jit(functools.partial(
        encoder_forward_pallas, n_heads=H, matmul_dtype=jnp.float32))
    out_f32 = jax.block_until_ready(fwd_f32(X, emb_w, layer_params))
    ref_f32 = encoder_forward_ref(X, emb_w, layer_params, H, jnp.float32)
    assert out_f32.shape == (B, S, E)
    assert jnp.allclose(out_f32, ref_f32, rtol=2e-3, atol=2e-3), "f32 mismatch"

    # 2) bf16 MXU operands (default fast path on v6e/v7x), checked against a
    #    reference applying the identical mixed-precision policy (stats in f32).
    fwd_bf16 = jax.jit(functools.partial(
        encoder_forward_pallas, n_heads=H, matmul_dtype=jnp.bfloat16))
    out_bf16 = jax.block_until_ready(fwd_bf16(X, emb_w, layer_params))
    ref_bf16 = encoder_forward_ref(X, emb_w, layer_params, H, jnp.bfloat16)
    assert jnp.allclose(out_bf16, ref_bf16, rtol=1e-2, atol=1e-2), "bf16 mismatch"

    print("KERNEL_OK")
</pallas_src>

<mosaic_0001>
module attributes {stable_mosaic.version = 11 : i64} {
  func.func @encoder_stack_kernel(%arg0: i32, %arg1: i32, %arg2: memref<128x128xf32, #tpu.memory_space<vmem>>, %arg3: memref<2x128x128xf32, #tpu.memory_space<vmem>>, %arg4: memref<2x1x128xf32, #tpu.memory_space<vmem>>, %arg5: memref<2x128x128xf32, #tpu.memory_space<vmem>>, %arg6: memref<2x1x128xf32, #tpu.memory_space<vmem>>, %arg7: memref<2x128x128xf32, #tpu.memory_space<vmem>>, %arg8: memref<2x1x128xf32, #tpu.memory_space<vmem>>, %arg9: memref<2x128x128xf32, #tpu.memory_space<vmem>>, %arg10: memref<2x1x128xf32, #tpu.memory_space<vmem>>, %arg11: memref<2x1x128xf32, #tpu.memory_space<vmem>>, %arg12: memref<2x1x128xf32, #tpu.memory_space<vmem>>, %arg13: memref<2x128x256xf32, #tpu.memory_space<vmem>>, %arg14: memref<2x1x256xf32, #tpu.memory_space<vmem>>, %arg15: memref<2x256x128xf32, #tpu.memory_space<vmem>>, %arg16: memref<2x1x128xf32, #tpu.memory_space<vmem>>, %arg17: memref<2x1x128xf32, #tpu.memory_space<vmem>>, %arg18: memref<2x1x128xf32, #tpu.memory_space<vmem>>, %arg19: memref<128x128xf32, #tpu.memory_space<vmem>>) attributes {dimension_semantics = [#tpu.dimension_semantics<parallel>, #tpu.dimension_semantics<arbitrary>], iteration_bounds = array<i64: 2, 2>, scalar_prefetch = 0 : i64, scratch_operands = 0 : i64, tpu.core_type = #tpu.core_type<tc>, window_params = [{transform_indices = @transform_0, window_bounds = array<i64: 128, 128>}, {pipeline_mode = #tpu.pipeline_mode<synchronous>, transform_indices = @transform_1, window_bounds = array<i64: 2, 128, 128>}, {pipeline_mode = #tpu.pipeline_mode<synchronous>, transform_indices = @transform_2, window_bounds = array<i64: 2, 1, 128>}, {pipeline_mode = #tpu.pipeline_mode<synchronous>, transform_indices = @transform_3, window_bounds = array<i64: 2, 128, 128>}, {pipeline_mode = #tpu.pipeline_mode<synchronous>, transform_indices = @transform_4, window_bounds = array<i64: 2, 1, 128>}, {pipeline_mode = #tpu.pipeline_mode<synchronous>, transform_indices = @transform_5, window_bounds = array<i64: 2, 128, 128>}, {pipeline_mode = #tpu.pipeline_mode<synchronous>, transform_indices = @transform_6, window_bounds = array<i64: 2, 1, 128>}, {pipeline_mode = #tpu.pipeline_mode<synchronous>, transform_indices = @transform_7, window_bounds = array<i64: 2, 128, 128>}, {pipeline_mode = #tpu.pipeline_mode<synchronous>, transform_indices = @transform_8, window_bounds = array<i64: 2, 1, 128>}, {pipeline_mode = #tpu.pipeline_mode<synchronous>, transform_indices = @transform_9, window_bounds = array<i64: 2, 1, 128>}, {pipeline_mode = #tpu.pipeline_mode<synchronous>, transform_indices = @transform_10, window_bounds = array<i64: 2, 1, 128>}, {pipeline_mode = #tpu.pipeline_mode<synchronous>, transform_indices = @transform_11, window_bounds = array<i64: 2, 128, 256>}, {pipeline_mode = #tpu.pipeline_mode<synchronous>, transform_indices = @transform_12, window_bounds = array<i64: 2, 1, 256>}, {pipeline_mode = #tpu.pipeline_mode<synchronous>, transform_indices = @transform_13, window_bounds = array<i64: 2, 256, 128>}, {pipeline_mode = #tpu.pipeline_mode<synchronous>, transform_indices = @transform_14, window_bounds = array<i64: 2, 1, 128>}, {pipeline_mode = #tpu.pipeline_mode<synchronous>, transform_indices = @transform_15, window_bounds = array<i64: 2, 1, 128>}, {pipeline_mode = #tpu.pipeline_mode<synchronous>, transform_indices = @transform_16, window_bounds = array<i64: 2, 1, 128>}, {transform_indices = @transform_17, window_bounds = array<i64: 128, 128>}]} {
    %c0_i32 = arith.constant 0 : i32
    %0 = arith.cmpi eq, %arg1, %c0_i32 : i32
    %1 = arith.extui %0 : i1 to i32
    %c0_i32_0 = arith.constant 0 : i32
    %2 = arith.cmpi ne, %1, %c0_i32_0 : i32
    scf.if %2 {
      %c0_57 = arith.constant 0 : index
      %c0_58 = arith.constant 0 : index
      %165 = vector.load %arg2[%c0_57, %c0_58] : memref<128x128xf32, #tpu.memory_space<vmem>>, vector<128x128xf32>
      %c0_59 = arith.constant 0 : index
      %c0_60 = arith.constant 0 : index
      %166 = vector.load %arg19[%c0_59, %c0_60] : memref<128x128xf32, #tpu.memory_space<vmem>>, vector<128x128xf32>
      tpu.vector_store %arg19[%c0_59, %c0_60], %165 {strides = array<i32>} : memref<128x128xf32, #tpu.memory_space<vmem>>, vector<128x128xf32>,
    } else {
    }
    %c0 = arith.constant 0 : index
    %c0_1 = arith.constant 0 : index
    %3 = vector.load %arg19[%c0, %c0_1] : memref<128x128xf32, #tpu.memory_space<vmem>>, vector<128x128xf32>
    %4 = arith.index_cast %arg1 : i32 to index
    %c0_2 = arith.constant 0 : index
    %c0_3 = arith.constant 0 : index
    %5 = vector.load %arg3[%4, %c0_2, %c0_3] : memref<2x128x128xf32, #tpu.memory_space<vmem>>, vector<1x128x128xf32>
    %6 = vector.shape_cast %5 : vector<1x128x128xf32> to vector<128x128xf32>
    %cst = arith.constant dense<0.000000e+00> : vector<128x128xf32>
    %7 = tpu.matmul %3, %6, %cst {dimension_numbers = #tpu.dot_dimension_numbers<[1], [0], [0], [1], [0, 0, 1, 1], [], []>} : vector<128x128xf32>, vector<128x128xf32>, vector<128x128xf32> -> vector<128x128xf32>
    %8 = arith.index_cast %arg1 : i32 to index
    %c0_4 = arith.constant 0 : index
    %c0_5 = arith.constant 0 : index
    %9 = vector.load %arg4[%8, %c0_4, %c0_5] : memref<2x1x128xf32, #tpu.memory_space<vmem>>, vector<1x1x128xf32>
    %10 = vector.shape_cast %9 : vector<1x1x128xf32> to vector<1x128xf32>
    %11 = vector.broadcast %10 : vector<1x128xf32> to vector<128x128xf32>
    %12 = arith.addf %7, %11 : vector<128x128xf32>
    %cst_6 = arith.constant 0.0883883461 : f32
    %13 = vector.broadcast %cst_6 : f32 to vector<128x128xf32>
    %14 = arith.mulf %12, %13 : vector<128x128xf32>
    %15 = arith.index_cast %arg1 : i32 to index
    %c0_7 = arith.constant 0 : index
    %c0_8 = arith.constant 0 : index
    %16 = vector.load %arg5[%15, %c0_7, %c0_8] : memref<2x128x128xf32, #tpu.memory_space<vmem>>, vector<1x128x128xf32>
    %17 = vector.shape_cast %16 : vector<1x128x128xf32> to vector<128x128xf32>
    %cst_9 = arith.constant dense<0.000000e+00> : vector<128x128xf32>
    %18 = tpu.matmul %3, %17, %cst_9 {dimension_numbers = #tpu.dot_dimension_numbers<[1], [0], [0], [1], [0, 0, 1, 1], [], []>} : vector<128x128xf32>, vector<128x128xf32>, vector<128x128xf32> -> vector<128x128xf32>
    %19 = arith.index_cast %arg1 : i32 to index
    %c0_10 = arith.constant 0 : index
    %c0_11 = arith.constant 0 : index
    %20 = vector.load %arg6[%19, %c0_10, %c0_11] : memref<2x1x128xf32, #tpu.memory_space<vmem>>, vector<1x1x128xf32>
    %21 = vector.shape_cast %20 : vector<1x1x128xf32> to vector<1x128xf32>
    %22 = vector.broadcast %21 : vector<1x128xf32> to vector<128x128xf32>
    %23 = arith.addf %18, %22 : vector<128x128xf32>
    %24 = arith.index_cast %arg1 : i32 to index
    %c0_12 = arith.constant 0 : index
    %c0_13 = arith.constant 0 : index
    %25 = vector.load %arg7[%24, %c0_12, %c0_13] : memref<2x128x128xf32, #tpu.memory_space<vmem>>, vector<1x128x128xf32>
    %26 = vector.shape_cast %25 : vector<1x128x128xf32> to vector<128x128xf32>
    %cst_14 = arith.constant dense<0.000000e+00> : vector<128x128xf32>
    %27 = tpu.matmul %3, %26, %cst_14 {dimension_numbers = #tpu.dot_dimension_numbers<[1], [0], [0], [1], [0, 0, 1, 1], [], []>} : vector<128x128xf32>, vector<128x128xf32>, vector<128x128xf32> -> vector<128x128xf32>
    %28 = arith.index_cast %arg1 : i32 to index
    %c0_15 = arith.constant 0 : index
    %c0_16 = arith.constant 0 : index
    %29 = vector.load %arg8[%28, %c0_15, %c0_16] : memref<2x1x128xf32, #tpu.memory_space<vmem>>, vector<1x1x128xf32>
    %30 = vector.shape_cast %29 : vector<1x1x128xf32> to vector<1x128xf32>
    %31 = vector.broadcast %30 : vector<1x128xf32> to vector<128x128xf32>
    %32 = arith.addf %27, %31 : vector<128x128xf32>
    %33 = vector.extract_strided_slice %14 {offsets = [0, 0], sizes = [128, 32], strides = [1, 1]} : vector<128x128xf32> to vector<128x32xf32>
    %34 = vector.shape_cast %33 : vector<128x32xf32> to vector<8x16x32xf32>
    %35 = vector.extract_strided_slice %14 {offsets = [0, 32], sizes = [128, 32], strides = [1, 1]} : vector<128x128xf32> to vector<128x32xf32>
    %36 = vector.shape_cast %35 : vector<128x32xf32> to vector<8x16x32xf32>
    %37 = vector.extract_strided_slice %14 {offsets = [0, 64], sizes = [128, 32], strides = [1, 1]} : vector<128x128xf32> to vector<128x32xf32>
    %38 = vector.shape_cast %37 : vector<128x32xf32> to vector<8x16x32xf32>
    %39 = vector.extract_strided_slice %14 {offsets = [0, 96], sizes = [128, 32], strides = [1, 1]} : vector<128x128xf32> to vector<128x32xf32>
    %40 = vector.shape_cast %39 : vector<128x32xf32> to vector<8x16x32xf32>
    %41 = tpu.concatenate %34, %36, %38, %40 in 0 : vector<8x16x32xf32>, vector<8x16x32xf32>, vector<8x16x32xf32>, vector<8x16x32xf32> -> vector<32x16x32xf32>
    %42 = vector.extract_strided_slice %23 {offsets = [0, 0], sizes = [128, 32], strides = [1, 1]} : vector<128x128xf32> to vector<128x32xf32>
    %43 = vector.shape_cast %42 : vector<128x32xf32> to vector<8x16x32xf32>
    %44 = vector.extract_strided_slice %23 {offsets = [0, 32], sizes = [128, 32], strides = [1, 1]} : vector<128x128xf32> to vector<128x32xf32>
    %45 = vector.shape_cast %44 : vector<128x32xf32> to vector<8x16x32xf32>
    %46 = vector.extract_strided_slice %23 {offsets = [0, 64], sizes = [128, 32], strides = [1, 1]} : vector<128x128xf32> to vector<128x32xf32>
    %47 = vector.shape_cast %46 : vector<128x32xf32> to vector<8x16x32xf32>
    %48 = vector.extract_strided_slice %23 {offsets = [0, 96], sizes = [128, 32], strides = [1, 1]} : vector<128x128xf32> to vector<128x32xf32>
    %49 = vector.shape_cast %48 : vector<128x32xf32> to vector<8x16x32xf32>
    %50 = tpu.concatenate %43, %45, %47, %49 in 0 : vector<8x16x32xf32>, vector<8x16x32xf32>, vector<8x16x32xf32>, vector<8x16x32xf32> -> vector<32x16x32xf32>
    %51 = vector.extract_strided_slice %32 {offsets = [0, 0], sizes = [128, 32], strides = [1, 1]} : vector<128x128xf32> to vector<128x32xf32>
    %52 = vector.shape_cast %51 : vector<128x32xf32> to vector<8x16x32xf32>
    %53 = vector.extract_strided_slice %32 {offsets = [0, 32], sizes = [128, 32], strides = [1, 1]} : vector<128x128xf32> to vector<128x32xf32>
    %54 = vector.shape_cast %53 : vector<128x32xf32> to vector<8x16x32xf32>
    %55 = vector.extract_strided_slice %32 {offsets = [0, 64], sizes = [128, 32], strides = [1, 1]} : vector<128x128xf32> to vector<128x32xf32>
    %56 = vector.shape_cast %55 : vector<128x32xf32> to vector<8x16x32xf32>
    %57 = vector.extract_strided_slice %32 {offsets = [0, 96], sizes = [128, 32], strides = [1, 1]} : vector<128x128xf32> to vector<128x32xf32>
    %58 = vector.shape_cast %57 : vector<128x32xf32> to vector<8x16x32xf32>
    %59 = tpu.concatenate %52, %54, %56, %58 in 0 : vector<8x16x32xf32>, vector<8x16x32xf32>, vector<8x16x32xf32>, vector<8x16x32xf32> -> vector<32x16x32xf32>
    "tpu.trace_start"() <{level = 10 : i32, message = "nqd,nkd->nqk"}> : () -> ()
    %cst_17 = arith.constant dense<0.000000e+00> : vector<32x16x16xf32>
    %60 = tpu.matmul %41, %50, %cst_17 {dimension_numbers = #tpu.dot_dimension_numbers<[2], [2], [1], [1], [0, 0, 0, 1, 1, 1], [0], [0]>} : vector<32x16x32xf32>, vector<32x16x32xf32>, vector<32x16x16xf32> -> vector<32x16x16xf32>
    "tpu.trace_stop"() : () -> ()
    %cst_18 = arith.constant dense<0xFF800000> : vector<32x16xf32>
    %61 = vector.multi_reduction <maximumf>, %60, %cst_18 [2] : vector<32x16x16xf32> to vector<32x16xf32>
    %62 = vector.shape_cast %61 : vector<32x16xf32> to vector<32x16x1xf32>
    %63 = vector.broadcast %62 : vector<32x16x1xf32> to vector<32x16x16xf32>
    %64 = arith.subf %60, %63 : vector<32x16x16xf32>
    %65 = math.exp %64 : vector<32x16x16xf32>
    %cst_19 = arith.constant dense<0.000000e+00> : vector<32x16xf32>
    %66 = vector.multi_reduction <add>, %65, %cst_19 [2] : vector<32x16x16xf32> to vector<32x16xf32>
    %67 = vector.shape_cast %66 : vector<32x16xf32> to vector<32x16x1xf32>
    %68 = vector.broadcast %67 : vector<32x16x1xf32> to vector<32x16x16xf32>
    %69 = arith.divf %65, %68 : vector<32x16x16xf32>
    "tpu.trace_start"() <{level = 10 : i32, message = "nqk,nkd->nqd"}> : () -> ()
    %cst_20 = arith.constant dense<0.000000e+00> : vector<32x16x32xf32>
    %70 = tpu.matmul %69, %59, %cst_20 {dimension_numbers = #tpu.dot_dimension_numbers<[2], [1], [1], [2], [0, 0, 0, 1, 1, 2], [0], [0]>} : vector<32x16x16xf32>, vector<32x16x32xf32>, vector<32x16x32xf32> -> vector<32x16x32xf32>
    "tpu.trace_stop"() : () -> ()
    %71 = vector.extract_strided_slice %70 {offsets = [0, 0, 0], sizes = [8, 16, 32], strides = [1, 1, 1]} : vector<32x16x32xf32> to vector<8x16x32xf32>
    %72 = vector.extract_strided_slice %70 {offsets = [8, 0, 0], sizes = [8, 16, 32], strides = [1, 1, 1]} : vector<32x16x32xf32> to vector<8x16x32xf32>
    %73 = vector.extract_strided_slice %70 {offsets = [16, 0, 0], sizes = [8, 16, 32], strides = [1, 1, 1]} : vector<32x16x32xf32> to vector<8x16x32xf32>
    %74 = vector.extract_strided_slice %70 {offsets = [24, 0, 0], sizes = [8, 16, 32], strides = [1, 1, 1]} : vector<32x16x32xf32> to vector<8x16x32xf32>
    %75 = tpu.concatenate %71, %72, %73, %74 in 2 : vector<8x16x32xf32>, vector<8x16x32xf32>, vector<8x16x32xf32>, vector<8x16x32xf32> -> vector<8x16x128xf32>
    %76 = vector.shape_cast %75 : vector<8x16x128xf32> to vector<128x128xf32>
    %77 = arith.index_cast %arg1 : i32 to index
    %c0_21 = arith.constant 0 : index
    %c0_22 = arith.constant 0 : index
    %78 = vector.load %arg9[%77, %c0_21, %c0_22] : memref<2x128x128xf32, #tpu.memory_space<vmem>>, vector<1x128x128xf32>
    %79 = vector.shape_cast %78 : vector<1x128x128xf32> to vector<128x128xf32>
    %cst_23 = arith.constant dense<0.000000e+00> : vector<128x128xf32>
    %80 = tpu.matmul %76, %79, %cst_23 {dimension_numbers = #tpu.dot_dimension_numbers<[1], [0], [0], [1], [0, 0, 1, 1], [], []>} : vector<128x128xf32>, vector<128x128xf32>, vector<128x128xf32> -> vector<128x128xf32>
    %81 = arith.index_cast %arg1 : i32 to index
    %c0_24 = arith.constant 0 : index
    %c0_25 = arith.constant 0 : index
    %82 = vector.load %arg10[%81, %c0_24, %c0_25] : memref<2x1x128xf32, #tpu.memory_space<vmem>>, vector<1x1x128xf32>
    %83 = vector.shape_cast %82 : vector<1x1x128xf32> to vector<1x128xf32>
    %84 = vector.broadcast %83 : vector<1x128xf32> to vector<128x128xf32>
    %85 = arith.addf %80, %84 : vector<128x128xf32>
    %86 = arith.addf %3, %85 : vector<128x128xf32>
    %cst_26 = arith.constant dense<0.000000e+00> : vector<128xf32>
    %87 = vector.multi_reduction <add>, %86, %cst_26 [1] : vector<128x128xf32> to vector<128xf32>
    %88 = vector.shape_cast %87 : vector<128xf32> to vector<128x1xf32>
    %cst_27 = arith.constant 1.280000e+02 : f32
    %89 = vector.broadcast %cst_27 : f32 to vector<128x1xf32>
    %90 = arith.divf %88, %89 : vector<128x1xf32>
    %91 = vector.broadcast %90 : vector<128x1xf32> to vector<128x128xf32>
    %92 = arith.subf %86, %91 : vector<128x128xf32>
    %93 = arith.mulf %92, %92 : vector<128x128xf32>
    %cst_28 = arith.constant dense<0.000000e+00> : vector<128xf32>
    %94 = vector.multi_reduction <add>, %93, %cst_28 [1] : vector<128x128xf32> to vector<128xf32>
    %95 = vector.shape_cast %94 : vector<128xf32> to vector<128x1xf32>
    %cst_29 = arith.constant 1.280000e+02 : f32
    %96 = vector.broadcast %cst_29 : f32 to vector<128x1xf32>
    %97 = arith.divf %95, %96 : vector<128x1xf32>
    %98 = vector.broadcast %90 : vector<128x1xf32> to vector<128x128xf32>
    %99 = arith.subf %86, %98 : vector<128x128xf32>
    %cst_30 = arith.constant 9.99999974E-6 : f32
    %100 = vector.broadcast %cst_30 : f32 to vector<128x1xf32>
    %101 = arith.addf %97, %100 : vector<128x1xf32>
    %102 = math.rsqrt %101 : vector<128x1xf32>
    %103 = vector.broadcast %102 : vector<128x1xf32> to vector<128x128xf32>
    %104 = arith.mulf %99, %103 : vector<128x128xf32>
    %105 = arith.index_cast %arg1 : i32 to index
    %c0_31 = arith.constant 0 : index
    %c0_32 = arith.constant 0 : index
    %106 = vector.load %arg11[%105, %c0_31, %c0_32] : memref<2x1x128xf32, #tpu.memory_space<vmem>>, vector<1x1x128xf32>
    %107 = vector.shape_cast %106 : vector<1x1x128xf32> to vector<1x128xf32>
    %108 = vector.broadcast %107 : vector<1x128xf32> to vector<128x128xf32>
    %109 = arith.mulf %104, %108 : vector<128x128xf32>
    %110 = arith.index_cast %arg1 : i32 to index
    %c0_33 = arith.constant 0 : index
    %c0_34 = arith.constant 0 : index
    %111 = vector.load %arg12[%110, %c0_33, %c0_34] : memref<2x1x128xf32, #tpu.memory_space<vmem>>, vector<1x1x128xf32>
    %112 = vector.shape_cast %111 : vector<1x1x128xf32> to vector<1x128xf32>
    %113 = vector.broadcast %112 : vector<1x128xf32> to vector<128x128xf32>
    %114 = arith.addf %109, %113 : vector<128x128xf32>
    %115 = arith.index_cast %arg1 : i32 to index
    %c0_35 = arith.constant 0 : index
    %c0_36 = arith.constant 0 : index
    %116 = vector.load %arg13[%115, %c0_35, %c0_36] : memref<2x128x256xf32, #tpu.memory_space<vmem>>, vector<1x128x256xf32>
    %117 = vector.shape_cast %116 : vector<1x128x256xf32> to vector<128x256xf32>
    %cst_37 = arith.constant dense<0.000000e+00> : vector<128x256xf32>
    %118 = tpu.matmul %114, %117, %cst_37 {dimension_numbers = #tpu.dot_dimension_numbers<[1], [0], [0], [1], [0, 0, 1, 1], [], []>} : vector<128x128xf32>, vector<128x256xf32>, vector<128x256xf32> -> vector<128x256xf32>
    %119 = arith.index_cast %arg1 : i32 to index
    %c0_38 = arith.constant 0 : index
    %c0_39 = arith.constant 0 : index
    %120 = vector.load %arg14[%119, %c0_38, %c0_39] : memref<2x1x256xf32, #tpu.memory_space<vmem>>, vector<1x1x256xf32>
    %121 = vector.shape_cast %120 : vector<1x1x256xf32> to vector<1x256xf32>
    %122 = vector.broadcast %121 : vector<1x256xf32> to vector<128x256xf32>
    %123 = arith.addf %118, %122 : vector<128x256xf32>
    %cst_40 = arith.constant 0.000000e+00 : f32
    %124 = vector.broadcast %cst_40 : f32 to vector<128x256xf32>
    %125 = arith.maximumf %123, %124 : vector<128x256xf32>
    %126 = arith.index_cast %arg1 : i32 to index
    %c0_41 = arith.constant 0 : index
    %c0_42 = arith.constant 0 : index
    %127 = vector.load %arg15[%126, %c0_41, %c0_42] : memref<2x256x128xf32, #tpu.memory_space<vmem>>, vector<1x256x128xf32>
    %128 = vector.shape_cast %127 : vector<1x256x128xf32> to vector<256x128xf32>
    %cst_43 = arith.constant dense<0.000000e+00> : vector<128x128xf32>
    %129 = tpu.matmul %125, %128, %cst_43 {dimension_numbers = #tpu.dot_dimension_numbers<[1], [0], [0], [1], [0, 0, 1, 1], [], []>} : vector<128x256xf32>, vector<256x128xf32>, vector<128x128xf32> -> vector<128x128xf32>
    %130 = arith.index_cast %arg1 : i32 to index
    %c0_44 = arith.constant 0 : index
    %c0_45 = arith.constant 0 : index
    %131 = vector.load %arg16[%130, %c0_44, %c0_45] : memref<2x1x128xf32, #tpu.memory_space<vmem>>, vector<1x1x128xf32>
    %132 = vector.shape_cast %131 : vector<1x1x128xf32> to vector<1x128xf32>
    %133 = vector.broadcast %132 : vector<1x128xf32> to vector<128x128xf32>
    %134 = arith.addf %129, %133 : vector<128x128xf32>
    %135 = arith.addf %114, %134 : vector<128x128xf32>
    %cst_46 = arith.constant dense<0.000000e+00> : vector<128xf32>
    %136 = vector.multi_reduction <add>, %135, %cst_46 [1] : vector<128x128xf32> to vector<128xf32>
    %137 = vector.shape_cast %136 : vector<128xf32> to vector<128x1xf32>
    %cst_47 = arith.constant 1.280000e+02 : f32
    %138 = vector.broadcast %cst_47 : f32 to vector<128x1xf32>
    %139 = arith.divf %137, %138 : vector<128x1xf32>
    %140 = vector.broadcast %139 : vector<128x1xf32> to vector<128x128xf32>
    %141 = arith.subf %135, %140 : vector<128x128xf32>
    %142 = arith.mulf %141, %141 : vector<128x128xf32>
    %cst_48 = arith.constant dense<0.000000e+00> : vector<128xf32>
    %143 = vector.multi_reduction <add>, %142, %cst_48 [1] : vector<128x128xf32> to vector<128xf32>
    %144 = vector.shape_cast %143 : vector<128xf32> to vector<128x1xf32>
    %cst_49 = arith.constant 1.280000e+02 : f32
    %145 = vector.broadcast %cst_49 : f32 to vector<128x1xf32>
    %146 = arith.divf %144, %145 : vector<128x1xf32>
    %147 = vector.broadcast %139 : vector<128x1xf32> to vector<128x128xf32>
    %148 = arith.subf %135, %147 : vector<128x128xf32>
    %cst_50 = arith.constant 9.99999974E-6 : f32
    %149 = vector.broadcast %cst_50 : f32 to vector<128x1xf32>
    %150 = arith.addf %146, %149 : vector<128x1xf32>
    %151 = math.rsqrt %150 : vector<128x1xf32>
    %152 = vector.broadcast %151 : vector<128x1xf32> to vector<128x128xf32>
    %153 = arith.mulf %148, %152 : vector<128x128xf32>
    %154 = arith.index_cast %arg1 : i32 to index
    %c0_51 = arith.constant 0 : index
    %c0_52 = arith.constant 0 : index
    %155 = vector.load %arg17[%154, %c0_51, %c0_52] : memref<2x1x128xf32, #tpu.memory_space<vmem>>, vector<1x1x128xf32>
    %156 = vector.shape_cast %155 : vector<1x1x128xf32> to vector<1x128xf32>
    %157 = vector.broadcast %156 : vector<1x128xf32> to vector<128x128xf32>
    %158 = arith.mulf %153, %157 : vector<128x128xf32>
    %159 = arith.index_cast %arg1 : i32 to index
    %c0_53 = arith.constant 0 : index
    %c0_54 = arith.constant 0 : index
    %160 = vector.load %arg18[%159, %c0_53, %c0_54] : memref<2x1x128xf32, #tpu.memory_space<vmem>>, vector<1x1x128xf32>
    %161 = vector.shape_cast %160 : vector<1x1x128xf32> to vector<1x128xf32>
    %162 = vector.broadcast %161 : vector<1x128xf32> to vector<128x128xf32>
    %163 = arith.addf %158, %162 : vector<128x128xf32>
    %c0_55 = arith.constant 0 : index
    %c0_56 = arith.constant 0 : index
    %164 = vector.load %arg19[%c0_55, %c0_56] : memref<128x128xf32, #tpu.memory_space<vmem>>, vector<128x128xf32>
    tpu.vector_store %arg19[%c0_55, %c0_56], %163 {strides = array<i32>} : memref<128x128xf32, #tpu.memory_space<vmem>>, vector<128x128xf32>,
    return
  }
  func.func @transform_0(%arg0: i32, %arg1: i32) -> (i32, i32) {
    %c0_i32 = arith.constant 0 : i32
    %c0_i32_0 = arith.constant 0 : i32
    return %arg0, %c0_i32 : i32, i32
  }
  func.func @transform_1(%arg0: i32, %arg1: i32) -> (i32, i32, i32) {
    %c0_i32 = arith.constant 0 : i32
    %c0_i32_0 = arith.constant 0 : i32
    %c0_i32_1 = arith.constant 0 : i32
    %c0_i32_2 = arith.constant 0 : i32
    return %c0_i32, %c0_i32_0, %c0_i32_1 : i32, i32, i32
  }
  func.func @transform_2(%arg0: i32, %arg1: i32) -> (i32, i32, i32) {
    %c0_i32 = arith.constant 0 : i32
    %c0_i32_0 = arith.constant 0 : i32
    %c0_i32_1 = arith.constant 0 : i32
    %c0_i32_2 = arith.constant 0 : i32
    return %c0_i32, %c0_i32_0, %c0_i32_1 : i32, i32, i32
  }
  func.func @transform_3(%arg0: i32, %arg1: i32) -> (i32, i32, i32) {
    %c0_i32 = arith.constant 0 : i32
    %c0_i32_0 = arith.constant 0 : i32
    %c0_i32_1 = arith.constant 0 : i32
    %c0_i32_2 = arith.constant 0 : i32
    return %c0_i32, %c0_i32_0, %c0_i32_1 : i32, i32, i32
  }
  func.func @transform_4(%arg0: i32, %arg1: i32) -> (i32, i32, i32) {
    %c0_i32 = arith.constant 0 : i32
    %c0_i32_0 = arith.constant 0 : i32
    %c0_i32_1 = arith.constant 0 : i32
    %c0_i32_2 = arith.constant 0 : i32
    return %c0_i32, %c0_i32_0, %c0_i32_1 : i32, i32, i32
  }
  func.func @transform_5(%arg0: i32, %arg1: i32) -> (i32, i32, i32) {
    %c0_i32 = arith.constant 0 : i32
    %c0_i32_0 = arith.constant 0 : i32
    %c0_i32_1 = arith.constant 0 : i32
    %c0_i32_2 = arith.constant 0 : i32
    return %c0_i32, %c0_i32_0, %c0_i32_1 : i32, i32, i32
  }
  func.func @transform_6(%arg0: i32, %arg1: i32) -> (i32, i32, i32) {
    %c0_i32 = arith.constant 0 : i32
    %c0_i32_0 = arith.constant 0 : i32
    %c0_i32_1 = arith.constant 0 : i32
    %c0_i32_2 = arith.constant 0 : i32
    return %c0_i32, %c0_i32_0, %c0_i32_1 : i32, i32, i32
  }
  func.func @transform_7(%arg0: i32, %arg1: i32) -> (i32, i32, i32) {
    %c0_i32 = arith.constant 0 : i32
    %c0_i32_0 = arith.constant 0 : i32
    %c0_i32_1 = arith.constant 0 : i32
    %c0_i32_2 = arith.constant 0 : i32
    return %c0_i32, %c0_i32_0, %c0_i32_1 : i32, i32, i32
  }
  func.func @transform_8(%arg0: i32, %arg1: i32) -> (i32, i32, i32) {
    %c0_i32 = arith.constant 0 : i32
    %c0_i32_0 = arith.constant 0 : i32
    %c0_i32_1 = arith.constant 0 : i32
    %c0_i32_2 = arith.constant 0 : i32
    return %c0_i32, %c0_i32_0, %c0_i32_1 : i32, i32, i32
  }
  func.func @transform_9(%arg0: i32, %arg1: i32) -> (i32, i32, i32) {
    %c0_i32 = arith.constant 0 : i32
    %c0_i32_0 = arith.constant 0 : i32
    %c0_i32_1 = arith.constant 0 : i32
    %c0_i32_2 = arith.constant 0 : i32
    return %c0_i32, %c0_i32_0, %c0_i32_1 : i32, i32, i32
  }
  func.func @transform_10(%arg0: i32, %arg1: i32) -> (i32, i32, i32) {
    %c0_i32 = arith.constant 0 : i32
    %c0_i32_0 = arith.constant 0 : i32
    %c0_i32_1 = arith.constant 0 : i32
    %c0_i32_2 = arith.constant 0 : i32
    return %c0_i32, %c0_i32_0, %c0_i32_1 : i32, i32, i32
  }
  func.func @transform_11(%arg0: i32, %arg1: i32) -> (i32, i32, i32) {
    %c0_i32 = arith.constant 0 : i32
    %c0_i32_0 = arith.constant 0 : i32
    %c0_i32_1 = arith.constant 0 : i32
    %c0_i32_2 = arith.constant 0 : i32
    return %c0_i32, %c0_i32_0, %c0_i32_1 : i32, i32, i32
  }
  func.func @transform_12(%arg0: i32, %arg1: i32) -> (i32, i32, i32) {
    %c0_i32 = arith.constant 0 : i32
    %c0_i32_0 = arith.constant 0 : i32
    %c0_i32_1 = arith.constant 0 : i32
    %c0_i32_2 = arith.constant 0 : i32
    return %c0_i32, %c0_i32_0, %c0_i32_1 : i32, i32, i32
  }
  func.func @transform_13(%arg0: i32, %arg1: i32) -> (i32, i32, i32) {
    %c0_i32 = arith.constant 0 : i32
    %c0_i32_0 = arith.constant 0 : i32
    %c0_i32_1 = arith.constant 0 : i32
    %c0_i32_2 = arith.constant 0 : i32
    return %c0_i32, %c0_i32_0, %c0_i32_1 : i32, i32, i32
  }
  func.func @transform_14(%arg0: i32, %arg1: i32) -> (i32, i32, i32) {
    %c0_i32 = arith.constant 0 : i32
    %c0_i32_0 = arith.constant 0 : i32
    %c0_i32_1 = arith.constant 0 : i32
    %c0_i32_2 = arith.constant 0 : i32
    return %c0_i32, %c0_i32_0, %c0_i32_1 : i32, i32, i32
  }
  func.func @transform_15(%arg0: i32, %arg1: i32) -> (i32, i32, i32) {
    %c0_i32 = arith.constant 0 : i32
    %c0_i32_0 = arith.constant 0 : i32
    %c0_i32_1 = arith.constant 0 : i32
    %c0_i32_2 = arith.constant 0 : i32
    return %c0_i32, %c0_i32_0, %c0_i32_1 : i32, i32, i32
  }
  func.func @transform_16(%arg0: i32, %arg1: i32) -> (i32, i32, i32) {
    %c0_i32 = arith.constant 0 : i32
    %c0_i32_0 = arith.constant 0 : i32
    %c0_i32_1 = arith.constant 0 : i32
    %c0_i32_2 = arith.constant 0 : i32
    return %c0_i32, %c0_i32_0, %c0_i32_1 : i32, i32, i32
  }
  func.func @transform_17(%arg0: i32, %arg1: i32) -> (i32, i32) {
    %c0_i32 = arith.constant 0 : i32
    %c0_i32_0 = arith.constant 0 : i32
    return %arg0, %c0_i32 : i32, i32
  }
}

</mosaic_0001>

<llo_original>
// kernel: encoder_forward_pallas.1
$region0: #{encoder_forward_pallas.1}
  #allocation0 [shape = 'u32[]', space=smem, size = 0x4, offset = 0x4, fixed_abs, tag = 'smem constant byte address 0x4 - core index']
  #allocation1 [shape = 'u32[144,128]{1,0:T(1,128)}', space=vmem, size = 0x12000, scoped, tag = 'internal scratch']
  %s0 = inlined_call_operand.vmem [shape: f32[256,128], index: 0, kind: input, shape index: {}]
  %s1 = inlined_call_operand.vmem [shape: f32[2,128,128], index: 1, kind: input, shape index: {}]
  %s2 = inlined_call_operand.vmem [shape: f32[2,1,128], index: 2, kind: input, shape index: {}]
  %s3 = inlined_call_operand.vmem [shape: f32[2,128,128], index: 3, kind: input, shape index: {}]
  %s4 = inlined_call_operand.vmem [shape: f32[2,1,128], index: 4, kind: input, shape index: {}]
  %s5 = inlined_call_operand.vmem [shape: f32[2,128,128], index: 5, kind: input, shape index: {}]
  %s6 = inlined_call_operand.vmem [shape: f32[2,1,128], index: 6, kind: input, shape index: {}]
  %s7 = inlined_call_operand.vmem [shape: f32[2,128,128], index: 7, kind: input, shape index: {}]
  %s8 = inlined_call_operand.vmem [shape: f32[2,1,128], index: 8, kind: input, shape index: {}]
  %s9 = inlined_call_operand.vmem [shape: f32[2,1,128], index: 9, kind: input, shape index: {}]
  %s10 = inlined_call_operand.vmem [shape: f32[2,1,128], index: 10, kind: input, shape index: {}]
  %s11 = inlined_call_operand.vmem [shape: f32[2,128,256], index: 11, kind: input, shape index: {}]
  %s12 = inlined_call_operand.vmem [shape: f32[2,1,256], index: 12, kind: input, shape index: {}]
  %s13 = inlined_call_operand.vmem [shape: f32[2,256,128], index: 13, kind: input, shape index: {}]
  %s14 = inlined_call_operand.vmem [shape: f32[2,1,128], index: 14, kind: input, shape index: {}]
  %s15 = inlined_call_operand.vmem [shape: f32[2,1,128], index: 15, kind: input, shape index: {}]
  %s16 = inlined_call_operand.vmem [shape: f32[2,1,128], index: 16, kind: input, shape index: {}]
  %s17 = inlined_call_operand.hbm [shape: f32[256,128], index: 17, kind: output, shape index: {}]
  %s18 = sld [smem:[#allocation0]]
  $region105: #{encoder_forward_pallas.1} parent=0
    _
  %s20 = ssub.s32 1, %s18
  %s21 = scalar_select 0, %s20, %s18
  $region1: #{encoder_forward_pallas.1} parent=0
    #allocation2 [shape = 'u8[131072]{0}', space=vmem, size = 0x20000, scoped, tag = 'output window, operand 0']
    #allocation3 [shape = 's32[2]{0}', space=sflag, size = 0x8, scoped, tag = 'scoped memory for encoder_forward_pallas.1']
    %22 = vsyncpa [#allocation3], 0
    %s23 = scalar_lea.sflag [#allocation3], 1
    %24 = vsyncpa %s23, 0
    loop: start=0, step=1, limit=6
    $region2: #{encoder_forward_pallas.1} parent=1 // loop_pre_header
      _
    $region3: #{encoder_forward_pallas.1} parent=1 // loop_header
      %s26 = sphi 0, %s30
      %p27 = scmp.ge.s32.totalorder %s26, 6
      %s33 = sphi 0, %s45
      %s34 = sphi 0, %s41
      %s35 = sphi 0, %s33
      %s36 = sphi 0, %s34
      %s37 = sphi 0, %s35
      %s38 = sphi 0, %s36
      %s48 = sphi 0, %s50
      %s51 = sphi 0, %s48
      %s52 = sphi 0, %s51
      %s68 = sphi 0, %s52
      %s72 = sphi 0, %s72
      %s74 = sphi 0, %s72
      %s75 = sphi 0, %s74
      %s89 = sphi 0, %s75
      %s93 = sphi 0, %s93
      %s95 = sphi 0, %s93
      %s96 = sphi 0, %s95
      %s110 = sphi 0, %s96
      %s114 = sphi 0, %s114
      %s116 = sphi 0, %s114
      %s117 = sphi 0, %s116
      %s131 = sphi 0, %s117
      %s135 = sphi 0, %s135
      %s137 = sphi 0, %s135
      %s138 = sphi 0, %s137
      %s152 = sphi 0, %s138
      %s156 = sphi 0, %s156
      %s158 = sphi 0, %s156
      %s159 = sphi 0, %s158
      %s173 = sphi 0, %s159
      %s177 = sphi 0, %s177
      %s179 = sphi 0, %s177
      %s180 = sphi 0, %s179
      %s194 = sphi 0, %s180
      %s198 = sphi 0, %s198
      %s200 = sphi 0, %s198
      %s201 = sphi 0, %s200
      %s215 = sphi 0, %s201
      %s219 = sphi 0, %s219
      %s221 = sphi 0, %s219
      %s222 = sphi 0, %s221
      %s236 = sphi 0, %s222
      %s240 = sphi 0, %s240
      %s242 = sphi 0, %s240
      %s243 = sphi 0, %s242
      %s257 = sphi 0, %s243
      %s261 = sphi 0, %s261
      %s263 = sphi 0, %s261
      %s264 = sphi 0, %s263
      %s278 = sphi 0, %s264
      %s282 = sphi 0, %s282
      %s284 = sphi 0, %s282
      %s285 = sphi 0, %s284
      %s299 = sphi 0, %s285
      %s303 = sphi 0, %s303
      %s305 = sphi 0, %s303
      %s306 = sphi 0, %s305
      %s320 = sphi 0, %s306
      %s324 = sphi 0, %s324
      %s326 = sphi 0, %s324
      %s327 = sphi 0, %s326
      %s341 = sphi 0, %s327
      %s345 = sphi 0, %s345
      %s347 = sphi 0, %s345
      %s348 = sphi 0, %s347
      %s362 = sphi 0, %s348
      %s366 = sphi 0, %s366
      %s368 = sphi 0, %s366
      %s369 = sphi 0, %s368
      %s383 = sphi 0, %s369
      %s387 = sphi 0, %s387
      %s389 = sphi 0, %s387
      %s390 = sphi 0, %s389
      %s404 = sphi 0, %s390
      %s410 = sphi 0, %s412
      %s413 = sphi 0, %s410
      %s414 = sphi 0, %s413
      %s430 = sphi 0, %s414
    $region4: #{encoder_forward_pallas.1} parent=1 // loop_header_branch
      %29 = sbr.rel (%p27) target = $region8
    $region5: #{encoder_forward_pallas.1} parent=1 // loop_body
      %s31 = ssub.s32 %s26, 1
      %s32 = ssub.s32 %s26, 2
      %s39 = sadd.s32 1, %s34
      %p40 = scmp.ge.s32.totalorder %s39, 2
      %s41 = scalar_select %p40, 0, %s39
      %s42 = sadd.s32 1, %s33
      %s43 = scalar_select %p40, %s42, %s33
      %p44 = scmp.ge.s32.totalorder %s43, 2
      %s45 = scalar_select %p44, 0, %s43
      %s46 = ssub.s32 %s33, %s45
      %p47 = scmp.eq.s32.totalorder %s46, 0
      %s49 = sadd.s32 %s48, 1
      %s50 = scalar_select %p47, %s48, %s49
      %p53 = pneg %p47
      %p54 = scmp.eq.s32.totalorder %s26, 3
      %p55 = por %p53, %p54
      %p56 = scmp.ne.s32.totalorder %s48, %s51
      %p57 = scmp.eq.s32.totalorder %s26, 0
      %p58 = por %p56, %p57
      %p59 = scmp.ne.s32.totalorder %s48, %s51
      %p60 = scmp.eq.s32.totalorder %s31, 3
      %p61 = por %p59, %p60
      %p62 = scmp.ne.s32.totalorder %s51, %s52
      %p63 = scmp.eq.s32.totalorder %s31, 0
      %p64 = por %p62, %p63
      %p65 = scmp.ne.s32.totalorder %s51, %s52
      %p66 = scmp.eq.s32.totalorder %s32, 3
      %p67 = por %p65, %p66
      %p69 = scmp.ne.s32.totalorder %s52, %s68
      %p70 = scmp.eq.s32.totalorder %s32, 0
      %p71 = por %p69, %p70
      %s73 = sadd.s32 %s72, 1
      %p76 = scmp.eq.s32.totalorder %s26, 3
      %p77 = scmp.ne.s32.totalorder %s72, %s74
      %p78 = scmp.eq.s32.totalorder %s26, 0
      %p79 = por %p77, %p78
      %p80 = scmp.ne.s32.totalorder %s72, %s74
      %p81 = scmp.eq.s32.totalorder %s31, 3
      %p82 = por %p80, %p81
      %p83 = scmp.ne.s32.totalorder %s74, %s75
      %p84 = scmp.eq.s32.totalorder %s31, 0
      %p85 = por %p83, %p84
      %p86 = scmp.ne.s32.totalorder %s74, %s75
      %p87 = scmp.eq.s32.totalorder %s32, 3
      %p88 = por %p86, %p87
      %p90 = scmp.ne.s32.totalorder %s75, %s89
      %p91 = scmp.eq.s32.totalorder %s32, 0
      %p92 = por %p90, %p91
      %s94 = sadd.s32 %s93, 1
      %p97 = scmp.eq.s32.totalorder %s26, 3
      %p98 = scmp.ne.s32.totalorder %s93, %s95
      %p99 = scmp.eq.s32.totalorder %s26, 0
      %p100 = por %p98, %p99
      %p101 = scmp.ne.s32.totalorder %s93, %s95
      %p102 = scmp.eq.s32.totalorder %s31, 3
      %p103 = por %p101, %p102
      %p104 = scmp.ne.s32.totalorder %s95, %s96
      %p105 = scmp.eq.s32.totalorder %s31, 0
      %p106 = por %p104, %p105
      %p107 = scmp.ne.s32.totalorder %s95, %s96
      %p108 = scmp.eq.s32.totalorder %s32, 3
      %p109 = por %p107, %p108
      %p111 = scmp.ne.s32.totalorder %s96, %s110
      %p112 = scmp.eq.s32.totalorder %s32, 0
      %p113 = por %p111, %p112
      %s115 = sadd.s32 %s114, 1
      %p118 = scmp.eq.s32.totalorder %s26, 3
      %p119 = scmp.ne.s32.totalorder %s114, %s116
      %p120 = scmp.eq.s32.totalorder %s26, 0
      %p121 = por %p119, %p120
      %p122 = scmp.ne.s32.totalorder %s114, %s116
      %p123 = scmp.eq.s32.totalorder %s31, 3
      %p124 = por %p122, %p123
      %p125 = scmp.ne.s32.totalorder %s116, %s117
      %p126 = scmp.eq.s32.totalorder %s31, 0
      %p127 = por %p125, %p126
      %p128 = scmp.ne.s32.totalorder %s116, %s117
      %p129 = scmp.eq.s32.totalorder %s32, 3
      %p130 = por %p128, %p129
      %p132 = scmp.ne.s32.totalorder %s117, %s131
      %p133 = scmp.eq.s32.totalorder %s32, 0
      %p134 = por %p132, %p133
      %s136 = sadd.s32 %s135, 1
      %p139 = scmp.eq.s32.totalorder %s26, 3
      %p140 = scmp.ne.s32.totalorder %s135, %s137
      %p141 = scmp.eq.s32.totalorder %s26, 0
      %p142 = por %p140, %p141
      %p143 = scmp.ne.s32.totalorder %s135, %s137
      %p144 = scmp.eq.s32.totalorder %s31, 3
      %p145 = por %p143, %p144
      %p146 = scmp.ne.s32.totalorder %s137, %s138
      %p147 = scmp.eq.s32.totalorder %s31, 0
      %p148 = por %p146, %p147
      %p149 = scmp.ne.s32.totalorder %s137, %s138
      %p150 = scmp.eq.s32.totalorder %s32, 3
      %p151 = por %p149, %p150
      %p153 = scmp.ne.s32.totalorder %s138, %s152
      %p154 = scmp.eq.s32.totalorder %s32, 0
      %p155 = por %p153, %p154
      %s157 = sadd.s32 %s156, 1
      %p160 = scmp.eq.s32.totalorder %s26, 3
      %p161 = scmp.ne.s32.totalorder %s156, %s158
      %p162 = scmp.eq.s32.totalorder %s26, 0
      %p163 = por %p161, %p162
      %p164 = scmp.ne.s32.totalorder %s156, %s158
      %p165 = scmp.eq.s32.totalorder %s31, 3
      %p166 = por %p164, %p165
      %p167 = scmp.ne.s32.totalorder %s158, %s159
      %p168 = scmp.eq.s32.totalorder %s31, 0
      %p169 = por %p167, %p168
      %p170 = scmp.ne.s32.totalorder %s158, %s159
      %p171 = scmp.eq.s32.totalorder %s32, 3
      %p172 = por %p170, %p171
      %p174 = scmp.ne.s32.totalorder %s159, %s173
      %p175 = scmp.eq.s32.totalorder %s32, 0
      %p176 = por %p174, %p175
      %s178 = sadd.s32 %s177, 1
      %p181 = scmp.eq.s32.totalorder %s26, 3
      %p182 = scmp.ne.s32.totalorder %s177, %s179
      %p183 = scmp.eq.s32.totalorder %s26, 0
      %p184 = por %p182, %p183
      %p185 = scmp.ne.s32.totalorder %s177, %s179
      %p186 = scmp.eq.s32.totalorder %s31, 3
      %p187 = por %p185, %p186
      %p188 = scmp.ne.s32.totalorder %s179, %s180
      %p189 = scmp.eq.s32.totalorder %s31, 0
      %p190 = por %p188, %p189
      %p191 = scmp.ne.s32.totalorder %s179, %s180
      %p192 = scmp.eq.s32.totalorder %s32, 3
      %p193 = por %p191, %p192
      %p195 = scmp.ne.s32.totalorder %s180, %s194
      %p196 = scmp.eq.s32.totalorder %s32, 0
      %p197 = por %p195, %p196
      %s199 = sadd.s32 %s198, 1
      %p202 = scmp.eq.s32.totalorder %s26, 3
      %p203 = scmp.ne.s32.totalorder %s198, %s200
      %p204 = scmp.eq.s32.totalorder %s26, 0
      %p205 = por %p203, %p204
      %p206 = scmp.ne.s32.totalorder %s198, %s200
      %p207 = scmp.eq.s32.totalorder %s31, 3
      %p208 = por %p206, %p207
      %p209 = scmp.ne.s32.totalorder %s200, %s201
      %p210 = scmp.eq.s32.totalorder %s31, 0
      %p211 = por %p209, %p210
      %p212 = scmp.ne.s32.totalorder %s200, %s201
      %p213 = scmp.eq.s32.totalorder %s32, 3
      %p214 = por %p212, %p213
      %p216 = scmp.ne.s32.totalorder %s201, %s215
      %p217 = scmp.eq.s32.totalorder %s32, 0
      %p218 = por %p216, %p217
      %s220 = sadd.s32 %s219, 1
      %p223 = scmp.eq.s32.totalorder %s26, 3
      %p224 = scmp.ne.s32.totalorder %s219, %s221
      %p225 = scmp.eq.s32.totalorder %s26, 0
      %p226 = por %p224, %p225
      %p227 = scmp.ne.s32.totalorder %s219, %s221
      %p228 = scmp.eq.s32.totalorder %s31, 3
      %p229 = por %p227, %p228
      %p230 = scmp.ne.s32.totalorder %s221, %s222
      %p231 = scmp.eq.s32.totalorder %s31, 0
      %p232 = por %p230, %p231
      %p233 = scmp.ne.s32.totalorder %s221, %s222
      %p234 = scmp.eq.s32.totalorder %s32, 3
      %p235 = por %p233, %p234
      %p237 = scmp.ne.s32.totalorder %s222, %s236
      %p238 = scmp.eq.s32.totalorder %s32, 0
      %p239 = por %p237, %p238
      %s241 = sadd.s32 %s240, 1
      %p244 = scmp.eq.s32.totalorder %s26, 3
      %p245 = scmp.ne.s32.totalorder %s240, %s242
      %p246 = scmp.eq.s32.totalorder %s26, 0
      %p247 = por %p245, %p246
      %p248 = scmp.ne.s32.totalorder %s240, %s242
      %p249 = scmp.eq.s32.totalorder %s31, 3
      %p250 = por %p248, %p249
      %p251 = scmp.ne.s32.totalorder %s242, %s243
      %p252 = scmp.eq.s32.totalorder %s31, 0
      %p253 = por %p251, %p252
      %p254 = scmp.ne.s32.totalorder %s242, %s243
      %p255 = scmp.eq.s32.totalorder %s32, 3
      %p256 = por %p254, %p255
      %p258 = scmp.ne.s32.totalorder %s243, %s257
      %p259 = scmp.eq.s32.totalorder %s32, 0
      %p260 = por %p258, %p259
      %s262 = sadd.s32 %s261, 1
      %p265 = scmp.eq.s32.totalorder %s26, 3
      %p266 = scmp.ne.s32.totalorder %s261, %s263
      %p267 = scmp.eq.s32.totalorder %s26, 0
      %p268 = por %p266, %p267
      %p269 = scmp.ne.s32.totalorder %s261, %s263
      %p270 = scmp.eq.s32.totalorder %s31, 3
      %p271 = por %p269, %p270
      %p272 = scmp.ne.s32.totalorder %s263, %s264
      %p273 = scmp.eq.s32.totalorder %s31, 0
      %p274 = por %p272, %p273
      %p275 = scmp.ne.s32.totalorder %s263, %s264
      %p276 = scmp.eq.s32.totalorder %s32, 3
      %p277 = por %p275, %p276
      %p279 = scmp.ne.s32.totalorder %s264, %s278
      %p280 = scmp.eq.s32.totalorder %s32, 0
      %p281 = por %p279, %p280
      %s283 = sadd.s32 %s282, 1
      %p286 = scmp.eq.s32.totalorder %s26, 3
      %p287 = scmp.ne.s32.totalorder %s282, %s284
      %p288 = scmp.eq.s32.totalorder %s26, 0
      %p289 = por %p287, %p288
      %p290 = scmp.ne.s32.totalorder %s282, %s284
      %p291 = scmp.eq.s32.totalorder %s31, 3
      %p292 = por %p290, %p291
      %p293 = scmp.ne.s32.totalorder %s284, %s285
      %p294 = scmp.eq.s32.totalorder %s31, 0
      %p295 = por %p293, %p294
      %p296 = scmp.ne.s32.totalorder %s284, %s285
      %p297 = scmp.eq.s32.totalorder %s32, 3
      %p298 = por %p296, %p297
      %p300 = scmp.ne.s32.totalorder %s285, %s299
      %p301 = scmp.eq.s32.totalorder %s32, 0
      %p302 = por %p300, %p301
      %s304 = sadd.s32 %s303, 1
      %p307 = scmp.eq.s32.totalorder %s26, 3
      %p308 = scmp.ne.s32.totalorder %s303, %s305
      %p309 = scmp.eq.s32.totalorder %s26, 0
      %p310 = por %p308, %p309
      %p311 = scmp.ne.s32.totalorder %s303, %s305
      %p312 = scmp.eq.s32.totalorder %s31, 3
      %p313 = por %p311, %p312
      %p314 = scmp.ne.s32.totalorder %s305, %s306
      %p315 = scmp.eq.s32.totalorder %s31, 0
      %p316 = por %p314, %p315
      %p317 = scmp.ne.s32.totalorder %s305, %s306
      %p318 = scmp.eq.s32.totalorder %s32, 3
      %p319 = por %p317, %p318
      %p321 = scmp.ne.s32.totalorder %s306, %s320
      %p322 = scmp.eq.s32.totalorder %s32, 0
      %p323 = por %p321, %p322
      %s325 = sadd.s32 %s324, 1
      %p328 = scmp.eq.s32.totalorder %s26, 3
      %p329 = scmp.ne.s32.totalorder %s324, %s326
      %p330 = scmp.eq.s32.totalorder %s26, 0
      %p331 = por %p329, %p330
      %p332 = scmp.ne.s32.totalorder %s324, %s326
      %p333 = scmp.eq.s32.totalorder %s31, 3
      %p334 = por %p332, %p333
      %p335 = scmp.ne.s32.totalorder %s326, %s327
      %p336 = scmp.eq.s32.totalorder %s31, 0
      %p337 = por %p335, %p336
      %p338 = scmp.ne.s32.totalorder %s326, %s327
      %p339 = scmp.eq.s32.totalorder %s32, 3
      %p340 = por %p338, %p339
      %p342 = scmp.ne.s32.totalorder %s327, %s341
      %p343 = scmp.eq.s32.totalorder %s32, 0
      %p344 = por %p342, %p343
      %s346 = sadd.s32 %s345, 1
      %p349 = scmp.eq.s32.totalorder %s26, 3
      %p350 = scmp.ne.s32.totalorder %s345, %s347
      %p351 = scmp.eq.s32.totalorder %s26, 0
      %p352 = por %p350, %p351
      %p353 = scmp.ne.s32.totalorder %s345, %s347
      %p354 = scmp.eq.s32.totalorder %s31, 3
      %p355 = por %p353, %p354
      %p356 = scmp.ne.s32.totalorder %s347, %s348
      %p357 = scmp.eq.s32.totalorder %s31, 0
      %p358 = por %p356, %p357
      %p359 = scmp.ne.s32.totalorder %s347, %s348
      %p360 = scmp.eq.s32.totalorder %s32, 3
      %p361 = por %p359, %p360
      %p363 = scmp.ne.s32.totalorder %s348, %s362
      %p364 = scmp.eq.s32.totalorder %s32, 0
      %p365 = por %p363, %p364
      %s367 = sadd.s32 %s366, 1
      %p370 = scmp.eq.s32.totalorder %s26, 3
      %p371 = scmp.ne.s32.totalorder %s366, %s368
      %p372 = scmp.eq.s32.totalorder %s26, 0
      %p373 = por %p371, %p372
      %p374 = scmp.ne.s32.totalorder %s366, %s368
      %p375 = scmp.eq.s32.totalorder %s31, 3
      %p376 = por %p374, %p375
      %p377 = scmp.ne.s32.totalorder %s368, %s369
      %p378 = scmp.eq.s32.totalorder %s31, 0
      %p379 = por %p377, %p378
      %p380 = scmp.ne.s32.totalorder %s368, %s369
      %p381 = scmp.eq.s32.totalorder %s32, 3
      %p382 = por %p380, %p381
      %p384 = scmp.ne.s32.totalorder %s369, %s383
      %p385 = scmp.eq.s32.totalorder %s32, 0
      %p386 = por %p384, %p385
      %s388 = sadd.s32 %s387, 1
      %p391 = scmp.eq.s32.totalorder %s26, 3
      %p392 = scmp.ne.s32.totalorder %s387, %s389
      %p393 = scmp.eq.s32.totalorder %s26, 0
      %p394 = por %p392, %p393
      %p395 = scmp.ne.s32.totalorder %s387, %s389
      %p396 = scmp.eq.s32.totalorder %s31, 3
      %p397 = por %p395, %p396
      %p398 = scmp.ne.s32.totalorder %s389, %s390
      %p399 = scmp.eq.s32.totalorder %s31, 0
      %p400 = por %p398, %p399
      %p401 = scmp.ne.s32.totalorder %s389, %s390
      %p402 = scmp.eq.s32.totalorder %s32, 3
      %p403 = por %p401, %p402
      %p405 = scmp.ne.s32.totalorder %s390, %s404
      %p406 = scmp.eq.s32.totalorder %s32, 0
      %p407 = por %p405, %p406
      %s408 = ssub.s32 %s33, %s45
      %p409 = scmp.eq.s32.totalorder %s408, 0
      %s411 = sadd.s32 %s410, 1
      %s412 = scalar_select %p409, %s410, %s411
      %p415 = pneg %p409
      %p416 = scmp.eq.s32.totalorder %s26, 3
      %p417 = por %p415, %p416
      %p418 = scmp.ne.s32.totalorder %s410, %s413
      %p419 = scmp.eq.s32.totalorder %s26, 0
      %p420 = por %p418, %p419
      %p421 = scmp.ne.s32.totalorder %s410, %s413
      %p422 = scmp.eq.s32.totalorder %s31, 3
      %p423 = por %p421, %p422
      %p424 = scmp.ne.s32.totalorder %s413, %s414
      %p425 = scmp.eq.s32.totalorder %s31, 0
      %p426 = por %p424, %p425
      %p427 = scmp.ne.s32.totalorder %s413, %s414
      %p428 = scmp.eq.s32.totalorder %s32, 3
      %p429 = por %p427, %p428
      %p431 = scmp.ne.s32.totalorder %s414, %s430
      %p432 = scmp.eq.s32.totalorder %s32, 0
      %p433 = por %p431, %p432
      %p434 = scmp.le.s32.totalorder 1, %s26
      %p435 = scmp.lt.s32.totalorder %s26, 5
      %p436 = pnand %p434, %p435
      %p437 = pneg %p436
      // Predicated region
      $region9: #{encoder_forward_pallas.1} parent=5 // pred_check
        _
      $region10: #{encoder_forward_pallas.1} parent=5 // pred_check_branch
        %439 = sbr.rel (%p436) target = $region12
      $region11: #{encoder_forward_pallas.1} parent=5 // pred_region
        %s440 = ssub.s32 %s26, 1
        // Predicated region
        $region13: #{encoder_forward_pallas.1} parent=11 // pred_check
          %p441 = pneg %p85
        $region14: #{encoder_forward_pallas.1} parent=11 // pred_check_branch
          %443 = sbr.rel (%p441) target = $region16
        $region15: #{encoder_forward_pallas.1} parent=11 // pred_region
          _
        $region16: #{encoder_forward_pallas.1} parent=11 // pred_fallthru
          _
        // Predicated region
        $region17: #{encoder_forward_pallas.1} parent=11 // pred_check
          %p444 = pneg %p106
        $region18: #{encoder_forward_pallas.1} parent=11 // pred_check_branch
          %446 = sbr.rel (%p444) target = $region20
        $region19: #{encoder_forward_pallas.1} parent=11 // pred_region
          _
        $region20: #{encoder_forward_pallas.1} parent=11 // pred_fallthru
          _
        // Predicated region
        $region21: #{encoder_forward_pallas.1} parent=11 // pred_check
          %p447 = pneg %p127
        $region22: #{encoder_forward_pallas.1} parent=11 // pred_check_branch
          %449 = sbr.rel (%p447) target = $region24
        $region23: #{encoder_forward_pallas.1} parent=11 // pred_region
          _
        $region24: #{encoder_forward_pallas.1} parent=11 // pred_fallthru
          _
        // Predicated region
        $region25: #{encoder_forward_pallas.1} parent=11 // pred_check
          %p450 = pneg %p148
        $region26: #{encoder_forward_pallas.1} parent=11 // pred_check_branch
          %452 = sbr.rel (%p450) target = $region28
        $region27: #{encoder_forward_pallas.1} parent=11 // pred_region
          _
        $region28: #{encoder_forward_pallas.1} parent=11 // pred_fallthru
          _
        // Predicated region
        $region29: #{encoder_forward_pallas.1} parent=11 // pred_check
          %p453 = pneg %p169
        $region30: #{encoder_forward_pallas.1} parent=11 // pred_check_branch
          %455 = sbr.rel (%p453) target = $region32
        $region31: #{encoder_forward_pallas.1} parent=11 // pred_region
          _
        $region32: #{encoder_forward_pallas.1} parent=11 // pred_fallthru
          _
        // Predicated region
        $region33: #{encoder_forward_pallas.1} parent=11 // pred_check
          %p456 = pneg %p190
        $region34: #{encoder_forward_pallas.1} parent=11 // pred_check_branch
          %458 = sbr.rel (%p456) target = $region36
        $region35: #{encoder_forward_pallas.1} parent=11 // pred_region
          _
        $region36: #{encoder_forward_pallas.1} parent=11 // pred_fallthru
          _
        // Predicated region
        $region37: #{encoder_forward_pallas.1} parent=11 // pred_check
          %p459 = pneg %p211
        $region38: #{encoder_forward_pallas.1} parent=11 // pred_check_branch
          %461 = sbr.rel (%p459) target = $region40
        $region39: #{encoder_forward_pallas.1} parent=11 // pred_region
          _
        $region40: #{encoder_forward_pallas.1} parent=11 // pred_fallthru
          _
        // Predicated region
        $region41: #{encoder_forward_pallas.1} parent=11 // pred_check
          %p462 = pneg %p232
        $region42: #{encoder_forward_pallas.1} parent=11 // pred_check_branch
          %464 = sbr.rel (%p462) target = $region44
        $region43: #{encoder_forward_pallas.1} parent=11 // pred_region
          _
        $region44: #{encoder_forward_pallas.1} parent=11 // pred_fallthru
          _
        // Predicated region
        $region45: #{encoder_forward_pallas.1} parent=11 // pred_check
          %p465 = pneg %p253
        $region46: #{encoder_forward_pallas.1} parent=11 // pred_check_branch
          %467 = sbr.rel (%p465) target = $region48
        $region47: #{encoder_forward_pallas.1} parent=11 // pred_region
          _
        $region48: #{encoder_forward_pallas.1} parent=11 // pred_fallthru
          _
        // Predicated region
        $region49: #{encoder_forward_pallas.1} parent=11 // pred_check
          %p468 = pneg %p274
        $region50: #{encoder_forward_pallas.1} parent=11 // pred_check_branch
          %470 = sbr.rel (%p468) target = $region52
        $region51: #{encoder_forward_pallas.1} parent=11 // pred_region
          _
        $region52: #{encoder_forward_pallas.1} parent=11 // pred_fallthru
          _
        // Predicated region
        $region53: #{encoder_forward_pallas.1} parent=11 // pred_check
          %p471 = pneg %p295
        $region54: #{encoder_forward_pallas.1} parent=11 // pred_check_branch
          %473 = sbr.rel (%p471) target = $region56
        $region55: #{encoder_forward_pallas.1} parent=11 // pred_region
          _
        $region56: #{encoder_forward_pallas.1} parent=11 // pred_fallthru
          _
        // Predicated region
        $region57: #{encoder_forward_pallas.1} parent=11 // pred_check
          %p474 = pneg %p316
        $region58: #{encoder_forward_pallas.1} parent=11 // pred_check_branch
          %476 = sbr.rel (%p474) target = $region60
        $region59: #{encoder_forward_pallas.1} parent=11 // pred_region
          _
        $region60: #{encoder_forward_pallas.1} parent=11 // pred_fallthru
          _
        // Predicated region
        $region61: #{encoder_forward_pallas.1} parent=11 // pred_check
          %p477 = pneg %p337
        $region62: #{encoder_forward_pallas.1} parent=11 // pred_check_branch
          %479 = sbr.rel (%p477) target = $region64
        $region63: #{encoder_forward_pallas.1} parent=11 // pred_region
          _
        $region64: #{encoder_forward_pallas.1} parent=11 // pred_fallthru
          _
        // Predicated region
        $region65: #{encoder_forward_pallas.1} parent=11 // pred_check
          %p480 = pneg %p358
        $region66: #{encoder_forward_pallas.1} parent=11 // pred_check_branch
          %482 = sbr.rel (%p480) target = $region68
        $region67: #{encoder_forward_pallas.1} parent=11 // pred_region
          _
        $region68: #{encoder_forward_pallas.1} parent=11 // pred_fallthru
          _
        // Predicated region
        $region69: #{encoder_forward_pallas.1} parent=11 // pred_check
          %p483 = pneg %p379
        $region70: #{encoder_forward_pallas.1} parent=11 // pred_check_branch
          %485 = sbr.rel (%p483) target = $region72
        $region71: #{encoder_forward_pallas.1} parent=11 // pred_region
          _
        $region72: #{encoder_forward_pallas.1} parent=11 // pred_fallthru
          _
        // Predicated region
        $region73: #{encoder_forward_pallas.1} parent=11 // pred_check
          %p486 = pneg %p400
        $region74: #{encoder_forward_pallas.1} parent=11 // pred_check_branch
          %488 = sbr.rel (%p486) target = $region76
        $region75: #{encoder_forward_pallas.1} parent=11 // pred_region
          _
        $region76: #{encoder_forward_pallas.1} parent=11 // pred_fallthru
          _
      $region12: #{encoder_forward_pallas.1} parent=5 // pred_fallthru
        _
      %p489 = scmp.lt.s32.totalorder %s26, 4
      // Predicated region
      $region77: #{encoder_forward_pallas.1} parent=5 // pred_check
        %p490 = pneg %p489
      $region78: #{encoder_forward_pallas.1} parent=5 // pred_check_branch
        %492 = sbr.rel (%p490) target = $region80
      $region79: #{encoder_forward_pallas.1} parent=5 // pred_region
        // Predicated region
        $region81: #{encoder_forward_pallas.1} parent=79 // pred_check
          %p493 = pneg %p58
        $region82: #{encoder_forward_pallas.1} parent=79 // pred_check_branch
          %495 = sbr.rel (%p493) target = $region84
        $region83: #{encoder_forward_pallas.1} parent=79 // pred_region
          %s496 = smul.u32 16, %s33
          %p497 = scmp.lt.s32.totalorder %s496, 31
          %s498 = scalar_select %p497, %s496, 31
          %s499 = smul.addr %s498, 8
          %s500 = scalar_lea.vmem %s0, %s499
          %s501 = smul.u32 16, %s33
        $region84: #{encoder_forward_pallas.1} parent=79 // pred_fallthru
          _
      $region80: #{encoder_forward_pallas.1} parent=5 // pred_fallthru
        _
      %p502 = scmp.le.s32.totalorder 1, %s26
      %p503 = scmp.lt.s32.totalorder %s26, 5
      %p504 = pnand %p502, %p503
      %p505 = pneg %p504
      // Predicated region
      $region85: #{encoder_forward_pallas.1} parent=5 // pred_check
        _
      $region86: #{encoder_forward_pallas.1} parent=5 // pred_check_branch
        %507 = sbr.rel (%p504) target = $region88
      $region87: #{encoder_forward_pallas.1} parent=5 // pred_region
        %s508 = ssub.s32 %s26, 1
        %s509 = smul.u32 16, %s35
        %p510 = scmp.lt.s32.totalorder %s509, 31
        %s511 = scalar_select %p510, %s509, 31
        %s512 = smul.addr %s511, 8
        %s513 = scalar_lea.vmem %s0, %s512
        %p514 = pneg %p64
        %p515 = pneg %p61
        %p516 = pneg %p85
        %p517 = pneg %p82
        %p518 = pneg %p106
        %p519 = pneg %p103
        %p520 = pneg %p127
        %p521 = pneg %p124
        %p522 = pneg %p148
        %p523 = pneg %p145
        %p524 = pneg %p169
        %p525 = pneg %p166
        %p526 = pneg %p190
        %p527 = pneg %p187
        %p528 = pneg %p211
        %p529 = pneg %p208
        %p530 = pneg %p232
        %p531 = pneg %p229
        %p532 = pneg %p253
        %p533 = pneg %p250
        %p534 = pneg %p274
        %p535 = pneg %p271
        %p536 = pneg %p295
        %p537 = pneg %p292
        %p538 = pneg %p316
        %p539 = pneg %p313
        %p540 = pneg %p337
        %p541 = pneg %p334
        %p542 = pneg %p358
        %p543 = pneg %p355
        %p544 = pneg %p379
        %p545 = pneg %p376
        %p546 = pneg %p400
        %p547 = pneg %p397
        %p548 = pneg %p426
        %p549 = pneg %p423
        %s550 = sand.u32 %s413, 1
        %s551 = scalar_lea.sflag [#allocation3], %s550
        %s552 = sand.u32 %s413, 1
        %s553 = smul.addr %s552, 128
        %s554 = scalar_lea.vmem [#allocation2], %s553
        %s555 = smul.u32 16, %s35
        %p556 = scmp.lt.s32.totalorder %s555, 31
        %s557 = scalar_select %p556, %s555, 31
        %s558 = smul.addr %s557, 8
        %s559 = scalar_lea.vmem %s0, %s558
        %s560 = smul.u32 16, %s35
        %s561 = smul.u32 16, %s35
        %p562 = scmp.eq.s32.totalorder %s36, 0
        // Predicated region
        $region89: #{encoder_forward_pallas.1} parent=87 // pred_check
          %p563 = pneg %p562
        $region90: #{encoder_forward_pallas.1} parent=87 // pred_check_branch
          %565 = sbr.rel (%p563) target = $region92
        $region91: #{encoder_forward_pallas.1} parent=87 // pred_region
          %v566 = vld [vmem:[%s559] sm:$0xff]
          %v567 = vld [vmem:[%s559 + $0x8] sm:$0xff]
          %v568 = vld [vmem:[%s559 + $0x10] sm:$0xff]
          %v569 = vld [vmem:[%s559 + $0x18] sm:$0xff]
          %v570 = vld [vmem:[%s559 + $0x20] sm:$0xff]
          %v571 = vld [vmem:[%s559 + $0x28] sm:$0xff]
          %v572 = vld [vmem:[%s559 + $0x30] sm:$0xff]
          %v573 = vld [vmem:[%s559 + $0x38] sm:$0xff]
          %v574 = vld [vmem:[%s559 + $0x40] sm:$0xff]
          %v575 = vld [vmem:[%s559 + $0x48] sm:$0xff]
          %v576 = vld [vmem:[%s559 + $0x50] sm:$0xff]
          %v577 = vld [vmem:[%s559 + $0x58] sm:$0xff]
          %v578 = vld [vmem:[%s559 + $0x60] sm:$0xff]
          %v579 = vld [vmem:[%s559 + $0x68] sm:$0xff]
          %v580 = vld [vmem:[%s559 + $0x70] sm:$0xff]
          %v581 = vld [vmem:[%s559 + $0x78] sm:$0xff]
          %582 = vst [vmem:[%s554] sm:$0xff] %v566
          %583 = vst [vmem:[%s554 + $0x8] sm:$0xff] %v567
          %584 = vst [vmem:[%s554 + $0x10] sm:$0xff] %v568
          %585 = vst [vmem:[%s554 + $0x18] sm:$0xff] %v569
          %586 = vst [vmem:[%s554 + $0x20] sm:$0xff] %v570
          %587 = vst [vmem:[%s554 + $0x28] sm:$0xff] %v571
          %588 = vst [vmem:[%s554 + $0x30] sm:$0xff] %v572
          %589 = vst [vmem:[%s554 + $0x38] sm:$0xff] %v573
          %590 = vst [vmem:[%s554 + $0x40] sm:$0xff] %v574
          %591 = vst [vmem:[%s554 + $0x48] sm:$0xff] %v575
          %592 = vst [vmem:[%s554 + $0x50] sm:$0xff] %v576
          %593 = vst [vmem:[%s554 + $0x58] sm:$0xff] %v577
          %594 = vst [vmem:[%s554 + $0x60] sm:$0xff] %v578
          %595 = vst [vmem:[%s554 + $0x68] sm:$0xff] %v579
          %596 = vst [vmem:[%s554 + $0x70] sm:$0xff] %v580
          %597 = vst [vmem:[%s554 + $0x78] sm:$0xff] %v581
        $region92: #{encoder_forward_pallas.1} parent=87 // pred_fallthru
          _
        %v598 = vld [vmem:[%s554] sm:$0xff]
        %v599 = vld [vmem:[%s554 + $0x8] sm:$0xff]
        %v600 = vld [vmem:[%s554 + $0x10] sm:$0xff]
        %v601 = vld [vmem:[%s554 + $0x18] sm:$0xff]
        %v602 = vld [vmem:[%s554 + $0x20] sm:$0xff]
        %v603 = vld [vmem:[%s554 + $0x28] sm:$0xff]
        %v604 = vld [vmem:[%s554 + $0x30] sm:$0xff]
        %v605 = vld [vmem:[%s554 + $0x38] sm:$0xff]
        %v606 = vld [vmem:[%s554 + $0x40] sm:$0xff]
        %v607 = vld [vmem:[%s554 + $0x48] sm:$0xff]
        %v608 = vld [vmem:[%s554 + $0x50] sm:$0xff]
        %v609 = vld [vmem:[%s554 + $0x58] sm:$0xff]
        %v610 = vld [vmem:[%s554 + $0x60] sm:$0xff]
        %v611 = vld [vmem:[%s554 + $0x68] sm:$0xff]
        %v612 = vld [vmem:[%s554 + $0x70] sm:$0xff]
        %v613 = vld [vmem:[%s554 + $0x78] sm:$0xff]
        %s614 = smul.u32 %s36, 128
        %s615 = scalar_lea.vmem %s1, %s614
        %v616 = vld [vmem:[%s615] sm:$0xff]
        %v617 = vld [vmem:[%s615 + $0x8] sm:$0xff]
        %v618 = vld [vmem:[%s615 + $0x10] sm:$0xff]
        %v619 = vld [vmem:[%s615 + $0x18] sm:$0xff]
        %v620 = vld [vmem:[%s615 + $0x20] sm:$0xff]
        %v621 = vld [vmem:[%s615 + $0x28] sm:$0xff]
        %v622 = vld [vmem:[%s615 + $0x30] sm:$0xff]
        %v623 = vld [vmem:[%s615 + $0x38] sm:$0xff]
        %v624 = vld [vmem:[%s615 + $0x40] sm:$0xff]
        %v625 = vld [vmem:[%s615 + $0x48] sm:$0xff]
        %v626 = vld [vmem:[%s615 + $0x50] sm:$0xff]
        %v627 = vld [vmem:[%s615 + $0x58] sm:$0xff]
        %v628 = vld [vmem:[%s615 + $0x60] sm:$0xff]
        %v629 = vld [vmem:[%s615 + $0x68] sm:$0xff]
        %v630 = vld [vmem:[%s615 + $0x70] sm:$0xff]
        %v631 = vld [vmem:[%s615 + $0x78] sm:$0xff]
        %s632 = scalar_lea.vmem %s2, %s36
        %v633 = vld [vmem:[%s632] sm:$0x1]
        %v635 = vlaneseq
        %v636 = vshrl.u32 %v635, 7
        %v637 = vsub.s32 0, %v636
        %v638 = vrot.slane %v633, %v637
        %640 = vmatprep.subr.mxu0 0.0
        %641 = vmatpush1.msra.mxu0 %v631
        %642 = vmatprep.subr.mxu0 0.0
        %643 = vmatpush1.msra.mxu0 %v630
        %644 = vmatprep.subr.mxu0 0.0
        %645 = vmatpush1.msra.mxu0 %v629
        %646 = vmatprep.subr.mxu0 0.0
        %647 = vmatpush1.msra.mxu0 %v628
        %648 = vmatprep.subr.mxu0 0.0
        %649 = vmatpush1.msra.mxu0 %v627
        %650 = vmatprep.subr.mxu0 0.0
        %651 = vmatpush1.msra.mxu0 %v626
        %652 = vmatprep.subr.mxu0 0.0
        %653 = vmatpush1.msra.mxu0 %v625
        %654 = vmatprep.subr.mxu0 0.0
        %655 = vmatpush1.msra.mxu0 %v624
        %656 = vmatprep.subr.mxu0 0.0
        %657 = vmatpush1.msra.mxu0 %v623
        %658 = vmatprep.subr.mxu0 0.0
        %659 = vmatpush1.msra.mxu0 %v622
        %660 = vmatprep.subr.mxu0 0.0
        %661 = vmatpush1.msra.mxu0 %v621
        %662 = vmatprep.subr.mxu0 0.0
        %663 = vmatpush1.msra.mxu0 %v620
        %664 = vmatprep.subr.mxu0 0.0
        %665 = vmatpush1.msra.mxu0 %v619
        %666 = vmatprep.subr.mxu0 0.0
        %667 = vmatpush1.msra.mxu0 %v618
        %668 = vmatprep.subr.mxu0 0.0
        %669 = vmatpush1.msra.mxu0 %v617
        %670 = vmatprep.subr.mxu0 0.0
        %671 = vmatpush1.msra.mxu0 %v616
        %672 = vmatprep.subr.mxu0 0.0
        %673 = vmatpush2.msra.mxu0 0.0
        %674 = vmatprep.subr.mxu0 0.0
        %675 = vmatpush2.msra.mxu0 0.0
        %676 = vmatprep.subr.mxu0 0.0
        %677 = vmatpush2.msra.mxu0 0.0
        %678 = vmatprep.subr.mxu0 0.0
        %679 = vmatpush2.msra.mxu0 0.0
        %680 = vmatprep.subr.mxu0 0.0
        %681 = vmatpush2.msra.mxu0 0.0
        %682 = vmatprep.subr.mxu0 0.0
        %683 = vmatpush2.msra.mxu0 0.0
        %684 = vmatprep.subr.mxu0 0.0
        %685 = vmatpush2.msra.mxu0 0.0
        %686 = vmatprep.subr.mxu0 0.0
        %687 = vmatpush2.msra.mxu0 0.0
        %688 = vmatprep.subr.mxu0 0.0
        %689 = vmatpush2.msra.mxu0 0.0
        %690 = vmatprep.subr.mxu0 0.0
        %691 = vmatpush2.msra.mxu0 0.0
        %692 = vmatprep.subr.mxu0 0.0
        %693 = vmatpush2.msra.mxu0 0.0
        %694 = vmatprep.subr.mxu0 0.0
        %695 = vmatpush2.msra.mxu0 0.0
        %696 = vmatprep.subr.mxu0 0.0
        %697 = vmatpush2.msra.mxu0 0.0
        %698 = vmatprep.subr.mxu0 0.0
        %699 = vmatpush2.msra.mxu0 0.0
        %700 = vmatprep.subr.mxu0 0.0
        %701 = vmatpush2.msra.mxu0 0.0
        %702 = vmatprep.subr.mxu0 0.0
        %703 = vmatpush2.msra.mxu0 0.0
        %704 = vmatprep.mubr.f32.mxu0 0.0
        %705 = vmatmul.mubr.f32.gmra.mxu0 %v598
        %v706 = vpop.f32.mrf.mxu0
        %v707 = vadd.f32 %v638, %v706
        %v708 = vpop.f32.mrf.mxu0
        %709 = vmatprep.mubr.f32.mxu0 0.0
        %710 = vmatmul.mubr.f32.gmra.mxu0 %v599
        %v711 = vpop.f32.mrf.mxu0
        %v712 = vadd.f32 %v638, %v711
        %v713 = vpop.f32.mrf.mxu0
        %714 = vmatprep.mubr.f32.mxu0 0.0
        %715 = vmatmul.mubr.f32.gmra.mxu0 %v600
        %v716 = vpop.f32.mrf.mxu0
        %v717 = vadd.f32 %v638, %v716
        %v718 = vpop.f32.mrf.mxu0
        %719 = vmatprep.mubr.f32.mxu0 0.0
        %720 = vmatmul.mubr.f32.gmra.mxu0 %v601
        %v721 = vpop.f32.mrf.mxu0
        %v722 = vadd.f32 %v638, %v721
        %v723 = vpop.f32.mrf.mxu0
        %724 = vmatprep.mubr.f32.mxu0 0.0
        %725 = vmatmul.mubr.f32.gmra.mxu0 %v602
        %v726 = vpop.f32.mrf.mxu0
        %v727 = vadd.f32 %v638, %v726
        %v728 = vpop.f32.mrf.mxu0
        %729 = vmatprep.mubr.f32.mxu0 0.0
        %730 = vmatmul.mubr.f32.gmra.mxu0 %v603
        %v731 = vpop.f32.mrf.mxu0
        %v732 = vadd.f32 %v638, %v731
        %v733 = vpop.f32.mrf.mxu0
        %734 = vmatprep.mubr.f32.mxu0 0.0
        %735 = vmatmul.mubr.f32.gmra.mxu0 %v604
        %v736 = vpop.f32.mrf.mxu0
        %v737 = vadd.f32 %v638, %v736
        %v738 = vpop.f32.mrf.mxu0
        %739 = vmatprep.mubr.f32.mxu0 0.0
        %740 = vmatmul.mubr.f32.gmra.mxu0 %v605
        %v741 = vpop.f32.mrf.mxu0
        %v742 = vadd.f32 %v638, %v741
        %v743 = vpop.f32.mrf.mxu0
        %744 = vmatprep.mubr.f32.mxu0 0.0
        %745 = vmatmul.mubr.f32.gmra.mxu0 %v606
        %v746 = vpop.f32.mrf.mxu0
        %v747 = vadd.f32 %v638, %v746
        %v748 = vpop.f32.mrf.mxu0
        %749 = vmatprep.mubr.f32.mxu0 0.0
        %750 = vmatmul.mubr.f32.gmra.mxu0 %v607
        %v751 = vpop.f32.mrf.mxu0
        %v752 = vadd.f32 %v638, %v751
        %v753 = vpop.f32.mrf.mxu0
        %754 = vmatprep.mubr.f32.mxu0 0.0
        %755 = vmatmul.mubr.f32.gmra.mxu0 %v608
        %v756 = vpop.f32.mrf.mxu0
        %v757 = vadd.f32 %v638, %v756
        %v758 = vpop.f32.mrf.mxu0
        %759 = vmatprep.mubr.f32.mxu0 0.0
        %760 = vmatmul.mubr.f32.gmra.mxu0 %v609
        %v761 = vpop.f32.mrf.mxu0
        %v762 = vadd.f32 %v638, %v761
        %v763 = vpop.f32.mrf.mxu0
        %764 = vmatprep.mubr.f32.mxu0 0.0
        %765 = vmatmul.mubr.f32.gmra.mxu0 %v610
        %v766 = vpop.f32.mrf.mxu0
        %v767 = vadd.f32 %v638, %v766
        %v768 = vpop.f32.mrf.mxu0
        %769 = vmatprep.mubr.f32.mxu0 0.0
        %770 = vmatmul.mubr.f32.gmra.mxu0 %v611
        %v771 = vpop.f32.mrf.mxu0
        %v772 = vadd.f32 %v638, %v771
        %v773 = vpop.f32.mrf.mxu0
        %774 = vmatprep.mubr.f32.mxu0 0.0
        %775 = vmatmul.mubr.f32.gmra.mxu0 %v612
        %v776 = vpop.f32.mrf.mxu0
        %v777 = vadd.f32 %v638, %v776
        %v778 = vpop.f32.mrf.mxu0
        %779 = vmatprep.mubr.f32.mxu0 0.0
        %780 = vmatmul.mubr.f32.gmra.mxu0 %v613
        %v781 = vpop.f32.mrf.mxu0
        %v782 = vadd.f32 %v638, %v781
        %v783 = vpop.f32.mrf.mxu0
        %784 = vdwg.mxu0
        %v785 = vmul.f32 %v707, 0.088388346
        %v786 = vmul.f32 %v712, 0.088388346
        %v787 = vmul.f32 %v717, 0.088388346
        %v788 = vmul.f32 %v722, 0.088388346
        %v789 = vmul.f32 %v727, 0.088388346
        %v790 = vmul.f32 %v732, 0.088388346
        %v791 = vmul.f32 %v737, 0.088388346
        %v792 = vmul.f32 %v742, 0.088388346
        %v793 = vmul.f32 %v747, 0.088388346
        %v794 = vmul.f32 %v752, 0.088388346
        %v795 = vmul.f32 %v757, 0.088388346
        %v796 = vmul.f32 %v762, 0.088388346
        %v797 = vmul.f32 %v767, 0.088388346
        %v798 = vmul.f32 %v772, 0.088388346
        %v799 = vmul.f32 %v777, 0.088388346
        %v800 = vmul.f32 %v782, 0.088388346
        %s801 = scalar_lea.vmem %s3, %s614
        %v802 = vld [vmem:[%s801] sm:$0xff]
        %v803 = vld [vmem:[%s801 + $0x8] sm:$0xff]
        %v804 = vld [vmem:[%s801 + $0x10] sm:$0xff]
        %v805 = vld [vmem:[%s801 + $0x18] sm:$0xff]
        %v806 = vld [vmem:[%s801 + $0x20] sm:$0xff]
        %v807 = vld [vmem:[%s801 + $0x28] sm:$0xff]
        %v808 = vld [vmem:[%s801 + $0x30] sm:$0xff]
        %v809 = vld [vmem:[%s801 + $0x38] sm:$0xff]
        %v810 = vld [vmem:[%s801 + $0x40] sm:$0xff]
        %v811 = vld [vmem:[%s801 + $0x48] sm:$0xff]
        %v812 = vld [vmem:[%s801 + $0x50] sm:$0xff]
        %v813 = vld [vmem:[%s801 + $0x58] sm:$0xff]
        %v814 = vld [vmem:[%s801 + $0x60] sm:$0xff]
        %v815 = vld [vmem:[%s801 + $0x68] sm:$0xff]
        %v816 = vld [vmem:[%s801 + $0x70] sm:$0xff]
        %v817 = vld [vmem:[%s801 + $0x78] sm:$0xff]
        %s818 = scalar_lea.vmem %s4, %s36
        %v819 = vld [vmem:[%s818] sm:$0x1]
        %v821 = vlaneseq
        %v822 = vshrl.u32 %v821, 7
        %v823 = vsub.s32 0, %v822
        %v824 = vrot.slane %v819, %v823
        %826 = vmatprep.subr.mxu0 0.0
        %827 = vmatpush1.msra.mxu0 %v817
        %828 = vmatprep.subr.mxu0 0.0
        %829 = vmatpush1.msra.mxu0 %v816
        %830 = vmatprep.subr.mxu0 0.0
        %831 = vmatpush1.msra.mxu0 %v815
        %832 = vmatprep.subr.mxu0 0.0
        %833 = vmatpush1.msra.mxu0 %v814
        %834 = vmatprep.subr.mxu0 0.0
        %835 = vmatpush1.msra.mxu0 %v813
        %836 = vmatprep.subr.mxu0 0.0
        %837 = vmatpush1.msra.mxu0 %v812
        %838 = vmatprep.subr.mxu0 0.0
        %839 = vmatpush1.msra.mxu0 %v811
        %840 = vmatprep.subr.mxu0 0.0
        %841 = vmatpush1.msra.mxu0 %v810
        %842 = vmatprep.subr.mxu0 0.0
        %843 = vmatpush1.msra.mxu0 %v809
        %844 = vmatprep.subr.mxu0 0.0
        %845 = vmatpush1.msra.mxu0 %v808
        %846 = vmatprep.subr.mxu0 0.0
        %847 = vmatpush1.msra.mxu0 %v807
        %848 = vmatprep.subr.mxu0 0.0
        %849 = vmatpush1.msra.mxu0 %v806
        %850 = vmatprep.subr.mxu0 0.0
        %851 = vmatpush1.msra.mxu0 %v805
        %852 = vmatprep.subr.mxu0 0.0
        %853 = vmatpush1.msra.mxu0 %v804
        %854 = vmatprep.subr.mxu0 0.0
        %855 = vmatpush1.msra.mxu0 %v803
        %856 = vmatprep.subr.mxu0 0.0
        %857 = vmatpush1.msra.mxu0 %v802
        %858 = vmatprep.subr.mxu0 0.0
        %859 = vmatpush2.msra.mxu0 0.0
        %860 = vmatprep.subr.mxu0 0.0
        %861 = vmatpush2.msra.mxu0 0.0
        %862 = vmatprep.subr.mxu0 0.0
        %863 = vmatpush2.msra.mxu0 0.0
        %864 = vmatprep.subr.mxu0 0.0
        %865 = vmatpush2.msra.mxu0 0.0
        %866 = vmatprep.subr.mxu0 0.0
        %867 = vmatpush2.msra.mxu0 0.0
        %868 = vmatprep.subr.mxu0 0.0
        %869 = vmatpush2.msra.mxu0 0.0
        %870 = vmatprep.subr.mxu0 0.0
        %871 = vmatpush2.msra.mxu0 0.0
        %872 = vmatprep.subr.mxu0 0.0
        %873 = vmatpush2.msra.mxu0 0.0
        %874 = vmatprep.subr.mxu0 0.0
        %875 = vmatpush2.msra.mxu0 0.0
        %876 = vmatprep.subr.mxu0 0.0
        %877 = vmatpush2.msra.mxu0 0.0
        %878 = vmatprep.subr.mxu0 0.0
        %879 = vmatpush2.msra.mxu0 0.0
        %880 = vmatprep.subr.mxu0 0.0
        %881 = vmatpush2.msra.mxu0 0.0
        %882 = vmatprep.subr.mxu0 0.0
        %883 = vmatpush2.msra.mxu0 0.0
        %884 = vmatprep.subr.mxu0 0.0
        %885 = vmatpush2.msra.mxu0 0.0
        %886 = vmatprep.subr.mxu0 0.0
        %887 = vmatpush2.msra.mxu0 0.0
        %888 = vmatprep.subr.mxu0 0.0
        %889 = vmatpush2.msra.mxu0 0.0
        %890 = vmatprep.mubr.f32.mxu0 0.0
        %891 = vmatmul.mubr.f32.gmra.mxu0 %v598
        %v892 = vpop.f32.mrf.mxu0
        %v893 = vadd.f32 %v824, %v892
        %v894 = vpop.f32.mrf.mxu0
        %895 = vmatprep.mubr.f32.mxu0 0.0
        %896 = vmatmul.mubr.f32.gmra.mxu0 %v599
        %v897 = vpop.f32.mrf.mxu0
        %v898 = vadd.f32 %v824, %v897
        %v899 = vpop.f32.mrf.mxu0
        %900 = vmatprep.mubr.f32.mxu0 0.0
        %901 = vmatmul.mubr.f32.gmra.mxu0 %v600
        %v902 = vpop.f32.mrf.mxu0
        %v903 = vadd.f32 %v824, %v902
        %v904 = vpop.f32.mrf.mxu0
        %905 = vmatprep.mubr.f32.mxu0 0.0
        %906 = vmatmul.mubr.f32.gmra.mxu0 %v601
        %v907 = vpop.f32.mrf.mxu0
        %v908 = vadd.f32 %v824, %v907
        %v909 = vpop.f32.mrf.mxu0
        %910 = vmatprep.mubr.f32.mxu0 0.0
        %911 = vmatmul.mubr.f32.gmra.mxu0 %v602
        %v912 = vpop.f32.mrf.mxu0
        %v913 = vadd.f32 %v824, %v912
        %v914 = vpop.f32.mrf.mxu0
        %915 = vmatprep.mubr.f32.mxu0 0.0
        %916 = vmatmul.mubr.f32.gmra.mxu0 %v603
        %v917 = vpop.f32.mrf.mxu0
        %v918 = vadd.f32 %v824, %v917
        %v919 = vpop.f32.mrf.mxu0
        %920 = vmatprep.mubr.f32.mxu0 0.0
        %921 = vmatmul.mubr.f32.gmra.mxu0 %v604
        %v922 = vpop.f32.mrf.mxu0
        %v923 = vadd.f32 %v824, %v922
        %v924 = vpop.f32.mrf.mxu0
        %925 = vmatprep.mubr.f32.mxu0 0.0
        %926 = vmatmul.mubr.f32.gmra.mxu0 %v605
        %v927 = vpop.f32.mrf.mxu0
        %v928 = vadd.f32 %v824, %v927
        %v929 = vpop.f32.mrf.mxu0
        %930 = vmatprep.mubr.f32.mxu0 0.0
        %931 = vmatmul.mubr.f32.gmra.mxu0 %v606
        %v932 = vpop.f32.mrf.mxu0
        %v933 = vadd.f32 %v824, %v932
        %v934 = vpop.f32.mrf.mxu0
        %935 = vmatprep.mubr.f32.mxu0 0.0
        %936 = vmatmul.mubr.f32.gmra.mxu0 %v607
        %v937 = vpop.f32.mrf.mxu0
        %v938 = vadd.f32 %v824, %v937
        %v939 = vpop.f32.mrf.mxu0
        %940 = vmatprep.mubr.f32.mxu0 0.0
        %941 = vmatmul.mubr.f32.gmra.mxu0 %v608
        %v942 = vpop.f32.mrf.mxu0
        %v943 = vadd.f32 %v824, %v942
        %v944 = vpop.f32.mrf.mxu0
        %945 = vmatprep.mubr.f32.mxu0 0.0
        %946 = vmatmul.mubr.f32.gmra.mxu0 %v609
        %v947 = vpop.f32.mrf.mxu0
        %v948 = vadd.f32 %v824, %v947
        %v949 = vpop.f32.mrf.mxu0
        %950 = vmatprep.mubr.f32.mxu0 0.0
        %951 = vmatmul.mubr.f32.gmra.mxu0 %v610
        %v952 = vpop.f32.mrf.mxu0
        %v953 = vadd.f32 %v824, %v952
        %v954 = vpop.f32.mrf.mxu0
        %955 = vmatprep.mubr.f32.mxu0 0.0
        %956 = vmatmul.mubr.f32.gmra.mxu0 %v611
        %v957 = vpop.f32.mrf.mxu0
        %v958 = vadd.f32 %v824, %v957
        %v959 = vpop.f32.mrf.mxu0
        %960 = vmatprep.mubr.f32.mxu0 0.0
        %961 = vmatmul.mubr.f32.gmra.mxu0 %v612
        %v962 = vpop.f32.mrf.mxu0
        %v963 = vadd.f32 %v824, %v962
        %v964 = vpop.f32.mrf.mxu0
        %965 = vmatprep.mubr.f32.mxu0 0.0
        %966 = vmatmul.mubr.f32.gmra.mxu0 %v613
        %v967 = vpop.f32.mrf.mxu0
        %v968 = vadd.f32 %v824, %v967
        %v969 = vpop.f32.mrf.mxu0
        %970 = vdwg.mxu0
        %s971 = scalar_lea.vmem %s5, %s614
        %v972 = vld [vmem:[%s971] sm:$0xff]
        %v973 = vld [vmem:[%s971 + $0x8] sm:$0xff]
        %v974 = vld [vmem:[%s971 + $0x10] sm:$0xff]
        %v975 = vld [vmem:[%s971 + $0x18] sm:$0xff]
        %v976 = vld [vmem:[%s971 + $0x20] sm:$0xff]
        %v977 = vld [vmem:[%s971 + $0x28] sm:$0xff]
        %v978 = vld [vmem:[%s971 + $0x30] sm:$0xff]
        %v979 = vld [vmem:[%s971 + $0x38] sm:$0xff]
        %v980 = vld [vmem:[%s971 + $0x40] sm:$0xff]
        %v981 = vld [vmem:[%s971 + $0x48] sm:$0xff]
        %v982 = vld [vmem:[%s971 + $0x50] sm:$0xff]
        %v983 = vld [vmem:[%s971 + $0x58] sm:$0xff]
        %v984 = vld [vmem:[%s971 + $0x60] sm:$0xff]
        %v985 = vld [vmem:[%s971 + $0x68] sm:$0xff]
        %v986 = vld [vmem:[%s971 + $0x70] sm:$0xff]
        %v987 = vld [vmem:[%s971 + $0x78] sm:$0xff]
        %s988 = scalar_lea.vmem %s6, %s36
        %v989 = vld [vmem:[%s988] sm:$0x1]
        %v991 = vlaneseq
        %v992 = vshrl.u32 %v991, 7
        %v993 = vsub.s32 0, %v992
        %v994 = vrot.slane %v989, %v993
        %996 = vmatprep.subr.mxu0 0.0
        %997 = vmatpush1.msra.mxu0 %v987
        %998 = vmatprep.subr.mxu0 0.0
        %999 = vmatpush1.msra.mxu0 %v986
        %1000 = vmatprep.subr.mxu0 0.0
        %1001 = vmatpush1.msra.mxu0 %v985
        %1002 = vmatprep.subr.mxu0 0.0
        %1003 = vmatpush1.msra.mxu0 %v984
        %1004 = vmatprep.subr.mxu0 0.0
        %1005 = vmatpush1.msra.mxu0 %v983
        %1006 = vmatprep.subr.mxu0 0.0
        %1007 = vmatpush1.msra.mxu0 %v982
        %1008 = vmatprep.subr.mxu0 0.0
        %1009 = vmatpush1.msra.mxu0 %v981
        %1010 = vmatprep.subr.mxu0 0.0
        %1011 = vmatpush1.msra.mxu0 %v980
        %1012 = vmatprep.subr.mxu0 0.0
        %1013 = vmatpush1.msra.mxu0 %v979
        %1014 = vmatprep.subr.mxu0 0.0
        %1015 = vmatpush1.msra.mxu0 %v978
        %1016 = vmatprep.subr.mxu0 0.0
        %1017 = vmatpush1.msra.mxu0 %v977
        %1018 = vmatprep.subr.mxu0 0.0
        %1019 = vmatpush1.msra.mxu0 %v976
        %1020 = vmatprep.subr.mxu0 0.0
        %1021 = vmatpush1.msra.mxu0 %v975
        %1022 = vmatprep.subr.mxu0 0.0
        %1023 = vmatpush1.msra.mxu0 %v974
        %1024 = vmatprep.subr.mxu0 0.0
        %1025 = vmatpush1.msra.mxu0 %v973
        %1026 = vmatprep.subr.mxu0 0.0
        %1027 = vmatpush1.msra.mxu0 %v972
        %1028 = vmatprep.subr.mxu0 0.0
        %1029 = vmatpush2.msra.mxu0 0.0
        %1030 = vmatprep.subr.mxu0 0.0
        %1031 = vmatpush2.msra.mxu0 0.0
        %1032 = vmatprep.subr.mxu0 0.0
        %1033 = vmatpush2.msra.mxu0 0.0
        %1034 = vmatprep.subr.mxu0 0.0
        %1035 = vmatpush2.msra.mxu0 0.0
        %1036 = vmatprep.subr.mxu0 0.0
        %1037 = vmatpush2.msra.mxu0 0.0
        %1038 = vmatprep.subr.mxu0 0.0
        %1039 = vmatpush2.msra.mxu0 0.0
        %1040 = vmatprep.subr.mxu0 0.0
        %1041 = vmatpush2.msra.mxu0 0.0
        %1042 = vmatprep.subr.mxu0 0.0
        %1043 = vmatpush2.msra.mxu0 0.0
        %1044 = vmatprep.subr.mxu0 0.0
        %1045 = vmatpush2.msra.mxu0 0.0
        %1046 = vmatprep.subr.mxu0 0.0
        %1047 = vmatpush2.msra.mxu0 0.0
        %1048 = vmatprep.subr.mxu0 0.0
        %1049 = vmatpush2.msra.mxu0 0.0
        %1050 = vmatprep.subr.mxu0 0.0
        %1051 = vmatpush2.msra.mxu0 0.0
        %1052 = vmatprep.subr.mxu0 0.0
        %1053 = vmatpush2.msra.mxu0 0.0
        %1054 = vmatprep.subr.mxu0 0.0
        %1055 = vmatpush2.msra.mxu0 0.0
        %1056 = vmatprep.subr.mxu0 0.0
        %1057 = vmatpush2.msra.mxu0 0.0
        %1058 = vmatprep.subr.mxu0 0.0
        %1059 = vmatpush2.msra.mxu0 0.0
        %1060 = vmatprep.mubr.f32.mxu0 0.0
        %1061 = vmatmul.mubr.f32.gmra.mxu0 %v598
        %v1062 = vpop.f32.mrf.mxu0
        %v1063 = vadd.f32 %v994, %v1062
        %v1064 = vpop.f32.mrf.mxu0
        %1065 = vmatprep.mubr.f32.mxu0 0.0
        %1066 = vmatmul.mubr.f32.gmra.mxu0 %v599
        %v1067 = vpop.f32.mrf.mxu0
        %v1068 = vadd.f32 %v994, %v1067
        %v1069 = vpop.f32.mrf.mxu0
        %1070 = vmatprep.mubr.f32.mxu0 0.0
        %1071 = vmatmul.mubr.f32.gmra.mxu0 %v600
        %v1072 = vpop.f32.mrf.mxu0
        %v1073 = vadd.f32 %v994, %v1072
        %v1074 = vpop.f32.mrf.mxu0
        %1075 = vmatprep.mubr.f32.mxu0 0.0
        %1076 = vmatmul.mubr.f32.gmra.mxu0 %v601
        %v1077 = vpop.f32.mrf.mxu0
        %v1078 = vadd.f32 %v994, %v1077
        %v1079 = vpop.f32.mrf.mxu0
        %1080 = vmatprep.mubr.f32.mxu0 0.0
        %1081 = vmatmul.mubr.f32.gmra.mxu0 %v602
        %v1082 = vpop.f32.mrf.mxu0
        %v1083 = vadd.f32 %v994, %v1082
        %v1084 = vpop.f32.mrf.mxu0
        %1085 = vmatprep.mubr.f32.mxu0 0.0
        %1086 = vmatmul.mubr.f32.gmra.mxu0 %v603
        %v1087 = vpop.f32.mrf.mxu0
        %v1088 = vadd.f32 %v994, %v1087
        %v1089 = vpop.f32.mrf.mxu0
        %1090 = vmatprep.mubr.f32.mxu0 0.0
        %1091 = vmatmul.mubr.f32.gmra.mxu0 %v604
        %v1092 = vpop.f32.mrf.mxu0
        %v1093 = vadd.f32 %v994, %v1092
        %v1094 = vpop.f32.mrf.mxu0
        %1095 = vmatprep.mubr.f32.mxu0 0.0
        %1096 = vmatmul.mubr.f32.gmra.mxu0 %v605
        %v1097 = vpop.f32.mrf.mxu0
        %v1098 = vadd.f32 %v994, %v1097
        %v1099 = vpop.f32.mrf.mxu0
        %1100 = vmatprep.mubr.f32.mxu0 0.0
        %1101 = vmatmul.mubr.f32.gmra.mxu0 %v606
        %v1102 = vpop.f32.mrf.mxu0
        %v1103 = vadd.f32 %v994, %v1102
        %v1104 = vpop.f32.mrf.mxu0
        %1105 = vmatprep.mubr.f32.mxu0 0.0
        %1106 = vmatmul.mubr.f32.gmra.mxu0 %v607
        %v1107 = vpop.f32.mrf.mxu0
        %v1108 = vadd.f32 %v994, %v1107
        %v1109 = vpop.f32.mrf.mxu0
        %1110 = vmatprep.mubr.f32.mxu0 0.0
        %1111 = vmatmul.mubr.f32.gmra.mxu0 %v608
        %v1112 = vpop.f32.mrf.mxu0
        %v1113 = vadd.f32 %v994, %v1112
        %v1114 = vpop.f32.mrf.mxu0
        %1115 = vmatprep.mubr.f32.mxu0 0.0
        %1116 = vmatmul.mubr.f32.gmra.mxu0 %v609
        %v1117 = vpop.f32.mrf.mxu0
        %v1118 = vadd.f32 %v994, %v1117
        %v1119 = vpop.f32.mrf.mxu0
        %1120 = vmatprep.mubr.f32.mxu0 0.0
        %1121 = vmatmul.mubr.f32.gmra.mxu0 %v610
        %v1122 = vpop.f32.mrf.mxu0
        %v1123 = vadd.f32 %v994, %v1122
        %v1124 = vpop.f32.mrf.mxu0
        %1125 = vmatprep.mubr.f32.mxu0 0.0
        %1126 = vmatmul.mubr.f32.gmra.mxu0 %v611
        %v1127 = vpop.f32.mrf.mxu0
        %v1128 = vadd.f32 %v994, %v1127
        %v1129 = vpop.f32.mrf.mxu0
        %1130 = vmatprep.mubr.f32.mxu0 0.0
        %1131 = vmatmul.mubr.f32.gmra.mxu0 %v612
        %v1132 = vpop.f32.mrf.mxu0
        %v1133 = vadd.f32 %v994, %v1132
        %v1134 = vpop.f32.mrf.mxu0
        %1135 = vmatprep.mubr.f32.mxu0 0.0
        %1136 = vmatmul.mubr.f32.gmra.mxu0 %v613
        %v1137 = vpop.f32.mrf.mxu0
        %v1138 = vadd.f32 %v994, %v1137
        %v1139 = vpop.f32.mrf.mxu0
        %1140 = vdwg.mxu0
        %1157 = vrot.lane.b32.xlu0 %v785, 96
        %v1158 = vpop.permute.xlu0 %1157
        %1159 = vrot.lane.b32.xlu0 %v786, 96
        %v1160 = vpop.permute.xlu0 %1159
        %1161 = vrot.lane.b32.xlu0 %v787, 96
        %v1162 = vpop.permute.xlu0 %1161
        %1163 = vrot.lane.b32.xlu0 %v788, 96
        %v1164 = vpop.permute.xlu0 %1163
        %1165 = vrot.lane.b32.xlu0 %v789, 96
        %v1166 = vpop.permute.xlu0 %1165
        %1167 = vrot.lane.b32.xlu0 %v790, 96
        %v1168 = vpop.permute.xlu0 %1167
        %1169 = vrot.lane.b32.xlu0 %v791, 96
        %v1170 = vpop.permute.xlu0 %1169
        %1171 = vrot.lane.b32.xlu0 %v792, 96
        %v1172 = vpop.permute.xlu0 %1171
        %1173 = vrot.lane.b32.xlu0 %v793, 96
        %v1174 = vpop.permute.xlu0 %1173
        %1175 = vrot.lane.b32.xlu0 %v794, 96
        %v1176 = vpop.permute.xlu0 %1175
        %1177 = vrot.lane.b32.xlu0 %v795, 96
        %v1178 = vpop.permute.xlu0 %1177
        %1179 = vrot.lane.b32.xlu0 %v796, 96
        %v1180 = vpop.permute.xlu0 %1179
        %1181 = vrot.lane.b32.xlu0 %v797, 96
        %v1182 = vpop.permute.xlu0 %1181
        %1183 = vrot.lane.b32.xlu0 %v798, 96
        %v1184 = vpop.permute.xlu0 %1183
        %1185 = vrot.lane.b32.xlu0 %v799, 96
        %v1186 = vpop.permute.xlu0 %1185
        %1187 = vrot.lane.b32.xlu0 %v800, 96
        %v1188 = vpop.permute.xlu0 %1187
        %1189 = vrot.lane.b32.xlu0 %v785, 64
        %v1190 = vpop.permute.xlu0 %1189
        %1191 = vrot.lane.b32.xlu0 %v786, 64
        %v1192 = vpop.permute.xlu0 %1191
        %1193 = vrot.lane.b32.xlu0 %v787, 64
        %v1194 = vpop.permute.xlu0 %1193
        %1195 = vrot.lane.b32.xlu0 %v788, 64
        %v1196 = vpop.permute.xlu0 %1195
        %1197 = vrot.lane.b32.xlu0 %v789, 64
        %v1198 = vpop.permute.xlu0 %1197
        %1199 = vrot.lane.b32.xlu0 %v790, 64
        %v1200 = vpop.permute.xlu0 %1199
        %1201 = vrot.lane.b32.xlu0 %v791, 64
        %v1202 = vpop.permute.xlu0 %1201
        %1203 = vrot.lane.b32.xlu0 %v792, 64
        %v1204 = vpop.permute.xlu0 %1203
        %1205 = vrot.lane.b32.xlu0 %v793, 64
        %v1206 = vpop.permute.xlu0 %1205
        %1207 = vrot.lane.b32.xlu0 %v794, 64
        %v1208 = vpop.permute.xlu0 %1207
        %1209 = vrot.lane.b32.xlu0 %v795, 64
        %v1210 = vpop.permute.xlu0 %1209
        %1211 = vrot.lane.b32.xlu0 %v796, 64
        %v1212 = vpop.permute.xlu0 %1211
        %1213 = vrot.lane.b32.xlu0 %v797, 64
        %v1214 = vpop.permute.xlu0 %1213
        %1215 = vrot.lane.b32.xlu0 %v798, 64
        %v1216 = vpop.permute.xlu0 %1215
        %1217 = vrot.lane.b32.xlu0 %v799, 64
        %v1218 = vpop.permute.xlu0 %1217
        %1219 = vrot.lane.b32.xlu0 %v800, 64
        %v1220 = vpop.permute.xlu0 %1219
        %1221 = vrot.lane.b32.xlu0 %v785, 32
        %v1222 = vpop.permute.xlu0 %1221
        %1223 = vrot.lane.b32.xlu0 %v786, 32
        %v1224 = vpop.permute.xlu0 %1223
        %1225 = vrot.lane.b32.xlu0 %v787, 32
        %v1226 = vpop.permute.xlu0 %1225
        %1227 = vrot.lane.b32.xlu0 %v788, 32
        %v1228 = vpop.permute.xlu0 %1227
        %1229 = vrot.lane.b32.xlu0 %v789, 32
        %v1230 = vpop.permute.xlu0 %1229
        %1231 = vrot.lane.b32.xlu0 %v790, 32
        %v1232 = vpop.permute.xlu0 %1231
        %1233 = vrot.lane.b32.xlu0 %v791, 32
        %v1234 = vpop.permute.xlu0 %1233
        %1235 = vrot.lane.b32.xlu0 %v792, 32
        %v1236 = vpop.permute.xlu0 %1235
        %1237 = vrot.lane.b32.xlu0 %v793, 32
        %v1238 = vpop.permute.xlu0 %1237
        %1239 = vrot.lane.b32.xlu0 %v794, 32
        %v1240 = vpop.permute.xlu0 %1239
        %1241 = vrot.lane.b32.xlu0 %v795, 32
        %v1242 = vpop.permute.xlu0 %1241
        %1243 = vrot.lane.b32.xlu0 %v796, 32
        %v1244 = vpop.permute.xlu0 %1243
        %1245 = vrot.lane.b32.xlu0 %v797, 32
        %v1246 = vpop.permute.xlu0 %1245
        %1247 = vrot.lane.b32.xlu0 %v798, 32
        %v1248 = vpop.permute.xlu0 %1247
        %1249 = vrot.lane.b32.xlu0 %v799, 32
        %v1250 = vpop.permute.xlu0 %1249
        %1251 = vrot.lane.b32.xlu0 %v800, 32
        %v1252 = vpop.permute.xlu0 %1251
        %1269 = vrot.lane.b32.xlu0 %v893, 96
        %v1270 = vpop.permute.xlu0 %1269
        %1271 = vrot.lane.b32.xlu0 %v898, 96
        %v1272 = vpop.permute.xlu0 %1271
        %1273 = vrot.lane.b32.xlu0 %v903, 96
        %v1274 = vpop.permute.xlu0 %1273
        %1275 = vrot.lane.b32.xlu0 %v908, 96
        %v1276 = vpop.permute.xlu0 %1275
        %1277 = vrot.lane.b32.xlu0 %v913, 96
        %v1278 = vpop.permute.xlu0 %1277
        %1279 = vrot.lane.b32.xlu0 %v918, 96
        %v1280 = vpop.permute.xlu0 %1279
        %1281 = vrot.lane.b32.xlu0 %v923, 96
        %v1282 = vpop.permute.xlu0 %1281
        %1283 = vrot.lane.b32.xlu0 %v928, 96
        %v1284 = vpop.permute.xlu0 %1283
        %1285 = vrot.lane.b32.xlu0 %v933, 96
        %v1286 = vpop.permute.xlu0 %1285
        %1287 = vrot.lane.b32.xlu0 %v938, 96
        %v1288 = vpop.permute.xlu0 %1287
        %1289 = vrot.lane.b32.xlu0 %v943, 96
        %v1290 = vpop.permute.xlu0 %1289
        %1291 = vrot.lane.b32.xlu0 %v948, 96
        %v1292 = vpop.permute.xlu0 %1291
        %1293 = vrot.lane.b32.xlu0 %v953, 96
        %v1294 = vpop.permute.xlu0 %1293
        %1295 = vrot.lane.b32.xlu0 %v958, 96
        %v1296 = vpop.permute.xlu0 %1295
        %1297 = vrot.lane.b32.xlu0 %v963, 96
        %v1298 = vpop.permute.xlu0 %1297
        %1299 = vrot.lane.b32.xlu0 %v968, 96
        %v1300 = vpop.permute.xlu0 %1299
        %1301 = vrot.lane.b32.xlu0 %v893, 64
        %v1302 = vpop.permute.xlu0 %1301
        %1303 = vrot.lane.b32.xlu0 %v898, 64
        %v1304 = vpop.permute.xlu0 %1303
        %1305 = vrot.lane.b32.xlu0 %v903, 64
        %v1306 = vpop.permute.xlu0 %1305
        %1307 = vrot.lane.b32.xlu0 %v908, 64
        %v1308 = vpop.permute.xlu0 %1307
        %1309 = vrot.lane.b32.xlu0 %v913, 64
        %v1310 = vpop.permute.xlu0 %1309
        %1311 = vrot.lane.b32.xlu0 %v918, 64
        %v1312 = vpop.permute.xlu0 %1311
        %1313 = vrot.lane.b32.xlu0 %v923, 64
        %v1314 = vpop.permute.xlu0 %1313
        %1315 = vrot.lane.b32.xlu0 %v928, 64
        %v1316 = vpop.permute.xlu0 %1315
        %1317 = vrot.lane.b32.xlu0 %v933, 64
        %v1318 = vpop.permute.xlu0 %1317
        %1319 = vrot.lane.b32.xlu0 %v938, 64
        %v1320 = vpop.permute.xlu0 %1319
        %1321 = vrot.lane.b32.xlu0 %v943, 64
        %v1322 = vpop.permute.xlu0 %1321
        %1323 = vrot.lane.b32.xlu0 %v948, 64
        %v1324 = vpop.permute.xlu0 %1323
        %1325 = vrot.lane.b32.xlu0 %v953, 64
        %v1326 = vpop.permute.xlu0 %1325
        %1327 = vrot.lane.b32.xlu0 %v958, 64
        %v1328 = vpop.permute.xlu0 %1327
        %1329 = vrot.lane.b32.xlu0 %v963, 64
        %v1330 = vpop.permute.xlu0 %1329
        %1331 = vrot.lane.b32.xlu0 %v968, 64
        %v1332 = vpop.permute.xlu0 %1331
        %1333 = vrot.lane.b32.xlu0 %v893, 32
        %v1334 = vpop.permute.xlu0 %1333
        %1335 = vrot.lane.b32.xlu0 %v898, 32
        %v1336 = vpop.permute.xlu0 %1335
        %1337 = vrot.lane.b32.xlu0 %v903, 32
        %v1338 = vpop.permute.xlu0 %1337
        %1339 = vrot.lane.b32.xlu0 %v908, 32
        %v1340 = vpop.permute.xlu0 %1339
        %1341 = vrot.lane.b32.xlu0 %v913, 32
        %v1342 = vpop.permute.xlu0 %1341
        %1343 = vrot.lane.b32.xlu0 %v918, 32
        %v1344 = vpop.permute.xlu0 %1343
        %1345 = vrot.lane.b32.xlu0 %v923, 32
        %v1346 = vpop.permute.xlu0 %1345
        %1347 = vrot.lane.b32.xlu0 %v928, 32
        %v1348 = vpop.permute.xlu0 %1347
        %1349 = vrot.lane.b32.xlu0 %v933, 32
        %v1350 = vpop.permute.xlu0 %1349
        %1351 = vrot.lane.b32.xlu0 %v938, 32
        %v1352 = vpop.permute.xlu0 %1351
        %1353 = vrot.lane.b32.xlu0 %v943, 32
        %v1354 = vpop.permute.xlu0 %1353
        %1355 = vrot.lane.b32.xlu0 %v948, 32
        %v1356 = vpop.permute.xlu0 %1355
        %1357 = vrot.lane.b32.xlu0 %v953, 32
        %v1358 = vpop.permute.xlu0 %1357
        %1359 = vrot.lane.b32.xlu0 %v958, 32
        %v1360 = vpop.permute.xlu0 %1359
        %1361 = vrot.lane.b32.xlu0 %v963, 32
        %v1362 = vpop.permute.xlu0 %1361
        %1363 = vrot.lane.b32.xlu0 %v968, 32
        %v1364 = vpop.permute.xlu0 %1363
        %1381 = vrot.lane.b32.xlu0 %v1063, 96
        %v1382 = vpop.permute.xlu0 %1381
        %1383 = vrot.lane.b32.xlu0 %v1068, 96
        %v1384 = vpop.permute.xlu0 %1383
        %1385 = vrot.lane.b32.xlu0 %v1073, 96
        %v1386 = vpop.permute.xlu0 %1385
        %1387 = vrot.lane.b32.xlu0 %v1078, 96
        %v1388 = vpop.permute.xlu0 %1387
        %1389 = vrot.lane.b32.xlu0 %v1083, 96
        %v1390 = vpop.permute.xlu0 %1389
        %1391 = vrot.lane.b32.xlu0 %v1088, 96
        %v1392 = vpop.permute.xlu0 %1391
        %1393 = vrot.lane.b32.xlu0 %v1093, 96
        %v1394 = vpop.permute.xlu0 %1393
        %1395 = vrot.lane.b32.xlu0 %v1098, 96
        %v1396 = vpop.permute.xlu0 %1395
        %1397 = vrot.lane.b32.xlu0 %v1103, 96
        %v1398 = vpop.permute.xlu0 %1397
        %1399 = vrot.lane.b32.xlu0 %v1108, 96
        %v1400 = vpop.permute.xlu0 %1399
        %1401 = vrot.lane.b32.xlu0 %v1113, 96
        %v1402 = vpop.permute.xlu0 %1401
        %1403 = vrot.lane.b32.xlu0 %v1118, 96
        %v1404 = vpop.permute.xlu0 %1403
        %1405 = vrot.lane.b32.xlu0 %v1123, 96
        %v1406 = vpop.permute.xlu0 %1405
        %1407 = vrot.lane.b32.xlu0 %v1128, 96
        %v1408 = vpop.permute.xlu0 %1407
        %1409 = vrot.lane.b32.xlu0 %v1133, 96
        %v1410 = vpop.permute.xlu0 %1409
        %1411 = vrot.lane.b32.xlu0 %v1138, 96
        %v1412 = vpop.permute.xlu0 %1411
        %1429 = vrot.lane.b32.xlu0 %v1063, 64
        %v1430 = vpop.permute.xlu0 %1429
        %1431 = vrot.lane.b32.xlu0 %v1068, 64
        %v1432 = vpop.permute.xlu0 %1431
        %1433 = vrot.lane.b32.xlu0 %v1073, 64
        %v1434 = vpop.permute.xlu0 %1433
        %1435 = vrot.lane.b32.xlu0 %v1078, 64
        %v1436 = vpop.permute.xlu0 %1435
        %1437 = vrot.lane.b32.xlu0 %v1083, 64
        %v1438 = vpop.permute.xlu0 %1437
        %1439 = vrot.lane.b32.xlu0 %v1088, 64
        %v1440 = vpop.permute.xlu0 %1439
        %1441 = vrot.lane.b32.xlu0 %v1093, 64
        %v1442 = vpop.permute.xlu0 %1441
        %1443 = vrot.lane.b32.xlu0 %v1098, 64
        %v1444 = vpop.permute.xlu0 %1443
        %1445 = vrot.lane.b32.xlu0 %v1103, 64
        %v1446 = vpop.permute.xlu0 %1445
        %1447 = vrot.lane.b32.xlu0 %v1108, 64
        %v1448 = vpop.permute.xlu0 %1447
        %1449 = vrot.lane.b32.xlu0 %v1113, 64
        %v1450 = vpop.permute.xlu0 %1449
        %1451 = vrot.lane.b32.xlu0 %v1118, 64
        %v1452 = vpop.permute.xlu0 %1451
        %1453 = vrot.lane.b32.xlu0 %v1123, 64
        %v1454 = vpop.permute.xlu0 %1453
        %1455 = vrot.lane.b32.xlu0 %v1128, 64
        %v1456 = vpop.permute.xlu0 %1455
        %1457 = vrot.lane.b32.xlu0 %v1133, 64
        %v1458 = vpop.permute.xlu0 %1457
        %1459 = vrot.lane.b32.xlu0 %v1138, 64
        %v1460 = vpop.permute.xlu0 %1459
        %1477 = vrot.lane.b32.xlu0 %v1063, 32
        %v1478 = vpop.permute.xlu0 %1477
        %1479 = vrot.lane.b32.xlu0 %v1068, 32
        %v1480 = vpop.permute.xlu0 %1479
        %1481 = vrot.lane.b32.xlu0 %v1073, 32
        %v1482 = vpop.permute.xlu0 %1481
        %1483 = vrot.lane.b32.xlu0 %v1078, 32
        %v1484 = vpop.permute.xlu0 %1483
        %1485 = vrot.lane.b32.xlu0 %v1083, 32
        %v1486 = vpop.permute.xlu0 %1485
        %1487 = vrot.lane.b32.xlu0 %v1088, 32
        %v1488 = vpop.permute.xlu0 %1487
        %1489 = vrot.lane.b32.xlu0 %v1093, 32
        %v1490 = vpop.permute.xlu0 %1489
        %1491 = vrot.lane.b32.xlu0 %v1098, 32
        %v1492 = vpop.permute.xlu0 %1491
        %1493 = vrot.lane.b32.xlu0 %v1103, 32
        %v1494 = vpop.permute.xlu0 %1493
        %1495 = vrot.lane.b32.xlu0 %v1108, 32
        %v1496 = vpop.permute.xlu0 %1495
        %1497 = vrot.lane.b32.xlu0 %v1113, 32
        %v1498 = vpop.permute.xlu0 %1497
        %1499 = vrot.lane.b32.xlu0 %v1118, 32
        %v1500 = vpop.permute.xlu0 %1499
        %1501 = vrot.lane.b32.xlu0 %v1123, 32
        %v1502 = vpop.permute.xlu0 %1501
        %1503 = vrot.lane.b32.xlu0 %v1128, 32
        %v1504 = vpop.permute.xlu0 %1503
        %1505 = vrot.lane.b32.xlu0 %v1133, 32
        %v1506 = vpop.permute.xlu0 %1505
        %1507 = vrot.lane.b32.xlu0 %v1138, 32
        %v1508 = vpop.permute.xlu0 %1507
        %vm1525 = vcmask 261120
        %v1526 = vsel %vm1525, %v785, 0
        %v1528 = vsel %vm1525, %v786, 0
        %v1530 = vsel %vm1525, %v893, 0
        %v1532 = vsel %vm1525, %v898, 0
        %1534 = vmatprep.subr.mxu0 0.0
        %1535 = vmatpush1.xpose.msra.mxu0 0.0
        %1536 = vmatprep.subr.mxu0 0.0
        %1537 = vmatpush1.xpose.msra.mxu0 0.0
        %1538 = vmatprep.subr.mxu0 0.0
        %1539 = vmatpush1.xpose.msra.mxu0 0.0
        %1540 = vmatprep.subr.mxu0 0.0
        %1541 = vmatpush1.xpose.msra.mxu0 0.0
        %1542 = vmatprep.subr.mxu0 0.0
        %1543 = vmatpush1.xpose.msra.mxu0 0.0
        %1544 = vmatprep.subr.mxu0 0.0
        %1545 = vmatpush1.xpose.msra.mxu0 0.0
        %1546 = vmatprep.subr.mxu0 0.0
        %1547 = vmatpush1.xpose.msra.mxu0 0.0
        %1548 = vmatprep.subr.mxu0 0.0
        %1549 = vmatpush1.xpose.msra.mxu0 0.0
        %1550 = vmatprep.subr.mxu0 0.0
        %1551 = vmatpush1.xpose.msra.mxu0 0.0
        %1552 = vmatprep.subr.mxu0 0.0
        %1553 = vmatpush1.xpose.msra.mxu0 0.0
        %1554 = vmatprep.subr.mxu0 0.0
        %1555 = vmatpush1.xpose.msra.mxu0 0.0
        %1556 = vmatprep.subr.mxu0 0.0
        %1557 = vmatpush1.xpose.msra.mxu0 0.0
        %1558 = vmatprep.subr.mxu0 0.0
        %1559 = vmatpush1.xpose.msra.mxu0 0.0
        %1560 = vmatprep.subr.mxu0 0.0
        %1561 = vmatpush1.xpose.msra.mxu0 0.0
        %1562 = vmatprep.subr.mxu0 0.0
        %1563 = vmatpush1.xpose.msra.mxu0 %v1532
        %1564 = vmatprep.subr.mxu0 0.0
        %1565 = vmatpush1.xpose.msra.mxu0 %v1530
        %1566 = vmatprep.subr.mxu0 0.0
        %1567 = vmatpush2.xpose.msra.mxu0 0.0
        %1568 = vmatprep.subr.mxu0 0.0
        %1569 = vmatpush2.xpose.msra.mxu0 0.0
        %1570 = vmatprep.subr.mxu0 0.0
        %1571 = vmatpush2.xpose.msra.mxu0 0.0
        %1572 = vmatprep.subr.mxu0 0.0
        %1573 = vmatpush2.xpose.msra.mxu0 0.0
        %1574 = vmatprep.subr.mxu0 0.0
        %1575 = vmatpush2.xpose.msra.mxu0 0.0
        %1576 = vmatprep.subr.mxu0 0.0
        %1577 = vmatpush2.xpose.msra.mxu0 0.0
        %1578 = vmatprep.subr.mxu0 0.0
        %1579 = vmatpush2.xpose.msra.mxu0 0.0
        %1580 = vmatprep.subr.mxu0 0.0
        %1581 = vmatpush2.xpose.msra.mxu0 0.0
        %1582 = vmatprep.subr.mxu0 0.0
        %1583 = vmatpush2.xpose.msra.mxu0 0.0
        %1584 = vmatprep.subr.mxu0 0.0
        %1585 = vmatpush2.xpose.msra.mxu0 0.0
        %1586 = vmatprep.subr.mxu0 0.0
        %1587 = vmatpush2.xpose.msra.mxu0 0.0
        %1588 = vmatprep.subr.mxu0 0.0
        %1589 = vmatpush2.xpose.msra.mxu0 0.0
        %1590 = vmatprep.subr.mxu0 0.0
        %1591 = vmatpush2.xpose.msra.mxu0 0.0
        %1592 = vmatprep.subr.mxu0 0.0
        %1593 = vmatpush2.xpose.msra.mxu0 0.0
        %1594 = vmatprep.subr.mxu0 0.0
        %1595 = vmatpush2.xpose.msra.mxu0 0.0
        %1596 = vmatprep.subr.mxu0 0.0
        %1597 = vmatpush2.xpose.msra.mxu0 0.0
        %1598 = vmatprep.mubr.f32.mxu0 0.0
        %1599 = vmatmul.mubr.f32.gmra.mxu0 %v1526
        %v1600 = vpop.f32.mrf.mxu0
        %v1601 = vadd.f32 0.0, %v1600
        %v1602 = vpop.f32.mrf.mxu0
        %1603 = vmatprep.mubr.f32.mxu0 0.0
        %1604 = vmatmul.mubr.f32.gmra.mxu0 %v1528
        %v1605 = vpop.f32.mrf.mxu0
        %v1606 = vadd.f32 0.0, %v1605
        %v1607 = vpop.f32.mrf.mxu0
        %1608 = vdwg.mxu0
        %v1609 = vsel %vm1525, %v787, 0
        %v1611 = vsel %vm1525, %v788, 0
        %v1613 = vsel %vm1525, %v903, 0
        %v1615 = vsel %vm1525, %v908, 0
        %1617 = vmatprep.subr.mxu0 0.0
        %1618 = vmatpush1.xpose.msra.mxu0 0.0
        %1619 = vmatprep.subr.mxu0 0.0
        %1620 = vmatpush1.xpose.msra.mxu0 0.0
        %1621 = vmatprep.subr.mxu0 0.0
        %1622 = vmatpush1.xpose.msra.mxu0 0.0
        %1623 = vmatprep.subr.mxu0 0.0
        %1624 = vmatpush1.xpose.msra.mxu0 0.0
        %1625 = vmatprep.subr.mxu0 0.0
        %1626 = vmatpush1.xpose.msra.mxu0 0.0
        %1627 = vmatprep.subr.mxu0 0.0
        %1628 = vmatpush1.xpose.msra.mxu0 0.0
        %1629 = vmatprep.subr.mxu0 0.0
        %1630 = vmatpush1.xpose.msra.mxu0 0.0
        %1631 = vmatprep.subr.mxu0 0.0
        %1632 = vmatpush1.xpose.msra.mxu0 0.0
        %1633 = vmatprep.subr.mxu0 0.0
        %1634 = vmatpush1.xpose.msra.mxu0 0.0
        %1635 = vmatprep.subr.mxu0 0.0
        %1636 = vmatpush1.xpose.msra.mxu0 0.0
        %1637 = vmatprep.subr.mxu0 0.0
        %1638 = vmatpush1.xpose.msra.mxu0 0.0
        %1639 = vmatprep.subr.mxu0 0.0
        %1640 = vmatpush1.xpose.msra.mxu0 0.0
        %1641 = vmatprep.subr.mxu0 0.0
        %1642 = vmatpush1.xpose.msra.mxu0 0.0
        %1643 = vmatprep.subr.mxu0 0.0
        %1644 = vmatpush1.xpose.msra.mxu0 0.0
        %1645 = vmatprep.subr.mxu0 0.0
        %1646 = vmatpush1.xpose.msra.mxu0 %v1615
        %1647 = vmatprep.subr.mxu0 0.0
        %1648 = vmatpush1.xpose.msra.mxu0 %v1613
        %1649 = vmatprep.subr.mxu0 0.0
        %1650 = vmatpush2.xpose.msra.mxu0 0.0
        %1651 = vmatprep.subr.mxu0 0.0
        %1652 = vmatpush2.xpose.msra.mxu0 0.0
        %1653 = vmatprep.subr.mxu0 0.0
        %1654 = vmatpush2.xpose.msra.mxu0 0.0
        %1655 = vmatprep.subr.mxu0 0.0
        %1656 = vmatpush2.xpose.msra.mxu0 0.0
        %1657 = vmatprep.subr.mxu0 0.0
        %1658 = vmatpush2.xpose.msra.mxu0 0.0
        %1659 = vmatprep.subr.mxu0 0.0
        %1660 = vmatpush2.xpose.msra.mxu0 0.0
        %1661 = vmatprep.subr.mxu0 0.0
        %1662 = vmatpush2.xpose.msra.mxu0 0.0
        %1663 = vmatprep.subr.mxu0 0.0
        %1664 = vmatpush2.xpose.msra.mxu0 0.0
        %1665 = vmatprep.subr.mxu0 0.0
        %1666 = vmatpush2.xpose.msra.mxu0 0.0
        %1667 = vmatprep.subr.mxu0 0.0
        %1668 = vmatpush2.xpose.msra.mxu0 0.0
        %1669 = vmatprep.subr.mxu0 0.0
        %1670 = vmatpush2.xpose.msra.mxu0 0.0
        %1671 = vmatprep.subr.mxu0 0.0
        %1672 = vmatpush2.xpose.msra.mxu0 0.0
        %1673 = vmatprep.subr.mxu0 0.0
        %1674 = vmatpush2.xpose.msra.mxu0 0.0
        %1675 = vmatprep.subr.mxu0 0.0
        %1676 = vmatpush2.xpose.msra.mxu0 0.0
        %1677 = vmatprep.subr.mxu0 0.0
        %1678 = vmatpush2.xpose.msra.mxu0 0.0
        %1679 = vmatprep.subr.mxu0 0.0
        %1680 = vmatpush2.xpose.msra.mxu0 0.0
        %1681 = vmatprep.mubr.f32.mxu0 0.0
        %1682 = vmatmul.mubr.f32.gmra.mxu0 %v1609
        %v1683 = vpop.f32.mrf.mxu0
        %v1684 = vadd.f32 0.0, %v1683
        %v1685 = vpop.f32.mrf.mxu0
        %1686 = vmatprep.mubr.f32.mxu0 0.0
        %1687 = vmatmul.mubr.f32.gmra.mxu0 %v1611
        %v1688 = vpop.f32.mrf.mxu0
        %v1689 = vadd.f32 0.0, %v1688
        %v1690 = vpop.f32.mrf.mxu0
        %1691 = vdwg.mxu0
        %v1692 = vsel %vm1525, %v789, 0
        %v1694 = vsel %vm1525, %v790, 0
        %v1696 = vsel %vm1525, %v913, 0
        %v1698 = vsel %vm1525, %v918, 0
        %1700 = vmatprep.subr.mxu0 0.0
        %1701 = vmatpush1.xpose.msra.mxu0 0.0
        %1702 = vmatprep.subr.mxu0 0.0
        %1703 = vmatpush1.xpose.msra.mxu0 0.0
        %1704 = vmatprep.subr.mxu0 0.0
        %1705 = vmatpush1.xpose.msra.mxu0 0.0
        %1706 = vmatprep.subr.mxu0 0.0
        %1707 = vmatpush1.xpose.msra.mxu0 0.0
        %1708 = vmatprep.subr.mxu0 0.0
        %1709 = vmatpush1.xpose.msra.mxu0 0.0
        %1710 = vmatprep.subr.mxu0 0.0
        %1711 = vmatpush1.xpose.msra.mxu0 0.0
        %1712 = vmatprep.subr.mxu0 0.0
        %1713 = vmatpush1.xpose.msra.mxu0 0.0
        %1714 = vmatprep.subr.mxu0 0.0
        %1715 = vmatpush1.xpose.msra.mxu0 0.0
        %1716 = vmatprep.subr.mxu0 0.0
        %1717 = vmatpush1.xpose.msra.mxu0 0.0
        %1718 = vmatprep.subr.mxu0 0.0
        %1719 = vmatpush1.xpose.msra.mxu0 0.0
        %1720 = vmatprep.subr.mxu0 0.0
        %1721 = vmatpush1.xpose.msra.mxu0 0.0
        %1722 = vmatprep.subr.mxu0 0.0
        %1723 = vmatpush1.xpose.msra.mxu0 0.0
        %1724 = vmatprep.subr.mxu0 0.0
        %1725 = vmatpush1.xpose.msra.mxu0 0.0
        %1726 = vmatprep.subr.mxu0 0.0
        %1727 = vmatpush1.xpose.msra.mxu0 0.0
        %1728 = vmatprep.subr.mxu0 0.0
        %1729 = vmatpush1.xpose.msra.mxu0 %v1698
        %1730 = vmatprep.subr.mxu0 0.0
        %1731 = vmatpush1.xpose.msra.mxu0 %v1696
        %1732 = vmatprep.subr.mxu0 0.0
        %1733 = vmatpush2.xpose.msra.mxu0 0.0
        %1734 = vmatprep.subr.mxu0 0.0
        %1735 = vmatpush2.xpose.msra.mxu0 0.0
        %1736 = vmatprep.subr.mxu0 0.0
        %1737 = vmatpush2.xpose.msra.mxu0 0.0
        %1738 = vmatprep.subr.mxu0 0.0
        %1739 = vmatpush2.xpose.msra.mxu0 0.0
        %1740 = vmatprep.subr.mxu0 0.0
        %1741 = vmatpush2.xpose.msra.mxu0 0.0
        %1742 = vmatprep.subr.mxu0 0.0
        %1743 = vmatpush2.xpose.msra.mxu0 0.0
        %1744 = vmatprep.subr.mxu0 0.0
        %1745 = vmatpush2.xpose.msra.mxu0 0.0
        %1746 = vmatprep.subr.mxu0 0.0
        %1747 = vmatpush2.xpose.msra.mxu0 0.0
        %1748 = vmatprep.subr.mxu0 0.0
        %1749 = vmatpush2.xpose.msra.mxu0 0.0
        %1750 = vmatprep.subr.mxu0 0.0
        %1751 = vmatpush2.xpose.msra.mxu0 0.0
        %1752 = vmatprep.subr.mxu0 0.0
        %1753 = vmatpush2.xpose.msra.mxu0 0.0
        %1754 = vmatprep.subr.mxu0 0.0
        %1755 = vmatpush2.xpose.msra.mxu0 0.0
        %1756 = vmatprep.subr.mxu0 0.0
        %1757 = vmatpush2.xpose.msra.mxu0 0.0
        %1758 = vmatprep.subr.mxu0 0.0
        %1759 = vmatpush2.xpose.msra.mxu0 0.0
        %1760 = vmatprep.subr.mxu0 0.0
        %1761 = vmatpush2.xpose.msra.mxu0 0.0
        %1762 = vmatprep.subr.mxu0 0.0
        %1763 = vmatpush2.xpose.msra.mxu0 0.0
        %1764 = vmatprep.mubr.f32.mxu0 0.0
        %1765 = vmatmul.mubr.f32.gmra.mxu0 %v1692
        %v1766 = vpop.f32.mrf.mxu0
        %v1767 = vadd.f32 0.0, %v1766
        %v1768 = vpop.f32.mrf.mxu0
        %1769 = vmatprep.mubr.f32.mxu0 0.0
        %1770 = vmatmul.mubr.f32.gmra.mxu0 %v1694
        %v1771 = vpop.f32.mrf.mxu0
        %v1772 = vadd.f32 0.0, %v1771
        %v1773 = vpop.f32.mrf.mxu0
        %1774 = vdwg.mxu0
        %v1775 = vsel %vm1525, %v791, 0
        %v1777 = vsel %vm1525, %v792, 0
        %v1779 = vsel %vm1525, %v923, 0
        %v1781 = vsel %vm1525, %v928, 0
        %1783 = vmatprep.subr.mxu0 0.0
        %1784 = vmatpush1.xpose.msra.mxu0 0.0
        %1785 = vmatprep.subr.mxu0 0.0
        %1786 = vmatpush1.xpose.msra.mxu0 0.0
        %1787 = vmatprep.subr.mxu0 0.0
        %1788 = vmatpush1.xpose.msra.mxu0 0.0
        %1789 = vmatprep.subr.mxu0 0.0
        %1790 = vmatpush1.xpose.msra.mxu0 0.0
        %1791 = vmatprep.subr.mxu0 0.0
        %1792 = vmatpush1.xpose.msra.mxu0 0.0
        %1793 = vmatprep.subr.mxu0 0.0
        %1794 = vmatpush1.xpose.msra.mxu0 0.0
        %1795 = vmatprep.subr.mxu0 0.0
        %1796 = vmatpush1.xpose.msra.mxu0 0.0
        %1797 = vmatprep.subr.mxu0 0.0
        %1798 = vmatpush1.xpose.msra.mxu0 0.0
        %1799 = vmatprep.subr.mxu0 0.0
        %1800 = vmatpush1.xpose.msra.mxu0 0.0
        %1801 = vmatprep.subr.mxu0 0.0
        %1802 = vmatpush1.xpose.msra.mxu0 0.0
        %1803 = vmatprep.subr.mxu0 0.0
        %1804 = vmatpush1.xpose.msra.mxu0 0.0
        %1805 = vmatprep.subr.mxu0 0.0
        %1806 = vmatpush1.xpose.msra.mxu0 0.0
        %1807 = vmatprep.subr.mxu0 0.0
        %1808 = vmatpush1.xpose.msra.mxu0 0.0
        %1809 = vmatprep.subr.mxu0 0.0
        %1810 = vmatpush1.xpose.msra.mxu0 0.0
        %1811 = vmatprep.subr.mxu0 0.0
        %1812 = vmatpush1.xpose.msra.mxu0 %v1781
        %1813 = vmatprep.subr.mxu0 0.0
        %1814 = vmatpush1.xpose.msra.mxu0 %v1779
        %1815 = vmatprep.subr.mxu0 0.0
        %1816 = vmatpush2.xpose.msra.mxu0 0.0
        %1817 = vmatprep.subr.mxu0 0.0
        %1818 = vmatpush2.xpose.msra.mxu0 0.0
        %1819 = vmatprep.subr.mxu0 0.0
        %1820 = vmatpush2.xpose.msra.mxu0 0.0
        %1821 = vmatprep.subr.mxu0 0.0
        %1822 = vmatpush2.xpose.msra.mxu0 0.0
        %1823 = vmatprep.subr.mxu0 0.0
        %1824 = vmatpush2.xpose.msra.mxu0 0.0
        %1825 = vmatprep.subr.mxu0 0.0
        %1826 = vmatpush2.xpose.msra.mxu0 0.0
        %1827 = vmatprep.subr.mxu0 0.0
        %1828 = vmatpush2.xpose.msra.mxu0 0.0
        %1829 = vmatprep.subr.mxu0 0.0
        %1830 = vmatpush2.xpose.msra.mxu0 0.0
        %1831 = vmatprep.subr.mxu0 0.0
        %1832 = vmatpush2.xpose.msra.mxu0 0.0
        %1833 = vmatprep.subr.mxu0 0.0
        %1834 = vmatpush2.xpose.msra.mxu0 0.0
        %1835 = vmatprep.subr.mxu0 0.0
        %1836 = vmatpush2.xpose.msra.mxu0 0.0
        %1837 = vmatprep.subr.mxu0 0.0
        %1838 = vmatpush2.xpose.msra.mxu0 0.0
        %1839 = vmatprep.subr.mxu0 0.0
        %1840 = vmatpush2.xpose.msra.mxu0 0.0
        %1841 = vmatprep.subr.mxu0 0.0
        %1842 = vmatpush2.xpose.msra.mxu0 0.0
        %1843 = vmatprep.subr.mxu0 0.0
        %1844 = vmatpush2.xpose.msra.mxu0 0.0
        %1845 = vmatprep.subr.mxu0 0.0
        %1846 = vmatpush2.xpose.msra.mxu0 0.0
        %1847 = vmatprep.mubr.f32.mxu0 0.0
        %1848 = vmatmul.mubr.f32.gmra.mxu0 %v1775
        %v1849 = vpop.f32.mrf.mxu0
        %v1850 = vadd.f32 0.0, %v1849
        %v1851 = vpop.f32.mrf.mxu0
        %1852 = vmatprep.mubr.f32.mxu0 0.0
        %1853 = vmatmul.mubr.f32.gmra.mxu0 %v1777
        %v1854 = vpop.f32.mrf.mxu0
        %v1855 = vadd.f32 0.0, %v1854
        %v1856 = vpop.f32.mrf.mxu0
        %1857 = vdwg.mxu0
        %v1858 = vsel %vm1525, %v793, 0
        %v1860 = vsel %vm1525, %v794, 0
        %v1862 = vsel %vm1525, %v933, 0
        %v1864 = vsel %vm1525, %v938, 0
        %1866 = vmatprep.subr.mxu0 0.0
        %1867 = vmatpush1.xpose.msra.mxu0 0.0
        %1868 = vmatprep.subr.mxu0 0.0
        %1869 = vmatpush1.xpose.msra.mxu0 0.0
        %1870 = vmatprep.subr.mxu0 0.0
        %1871 = vmatpush1.xpose.msra.mxu0 0.0
        %1872 = vmatprep.subr.mxu0 0.0
        %1873 = vmatpush1.xpose.msra.mxu0 0.0
        %1874 = vmatprep.subr.mxu0 0.0
        %1875 = vmatpush1.xpose.msra.mxu0 0.0
        %1876 = vmatprep.subr.mxu0 0.0
        %1877 = vmatpush1.xpose.msra.mxu0 0.0
        %1878 = vmatprep.subr.mxu0 0.0
        %1879 = vmatpush1.xpose.msra.mxu0 0.0
        %1880 = vmatprep.subr.mxu0 0.0
        %1881 = vmatpush1.xpose.msra.mxu0 0.0
        %1882 = vmatprep.subr.mxu0 0.0
        %1883 = vmatpush1.xpose.msra.mxu0 0.0
        %1884 = vmatprep.subr.mxu0 0.0
        %1885 = vmatpush1.xpose.msra.mxu0 0.0
        %1886 = vmatprep.subr.mxu0 0.0
        %1887 = vmatpush1.xpose.msra.mxu0 0.0
        %1888 = vmatprep.subr.mxu0 0.0
        %1889 = vmatpush1.xpose.msra.mxu0 0.0
        %1890 = vmatprep.subr.mxu0 0.0
        %1891 = vmatpush1.xpose.msra.mxu0 0.0
        %1892 = vmatprep.subr.mxu0 0.0
        %1893 = vmatpush1.xpose.msra.mxu0 0.0
        %1894 = vmatprep.subr.mxu0 0.0
        %1895 = vmatpush1.xpose.msra.mxu0 %v1864
        %1896 = vmatprep.subr.mxu0 0.0
        %1897 = vmatpush1.xpose.msra.mxu0 %v1862
        %1898 = vmatprep.subr.mxu0 0.0
        %1899 = vmatpush2.xpose.msra.mxu0 0.0
        %1900 = vmatprep.subr.mxu0 0.0
        %1901 = vmatpush2.xpose.msra.mxu0 0.0
        %1902 = vmatprep.subr.mxu0 0.0
        %1903 = vmatpush2.xpose.msra.mxu0 0.0
        %1904 = vmatprep.subr.mxu0 0.0
        %1905 = vmatpush2.xpose.msra.mxu0 0.0
        %1906 = vmatprep.subr.mxu0 0.0
        %1907 = vmatpush2.xpose.msra.mxu0 0.0
        %1908 = vmatprep.subr.mxu0 0.0
        %1909 = vmatpush2.xpose.msra.mxu0 0.0
        %1910 = vmatprep.subr.mxu0 0.0
        %1911 = vmatpush2.xpose.msra.mxu0 0.0
        %1912 = vmatprep.subr.mxu0 0.0
        %1913 = vmatpush2.xpose.msra.mxu0 0.0
        %1914 = vmatprep.subr.mxu0 0.0
        %1915 = vmatpush2.xpose.msra.mxu0 0.0
        %1916 = vmatprep.subr.mxu0 0.0
        %1917 = vmatpush2.xpose.msra.mxu0 0.0
        %1918 = vmatprep.subr.mxu0 0.0
        %1919 = vmatpush2.xpose.msra.mxu0 0.0
        %1920 = vmatprep.subr.mxu0 0.0
        %1921 = vmatpush2.xpose.msra.mxu0 0.0
        %1922 = vmatprep.subr.mxu0 0.0
        %1923 = vmatpush2.xpose.msra.mxu0 0.0
        %1924 = vmatprep.subr.mxu0 0.0
        %1925 = vmatpush2.xpose.msra.mxu0 0.0
        %1926 = vmatprep.subr.mxu0 0.0
        %1927 = vmatpush2.xpose.msra.mxu0 0.0
        %1928 = vmatprep.subr.mxu0 0.0
        %1929 = vmatpush2.xpose.msra.mxu0 0.0
        %1930 = vmatprep.mubr.f32.mxu0 0.0
        %1931 = vmatmul.mubr.f32.gmra.mxu0 %v1858
        %v1932 = vpop.f32.mrf.mxu0
        %v1933 = vadd.f32 0.0, %v1932
        %v1934 = vpop.f32.mrf.mxu0
        %1935 = vmatprep.mubr.f32.mxu0 0.0
        %1936 = vmatmul.mubr.f32.gmra.mxu0 %v1860
        %v1937 = vpop.f32.mrf.mxu0
        %v1938 = vadd.f32 0.0, %v1937
        %v1939 = vpop.f32.mrf.mxu0
        %1940 = vdwg.mxu0
        %v1941 = vsel %vm1525, %v795, 0
        %v1943 = vsel %vm1525, %v796, 0
        %v1945 = vsel %vm1525, %v943, 0
        %v1947 = vsel %vm1525, %v948, 0
        %1949 = vmatprep.subr.mxu0 0.0
        %1950 = vmatpush1.xpose.msra.mxu0 0.0
        %1951 = vmatprep.subr.mxu0 0.0
        %1952 = vmatpush1.xpose.msra.mxu0 0.0
        %1953 = vmatprep.subr.mxu0 0.0
        %1954 = vmatpush1.xpose.msra.mxu0 0.0
        %1955 = vmatprep.subr.mxu0 0.0
        %1956 = vmatpush1.xpose.msra.mxu0 0.0
        %1957 = vmatprep.subr.mxu0 0.0
        %1958 = vmatpush1.xpose.msra.mxu0 0.0
        %1959 = vmatprep.subr.mxu0 0.0
        %1960 = vmatpush1.xpose.msra.mxu0 0.0
        %1961 = vmatprep.subr.mxu0 0.0
        %1962 = vmatpush1.xpose.msra.mxu0 0.0
        %1963 = vmatprep.subr.mxu0 0.0
        %1964 = vmatpush1.xpose.msra.mxu0 0.0
        %1965 = vmatprep.subr.mxu0 0.0
        %1966 = vmatpush1.xpose.msra.mxu0 0.0
        %1967 = vmatprep.subr.mxu0 0.0
        %1968 = vmatpush1.xpose.msra.mxu0 0.0
        %1969 = vmatprep.subr.mxu0 0.0
        %1970 = vmatpush1.xpose.msra.mxu0 0.0
        %1971 = vmatprep.subr.mxu0 0.0
        %1972 = vmatpush1.xpose.msra.mxu0 0.0
        %1973 = vmatprep.subr.mxu0 0.0
        %1974 = vmatpush1.xpose.msra.mxu0 0.0
        %1975 = vmatprep.subr.mxu0 0.0
        %1976 = vmatpush1.xpose.msra.mxu0 0.0
        %1977 = vmatprep.subr.mxu0 0.0
        %1978 = vmatpush1.xpose.msra.mxu0 %v1947
        %1979 = vmatprep.subr.mxu0 0.0
        %1980 = vmatpush1.xpose.msra.mxu0 %v1945
        %1981 = vmatprep.subr.mxu0 0.0
        %1982 = vmatpush2.xpose.msra.mxu0 0.0
        %1983 = vmatprep.subr.mxu0 0.0
        %1984 = vmatpush2.xpose.msra.mxu0 0.0
        %1985 = vmatprep.subr.mxu0 0.0
        %1986 = vmatpush2.xpose.msra.mxu0 0.0
        %1987 = vmatprep.subr.mxu0 0.0
        %1988 = vmatpush2.xpose.msra.mxu0 0.0
        %1989 = vmatprep.subr.mxu0 0.0
        %1990 = vmatpush2.xpose.msra.mxu0 0.0
        %1991 = vmatprep.subr.mxu0 0.0
        %1992 = vmatpush2.xpose.msra.mxu0 0.0
        %1993 = vmatprep.subr.mxu0 0.0
        %1994 = vmatpush2.xpose.msra.mxu0 0.0
        %1995 = vmatprep.subr.mxu0 0.0
        %1996 = vmatpush2.xpose.msra.mxu0 0.0
        %1997 = vmatprep.subr.mxu0 0.0
        %1998 = vmatpush2.xpose.msra.mxu0 0.0
        %1999 = vmatprep.subr.mxu0 0.0
        %2000 = vmatpush2.xpose.msra.mxu0 0.0
        %2001 = vmatprep.subr.mxu0 0.0
        %2002 = vmatpush2.xpose.msra.mxu0 0.0
        %2003 = vmatprep.subr.mxu0 0.0
        %2004 = vmatpush2.xpose.msra.mxu0 0.0
        %2005 = vmatprep.subr.mxu0 0.0
        %2006 = vmatpush2.xpose.msra.mxu0 0.0
        %2007 = vmatprep.subr.mxu0 0.0
        %2008 = vmatpush2.xpose.msra.mxu0 0.0
        %2009 = vmatprep.subr.mxu0 0.0
        %2010 = vmatpush2.xpose.msra.mxu0 0.0
        %2011 = vmatprep.subr.mxu0 0.0
        %2012 = vmatpush2.xpose.msra.mxu0 0.0
        %2013 = vmatprep.mubr.f32.mxu0 0.0
        %2014 = vmatmul.mubr.f32.gmra.mxu0 %v1941
        %v2015 = vpop.f32.mrf.mxu0
        %v2016 = vadd.f32 0.0, %v2015
        %v2017 = vpop.f32.mrf.mxu0
        %2018 = vmatprep.mubr.f32.mxu0 0.0
        %2019 = vmatmul.mubr.f32.gmra.mxu0 %v1943
        %v2020 = vpop.f32.mrf.mxu0
        %v2021 = vadd.f32 0.0, %v2020
        %v2022 = vpop.f32.mrf.mxu0
        %2023 = vdwg.mxu0
        %v2024 = vsel %vm1525, %v797, 0
        %v2026 = vsel %vm1525, %v798, 0
        %v2028 = vsel %vm1525, %v953, 0
        %v2030 = vsel %vm1525, %v958, 0
        %2032 = vmatprep.subr.mxu0 0.0
        %2033 = vmatpush1.xpose.msra.mxu0 0.0
        %2034 = vmatprep.subr.mxu0 0.0
        %2035 = vmatpush1.xpose.msra.mxu0 0.0
        %2036 = vmatprep.subr.mxu0 0.0
        %2037 = vmatpush1.xpose.msra.mxu0 0.0
        %2038 = vmatprep.subr.mxu0 0.0
        %2039 = vmatpush1.xpose.msra.mxu0 0.0
        %2040 = vmatprep.subr.mxu0 0.0
        %2041 = vmatpush1.xpose.msra.mxu0 0.0
        %2042 = vmatprep.subr.mxu0 0.0
        %2043 = vmatpush1.xpose.msra.mxu0 0.0
        %2044 = vmatprep.subr.mxu0 0.0
        %2045 = vmatpush1.xpose.msra.mxu0 0.0
        %2046 = vmatprep.subr.mxu0 0.0
        %2047 = vmatpush1.xpose.msra.mxu0 0.0
        %2048 = vmatprep.subr.mxu0 0.0
        %2049 = vmatpush1.xpose.msra.mxu0 0.0
        %2050 = vmatprep.subr.mxu0 0.0
        %2051 = vmatpush1.xpose.msra.mxu0 0.0
        %2052 = vmatprep.subr.mxu0 0.0
        %2053 = vmatpush1.xpose.msra.mxu0 0.0
        %2054 = vmatprep.subr.mxu0 0.0
        %2055 = vmatpush1.xpose.msra.mxu0 0.0
        %2056 = vmatprep.subr.mxu0 0.0
        %2057 = vmatpush1.xpose.msra.mxu0 0.0
        %2058 = vmatprep.subr.mxu0 0.0
        %2059 = vmatpush1.xpose.msra.mxu0 0.0
        %2060 = vmatprep.subr.mxu0 0.0
        %2061 = vmatpush1.xpose.msra.mxu0 %v2030
        %2062 = vmatprep.subr.mxu0 0.0
        %2063 = vmatpush1.xpose.msra.mxu0 %v2028
        %2064 = vmatprep.subr.mxu0 0.0
        %2065 = vmatpush2.xpose.msra.mxu0 0.0
        %2066 = vmatprep.subr.mxu0 0.0
        %2067 = vmatpush2.xpose.msra.mxu0 0.0
        %2068 = vmatprep.subr.mxu0 0.0
        %2069 = vmatpush2.xpose.msra.mxu0 0.0
        %2070 = vmatprep.subr.mxu0 0.0
        %2071 = vmatpush2.xpose.msra.mxu0 0.0
        %2072 = vmatprep.subr.mxu0 0.0
        %2073 = vmatpush2.xpose.msra.mxu0 0.0
        %2074 = vmatprep.subr.mxu0 0.0
        %2075 = vmatpush2.xpose.msra.mxu0 0.0
        %2076 = vmatprep.subr.mxu0 0.0
        %2077 = vmatpush2.xpose.msra.mxu0 0.0
        %2078 = vmatprep.subr.mxu0 0.0
        %2079 = vmatpush2.xpose.msra.mxu0 0.0
        %2080 = vmatprep.subr.mxu0 0.0
        %2081 = vmatpush2.xpose.msra.mxu0 0.0
        %2082 = vmatprep.subr.mxu0 0.0
        %2083 = vmatpush2.xpose.msra.mxu0 0.0
        %2084 = vmatprep.subr.mxu0 0.0
        %2085 = vmatpush2.xpose.msra.mxu0 0.0
        %2086 = vmatprep.subr.mxu0 0.0
        %2087 = vmatpush2.xpose.msra.mxu0 0.0
        %2088 = vmatprep.subr.mxu0 0.0
        %2089 = vmatpush2.xpose.msra.mxu0 0.0
        %2090 = vmatprep.subr.mxu0 0.0
        %2091 = vmatpush2.xpose.msra.mxu0 0.0
        %2092 = vmatprep.subr.mxu0 0.0
        %2093 = vmatpush2.xpose.msra.mxu0 0.0
        %2094 = vmatprep.subr.mxu0 0.0
        %2095 = vmatpush2.xpose.msra.mxu0 0.0
        %2096 = vmatprep.mubr.f32.mxu0 0.0
        %2097 = vmatmul.mubr.f32.gmra.mxu0 %v2024
        %v2098 = vpop.f32.mrf.mxu0
        %v2099 = vadd.f32 0.0, %v2098
        %v2100 = vpop.f32.mrf.mxu0
        %2101 = vmatprep.mubr.f32.mxu0 0.0
        %2102 = vmatmul.mubr.f32.gmra.mxu0 %v2026
        %v2103 = vpop.f32.mrf.mxu0
        %v2104 = vadd.f32 0.0, %v2103
        %v2105 = vpop.f32.mrf.mxu0
        %2106 = vdwg.mxu0
        %v2107 = vsel %vm1525, %v799, 0
        %v2109 = vsel %vm1525, %v800, 0
        %v2111 = vsel %vm1525, %v963, 0
        %v2113 = vsel %vm1525, %v968, 0
        %2115 = vmatprep.subr.mxu0 0.0
        %2116 = vmatpush1.xpose.msra.mxu0 0.0
        %2117 = vmatprep.subr.mxu0 0.0
        %2118 = vmatpush1.xpose.msra.mxu0 0.0
        %2119 = vmatprep.subr.mxu0 0.0
        %2120 = vmatpush1.xpose.msra.mxu0 0.0
        %2121 = vmatprep.subr.mxu0 0.0
        %2122 = vmatpush1.xpose.msra.mxu0 0.0
        %2123 = vmatprep.subr.mxu0 0.0
        %2124 = vmatpush1.xpose.msra.mxu0 0.0
        %2125 = vmatprep.subr.mxu0 0.0
        %2126 = vmatpush1.xpose.msra.mxu0 0.0
        %2127 = vmatprep.subr.mxu0 0.0
        %2128 = vmatpush1.xpose.msra.mxu0 0.0
        %2129 = vmatprep.subr.mxu0 0.0
        %2130 = vmatpush1.xpose.msra.mxu0 0.0
        %2131 = vmatprep.subr.mxu0 0.0
        %2132 = vmatpush1.xpose.msra.mxu0 0.0
        %2133 = vmatprep.subr.mxu0 0.0
        %2134 = vmatpush1.xpose.msra.mxu0 0.0
        %2135 = vmatprep.subr.mxu0 0.0
        %2136 = vmatpush1.xpose.msra.mxu0 0.0
        %2137 = vmatprep.subr.mxu0 0.0
        %2138 = vmatpush1.xpose.msra.mxu0 0.0
        %2139 = vmatprep.subr.mxu0 0.0
        %2140 = vmatpush1.xpose.msra.mxu0 0.0
        %2141 = vmatprep.subr.mxu0 0.0
        %2142 = vmatpush1.xpose.msra.mxu0 0.0
        %2143 = vmatprep.subr.mxu0 0.0
        %2144 = vmatpush1.xpose.msra.mxu0 %v2113
        %2145 = vmatprep.subr.mxu0 0.0
        %2146 = vmatpush1.xpose.msra.mxu0 %v2111
        %2147 = vmatprep.subr.mxu0 0.0
        %2148 = vmatpush2.xpose.msra.mxu0 0.0
        %2149 = vmatprep.subr.mxu0 0.0
        %2150 = vmatpush2.xpose.msra.mxu0 0.0
        %2151 = vmatprep.subr.mxu0 0.0
        %2152 = vmatpush2.xpose.msra.mxu0 0.0
        %2153 = vmatprep.subr.mxu0 0.0
        %2154 = vmatpush2.xpose.msra.mxu0 0.0
        %2155 = vmatprep.subr.mxu0 0.0
        %2156 = vmatpush2.xpose.msra.mxu0 0.0
        %2157 = vmatprep.subr.mxu0 0.0
        %2158 = vmatpush2.xpose.msra.mxu0 0.0
        %2159 = vmatprep.subr.mxu0 0.0
        %2160 = vmatpush2.xpose.msra.mxu0 0.0
        %2161 = vmatprep.subr.mxu0 0.0
        %2162 = vmatpush2.xpose.msra.mxu0 0.0
        %2163 = vmatprep.subr.mxu0 0.0
        %2164 = vmatpush2.xpose.msra.mxu0 0.0
        %2165 = vmatprep.subr.mxu0 0.0
        %2166 = vmatpush2.xpose.msra.mxu0 0.0
        %2167 = vmatprep.subr.mxu0 0.0
        %2168 = vmatpush2.xpose.msra.mxu0 0.0
        %2169 = vmatprep.subr.mxu0 0.0
        %2170 = vmatpush2.xpose.msra.mxu0 0.0
        %2171 = vmatprep.subr.mxu0 0.0
        %2172 = vmatpush2.xpose.msra.mxu0 0.0
        %2173 = vmatprep.subr.mxu0 0.0
        %2174 = vmatpush2.xpose.msra.mxu0 0.0
        %2175 = vmatprep.subr.mxu0 0.0
        %2176 = vmatpush2.xpose.msra.mxu0 0.0
        %2177 = vmatprep.subr.mxu0 0.0
        %2178 = vmatpush2.xpose.msra.mxu0 0.0
        %2179 = vmatprep.mubr.f32.mxu0 0.0
        %2180 = vmatmul.mubr.f32.gmra.mxu0 %v2107
        %v2181 = vpop.f32.mrf.mxu0
        %v2182 = vadd.f32 0.0, %v2181
        %v2183 = vpop.f32.mrf.mxu0
        %2184 = vmatprep.mubr.f32.mxu0 0.0
        %2185 = vmatmul.mubr.f32.gmra.mxu0 %v2109
        %v2186 = vpop.f32.mrf.mxu0
        %v2187 = vadd.f32 0.0, %v2186
        %v2188 = vpop.f32.mrf.mxu0
        %2189 = vdwg.mxu0
        %v2190 = vsel %vm1525, %v1158, 0
        %v2192 = vsel %vm1525, %v1160, 0
        %v2194 = vsel %vm1525, %v1270, 0
        %v2196 = vsel %vm1525, %v1272, 0
        %2198 = vmatprep.subr.mxu0 0.0
        %2199 = vmatpush1.xpose.msra.mxu0 0.0
        %2200 = vmatprep.subr.mxu0 0.0
        %2201 = vmatpush1.xpose.msra.mxu0 0.0
        %2202 = vmatprep.subr.mxu0 0.0
        %2203 = vmatpush1.xpose.msra.mxu0 0.0
        %2204 = vmatprep.subr.mxu0 0.0
        %2205 = vmatpush1.xpose.msra.mxu0 0.0
        %2206 = vmatprep.subr.mxu0 0.0
        %2207 = vmatpush1.xpose.msra.mxu0 0.0
        %2208 = vmatprep.subr.mxu0 0.0
        %2209 = vmatpush1.xpose.msra.mxu0 0.0
        %2210 = vmatprep.subr.mxu0 0.0
        %2211 = vmatpush1.xpose.msra.mxu0 0.0
        %2212 = vmatprep.subr.mxu0 0.0
        %2213 = vmatpush1.xpose.msra.mxu0 0.0
        %2214 = vmatprep.subr.mxu0 0.0
        %2215 = vmatpush1.xpose.msra.mxu0 0.0
        %2216 = vmatprep.subr.mxu0 0.0
        %2217 = vmatpush1.xpose.msra.mxu0 0.0
        %2218 = vmatprep.subr.mxu0 0.0
        %2219 = vmatpush1.xpose.msra.mxu0 0.0
        %2220 = vmatprep.subr.mxu0 0.0
        %2221 = vmatpush1.xpose.msra.mxu0 0.0
        %2222 = vmatprep.subr.mxu0 0.0
        %2223 = vmatpush1.xpose.msra.mxu0 0.0
        %2224 = vmatprep.subr.mxu0 0.0
        %2225 = vmatpush1.xpose.msra.mxu0 0.0
        %2226 = vmatprep.subr.mxu0 0.0
        %2227 = vmatpush1.xpose.msra.mxu0 %v2196
        %2228 = vmatprep.subr.mxu0 0.0
        %2229 = vmatpush1.xpose.msra.mxu0 %v2194
        %2230 = vmatprep.subr.mxu0 0.0
        %2231 = vmatpush2.xpose.msra.mxu0 0.0
        %2232 = vmatprep.subr.mxu0 0.0
        %2233 = vmatpush2.xpose.msra.mxu0 0.0
        %2234 = vmatprep.subr.mxu0 0.0
        %2235 = vmatpush2.xpose.msra.mxu0 0.0
        %2236 = vmatprep.subr.mxu0 0.0
        %2237 = vmatpush2.xpose.msra.mxu0 0.0
        %2238 = vmatprep.subr.mxu0 0.0
        %2239 = vmatpush2.xpose.msra.mxu0 0.0
        %2240 = vmatprep.subr.mxu0 0.0
        %2241 = vmatpush2.xpose.msra.mxu0 0.0
        %2242 = vmatprep.subr.mxu0 0.0
        %2243 = vmatpush2.xpose.msra.mxu0 0.0
        %2244 = vmatprep.subr.mxu0 0.0
        %2245 = vmatpush2.xpose.msra.mxu0 0.0
        %2246 = vmatprep.subr.mxu0 0.0
        %2247 = vmatpush2.xpose.msra.mxu0 0.0
        %2248 = vmatprep.subr.mxu0 0.0
        %2249 = vmatpush2.xpose.msra.mxu0 0.0
        %2250 = vmatprep.subr.mxu0 0.0
        %2251 = vmatpush2.xpose.msra.mxu0 0.0
        %2252 = vmatprep.subr.mxu0 0.0
        %2253 = vmatpush2.xpose.msra.mxu0 0.0
        %2254 = vmatprep.subr.mxu0 0.0
        %2255 = vmatpush2.xpose.msra.mxu0 0.0
        %2256 = vmatprep.subr.mxu0 0.0
        %2257 = vmatpush2.xpose.msra.mxu0 0.0
        %2258 = vmatprep.subr.mxu0 0.0
        %2259 = vmatpush2.xpose.msra.mxu0 0.0
        %2260 = vmatprep.subr.mxu0 0.0
        %2261 = vmatpush2.xpose.msra.mxu0 0.0
        %2262 = vmatprep.mubr.f32.mxu0 0.0
        %2263 = vmatmul.mubr.f32.gmra.mxu0 %v2190
        %v2264 = vpop.f32.mrf.mxu0
        %v2265 = vadd.f32 0.0, %v2264
        %v2266 = vpop.f32.mrf.mxu0
        %2267 = vmatprep.mubr.f32.mxu0 0.0
        %2268 = vmatmul.mubr.f32.gmra.mxu0 %v2192
        %v2269 = vpop.f32.mrf.mxu0
        %v2270 = vadd.f32 0.0, %v2269
        %v2271 = vpop.f32.mrf.mxu0
        %2272 = vdwg.mxu0
        %v2273 = vsel %vm1525, %v1162, 0
        %v2275 = vsel %vm1525, %v1164, 0
        %v2277 = vsel %vm1525, %v1274, 0
        %v2279 = vsel %vm1525, %v1276, 0
        %2281 = vmatprep.subr.mxu0 0.0
        %2282 = vmatpush1.xpose.msra.mxu0 0.0
        %2283 = vmatprep.subr.mxu0 0.0
        %2284 = vmatpush1.xpose.msra.mxu0 0.0
        %2285 = vmatprep.subr.mxu0 0.0
        %2286 = vmatpush1.xpose.msra.mxu0 0.0
        %2287 = vmatprep.subr.mxu0 0.0
        %2288 = vmatpush1.xpose.msra.mxu0 0.0
        %2289 = vmatprep.subr.mxu0 0.0
        %2290 = vmatpush1.xpose.msra.mxu0 0.0
        %2291 = vmatprep.subr.mxu0 0.0
        %2292 = vmatpush1.xpose.msra.mxu0 0.0
        %2293 = vmatprep.subr.mxu0 0.0
        %2294 = vmatpush1.xpose.msra.mxu0 0.0
        %2295 = vmatprep.subr.mxu0 0.0
        %2296 = vmatpush1.xpose.msra.mxu0 0.0
        %2297 = vmatprep.subr.mxu0 0.0
        %2298 = vmatpush1.xpose.msra.mxu0 0.0
        %2299 = vmatprep.subr.mxu0 0.0
        %2300 = vmatpush1.xpose.msra.mxu0 0.0
        %2301 = vmatprep.subr.mxu0 0.0
        %2302 = vmatpush1.xpose.msra.mxu0 0.0
        %2303 = vmatprep.subr.mxu0 0.0
        %2304 = vmatpush1.xpose.msra.mxu0 0.0
        %2305 = vmatprep.subr.mxu0 0.0
        %2306 = vmatpush1.xpose.msra.mxu0 0.0
        %2307 = vmatprep.subr.mxu0 0.0
        %2308 = vmatpush1.xpose.msra.mxu0 0.0
        %2309 = vmatprep.subr.mxu0 0.0
        %2310 = vmatpush1.xpose.msra.mxu0 %v2279
        %2311 = vmatprep.subr.mxu0 0.0
        %2312 = vmatpush1.xpose.msra.mxu0 %v2277
        %2313 = vmatprep.subr.mxu0 0.0
        %2314 = vmatpush2.xpose.msra.mxu0 0.0
        %2315 = vmatprep.subr.mxu0 0.0
        %2316 = vmatpush2.xpose.msra.mxu0 0.0
        %2317 = vmatprep.subr.mxu0 0.0
        %2318 = vmatpush2.xpose.msra.mxu0 0.0
        %2319 = vmatprep.subr.mxu0 0.0
        %2320 = vmatpush2.xpose.msra.mxu0 0.0
        %2321 = vmatprep.subr.mxu0 0.0
        %2322 = vmatpush2.xpose.msra.mxu0 0.0
        %2323 = vmatprep.subr.mxu0 0.0
        %2324 = vmatpush2.xpose.msra.mxu0 0.0
        %2325 = vmatprep.subr.mxu0 0.0
        %2326 = vmatpush2.xpose.msra.mxu0 0.0
        %2327 = vmatprep.subr.mxu0 0.0
        %2328 = vmatpush2.xpose.msra.mxu0 0.0
        %2329 = vmatprep.subr.mxu0 0.0
        %2330 = vmatpush2.xpose.msra.mxu0 0.0
        %2331 = vmatprep.subr.mxu0 0.0
        %2332 = vmatpush2.xpose.msra.mxu0 0.0
        %2333 = vmatprep.subr.mxu0 0.0
        %2334 = vmatpush2.xpose.msra.mxu0 0.0
        %2335 = vmatprep.subr.mxu0 0.0
        %2336 = vmatpush2.xpose.msra.mxu0 0.0
        %2337 = vmatprep.subr.mxu0 0.0
        %2338 = vmatpush2.xpose.msra.mxu0 0.0
        %2339 = vmatprep.subr.mxu0 0.0
        %2340 = vmatpush2.xpose.msra.mxu0 0.0
        %2341 = vmatprep.subr.mxu0 0.0
        %2342 = vmatpush2.xpose.msra.mxu0 0.0
        %2343 = vmatprep.subr.mxu0 0.0
        %2344 = vmatpush2.xpose.msra.mxu0 0.0
        %2345 = vmatprep.mubr.f32.mxu0 0.0
        %2346 = vmatmul.mubr.f32.gmra.mxu0 %v2273
        %v2347 = vpop.f32.mrf.mxu0
        %v2348 = vadd.f32 0.0, %v2347
        %v2349 = vpop.f32.mrf.mxu0
        %2350 = vmatprep.mubr.f32.mxu0 0.0
        %2351 = vmatmul.mubr.f32.gmra.mxu0 %v2275
        %v2352 = vpop.f32.mrf.mxu0
        %v2353 = vadd.f32 0.0, %v2352
        %v2354 = vpop.f32.mrf.mxu0
        %2355 = vdwg.mxu0
        %v2356 = vsel %vm1525, %v1166, 0
        %v2358 = vsel %vm1525, %v1168, 0
        %v2360 = vsel %vm1525, %v1278, 0
        %v2362 = vsel %vm1525, %v1280, 0
        %2364 = vmatprep.subr.mxu0 0.0
        %2365 = vmatpush1.xpose.msra.mxu0 0.0
        %2366 = vmatprep.subr.mxu0 0.0
        %2367 = vmatpush1.xpose.msra.mxu0 0.0
        %2368 = vmatprep.subr.mxu0 0.0
        %2369 = vmatpush1.xpose.msra.mxu0 0.0
        %2370 = vmatprep.subr.mxu0 0.0
        %2371 = vmatpush1.xpose.msra.mxu0 0.0
        %2372 = vmatprep.subr.mxu0 0.0
        %2373 = vmatpush1.xpose.msra.mxu0 0.0
        %2374 = vmatprep.subr.mxu0 0.0
        %2375 = vmatpush1.xpose.msra.mxu0 0.0
        %2376 = vmatprep.subr.mxu0 0.0
        %2377 = vmatpush1.xpose.msra.mxu0 0.0
        %2378 = vmatprep.subr.mxu0 0.0
        %2379 = vmatpush1.xpose.msra.mxu0 0.0
        %2380 = vmatprep.subr.mxu0 0.0
        %2381 = vmatpush1.xpose.msra.mxu0 0.0
        %2382 = vmatprep.subr.mxu0 0.0
        %2383 = vmatpush1.xpose.msra.mxu0 0.0
        %2384 = vmatprep.subr.mxu0 0.0
        %2385 = vmatpush1.xpose.msra.mxu0 0.0
        %2386 = vmatprep.subr.mxu0 0.0
        %2387 = vmatpush1.xpose.msra.mxu0 0.0
        %2388 = vmatprep.subr.mxu0 0.0
        %2389 = vmatpush1.xpose.msra.mxu0 0.0
        %2390 = vmatprep.subr.mxu0 0.0
        %2391 = vmatpush1.xpose.msra.mxu0 0.0
        %2392 = vmatprep.subr.mxu0 0.0
        %2393 = vmatpush1.xpose.msra.mxu0 %v2362
        %2394 = vmatprep.subr.mxu0 0.0
        %2395 = vmatpush1.xpose.msra.mxu0 %v2360
        %2396 = vmatprep.subr.mxu0 0.0
        %2397 = vmatpush2.xpose.msra.mxu0 0.0
        %2398 = vmatprep.subr.mxu0 0.0
        %2399 = vmatpush2.xpose.msra.mxu0 0.0
        %2400 = vmatprep.subr.mxu0 0.0
        %2401 = vmatpush2.xpose.msra.mxu0 0.0
        %2402 = vmatprep.subr.mxu0 0.0
        %2403 = vmatpush2.xpose.msra.mxu0 0.0
        %2404 = vmatprep.subr.mxu0 0.0
        %2405 = vmatpush2.xpose.msra.mxu0 0.0
        %2406 = vmatprep.subr.mxu0 0.0
        %2407 = vmatpush2.xpose.msra.mxu0 0.0
        %2408 = vmatprep.subr.mxu0 0.0
        %2409 = vmatpush2.xpose.msra.mxu0 0.0
        %2410 = vmatprep.subr.mxu0 0.0
        %2411 = vmatpush2.xpose.msra.mxu0 0.0
        %2412 = vmatprep.subr.mxu0 0.0
        %2413 = vmatpush2.xpose.msra.mxu0 0.0
        %2414 = vmatprep.subr.mxu0 0.0
        %2415 = vmatpush2.xpose.msra.mxu0 0.0
        %2416 = vmatprep.subr.mxu0 0.0
        %2417 = vmatpush2.xpose.msra.mxu0 0.0
        %2418 = vmatprep.subr.mxu0 0.0
        %2419 = vmatpush2.xpose.msra.mxu0 0.0
        %2420 = vmatprep.subr.mxu0 0.0
        %2421 = vmatpush2.xpose.msra.mxu0 0.0
        %2422 = vmatprep.subr.mxu0 0.0
        %2423 = vmatpush2.xpose.msra.mxu0 0.0
        %2424 = vmatprep.subr.mxu0 0.0
        %2425 = vmatpush2.xpose.msra.mxu0 0.0
        %2426 = vmatprep.subr.mxu0 0.0
        %2427 = vmatpush2.xpose.msra.mxu0 0.0
        %2428 = vmatprep.mubr.f32.mxu0 0.0
        %2429 = vmatmul.mubr.f32.gmra.mxu0 %v2356
        %v2430 = vpop.f32.mrf.mxu0
        %v2431 = vadd.f32 0.0, %v2430
        %v2432 = vpop.f32.mrf.mxu0
        %2433 = vmatprep.mubr.f32.mxu0 0.0
        %2434 = vmatmul.mubr.f32.gmra.mxu0 %v2358
        %v2435 = vpop.f32.mrf.mxu0
        %v2436 = vadd.f32 0.0, %v2435
        %v2437 = vpop.f32.mrf.mxu0
        %2438 = vdwg.mxu0
        %v2439 = vsel %vm1525, %v1170, 0
        %v2441 = vsel %vm1525, %v1172, 0
        %v2443 = vsel %vm1525, %v1282, 0
        %v2445 = vsel %vm1525, %v1284, 0
        %2447 = vmatprep.subr.mxu0 0.0
        %2448 = vmatpush1.xpose.msra.mxu0 0.0
        %2449 = vmatprep.subr.mxu0 0.0
        %2450 = vmatpush1.xpose.msra.mxu0 0.0
        %2451 = vmatprep.subr.mxu0 0.0
        %2452 = vmatpush1.xpose.msra.mxu0 0.0
        %2453 = vmatprep.subr.mxu0 0.0
        %2454 = vmatpush1.xpose.msra.mxu0 0.0
        %2455 = vmatprep.subr.mxu0 0.0
        %2456 = vmatpush1.xpose.msra.mxu0 0.0
        %2457 = vmatprep.subr.mxu0 0.0
        %2458 = vmatpush1.xpose.msra.mxu0 0.0
        %2459 = vmatprep.subr.mxu0 0.0
        %2460 = vmatpush1.xpose.msra.mxu0 0.0
        %2461 = vmatprep.subr.mxu0 0.0
        %2462 = vmatpush1.xpose.msra.mxu0 0.0
        %2463 = vmatprep.subr.mxu0 0.0
        %2464 = vmatpush1.xpose.msra.mxu0 0.0
        %2465 = vmatprep.subr.mxu0 0.0
        %2466 = vmatpush1.xpose.msra.mxu0 0.0
        %2467 = vmatprep.subr.mxu0 0.0
        %2468 = vmatpush1.xpose.msra.mxu0 0.0
        %2469 = vmatprep.subr.mxu0 0.0
        %2470 = vmatpush1.xpose.msra.mxu0 0.0
        %2471 = vmatprep.subr.mxu0 0.0
        %2472 = vmatpush1.xpose.msra.mxu0 0.0
        %2473 = vmatprep.subr.mxu0 0.0
        %2474 = vmatpush1.xpose.msra.mxu0 0.0
        %2475 = vmatprep.subr.mxu0 0.0
        %2476 = vmatpush1.xpose.msra.mxu0 %v2445
        %2477 = vmatprep.subr.mxu0 0.0
        %2478 = vmatpush1.xpose.msra.mxu0 %v2443
        %2479 = vmatprep.subr.mxu0 0.0
        %2480 = vmatpush2.xpose.msra.mxu0 0.0
        %2481 = vmatprep.subr.mxu0 0.0
        %2482 = vmatpush2.xpose.msra.mxu0 0.0
        %2483 = vmatprep.subr.mxu0 0.0
        %2484 = vmatpush2.xpose.msra.mxu0 0.0
        %2485 = vmatprep.subr.mxu0 0.0
        %2486 = vmatpush2.xpose.msra.mxu0 0.0
        %2487 = vmatprep.subr.mxu0 0.0
        %2488 = vmatpush2.xpose.msra.mxu0 0.0
        %2489 = vmatprep.subr.mxu0 0.0
        %2490 = vmatpush2.xpose.msra.mxu0 0.0
        %2491 = vmatprep.subr.mxu0 0.0
        %2492 = vmatpush2.xpose.msra.mxu0 0.0
        %2493 = vmatprep.subr.mxu0 0.0
        %2494 = vmatpush2.xpose.msra.mxu0 0.0
        %2495 = vmatprep.subr.mxu0 0.0
        %2496 = vmatpush2.xpose.msra.mxu0 0.0
        %2497 = vmatprep.subr.mxu0 0.0
        %2498 = vmatpush2.xpose.msra.mxu0 0.0
        %2499 = vmatprep.subr.mxu0 0.0
        %2500 = vmatpush2.xpose.msra.mxu0 0.0
        %2501 = vmatprep.subr.mxu0 0.0
        %2502 = vmatpush2.xpose.msra.mxu0 0.0
        %2503 = vmatprep.subr.mxu0 0.0
        %2504 = vmatpush2.xpose.msra.mxu0 0.0
        %2505 = vmatprep.subr.mxu0 0.0
        %2506 = vmatpush2.xpose.msra.mxu0 0.0
        %2507 = vmatprep.subr.mxu0 0.0
        %2508 = vmatpush2.xpose.msra.mxu0 0.0
        %2509 = vmatprep.subr.mxu0 0.0
        %2510 = vmatpush2.xpose.msra.mxu0 0.0
        %2511 = vmatprep.mubr.f32.mxu0 0.0
        %2512 = vmatmul.mubr.f32.gmra.mxu0 %v2439
        %v2513 = vpop.f32.mrf.mxu0
        %v2514 = vadd.f32 0.0, %v2513
        %v2515 = vpop.f32.mrf.mxu0
        %2516 = vmatprep.mubr.f32.mxu0 0.0
        %2517 = vmatmul.mubr.f32.gmra.mxu0 %v2441
        %v2518 = vpop.f32.mrf.mxu0
        %v2519 = vadd.f32 0.0, %v2518
        %v2520 = vpop.f32.mrf.mxu0
        %2521 = vdwg.mxu0
        %v2522 = vsel %vm1525, %v1174, 0
        %v2524 = vsel %vm1525, %v1176, 0
        %v2526 = vsel %vm1525, %v1286, 0
        %v2528 = vsel %vm1525, %v1288, 0
        %2530 = vmatprep.subr.mxu0 0.0
        %2531 = vmatpush1.xpose.msra.mxu0 0.0
        %2532 = vmatprep.subr.mxu0 0.0
        %2533 = vmatpush1.xpose.msra.mxu0 0.0
        %2534 = vmatprep.subr.mxu0 0.0
        %2535 = vmatpush1.xpose.msra.mxu0 0.0
        %2536 = vmatprep.subr.mxu0 0.0
        %2537 = vmatpush1.xpose.msra.mxu0 0.0
        %2538 = vmatprep.subr.mxu0 0.0
        %2539 = vmatpush1.xpose.msra.mxu0 0.0
        %2540 = vmatprep.subr.mxu0 0.0
        %2541 = vmatpush1.xpose.msra.mxu0 0.0
        %2542 = vmatprep.subr.mxu0 0.0
        %2543 = vmatpush1.xpose.msra.mxu0 0.0
        %2544 = vmatprep.subr.mxu0 0.0
        %2545 = vmatpush1.xpose.msra.mxu0 0.0
        %2546 = vmatprep.subr.mxu0 0.0
        %2547 = vmatpush1.xpose.msra.mxu0 0.0
        %2548 = vmatprep.subr.mxu0 0.0
        %2549 = vmatpush1.xpose.msra.mxu0 0.0
        %2550 = vmatprep.subr.mxu0 0.0
        %2551 = vmatpush1.xpose.msra.mxu0 0.0
        %2552 = vmatprep.subr.mxu0 0.0
        %2553 = vmatpush1.xpose.msra.mxu0 0.0
        %2554 = vmatprep.subr.mxu0 0.0
        %2555 = vmatpush1.xpose.msra.mxu0 0.0
        %2556 = vmatprep.subr.mxu0 0.0
        %2557 = vmatpush1.xpose.msra.mxu0 0.0
        %2558 = vmatprep.subr.mxu0 0.0
        %2559 = vmatpush1.xpose.msra.mxu0 %v2528
        %2560 = vmatprep.subr.mxu0 0.0
        %2561 = vmatpush1.xpose.msra.mxu0 %v2526
        %2562 = vmatprep.subr.mxu0 0.0
        %2563 = vmatpush2.xpose.msra.mxu0 0.0
        %2564 = vmatprep.subr.mxu0 0.0
        %2565 = vmatpush2.xpose.msra.mxu0 0.0
        %2566 = vmatprep.subr.mxu0 0.0
        %2567 = vmatpush2.xpose.msra.mxu0 0.0
        %2568 = vmatprep.subr.mxu0 0.0
        %2569 = vmatpush2.xpose.msra.mxu0 0.0
        %2570 = vmatprep.subr.mxu0 0.0
        %2571 = vmatpush2.xpose.msra.mxu0 0.0
        %2572 = vmatprep.subr.mxu0 0.0
        %2573 = vmatpush2.xpose.msra.mxu0 0.0
        %2574 = vmatprep.subr.mxu0 0.0
        %2575 = vmatpush2.xpose.msra.mxu0 0.0
        %2576 = vmatprep.subr.mxu0 0.0
        %2577 = vmatpush2.xpose.msra.mxu0 0.0
        %2578 = vmatprep.subr.mxu0 0.0
        %2579 = vmatpush2.xpose.msra.mxu0 0.0
        %2580 = vmatprep.subr.mxu0 0.0
        %2581 = vmatpush2.xpose.msra.mxu0 0.0
        %2582 = vmatprep.subr.mxu0 0.0
        %2583 = vmatpush2.xpose.msra.mxu0 0.0
        %2584 = vmatprep.subr.mxu0 0.0
        %2585 = vmatpush2.xpose.msra.mxu0 0.0
        %2586 = vmatprep.subr.mxu0 0.0
        %2587 = vmatpush2.xpose.msra.mxu0 0.0
        %2588 = vmatprep.subr.mxu0 0.0
        %2589 = vmatpush2.xpose.msra.mxu0 0.0
        %2590 = vmatprep.subr.mxu0 0.0
        %2591 = vmatpush2.xpose.msra.mxu0 0.0
        %2592 = vmatprep.subr.mxu0 0.0
        %2593 = vmatpush2.xpose.msra.mxu0 0.0
        %2594 = vmatprep.mubr.f32.mxu0 0.0
        %2595 = vmatmul.mubr.f32.gmra.mxu0 %v2522
        %v2596 = vpop.f32.mrf.mxu0
        %v2597 = vadd.f32 0.0, %v2596
        %v2598 = vpop.f32.mrf.mxu0
        %2599 = vmatprep.mubr.f32.mxu0 0.0
        %2600 = vmatmul.mubr.f32.gmra.mxu0 %v2524
        %v2601 = vpop.f32.mrf.mxu0
        %v2602 = vadd.f32 0.0, %v2601
        %v2603 = vpop.f32.mrf.mxu0
        %2604 = vdwg.mxu0
        %v2605 = vsel %vm1525, %v1178, 0
        %v2607 = vsel %vm1525, %v1180, 0
        %v2609 = vsel %vm1525, %v1290, 0
        %v2611 = vsel %vm1525, %v1292, 0
        %2613 = vmatprep.subr.mxu0 0.0
        %2614 = vmatpush1.xpose.msra.mxu0 0.0
        %2615 = vmatprep.subr.mxu0 0.0
        %2616 = vmatpush1.xpose.msra.mxu0 0.0
        %2617 = vmatprep.subr.mxu0 0.0
        %2618 = vmatpush1.xpose.msra.mxu0 0.0
        %2619 = vmatprep.subr.mxu0 0.0
        %2620 = vmatpush1.xpose.msra.mxu0 0.0
        %2621 = vmatprep.subr.mxu0 0.0
        %2622 = vmatpush1.xpose.msra.mxu0 0.0
        %2623 = vmatprep.subr.mxu0 0.0
        %2624 = vmatpush1.xpose.msra.mxu0 0.0
        %2625 = vmatprep.subr.mxu0 0.0
        %2626 = vmatpush1.xpose.msra.mxu0 0.0
        %2627 = vmatprep.subr.mxu0 0.0
        %2628 = vmatpush1.xpose.msra.mxu0 0.0
        %2629 = vmatprep.subr.mxu0 0.0
        %2630 = vmatpush1.xpose.msra.mxu0 0.0
        %2631 = vmatprep.subr.mxu0 0.0
        %2632 = vmatpush1.xpose.msra.mxu0 0.0
        %2633 = vmatprep.subr.mxu0 0.0
        %2634 = vmatpush1.xpose.msra.mxu0 0.0
        %2635 = vmatprep.subr.mxu0 0.0
        %2636 = vmatpush1.xpose.msra.mxu0 0.0
        %2637 = vmatprep.subr.mxu0 0.0
        %2638 = vmatpush1.xpose.msra.mxu0 0.0
        %2639 = vmatprep.subr.mxu0 0.0
        %2640 = vmatpush1.xpose.msra.mxu0 0.0
        %2641 = vmatprep.subr.mxu0 0.0
        %2642 = vmatpush1.xpose.msra.mxu0 %v2611
        %2643 = vmatprep.subr.mxu0 0.0
        %2644 = vmatpush1.xpose.msra.mxu0 %v2609
        %2645 = vmatprep.subr.mxu0 0.0
        %2646 = vmatpush2.xpose.msra.mxu0 0.0
        %2647 = vmatprep.subr.mxu0 0.0
        %2648 = vmatpush2.xpose.msra.mxu0 0.0
        %2649 = vmatprep.subr.mxu0 0.0
        %2650 = vmatpush2.xpose.msra.mxu0 0.0
        %2651 = vmatprep.subr.mxu0 0.0
        %2652 = vmatpush2.xpose.msra.mxu0 0.0
        %2653 = vmatprep.subr.mxu0 0.0
        %2654 = vmatpush2.xpose.msra.mxu0 0.0
        %2655 = vmatprep.subr.mxu0 0.0
        %2656 = vmatpush2.xpose.msra.mxu0 0.0
        %2657 = vmatprep.subr.mxu0 0.0
        %2658 = vmatpush2.xpose.msra.mxu0 0.0
        %2659 = vmatprep.subr.mxu0 0.0
        %2660 = vmatpush2.xpose.msra.mxu0 0.0
        %2661 = vmatprep.subr.mxu0 0.0
        %2662 = vmatpush2.xpose.msra.mxu0 0.0
        %2663 = vmatprep.subr.mxu0 0.0
        %2664 = vmatpush2.xpose.msra.mxu0 0.0
        %2665 = vmatprep.subr.mxu0 0.0
        %2666 = vmatpush2.xpose.msra.mxu0 0.0
        %2667 = vmatprep.subr.mxu0 0.0
        %2668 = vmatpush2.xpose.msra.mxu0 0.0
        %2669 = vmatprep.subr.mxu0 0.0
        %2670 = vmatpush2.xpose.msra.mxu0 0.0
        %2671 = vmatprep.subr.mxu0 0.0
        %2672 = vmatpush2.xpose.msra.mxu0 0.0
        %2673 = vmatprep.subr.mxu0 0.0
        %2674 = vmatpush2.xpose.msra.mxu0 0.0
        %2675 = vmatprep.subr.mxu0 0.0
        %2676 = vmatpush2.xpose.msra.mxu0 0.0
        %2677 = vmatprep.mubr.f32.mxu0 0.0
        %2678 = vmatmul.mubr.f32.gmra.mxu0 %v2605
        %v2679 = vpop.f32.mrf.mxu0
        %v2680 = vadd.f32 0.0, %v2679
        %v2681 = vpop.f32.mrf.mxu0
        %2682 = vmatprep.mubr.f32.mxu0 0.0
        %2683 = vmatmul.mubr.f32.gmra.mxu0 %v2607
        %v2684 = vpop.f32.mrf.mxu0
        %v2685 = vadd.f32 0.0, %v2684
        %v2686 = vpop.f32.mrf.mxu0
        %2687 = vdwg.mxu0
        %v2688 = vsel %vm1525, %v1182, 0
        %v2690 = vsel %vm1525, %v1184, 0
        %v2692 = vsel %vm1525, %v1294, 0
        %v2694 = vsel %vm1525, %v1296, 0
        %2696 = vmatprep.subr.mxu0 0.0
        %2697 = vmatpush1.xpose.msra.mxu0 0.0
        %2698 = vmatprep.subr.mxu0 0.0
        %2699 = vmatpush1.xpose.msra.mxu0 0.0
        %2700 = vmatprep.subr.mxu0 0.0
        %2701 = vmatpush1.xpose.msra.mxu0 0.0
        %2702 = vmatprep.subr.mxu0 0.0
        %2703 = vmatpush1.xpose.msra.mxu0 0.0
        %2704 = vmatprep.subr.mxu0 0.0
        %2705 = vmatpush1.xpose.msra.mxu0 0.0
        %2706 = vmatprep.subr.mxu0 0.0
        %2707 = vmatpush1.xpose.msra.mxu0 0.0
        %2708 = vmatprep.subr.mxu0 0.0
        %2709 = vmatpush1.xpose.msra.mxu0 0.0
        %2710 = vmatprep.subr.mxu0 0.0
        %2711 = vmatpush1.xpose.msra.mxu0 0.0
        %2712 = vmatprep.subr.mxu0 0.0
        %2713 = vmatpush1.xpose.msra.mxu0 0.0
        %2714 = vmatprep.subr.mxu0 0.0
        %2715 = vmatpush1.xpose.msra.mxu0 0.0
        %2716 = vmatprep.subr.mxu0 0.0
        %2717 = vmatpush1.xpose.msra.mxu0 0.0
        %2718 = vmatprep.subr.mxu0 0.0
        %2719 = vmatpush1.xpose.msra.mxu0 0.0
        %2720 = vmatprep.subr.mxu0 0.0
        %2721 = vmatpush1.xpose.msra.mxu0 0.0
        %2722 = vmatprep.subr.mxu0 0.0
        %2723 = vmatpush1.xpose.msra.mxu0 0.0
        %2724 = vmatprep.subr.mxu0 0.0
        %2725 = vmatpush1.xpose.msra.mxu0 %v2694
        %2726 = vmatprep.subr.mxu0 0.0
        %2727 = vmatpush1.xpose.msra.mxu0 %v2692
        %2728 = vmatprep.subr.mxu0 0.0
        %2729 = vmatpush2.xpose.msra.mxu0 0.0
        %2730 = vmatprep.subr.mxu0 0.0
        %2731 = vmatpush2.xpose.msra.mxu0 0.0
        %2732 = vmatprep.subr.mxu0 0.0
        %2733 = vmatpush2.xpose.msra.mxu0 0.0
        %2734 = vmatprep.subr.mxu0 0.0
        %2735 = vmatpush2.xpose.msra.mxu0 0.0
        %2736 = vmatprep.subr.mxu0 0.0
        %2737 = vmatpush2.xpose.msra.mxu0 0.0
        %2738 = vmatprep.subr.mxu0 0.0
        %2739 = vmatpush2.xpose.msra.mxu0 0.0
        %2740 = vmatprep.subr.mxu0 0.0
        %2741 = vmatpush2.xpose.msra.mxu0 0.0
        %2742 = vmatprep.subr.mxu0 0.0
        %2743 = vmatpush2.xpose.msra.mxu0 0.0
        %2744 = vmatprep.subr.mxu0 0.0
        %2745 = vmatpush2.xpose.msra.mxu0 0.0
        %2746 = vmatprep.subr.mxu0 0.0
        %2747 = vmatpush2.xpose.msra.mxu0 0.0
        %2748 = vmatprep.subr.mxu0 0.0
        %2749 = vmatpush2.xpose.msra.mxu0 0.0
        %2750 = vmatprep.subr.mxu0 0.0
        %2751 = vmatpush2.xpose.msra.mxu0 0.0
        %2752 = vmatprep.subr.mxu0 0.0
        %2753 = vmatpush2.xpose.msra.mxu0 0.0
        %2754 = vmatprep.subr.mxu0 0.0
        %2755 = vmatpush2.xpose.msra.mxu0 0.0
        %2756 = vmatprep.subr.mxu0 0.0
        %2757 = vmatpush2.xpose.msra.mxu0 0.0
        %2758 = vmatprep.subr.mxu0 0.0
        %2759 = vmatpush2.xpose.msra.mxu0 0.0
        %2760 = vmatprep.mubr.f32.mxu0 0.0
        %2761 = vmatmul.mubr.f32.gmra.mxu0 %v2688
        %v2762 = vpop.f32.mrf.mxu0
        %v2763 = vadd.f32 0.0, %v2762
        %v2764 = vpop.f32.mrf.mxu0
        %2765 = vmatprep.mubr.f32.mxu0 0.0
        %2766 = vmatmul.mubr.f32.gmra.mxu0 %v2690
        %v2767 = vpop.f32.mrf.mxu0
        %v2768 = vadd.f32 0.0, %v2767
        %v2769 = vpop.f32.mrf.mxu0
        %2770 = vdwg.mxu0
        %v2771 = vsel %vm1525, %v1186, 0
        %v2773 = vsel %vm1525, %v1188, 0
        %v2775 = vsel %vm1525, %v1298, 0
        %v2777 = vsel %vm1525, %v1300, 0
        %2779 = vmatprep.subr.mxu0 0.0
        %2780 = vmatpush1.xpose.msra.mxu0 0.0
        %2781 = vmatprep.subr.mxu0 0.0
        %2782 = vmatpush1.xpose.msra.mxu0 0.0
        %2783 = vmatprep.subr.mxu0 0.0
        %2784 = vmatpush1.xpose.msra.mxu0 0.0
        %2785 = vmatprep.subr.mxu0 0.0
        %2786 = vmatpush1.xpose.msra.mxu0 0.0
        %2787 = vmatprep.subr.mxu0 0.0
        %2788 = vmatpush1.xpose.msra.mxu0 0.0
        %2789 = vmatprep.subr.mxu0 0.0
        %2790 = vmatpush1.xpose.msra.mxu0 0.0
        %2791 = vmatprep.subr.mxu0 0.0
        %2792 = vmatpush1.xpose.msra.mxu0 0.0
        %2793 = vmatprep.subr.mxu0 0.0
        %2794 = vmatpush1.xpose.msra.mxu0 0.0
        %2795 = vmatprep.subr.mxu0 0.0
        %2796 = vmatpush1.xpose.msra.mxu0 0.0
        %2797 = vmatprep.subr.mxu0 0.0
        %2798 = vmatpush1.xpose.msra.mxu0 0.0
        %2799 = vmatprep.subr.mxu0 0.0
        %2800 = vmatpush1.xpose.msra.mxu0 0.0
        %2801 = vmatprep.subr.mxu0 0.0
        %2802 = vmatpush1.xpose.msra.mxu0 0.0
        %2803 = vmatprep.subr.mxu0 0.0
        %2804 = vmatpush1.xpose.msra.mxu0 0.0
        %2805 = vmatprep.subr.mxu0 0.0
        %2806 = vmatpush1.xpose.msra.mxu0 0.0
        %2807 = vmatprep.subr.mxu0 0.0
        %2808 = vmatpush1.xpose.msra.mxu0 %v2777
        %2809 = vmatprep.subr.mxu0 0.0
        %2810 = vmatpush1.xpose.msra.mxu0 %v2775
        %2811 = vmatprep.subr.mxu0 0.0
        %2812 = vmatpush2.xpose.msra.mxu0 0.0
        %2813 = vmatprep.subr.mxu0 0.0
        %2814 = vmatpush2.xpose.msra.mxu0 0.0
        %2815 = vmatprep.subr.mxu0 0.0
        %2816 = vmatpush2.xpose.msra.mxu0 0.0
        %2817 = vmatprep.subr.mxu0 0.0
        %2818 = vmatpush2.xpose.msra.mxu0 0.0
        %2819 = vmatprep.subr.mxu0 0.0
        %2820 = vmatpush2.xpose.msra.mxu0 0.0
        %2821 = vmatprep.subr.mxu0 0.0
        %2822 = vmatpush2.xpose.msra.mxu0 0.0
        %2823 = vmatprep.subr.mxu0 0.0
        %2824 = vmatpush2.xpose.msra.mxu0 0.0
        %2825 = vmatprep.subr.mxu0 0.0
        %2826 = vmatpush2.xpose.msra.mxu0 0.0
        %2827 = vmatprep.subr.mxu0 0.0
        %2828 = vmatpush2.xpose.msra.mxu0 0.0
        %2829 = vmatprep.subr.mxu0 0.0
        %2830 = vmatpush2.xpose.msra.mxu0 0.0
        %2831 = vmatprep.subr.mxu0 0.0
        %2832 = vmatpush2.xpose.msra.mxu0 0.0
        %2833 = vmatprep.subr.mxu0 0.0
        %2834 = vmatpush2.xpose.msra.mxu0 0.0
        %2835 = vmatprep.subr.mxu0 0.0
        %2836 = vmatpush2.xpose.msra.mxu0 0.0
        %2837 = vmatprep.subr.mxu0 0.0
        %2838 = vmatpush2.xpose.msra.mxu0 0.0
        %2839 = vmatprep.subr.mxu0 0.0
        %2840 = vmatpush2.xpose.msra.mxu0 0.0
        %2841 = vmatprep.subr.mxu0 0.0
        %2842 = vmatpush2.xpose.msra.mxu0 0.0
        %2843 = vmatprep.mubr.f32.mxu0 0.0
        %2844 = vmatmul.mubr.f32.gmra.mxu0 %v2771
        %v2845 = vpop.f32.mrf.mxu0
        %v2846 = vadd.f32 0.0, %v2845
        %v2847 = vpop.f32.mrf.mxu0
        %2848 = vmatprep.mubr.f32.mxu0 0.0
        %2849 = vmatmul.mubr.f32.gmra.mxu0 %v2773
        %v2850 = vpop.f32.mrf.mxu0
        %v2851 = vadd.f32 0.0, %v2850
        %v2852 = vpop.f32.mrf.mxu0
        %2853 = vdwg.mxu0
        %v2854 = vsel %vm1525, %v1190, 0
        %v2856 = vsel %vm1525, %v1192, 0
        %v2858 = vsel %vm1525, %v1302, 0
        %v2860 = vsel %vm1525, %v1304, 0
        %2862 = vmatprep.subr.mxu0 0.0
        %2863 = vmatpush1.xpose.msra.mxu0 0.0
        %2864 = vmatprep.subr.mxu0 0.0
        %2865 = vmatpush1.xpose.msra.mxu0 0.0
        %2866 = vmatprep.subr.mxu0 0.0
        %2867 = vmatpush1.xpose.msra.mxu0 0.0
        %2868 = vmatprep.subr.mxu0 0.0
        %2869 = vmatpush1.xpose.msra.mxu0 0.0
        %2870 = vmatprep.subr.mxu0 0.0
        %2871 = vmatpush1.xpose.msra.mxu0 0.0
        %2872 = vmatprep.subr.mxu0 0.0
        %2873 = vmatpush1.xpose.msra.mxu0 0.0
        %2874 = vmatprep.subr.mxu0 0.0
        %2875 = vmatpush1.xpose.msra.mxu0 0.0
        %2876 = vmatprep.subr.mxu0 0.0
        %2877 = vmatpush1.xpose.msra.mxu0 0.0
        %2878 = vmatprep.subr.mxu0 0.0
        %2879 = vmatpush1.xpose.msra.mxu0 0.0
        %2880 = vmatprep.subr.mxu0 0.0
        %2881 = vmatpush1.xpose.msra.mxu0 0.0
        %2882 = vmatprep.subr.mxu0 0.0
        %2883 = vmatpush1.xpose.msra.mxu0 0.0
        %2884 = vmatprep.subr.mxu0 0.0
        %2885 = vmatpush1.xpose.msra.mxu0 0.0
        %2886 = vmatprep.subr.mxu0 0.0
        %2887 = vmatpush1.xpose.msra.mxu0 0.0
        %2888 = vmatprep.subr.mxu0 0.0
        %2889 = vmatpush1.xpose.msra.mxu0 0.0
        %2890 = vmatprep.subr.mxu0 0.0
        %2891 = vmatpush1.xpose.msra.mxu0 %v2860
        %2892 = vmatprep.subr.mxu0 0.0
        %2893 = vmatpush1.xpose.msra.mxu0 %v2858
        %2894 = vmatprep.subr.mxu0 0.0
        %2895 = vmatpush2.xpose.msra.mxu0 0.0
        %2896 = vmatprep.subr.mxu0 0.0
        %2897 = vmatpush2.xpose.msra.mxu0 0.0
        %2898 = vmatprep.subr.mxu0 0.0
        %2899 = vmatpush2.xpose.msra.mxu0 0.0
        %2900 = vmatprep.subr.mxu0 0.0
        %2901 = vmatpush2.xpose.msra.mxu0 0.0
        %2902 = vmatprep.subr.mxu0 0.0
        %2903 = vmatpush2.xpose.msra.mxu0 0.0
        %2904 = vmatprep.subr.mxu0 0.0
        %2905 = vmatpush2.xpose.msra.mxu0 0.0
        %2906 = vmatprep.subr.mxu0 0.0
        %2907 = vmatpush2.xpose.msra.mxu0 0.0
        %2908 = vmatprep.subr.mxu0 0.0
        %2909 = vmatpush2.xpose.msra.mxu0 0.0
        %2910 = vmatprep.subr.mxu0 0.0
        %2911 = vmatpush2.xpose.msra.mxu0 0.0
        %2912 = vmatprep.subr.mxu0 0.0
        %2913 = vmatpush2.xpose.msra.mxu0 0.0
        %2914 = vmatprep.subr.mxu0 0.0
        %2915 = vmatpush2.xpose.msra.mxu0 0.0
        %2916 = vmatprep.subr.mxu0 0.0
        %2917 = vmatpush2.xpose.msra.mxu0 0.0
        %2918 = vmatprep.subr.mxu0 0.0
        %2919 = vmatpush2.xpose.msra.mxu0 0.0
        %2920 = vmatprep.subr.mxu0 0.0
        %2921 = vmatpush2.xpose.msra.mxu0 0.0
        %2922 = vmatprep.subr.mxu0 0.0
        %2923 = vmatpush2.xpose.msra.mxu0 0.0
        %2924 = vmatprep.subr.mxu0 0.0
        %2925 = vmatpush2.xpose.msra.mxu0 0.0
        %2926 = vmatprep.mubr.f32.mxu0 0.0
        %2927 = vmatmul.mubr.f32.gmra.mxu0 %v2854
        %v2928 = vpop.f32.mrf.mxu0
        %v2929 = vadd.f32 0.0, %v2928
        %v2930 = vpop.f32.mrf.mxu0
        %2931 = vmatprep.mubr.f32.mxu0 0.0
        %2932 = vmatmul.mubr.f32.gmra.mxu0 %v2856
        %v2933 = vpop.f32.mrf.mxu0
        %v2934 = vadd.f32 0.0, %v2933
        %v2935 = vpop.f32.mrf.mxu0
        %2936 = vdwg.mxu0
        %v2937 = vsel %vm1525, %v1194, 0
        %v2939 = vsel %vm1525, %v1196, 0
        %v2941 = vsel %vm1525, %v1306, 0
        %v2943 = vsel %vm1525, %v1308, 0
        %2945 = vmatprep.subr.mxu0 0.0
        %2946 = vmatpush1.xpose.msra.mxu0 0.0
        %2947 = vmatprep.subr.mxu0 0.0
        %2948 = vmatpush1.xpose.msra.mxu0 0.0
        %2949 = vmatprep.subr.mxu0 0.0
        %2950 = vmatpush1.xpose.msra.mxu0 0.0
        %2951 = vmatprep.subr.mxu0 0.0
        %2952 = vmatpush1.xpose.msra.mxu0 0.0
        %2953 = vmatprep.subr.mxu0 0.0
        %2954 = vmatpush1.xpose.msra.mxu0 0.0
        %2955 = vmatprep.subr.mxu0 0.0
        %2956 = vmatpush1.xpose.msra.mxu0 0.0
        %2957 = vmatprep.subr.mxu0 0.0
        %2958 = vmatpush1.xpose.msra.mxu0 0.0
        %2959 = vmatprep.subr.mxu0 0.0
        %2960 = vmatpush1.xpose.msra.mxu0 0.0
        %2961 = vmatprep.subr.mxu0 0.0
        %2962 = vmatpush1.xpose.msra.mxu0 0.0
        %2963 = vmatprep.subr.mxu0 0.0
        %2964 = vmatpush1.xpose.msra.mxu0 0.0
        %2965 = vmatprep.subr.mxu0 0.0
        %2966 = vmatpush1.xpose.msra.mxu0 0.0
        %2967 = vmatprep.subr.mxu0 0.0
        %2968 = vmatpush1.xpose.msra.mxu0 0.0
        %2969 = vmatprep.subr.mxu0 0.0
        %2970 = vmatpush1.xpose.msra.mxu0 0.0
        %2971 = vmatprep.subr.mxu0 0.0
        %2972 = vmatpush1.xpose.msra.mxu0 0.0
        %2973 = vmatprep.subr.mxu0 0.0
        %2974 = vmatpush1.xpose.msra.mxu0 %v2943
        %2975 = vmatprep.subr.mxu0 0.0
        %2976 = vmatpush1.xpose.msra.mxu0 %v2941
        %2977 = vmatprep.subr.mxu0 0.0
        %2978 = vmatpush2.xpose.msra.mxu0 0.0
        %2979 = vmatprep.subr.mxu0 0.0
        %2980 = vmatpush2.xpose.msra.mxu0 0.0
        %2981 = vmatprep.subr.mxu0 0.0
        %2982 = vmatpush2.xpose.msra.mxu0 0.0
        %2983 = vmatprep.subr.mxu0 0.0
        %2984 = vmatpush2.xpose.msra.mxu0 0.0
        %2985 = vmatprep.subr.mxu0 0.0
        %2986 = vmatpush2.xpose.msra.mxu0 0.0
        %2987 = vmatprep.subr.mxu0 0.0
        %2988 = vmatpush2.xpose.msra.mxu0 0.0
        %2989 = vmatprep.subr.mxu0 0.0
        %2990 = vmatpush2.xpose.msra.mxu0 0.0
        %2991 = vmatprep.subr.mxu0 0.0
        %2992 = vmatpush2.xpose.msra.mxu0 0.0
        %2993 = vmatprep.subr.mxu0 0.0
        %2994 = vmatpush2.xpose.msra.mxu0 0.0
        %2995 = vmatprep.subr.mxu0 0.0
        %2996 = vmatpush2.xpose.msra.mxu0 0.0
        %2997 = vmatprep.subr.mxu0 0.0
        %2998 = vmatpush2.xpose.msra.mxu0 0.0
        %2999 = vmatprep.subr.mxu0 0.0
        %3000 = vmatpush2.xpose.msra.mxu0 0.0
        %3001 = vmatprep.subr.mxu0 0.0
        %3002 = vmatpush2.xpose.msra.mxu0 0.0
        %3003 = vmatprep.subr.mxu0 0.0
        %3004 = vmatpush2.xpose.msra.mxu0 0.0
        %3005 = vmatprep.subr.mxu0 0.0
        %3006 = vmatpush2.xpose.msra.mxu0 0.0
        %3007 = vmatprep.subr.mxu0 0.0
        %3008 = vmatpush2.xpose.msra.mxu0 0.0
        %3009 = vmatprep.mubr.f32.mxu0 0.0
        %3010 = vmatmul.mubr.f32.gmra.mxu0 %v2937
        %v3011 = vpop.f32.mrf.mxu0
        %v3012 = vadd.f32 0.0, %v3011
        %v3013 = vpop.f32.mrf.mxu0
        %3014 = vmatprep.mubr.f32.mxu0 0.0
        %3015 = vmatmul.mubr.f32.gmra.mxu0 %v2939
        %v3016 = vpop.f32.mrf.mxu0
        %v3017 = vadd.f32 0.0, %v3016
        %v3018 = vpop.f32.mrf.mxu0
        %3019 = vdwg.mxu0
        %v3020 = vsel %vm1525, %v1198, 0
        %v3022 = vsel %vm1525, %v1200, 0
        %v3024 = vsel %vm1525, %v1310, 0
        %v3026 = vsel %vm1525, %v1312, 0
        %3028 = vmatprep.subr.mxu0 0.0
        %3029 = vmatpush1.xpose.msra.mxu0 0.0
        %3030 = vmatprep.subr.mxu0 0.0
        %3031 = vmatpush1.xpose.msra.mxu0 0.0
        %3032 = vmatprep.subr.mxu0 0.0
        %3033 = vmatpush1.xpose.msra.mxu0 0.0
        %3034 = vmatprep.subr.mxu0 0.0
        %3035 = vmatpush1.xpose.msra.mxu0 0.0
        %3036 = vmatprep.subr.mxu0 0.0
        %3037 = vmatpush1.xpose.msra.mxu0 0.0
        %3038 = vmatprep.subr.mxu0 0.0
        %3039 = vmatpush1.xpose.msra.mxu0 0.0
        %3040 = vmatprep.subr.mxu0 0.0
        %3041 = vmatpush1.xpose.msra.mxu0 0.0
        %3042 = vmatprep.subr.mxu0 0.0
        %3043 = vmatpush1.xpose.msra.mxu0 0.0
        %3044 = vmatprep.subr.mxu0 0.0
        %3045 = vmatpush1.xpose.msra.mxu0 0.0
        %3046 = vmatprep.subr.mxu0 0.0
        %3047 = vmatpush1.xpose.msra.mxu0 0.0
        %3048 = vmatprep.subr.mxu0 0.0
        %3049 = vmatpush1.xpose.msra.mxu0 0.0
        %3050 = vmatprep.subr.mxu0 0.0
        %3051 = vmatpush1.xpose.msra.mxu0 0.0
        %3052 = vmatprep.subr.mxu0 0.0
        %3053 = vmatpush1.xpose.msra.mxu0 0.0
        %3054 = vmatprep.subr.mxu0 0.0
        %3055 = vmatpush1.xpose.msra.mxu0 0.0
        %3056 = vmatprep.subr.mxu0 0.0
        %3057 = vmatpush1.xpose.msra.mxu0 %v3026
        %3058 = vmatprep.subr.mxu0 0.0
        %3059 = vmatpush1.xpose.msra.mxu0 %v3024
        %3060 = vmatprep.subr.mxu0 0.0
        %3061 = vmatpush2.xpose.msra.mxu0 0.0
        %3062 = vmatprep.subr.mxu0 0.0
        %3063 = vmatpush2.xpose.msra.mxu0 0.0
        %3064 = vmatprep.subr.mxu0 0.0
        %3065 = vmatpush2.xpose.msra.mxu0 0.0
        %3066 = vmatprep.subr.mxu0 0.0
        %3067 = vmatpush2.xpose.msra.mxu0 0.0
        %3068 = vmatprep.subr.mxu0 0.0
        %3069 = vmatpush2.xpose.msra.mxu0 0.0
        %3070 = vmatprep.subr.mxu0 0.0
        %3071 = vmatpush2.xpose.msra.mxu0 0.0
        %3072 = vmatprep.subr.mxu0 0.0
        %3073 = vmatpush2.xpose.msra.mxu0 0.0
        %3074 = vmatprep.subr.mxu0 0.0
        %3075 = vmatpush2.xpose.msra.mxu0 0.0
        %3076 = vmatprep.subr.mxu0 0.0
        %3077 = vmatpush2.xpose.msra.mxu0 0.0
        %3078 = vmatprep.subr.mxu0 0.0
        %3079 = vmatpush2.xpose.msra.mxu0 0.0
        %3080 = vmatprep.subr.mxu0 0.0
        %3081 = vmatpush2.xpose.msra.mxu0 0.0
        %3082 = vmatprep.subr.mxu0 0.0
        %3083 = vmatpush2.xpose.msra.mxu0 0.0
        %3084 = vmatprep.subr.mxu0 0.0
        %3085 = vmatpush2.xpose.msra.mxu0 0.0
        %3086 = vmatprep.subr.mxu0 0.0
        %3087 = vmatpush2.xpose.msra.mxu0 0.0
        %3088 = vmatprep.subr.mxu0 0.0
        %3089 = vmatpush2.xpose.msra.mxu0 0.0
        %3090 = vmatprep.subr.mxu0 0.0
        %3091 = vmatpush2.xpose.msra.mxu0 0.0
        %3092 = vmatprep.mubr.f32.mxu0 0.0
        %3093 = vmatmul.mubr.f32.gmra.mxu0 %v3020
        %v3094 = vpop.f32.mrf.mxu0
        %v3095 = vadd.f32 0.0, %v3094
        %v3096 = vpop.f32.mrf.mxu0
        %3097 = vmatprep.mubr.f32.mxu0 0.0
        %3098 = vmatmul.mubr.f32.gmra.mxu0 %v3022
        %v3099 = vpop.f32.mrf.mxu0
        %v3100 = vadd.f32 0.0, %v3099
        %v3101 = vpop.f32.mrf.mxu0
        %3102 = vdwg.mxu0
        %v3103 = vsel %vm1525, %v1202, 0
        %v3105 = vsel %vm1525, %v1204, 0
        %v3107 = vsel %vm1525, %v1314, 0
        %v3109 = vsel %vm1525, %v1316, 0
        %3111 = vmatprep.subr.mxu0 0.0
        %3112 = vmatpush1.xpose.msra.mxu0 0.0
        %3113 = vmatprep.subr.mxu0 0.0
        %3114 = vmatpush1.xpose.msra.mxu0 0.0
        %3115 = vmatprep.subr.mxu0 0.0
        %3116 = vmatpush1.xpose.msra.mxu0 0.0
        %3117 = vmatprep.subr.mxu0 0.0
        %3118 = vmatpush1.xpose.msra.mxu0 0.0
        %3119 = vmatprep.subr.mxu0 0.0
        %3120 = vmatpush1.xpose.msra.mxu0 0.0
        %3121 = vmatprep.subr.mxu0 0.0
        %3122 = vmatpush1.xpose.msra.mxu0 0.0
        %3123 = vmatprep.subr.mxu0 0.0
        %3124 = vmatpush1.xpose.msra.mxu0 0.0
        %3125 = vmatprep.subr.mxu0 0.0
        %3126 = vmatpush1.xpose.msra.mxu0 0.0
        %3127 = vmatprep.subr.mxu0 0.0
        %3128 = vmatpush1.xpose.msra.mxu0 0.0
        %3129 = vmatprep.subr.mxu0 0.0
        %3130 = vmatpush1.xpose.msra.mxu0 0.0
        %3131 = vmatprep.subr.mxu0 0.0
        %3132 = vmatpush1.xpose.msra.mxu0 0.0
        %3133 = vmatprep.subr.mxu0 0.0
        %3134 = vmatpush1.xpose.msra.mxu0 0.0
        %3135 = vmatprep.subr.mxu0 0.0
        %3136 = vmatpush1.xpose.msra.mxu0 0.0
        %3137 = vmatprep.subr.mxu0 0.0
        %3138 = vmatpush1.xpose.msra.mxu0 0.0
        %3139 = vmatprep.subr.mxu0 0.0
        %3140 = vmatpush1.xpose.msra.mxu0 %v3109
        %3141 = vmatprep.subr.mxu0 0.0
        %3142 = vmatpush1.xpose.msra.mxu0 %v3107
        %3143 = vmatprep.subr.mxu0 0.0
        %3144 = vmatpush2.xpose.msra.mxu0 0.0
        %3145 = vmatprep.subr.mxu0 0.0
        %3146 = vmatpush2.xpose.msra.mxu0 0.0
        %3147 = vmatprep.subr.mxu0 0.0
        %3148 = vmatpush2.xpose.msra.mxu0 0.0
        %3149 = vmatprep.subr.mxu0 0.0
        %3150 = vmatpush2.xpose.msra.mxu0 0.0
        %3151 = vmatprep.subr.mxu0 0.0
        %3152 = vmatpush2.xpose.msra.mxu0 0.0
        %3153 = vmatprep.subr.mxu0 0.0
        %3154 = vmatpush2.xpose.msra.mxu0 0.0
        %3155 = vmatprep.subr.mxu0 0.0
        %3156 = vmatpush2.xpose.msra.mxu0 0.0
        %3157 = vmatprep.subr.mxu0 0.0
        %3158 = vmatpush2.xpose.msra.mxu0 0.0
        %3159 = vmatprep.subr.mxu0 0.0
        %3160 = vmatpush2.xpose.msra.mxu0 0.0
        %3161 = vmatprep.subr.mxu0 0.0
        %3162 = vmatpush2.xpose.msra.mxu0 0.0
        %3163 = vmatprep.subr.mxu0 0.0
        %3164 = vmatpush2.xpose.msra.mxu0 0.0
        %3165 = vmatprep.subr.mxu0 0.0
        %3166 = vmatpush2.xpose.msra.mxu0 0.0
        %3167 = vmatprep.subr.mxu0 0.0
        %3168 = vmatpush2.xpose.msra.mxu0 0.0
        %3169 = vmatprep.subr.mxu0 0.0
        %3170 = vmatpush2.xpose.msra.mxu0 0.0
        %3171 = vmatprep.subr.mxu0 0.0
        %3172 = vmatpush2.xpose.msra.mxu0 0.0
        %3173 = vmatprep.subr.mxu0 0.0
        %3174 = vmatpush2.xpose.msra.mxu0 0.0
        %3175 = vmatprep.mubr.f32.mxu0 0.0
        %3176 = vmatmul.mubr.f32.gmra.mxu0 %v3103
        %v3177 = vpop.f32.mrf.mxu0
        %v3178 = vadd.f32 0.0, %v3177
        %v3179 = vpop.f32.mrf.mxu0
        %3180 = vmatprep.mubr.f32.mxu0 0.0
        %3181 = vmatmul.mubr.f32.gmra.mxu0 %v3105
        %v3182 = vpop.f32.mrf.mxu0
        %v3183 = vadd.f32 0.0, %v3182
        %v3184 = vpop.f32.mrf.mxu0
        %3185 = vdwg.mxu0
        %v3186 = vsel %vm1525, %v1206, 0
        %v3188 = vsel %vm1525, %v1208, 0
        %v3190 = vsel %vm1525, %v1318, 0
        %v3192 = vsel %vm1525, %v1320, 0
        %3194 = vmatprep.subr.mxu0 0.0
        %3195 = vmatpush1.xpose.msra.mxu0 0.0
        %3196 = vmatprep.subr.mxu0 0.0
        %3197 = vmatpush1.xpose.msra.mxu0 0.0
        %3198 = vmatprep.subr.mxu0 0.0
        %3199 = vmatpush1.xpose.msra.mxu0 0.0
        %3200 = vmatprep.subr.mxu0 0.0
        %3201 = vmatpush1.xpose.msra.mxu0 0.0
        %3202 = vmatprep.subr.mxu0 0.0
        %3203 = vmatpush1.xpose.msra.mxu0 0.0
        %3204 = vmatprep.subr.mxu0 0.0
        %3205 = vmatpush1.xpose.msra.mxu0 0.0
        %3206 = vmatprep.subr.mxu0 0.0
        %3207 = vmatpush1.xpose.msra.mxu0 0.0
        %3208 = vmatprep.subr.mxu0 0.0
        %3209 = vmatpush1.xpose.msra.mxu0 0.0
        %3210 = vmatprep.subr.mxu0 0.0
        %3211 = vmatpush1.xpose.msra.mxu0 0.0
        %3212 = vmatprep.subr.mxu0 0.0
        %3213 = vmatpush1.xpose.msra.mxu0 0.0
        %3214 = vmatprep.subr.mxu0 0.0
        %3215 = vmatpush1.xpose.msra.mxu0 0.0
        %3216 = vmatprep.subr.mxu0 0.0
        %3217 = vmatpush1.xpose.msra.mxu0 0.0
        %3218 = vmatprep.subr.mxu0 0.0
        %3219 = vmatpush1.xpose.msra.mxu0 0.0
        %3220 = vmatprep.subr.mxu0 0.0
        %3221 = vmatpush1.xpose.msra.mxu0 0.0
        %3222 = vmatprep.subr.mxu0 0.0
        %3223 = vmatpush1.xpose.msra.mxu0 %v3192
        %3224 = vmatprep.subr.mxu0 0.0
        %3225 = vmatpush1.xpose.msra.mxu0 %v3190
        %3226 = vmatprep.subr.mxu0 0.0
        %3227 = vmatpush2.xpose.msra.mxu0 0.0
        %3228 = vmatprep.subr.mxu0 0.0
        %3229 = vmatpush2.xpose.msra.mxu0 0.0
        %3230 = vmatprep.subr.mxu0 0.0
        %3231 = vmatpush2.xpose.msra.mxu0 0.0
        %3232 = vmatprep.subr.mxu0 0.0
        %3233 = vmatpush2.xpose.msra.mxu0 0.0
        %3234 = vmatprep.subr.mxu0 0.0
        %3235 = vmatpush2.xpose.msra.mxu0 0.0
        %3236 = vmatprep.subr.mxu0 0.0
        %3237 = vmatpush2.xpose.msra.mxu0 0.0
        %3238 = vmatprep.subr.mxu0 0.0
        %3239 = vmatpush2.xpose.msra.mxu0 0.0
        %3240 = vmatprep.subr.mxu0 0.0
        %3241 = vmatpush2.xpose.msra.mxu0 0.0
        %3242 = vmatprep.subr.mxu0 0.0
        %3243 = vmatpush2.xpose.msra.mxu0 0.0
        %3244 = vmatprep.subr.mxu0 0.0
        %3245 = vmatpush2.xpose.msra.mxu0 0.0
        %3246 = vmatprep.subr.mxu0 0.0
        %3247 = vmatpush2.xpose.msra.mxu0 0.0
        %3248 = vmatprep.subr.mxu0 0.0
        %3249 = vmatpush2.xpose.msra.mxu0 0.0
        %3250 = vmatprep.subr.mxu0 0.0
        %3251 = vmatpush2.xpose.msra.mxu0 0.0
        %3252 = vmatprep.subr.mxu0 0.0
        %3253 = vmatpush2.xpose.msra.mxu0 0.0
        %3254 = vmatprep.subr.mxu0 0.0
        %3255 = vmatpush2.xpose.msra.mxu0 0.0
        %3256 = vmatprep.subr.mxu0 0.0
        %3257 = vmatpush2.xpose.msra.mxu0 0.0
        %3258 = vmatprep.mubr.f32.mxu0 0.0
        %3259 = vmatmul.mubr.f32.gmra.mxu0 %v3186
        %v3260 = vpop.f32.mrf.mxu0
        %v3261 = vadd.f32 0.0, %v3260
        %v3262 = vpop.f32.mrf.mxu0
        %3263 = vmatprep.mubr.f32.mxu0 0.0
        %3264 = vmatmul.mubr.f32.gmra.mxu0 %v3188
        %v3265 = vpop.f32.mrf.mxu0
        %v3266 = vadd.f32 0.0, %v3265
        %v3267 = vpop.f32.mrf.mxu0
        %3268 = vdwg.mxu0
        %v3269 = vsel %vm1525, %v1210, 0
        %v3271 = vsel %vm1525, %v1212, 0
        %v3273 = vsel %vm1525, %v1322, 0
        %v3275 = vsel %vm1525, %v1324, 0
        %3277 = vmatprep.subr.mxu0 0.0
        %3278 = vmatpush1.xpose.msra.mxu0 0.0
        %3279 = vmatprep.subr.mxu0 0.0
        %3280 = vmatpush1.xpose.msra.mxu0 0.0
        %3281 = vmatprep.subr.mxu0 0.0
        %3282 = vmatpush1.xpose.msra.mxu0 0.0
        %3283 = vmatprep.subr.mxu0 0.0
        %3284 = vmatpush1.xpose.msra.mxu0 0.0
        %3285 = vmatprep.subr.mxu0 0.0
        %3286 = vmatpush1.xpose.msra.mxu0 0.0
        %3287 = vmatprep.subr.mxu0 0.0
        %3288 = vmatpush1.xpose.msra.mxu0 0.0
        %3289 = vmatprep.subr.mxu0 0.0
        %3290 = vmatpush1.xpose.msra.mxu0 0.0
        %3291 = vmatprep.subr.mxu0 0.0
        %3292 = vmatpush1.xpose.msra.mxu0 0.0
        %3293 = vmatprep.subr.mxu0 0.0
        %3294 = vmatpush1.xpose.msra.mxu0 0.0
        %3295 = vmatprep.subr.mxu0 0.0
        %3296 = vmatpush1.xpose.msra.mxu0 0.0
        %3297 = vmatprep.subr.mxu0 0.0
        %3298 = vmatpush1.xpose.msra.mxu0 0.0
        %3299 = vmatprep.subr.mxu0 0.0
        %3300 = vmatpush1.xpose.msra.mxu0 0.0
        %3301 = vmatprep.subr.mxu0 0.0
        %3302 = vmatpush1.xpose.msra.mxu0 0.0
        %3303 = vmatprep.subr.mxu0 0.0
        %3304 = vmatpush1.xpose.msra.mxu0 0.0
        %3305 = vmatprep.subr.mxu0 0.0
        %3306 = vmatpush1.xpose.msra.mxu0 %v3275
        %3307 = vmatprep.subr.mxu0 0.0
        %3308 = vmatpush1.xpose.msra.mxu0 %v3273
        %3309 = vmatprep.subr.mxu0 0.0
        %3310 = vmatpush2.xpose.msra.mxu0 0.0
        %3311 = vmatprep.subr.mxu0 0.0
        %3312 = vmatpush2.xpose.msra.mxu0 0.0
        %3313 = vmatprep.subr.mxu0 0.0
        %3314 = vmatpush2.xpose.msra.mxu0 0.0
        %3315 = vmatprep.subr.mxu0 0.0
        %3316 = vmatpush2.xpose.msra.mxu0 0.0
        %3317 = vmatprep.subr.mxu0 0.0
        %3318 = vmatpush2.xpose.msra.mxu0 0.0
        %3319 = vmatprep.subr.mxu0 0.0
        %3320 = vmatpush2.xpose.msra.mxu0 0.0
        %3321 = vmatprep.subr.mxu0 0.0
        %3322 = vmatpush2.xpose.msra.mxu0 0.0
        %3323 = vmatprep.subr.mxu0 0.0
        %3324 = vmatpush2.xpose.msra.mxu0 0.0
        %3325 = vmatprep.subr.mxu0 0.0
        %3326 = vmatpush2.xpose.msra.mxu0 0.0
        %3327 = vmatprep.subr.mxu0 0.0
        %3328 = vmatpush2.xpose.msra.mxu0 0.0
        %3329 = vmatprep.subr.mxu0 0.0
        %3330 = vmatpush2.xpose.msra.mxu0 0.0
        %3331 = vmatprep.subr.mxu0 0.0
        %3332 = vmatpush2.xpose.msra.mxu0 0.0
        %3333 = vmatprep.subr.mxu0 0.0
        %3334 = vmatpush2.xpose.msra.mxu0 0.0
        %3335 = vmatprep.subr.mxu0 0.0
        %3336 = vmatpush2.xpose.msra.mxu0 0.0
        %3337 = vmatprep.subr.mxu0 0.0
        %3338 = vmatpush2.xpose.msra.mxu0 0.0
        %3339 = vmatprep.subr.mxu0 0.0
        %3340 = vmatpush2.xpose.msra.mxu0 0.0
        %3341 = vmatprep.mubr.f32.mxu0 0.0
        %3342 = vmatmul.mubr.f32.gmra.mxu0 %v3269
        %v3343 = vpop.f32.mrf.mxu0
        %v3344 = vadd.f32 0.0, %v3343
        %v3345 = vpop.f32.mrf.mxu0
        %3346 = vmatprep.mubr.f32.mxu0 0.0
        %3347 = vmatmul.mubr.f32.gmra.mxu0 %v3271
        %v3348 = vpop.f32.mrf.mxu0
        %v3349 = vadd.f32 0.0, %v3348
        %v3350 = vpop.f32.mrf.mxu0
        %3351 = vdwg.mxu0
        %v3352 = vsel %vm1525, %v1214, 0
        %v3354 = vsel %vm1525, %v1216, 0
        %v3356 = vsel %vm1525, %v1326, 0
        %v3358 = vsel %vm1525, %v1328, 0
        %3360 = vmatprep.subr.mxu0 0.0
        %3361 = vmatpush1.xpose.msra.mxu0 0.0
        %3362 = vmatprep.subr.mxu0 0.0
        %3363 = vmatpush1.xpose.msra.mxu0 0.0
        %3364 = vmatprep.subr.mxu0 0.0
        %3365 = vmatpush1.xpose.msra.mxu0 0.0
        %3366 = vmatprep.subr.mxu0 0.0
        %3367 = vmatpush1.xpose.msra.mxu0 0.0
        %3368 = vmatprep.subr.mxu0 0.0
        %3369 = vmatpush1.xpose.msra.mxu0 0.0
        %3370 = vmatprep.subr.mxu0 0.0
        %3371 = vmatpush1.xpose.msra.mxu0 0.0
        %3372 = vmatprep.subr.mxu0 0.0
        %3373 = vmatpush1.xpose.msra.mxu0 0.0
        %3374 = vmatprep.subr.mxu0 0.0
        %3375 = vmatpush1.xpose.msra.mxu0 0.0
        %3376 = vmatprep.subr.mxu0 0.0
        %3377 = vmatpush1.xpose.msra.mxu0 0.0
        %3378 = vmatprep.subr.mxu0 0.0
        %3379 = vmatpush1.xpose.msra.mxu0 0.0
        %3380 = vmatprep.subr.mxu0 0.0
        %3381 = vmatpush1.xpose.msra.mxu0 0.0
        %3382 = vmatprep.subr.mxu0 0.0
        %3383 = vmatpush1.xpose.msra.mxu0 0.0
        %3384 = vmatprep.subr.mxu0 0.0
        %3385 = vmatpush1.xpose.msra.mxu0 0.0
        %3386 = vmatprep.subr.mxu0 0.0
        %3387 = vmatpush1.xpose.msra.mxu0 0.0
        %3388 = vmatprep.subr.mxu0 0.0
        %3389 = vmatpush1.xpose.msra.mxu0 %v3358
        %3390 = vmatprep.subr.mxu0 0.0
        %3391 = vmatpush1.xpose.msra.mxu0 %v3356
        %3392 = vmatprep.subr.mxu0 0.0
        %3393 = vmatpush2.xpose.msra.mxu0 0.0
        %3394 = vmatprep.subr.mxu0 0.0
        %3395 = vmatpush2.xpose.msra.mxu0 0.0
        %3396 = vmatprep.subr.mxu0 0.0
        %3397 = vmatpush2.xpose.msra.mxu0 0.0
        %3398 = vmatprep.subr.mxu0 0.0
        %3399 = vmatpush2.xpose.msra.mxu0 0.0
        %3400 = vmatprep.subr.mxu0 0.0
        %3401 = vmatpush2.xpose.msra.mxu0 0.0
        %3402 = vmatprep.subr.mxu0 0.0
        %3403 = vmatpush2.xpose.msra.mxu0 0.0
        %3404 = vmatprep.subr.mxu0 0.0
        %3405 = vmatpush2.xpose.msra.mxu0 0.0
        %3406 = vmatprep.subr.mxu0 0.0
        %3407 = vmatpush2.xpose.msra.mxu0 0.0
        %3408 = vmatprep.subr.mxu0 0.0
        %3409 = vmatpush2.xpose.msra.mxu0 0.0
        %3410 = vmatprep.subr.mxu0 0.0
        %3411 = vmatpush2.xpose.msra.mxu0 0.0
        %3412 = vmatprep.subr.mxu0 0.0
        %3413 = vmatpush2.xpose.msra.mxu0 0.0
        %3414 = vmatprep.subr.mxu0 0.0
        %3415 = vmatpush2.xpose.msra.mxu0 0.0
        %3416 = vmatprep.subr.mxu0 0.0
        %3417 = vmatpush2.xpose.msra.mxu0 0.0
        %3418 = vmatprep.subr.mxu0 0.0
        %3419 = vmatpush2.xpose.msra.mxu0 0.0
        %3420 = vmatprep.subr.mxu0 0.0
        %3421 = vmatpush2.xpose.msra.mxu0 0.0
        %3422 = vmatprep.subr.mxu0 0.0
        %3423 = vmatpush2.xpose.msra.mxu0 0.0
        %3424 = vmatprep.mubr.f32.mxu0 0.0
        %3425 = vmatmul.mubr.f32.gmra.mxu0 %v3352
        %v3426 = vpop.f32.mrf.mxu0
        %v3427 = vadd.f32 0.0, %v3426
        %v3428 = vpop.f32.mrf.mxu0
        %3429 = vmatprep.mubr.f32.mxu0 0.0
        %3430 = vmatmul.mubr.f32.gmra.mxu0 %v3354
        %v3431 = vpop.f32.mrf.mxu0
        %v3432 = vadd.f32 0.0, %v3431
        %v3433 = vpop.f32.mrf.mxu0
        %3434 = vdwg.mxu0
        %v3435 = vsel %vm1525, %v1218, 0
        %v3437 = vsel %vm1525, %v1220, 0
        %v3439 = vsel %vm1525, %v1330, 0
        %v3441 = vsel %vm1525, %v1332, 0
        %3443 = vmatprep.subr.mxu0 0.0
        %3444 = vmatpush1.xpose.msra.mxu0 0.0
        %3445 = vmatprep.subr.mxu0 0.0
        %3446 = vmatpush1.xpose.msra.mxu0 0.0
        %3447 = vmatprep.subr.mxu0 0.0
        %3448 = vmatpush1.xpose.msra.mxu0 0.0
        %3449 = vmatprep.subr.mxu0 0.0
        %3450 = vmatpush1.xpose.msra.mxu0 0.0
        %3451 = vmatprep.subr.mxu0 0.0
        %3452 = vmatpush1.xpose.msra.mxu0 0.0
        %3453 = vmatprep.subr.mxu0 0.0
        %3454 = vmatpush1.xpose.msra.mxu0 0.0
        %3455 = vmatprep.subr.mxu0 0.0
        %3456 = vmatpush1.xpose.msra.mxu0 0.0
        %3457 = vmatprep.subr.mxu0 0.0
        %3458 = vmatpush1.xpose.msra.mxu0 0.0
        %3459 = vmatprep.subr.mxu0 0.0
        %3460 = vmatpush1.xpose.msra.mxu0 0.0
        %3461 = vmatprep.subr.mxu0 0.0
        %3462 = vmatpush1.xpose.msra.mxu0 0.0
        %3463 = vmatprep.subr.mxu0 0.0
        %3464 = vmatpush1.xpose.msra.mxu0 0.0
        %3465 = vmatprep.subr.mxu0 0.0
        %3466 = vmatpush1.xpose.msra.mxu0 0.0
        %3467 = vmatprep.subr.mxu0 0.0
        %3468 = vmatpush1.xpose.msra.mxu0 0.0
        %3469 = vmatprep.subr.mxu0 0.0
        %3470 = vmatpush1.xpose.msra.mxu0 0.0
        %3471 = vmatprep.subr.mxu0 0.0
        %3472 = vmatpush1.xpose.msra.mxu0 %v3441
        %3473 = vmatprep.subr.mxu0 0.0
        %3474 = vmatpush1.xpose.msra.mxu0 %v3439
        %3475 = vmatprep.subr.mxu0 0.0
        %3476 = vmatpush2.xpose.msra.mxu0 0.0
        %3477 = vmatprep.subr.mxu0 0.0
        %3478 = vmatpush2.xpose.msra.mxu0 0.0
        %3479 = vmatprep.subr.mxu0 0.0
        %3480 = vmatpush2.xpose.msra.mxu0 0.0
        %3481 = vmatprep.subr.mxu0 0.0
        %3482 = vmatpush2.xpose.msra.mxu0 0.0
        %3483 = vmatprep.subr.mxu0 0.0
        %3484 = vmatpush2.xpose.msra.mxu0 0.0
        %3485 = vmatprep.subr.mxu0 0.0
        %3486 = vmatpush2.xpose.msra.mxu0 0.0
        %3487 = vmatprep.subr.mxu0 0.0
        %3488 = vmatpush2.xpose.msra.mxu0 0.0
        %3489 = vmatprep.subr.mxu0 0.0
        %3490 = vmatpush2.xpose.msra.mxu0 0.0
        %3491 = vmatprep.subr.mxu0 0.0
        %3492 = vmatpush2.xpose.msra.mxu0 0.0
        %3493 = vmatprep.subr.mxu0 0.0
        %3494 = vmatpush2.xpose.msra.mxu0 0.0
        %3495 = vmatprep.subr.mxu0 0.0
        %3496 = vmatpush2.xpose.msra.mxu0 0.0
        %3497 = vmatprep.subr.mxu0 0.0
        %3498 = vmatpush2.xpose.msra.mxu0 0.0
        %3499 = vmatprep.subr.mxu0 0.0
        %3500 = vmatpush2.xpose.msra.mxu0 0.0
        %3501 = vmatprep.subr.mxu0 0.0
        %3502 = vmatpush2.xpose.msra.mxu0 0.0
        %3503 = vmatprep.subr.mxu0 0.0
        %3504 = vmatpush2.xpose.msra.mxu0 0.0
        %3505 = vmatprep.subr.mxu0 0.0
        %3506 = vmatpush2.xpose.msra.mxu0 0.0
        %3507 = vmatprep.mubr.f32.mxu0 0.0
        %3508 = vmatmul.mubr.f32.gmra.mxu0 %v3435
        %v3509 = vpop.f32.mrf.mxu0
        %v3510 = vadd.f32 0.0, %v3509
        %v3511 = vpop.f32.mrf.mxu0
        %3512 = vmatprep.mubr.f32.mxu0 0.0
        %3513 = vmatmul.mubr.f32.gmra.mxu0 %v3437
        %v3514 = vpop.f32.mrf.mxu0
        %v3515 = vadd.f32 0.0, %v3514
        %v3516 = vpop.f32.mrf.mxu0
        %3517 = vdwg.mxu0
        %v3518 = vsel %vm1525, %v1222, 0
        %v3520 = vsel %vm1525, %v1224, 0
        %v3522 = vsel %vm1525, %v1334, 0
        %v3524 = vsel %vm1525, %v1336, 0
        %3526 = vmatprep.subr.mxu0 0.0
        %3527 = vmatpush1.xpose.msra.mxu0 0.0
        %3528 = vmatprep.subr.mxu0 0.0
        %3529 = vmatpush1.xpose.msra.mxu0 0.0
        %3530 = vmatprep.subr.mxu0 0.0
        %3531 = vmatpush1.xpose.msra.mxu0 0.0
        %3532 = vmatprep.subr.mxu0 0.0
        %3533 = vmatpush1.xpose.msra.mxu0 0.0
        %3534 = vmatprep.subr.mxu0 0.0
        %3535 = vmatpush1.xpose.msra.mxu0 0.0
        %3536 = vmatprep.subr.mxu0 0.0
        %3537 = vmatpush1.xpose.msra.mxu0 0.0
        %3538 = vmatprep.subr.mxu0 0.0
        %3539 = vmatpush1.xpose.msra.mxu0 0.0
        %3540 = vmatprep.subr.mxu0 0.0
        %3541 = vmatpush1.xpose.msra.mxu0 0.0
        %3542 = vmatprep.subr.mxu0 0.0
        %3543 = vmatpush1.xpose.msra.mxu0 0.0
        %3544 = vmatprep.subr.mxu0 0.0
        %3545 = vmatpush1.xpose.msra.mxu0 0.0
        %3546 = vmatprep.subr.mxu0 0.0
        %3547 = vmatpush1.xpose.msra.mxu0 0.0
        %3548 = vmatprep.subr.mxu0 0.0
        %3549 = vmatpush1.xpose.msra.mxu0 0.0
        %3550 = vmatprep.subr.mxu0 0.0
        %3551 = vmatpush1.xpose.msra.mxu0 0.0
        %3552 = vmatprep.subr.mxu0 0.0
        %3553 = vmatpush1.xpose.msra.mxu0 0.0
        %3554 = vmatprep.subr.mxu0 0.0
        %3555 = vmatpush1.xpose.msra.mxu0 %v3524
        %3556 = vmatprep.subr.mxu0 0.0
        %3557 = vmatpush1.xpose.msra.mxu0 %v3522
        %3558 = vmatprep.subr.mxu0 0.0
        %3559 = vmatpush2.xpose.msra.mxu0 0.0
        %3560 = vmatprep.subr.mxu0 0.0
        %3561 = vmatpush2.xpose.msra.mxu0 0.0
        %3562 = vmatprep.subr.mxu0 0.0
        %3563 = vmatpush2.xpose.msra.mxu0 0.0
        %3564 = vmatprep.subr.mxu0 0.0
        %3565 = vmatpush2.xpose.msra.mxu0 0.0
        %3566 = vmatprep.subr.mxu0 0.0
        %3567 = vmatpush2.xpose.msra.mxu0 0.0
        %3568 = vmatprep.subr.mxu0 0.0
        %3569 = vmatpush2.xpose.msra.mxu0 0.0
        %3570 = vmatprep.subr.mxu0 0.0
        %3571 = vmatpush2.xpose.msra.mxu0 0.0
        %3572 = vmatprep.subr.mxu0 0.0
        %3573 = vmatpush2.xpose.msra.mxu0 0.0
        %3574 = vmatprep.subr.mxu0 0.0
        %3575 = vmatpush2.xpose.msra.mxu0 0.0
        %3576 = vmatprep.subr.mxu0 0.0
        %3577 = vmatpush2.xpose.msra.mxu0 0.0
        %3578 = vmatprep.subr.mxu0 0.0
        %3579 = vmatpush2.xpose.msra.mxu0 0.0
        %3580 = vmatprep.subr.mxu0 0.0
        %3581 = vmatpush2.xpose.msra.mxu0 0.0
        %3582 = vmatprep.subr.mxu0 0.0
        %3583 = vmatpush2.xpose.msra.mxu0 0.0
        %3584 = vmatprep.subr.mxu0 0.0
        %3585 = vmatpush2.xpose.msra.mxu0 0.0
        %3586 = vmatprep.subr.mxu0 0.0
        %3587 = vmatpush2.xpose.msra.mxu0 0.0
        %3588 = vmatprep.subr.mxu0 0.0
        %3589 = vmatpush2.xpose.msra.mxu0 0.0
        %3590 = vmatprep.mubr.f32.mxu0 0.0
        %3591 = vmatmul.mubr.f32.gmra.mxu0 %v3518
        %v3592 = vpop.f32.mrf.mxu0
        %v3593 = vadd.f32 0.0, %v3592
        %v3594 = vpop.f32.mrf.mxu0
        %3595 = vmatprep.mubr.f32.mxu0 0.0
        %3596 = vmatmul.mubr.f32.gmra.mxu0 %v3520
        %v3597 = vpop.f32.mrf.mxu0
        %v3598 = vadd.f32 0.0, %v3597
        %v3599 = vpop.f32.mrf.mxu0
        %3600 = vdwg.mxu0
        %v3601 = vsel %vm1525, %v1226, 0
        %v3603 = vsel %vm1525, %v1228, 0
        %v3605 = vsel %vm1525, %v1338, 0
        %v3607 = vsel %vm1525, %v1340, 0
        %3609 = vmatprep.subr.mxu0 0.0
        %3610 = vmatpush1.xpose.msra.mxu0 0.0
        %3611 = vmatprep.subr.mxu0 0.0
        %3612 = vmatpush1.xpose.msra.mxu0 0.0
        %3613 = vmatprep.subr.mxu0 0.0
        %3614 = vmatpush1.xpose.msra.mxu0 0.0
        %3615 = vmatprep.subr.mxu0 0.0
        %3616 = vmatpush1.xpose.msra.mxu0 0.0
        %3617 = vmatprep.subr.mxu0 0.0
        %3618 = vmatpush1.xpose.msra.mxu0 0.0
        %3619 = vmatprep.subr.mxu0 0.0
        %3620 = vmatpush1.xpose.msra.mxu0 0.0
        %3621 = vmatprep.subr.mxu0 0.0
        %3622 = vmatpush1.xpose.msra.mxu0 0.0
        %3623 = vmatprep.subr.mxu0 0.0
        %3624 = vmatpush1.xpose.msra.mxu0 0.0
        %3625 = vmatprep.subr.mxu0 0.0
        %3626 = vmatpush1.xpose.msra.mxu0 0.0
        %3627 = vmatprep.subr.mxu0 0.0
        %3628 = vmatpush1.xpose.msra.mxu0 0.0
        %3629 = vmatprep.subr.mxu0 0.0
        %3630 = vmatpush1.xpose.msra.mxu0 0.0
        %3631 = vmatprep.subr.mxu0 0.0
        %3632 = vmatpush1.xpose.msra.mxu0 0.0
        %3633 = vmatprep.subr.mxu0 0.0
        %3634 = vmatpush1.xpose.msra.mxu0 0.0
        %3635 = vmatprep.subr.mxu0 0.0
        %3636 = vmatpush1.xpose.msra.mxu0 0.0
        %3637 = vmatprep.subr.mxu0 0.0
        %3638 = vmatpush1.xpose.msra.mxu0 %v3607
        %3639 = vmatprep.subr.mxu0 0.0
        %3640 = vmatpush1.xpose.msra.mxu0 %v3605
        %3641 = vmatprep.subr.mxu0 0.0
        %3642 = vmatpush2.xpose.msra.mxu0 0.0
        %3643 = vmatprep.subr.mxu0 0.0
        %3644 = vmatpush2.xpose.msra.mxu0 0.0
        %3645 = vmatprep.subr.mxu0 0.0
        %3646 = vmatpush2.xpose.msra.mxu0 0.0
        %3647 = vmatprep.subr.mxu0 0.0
        %3648 = vmatpush2.xpose.msra.mxu0 0.0
        %3649 = vmatprep.subr.mxu0 0.0
        %3650 = vmatpush2.xpose.msra.mxu0 0.0
        %3651 = vmatprep.subr.mxu0 0.0
        %3652 = vmatpush2.xpose.msra.mxu0 0.0
        %3653 = vmatprep.subr.mxu0 0.0
        %3654 = vmatpush2.xpose.msra.mxu0 0.0
        %3655 = vmatprep.subr.mxu0 0.0
        %3656 = vmatpush2.xpose.msra.mxu0 0.0
        %3657 = vmatprep.subr.mxu0 0.0
        %3658 = vmatpush2.xpose.msra.mxu0 0.0
        %3659 = vmatprep.subr.mxu0 0.0
        %3660 = vmatpush2.xpose.msra.mxu0 0.0
        %3661 = vmatprep.subr.mxu0 0.0
        %3662 = vmatpush2.xpose.msra.mxu0 0.0
        %3663 = vmatprep.subr.mxu0 0.0
        %3664 = vmatpush2.xpose.msra.mxu0 0.0
        %3665 = vmatprep.subr.mxu0 0.0
        %3666 = vmatpush2.xpose.msra.mxu0 0.0
        %3667 = vmatprep.subr.mxu0 0.0
        %3668 = vmatpush2.xpose.msra.mxu0 0.0
        %3669 = vmatprep.subr.mxu0 0.0
        %3670 = vmatpush2.xpose.msra.mxu0 0.0
        %3671 = vmatprep.subr.mxu0 0.0
        %3672 = vmatpush2.xpose.msra.mxu0 0.0
        %3673 = vmatprep.mubr.f32.mxu0 0.0
        %3674 = vmatmul.mubr.f32.gmra.mxu0 %v3601
        %v3675 = vpop.f32.mrf.mxu0
        %v3676 = vadd.f32 0.0, %v3675
        %v3677 = vpop.f32.mrf.mxu0
        %3678 = vmatprep.mubr.f32.mxu0 0.0
        %3679 = vmatmul.mubr.f32.gmra.mxu0 %v3603
        %v3680 = vpop.f32.mrf.mxu0
        %v3681 = vadd.f32 0.0, %v3680
        %v3682 = vpop.f32.mrf.mxu0
        %3683 = vdwg.mxu0
        %v3684 = vsel %vm1525, %v1230, 0
        %v3686 = vsel %vm1525, %v1232, 0
        %v3688 = vsel %vm1525, %v1342, 0
        %v3690 = vsel %vm1525, %v1344, 0
        %3692 = vmatprep.subr.mxu0 0.0
        %3693 = vmatpush1.xpose.msra.mxu0 0.0
        %3694 = vmatprep.subr.mxu0 0.0
        %3695 = vmatpush1.xpose.msra.mxu0 0.0
        %3696 = vmatprep.subr.mxu0 0.0
        %3697 = vmatpush1.xpose.msra.mxu0 0.0
        %3698 = vmatprep.subr.mxu0 0.0
        %3699 = vmatpush1.xpose.msra.mxu0 0.0
        %3700 = vmatprep.subr.mxu0 0.0
        %3701 = vmatpush1.xpose.msra.mxu0 0.0
        %3702 = vmatprep.subr.mxu0 0.0
        %3703 = vmatpush1.xpose.msra.mxu0 0.0
        %3704 = vmatprep.subr.mxu0 0.0
        %3705 = vmatpush1.xpose.msra.mxu0 0.0
        %3706 = vmatprep.subr.mxu0 0.0
        %3707 = vmatpush1.xpose.msra.mxu0 0.0
        %3708 = vmatprep.subr.mxu0 0.0
        %3709 = vmatpush1.xpose.msra.mxu0 0.0
        %3710 = vmatprep.subr.mxu0 0.0
        %3711 = vmatpush1.xpose.msra.mxu0 0.0
        %3712 = vmatprep.subr.mxu0 0.0
        %3713 = vmatpush1.xpose.msra.mxu0 0.0
        %3714 = vmatprep.subr.mxu0 0.0
        %3715 = vmatpush1.xpose.msra.mxu0 0.0
        %3716 = vmatprep.subr.mxu0 0.0
        %3717 = vmatpush1.xpose.msra.mxu0 0.0
        %3718 = vmatprep.subr.mxu0 0.0
        %3719 = vmatpush1.xpose.msra.mxu0 0.0
        %3720 = vmatprep.subr.mxu0 0.0
        %3721 = vmatpush1.xpose.msra.mxu0 %v3690
        %3722 = vmatprep.subr.mxu0 0.0
        %3723 = vmatpush1.xpose.msra.mxu0 %v3688
        %3724 = vmatprep.subr.mxu0 0.0
        %3725 = vmatpush2.xpose.msra.mxu0 0.0
        %3726 = vmatprep.subr.mxu0 0.0
        %3727 = vmatpush2.xpose.msra.mxu0 0.0
        %3728 = vmatprep.subr.mxu0 0.0
        %3729 = vmatpush2.xpose.msra.mxu0 0.0
        %3730 = vmatprep.subr.mxu0 0.0
        %3731 = vmatpush2.xpose.msra.mxu0 0.0
        %3732 = vmatprep.subr.mxu0 0.0
        %3733 = vmatpush2.xpose.msra.mxu0 0.0
        %3734 = vmatprep.subr.mxu0 0.0
        %3735 = vmatpush2.xpose.msra.mxu0 0.0
        %3736 = vmatprep.subr.mxu0 0.0
        %3737 = vmatpush2.xpose.msra.mxu0 0.0
        %3738 = vmatprep.subr.mxu0 0.0
        %3739 = vmatpush2.xpose.msra.mxu0 0.0
        %3740 = vmatprep.subr.mxu0 0.0
        %3741 = vmatpush2.xpose.msra.mxu0 0.0
        %3742 = vmatprep.subr.mxu0 0.0
        %3743 = vmatpush2.xpose.msra.mxu0 0.0
        %3744 = vmatprep.subr.mxu0 0.0
        %3745 = vmatpush2.xpose.msra.mxu0 0.0
        %3746 = vmatprep.subr.mxu0 0.0
        %3747 = vmatpush2.xpose.msra.mxu0 0.0
        %3748 = vmatprep.subr.mxu0 0.0
        %3749 = vmatpush2.xpose.msra.mxu0 0.0
        %3750 = vmatprep.subr.mxu0 0.0
        %3751 = vmatpush2.xpose.msra.mxu0 0.0
        %3752 = vmatprep.subr.mxu0 0.0
        %3753 = vmatpush2.xpose.msra.mxu0 0.0
        %3754 = vmatprep.subr.mxu0 0.0
        %3755 = vmatpush2.xpose.msra.mxu0 0.0
        %3756 = vmatprep.mubr.f32.mxu0 0.0
        %3757 = vmatmul.mubr.f32.gmra.mxu0 %v3684
        %v3758 = vpop.f32.mrf.mxu0
        %v3759 = vadd.f32 0.0, %v3758
        %v3760 = vpop.f32.mrf.mxu0
        %3761 = vmatprep.mubr.f32.mxu0 0.0
        %3762 = vmatmul.mubr.f32.gmra.mxu0 %v3686
        %v3763 = vpop.f32.mrf.mxu0
        %v3764 = vadd.f32 0.0, %v3763
        %v3765 = vpop.f32.mrf.mxu0
        %3766 = vdwg.mxu0
        %v3767 = vsel %vm1525, %v1234, 0
        %v3769 = vsel %vm1525, %v1236, 0
        %v3771 = vsel %vm1525, %v1346, 0
        %v3773 = vsel %vm1525, %v1348, 0
        %3775 = vmatprep.subr.mxu0 0.0
        %3776 = vmatpush1.xpose.msra.mxu0 0.0
        %3777 = vmatprep.subr.mxu0 0.0
        %3778 = vmatpush1.xpose.msra.mxu0 0.0
        %3779 = vmatprep.subr.mxu0 0.0
        %3780 = vmatpush1.xpose.msra.mxu0 0.0
        %3781 = vmatprep.subr.mxu0 0.0
        %3782 = vmatpush1.xpose.msra.mxu0 0.0
        %3783 = vmatprep.subr.mxu0 0.0
        %3784 = vmatpush1.xpose.msra.mxu0 0.0
        %3785 = vmatprep.subr.mxu0 0.0
        %3786 = vmatpush1.xpose.msra.mxu0 0.0
        %3787 = vmatprep.subr.mxu0 0.0
        %3788 = vmatpush1.xpose.msra.mxu0 0.0
        %3789 = vmatprep.subr.mxu0 0.0
        %3790 = vmatpush1.xpose.msra.mxu0 0.0
        %3791 = vmatprep.subr.mxu0 0.0
        %3792 = vmatpush1.xpose.msra.mxu0 0.0
        %3793 = vmatprep.subr.mxu0 0.0
        %3794 = vmatpush1.xpose.msra.mxu0 0.0
        %3795 = vmatprep.subr.mxu0 0.0
        %3796 = vmatpush1.xpose.msra.mxu0 0.0
        %3797 = vmatprep.subr.mxu0 0.0
        %3798 = vmatpush1.xpose.msra.mxu0 0.0
        %3799 = vmatprep.subr.mxu0 0.0
        %3800 = vmatpush1.xpose.msra.mxu0 0.0
        %3801 = vmatprep.subr.mxu0 0.0
        %3802 = vmatpush1.xpose.msra.mxu0 0.0
        %3803 = vmatprep.subr.mxu0 0.0
        %3804 = vmatpush1.xpose.msra.mxu0 %v3773
        %3805 = vmatprep.subr.mxu0 0.0
        %3806 = vmatpush1.xpose.msra.mxu0 %v3771
        %3807 = vmatprep.subr.mxu0 0.0
        %3808 = vmatpush2.xpose.msra.mxu0 0.0
        %3809 = vmatprep.subr.mxu0 0.0
        %3810 = vmatpush2.xpose.msra.mxu0 0.0
        %3811 = vmatprep.subr.mxu0 0.0
        %3812 = vmatpush2.xpose.msra.mxu0 0.0
        %3813 = vmatprep.subr.mxu0 0.0
        %3814 = vmatpush2.xpose.msra.mxu0 0.0
        %3815 = vmatprep.subr.mxu0 0.0
        %3816 = vmatpush2.xpose.msra.mxu0 0.0
        %3817 = vmatprep.subr.mxu0 0.0
        %3818 = vmatpush2.xpose.msra.mxu0 0.0
        %3819 = vmatprep.subr.mxu0 0.0
        %3820 = vmatpush2.xpose.msra.mxu0 0.0
        %3821 = vmatprep.subr.mxu0 0.0
        %3822 = vmatpush2.xpose.msra.mxu0 0.0
        %3823 = vmatprep.subr.mxu0 0.0
        %3824 = vmatpush2.xpose.msra.mxu0 0.0
        %3825 = vmatprep.subr.mxu0 0.0
        %3826 = vmatpush2.xpose.msra.mxu0 0.0
        %3827 = vmatprep.subr.mxu0 0.0
        %3828 = vmatpush2.xpose.msra.mxu0 0.0
        %3829 = vmatprep.subr.mxu0 0.0
        %3830 = vmatpush2.xpose.msra.mxu0 0.0
        %3831 = vmatprep.subr.mxu0 0.0
        %3832 = vmatpush2.xpose.msra.mxu0 0.0
        %3833 = vmatprep.subr.mxu0 0.0
        %3834 = vmatpush2.xpose.msra.mxu0 0.0
        %3835 = vmatprep.subr.mxu0 0.0
        %3836 = vmatpush2.xpose.msra.mxu0 0.0
        %3837 = vmatprep.subr.mxu0 0.0
        %3838 = vmatpush2.xpose.msra.mxu0 0.0
        %3839 = vmatprep.mubr.f32.mxu0 0.0
        %3840 = vmatmul.mubr.f32.gmra.mxu0 %v3767
        %v3841 = vpop.f32.mrf.mxu0
        %v3842 = vadd.f32 0.0, %v3841
        %v3843 = vpop.f32.mrf.mxu0
        %3844 = vmatprep.mubr.f32.mxu0 0.0
        %3845 = vmatmul.mubr.f32.gmra.mxu0 %v3769
        %v3846 = vpop.f32.mrf.mxu0
        %v3847 = vadd.f32 0.0, %v3846
        %v3848 = vpop.f32.mrf.mxu0
        %3849 = vdwg.mxu0
        %v3850 = vsel %vm1525, %v1238, 0
        %v3852 = vsel %vm1525, %v1240, 0
        %v3854 = vsel %vm1525, %v1350, 0
        %v3856 = vsel %vm1525, %v1352, 0
        %3858 = vmatprep.subr.mxu0 0.0
        %3859 = vmatpush1.xpose.msra.mxu0 0.0
        %3860 = vmatprep.subr.mxu0 0.0
        %3861 = vmatpush1.xpose.msra.mxu0 0.0
        %3862 = vmatprep.subr.mxu0 0.0
        %3863 = vmatpush1.xpose.msra.mxu0 0.0
        %3864 = vmatprep.subr.mxu0 0.0
        %3865 = vmatpush1.xpose.msra.mxu0 0.0
        %3866 = vmatprep.subr.mxu0 0.0
        %3867 = vmatpush1.xpose.msra.mxu0 0.0
        %3868 = vmatprep.subr.mxu0 0.0
        %3869 = vmatpush1.xpose.msra.mxu0 0.0
        %3870 = vmatprep.subr.mxu0 0.0
        %3871 = vmatpush1.xpose.msra.mxu0 0.0
        %3872 = vmatprep.subr.mxu0 0.0
        %3873 = vmatpush1.xpose.msra.mxu0 0.0
        %3874 = vmatprep.subr.mxu0 0.0
        %3875 = vmatpush1.xpose.msra.mxu0 0.0
        %3876 = vmatprep.subr.mxu0 0.0
        %3877 = vmatpush1.xpose.msra.mxu0 0.0
        %3878 = vmatprep.subr.mxu0 0.0
        %3879 = vmatpush1.xpose.msra.mxu0 0.0
        %3880 = vmatprep.subr.mxu0 0.0
        %3881 = vmatpush1.xpose.msra.mxu0 0.0
        %3882 = vmatprep.subr.mxu0 0.0
        %3883 = vmatpush1.xpose.msra.mxu0 0.0
        %3884 = vmatprep.subr.mxu0 0.0
        %3885 = vmatpush1.xpose.msra.mxu0 0.0
        %3886 = vmatprep.subr.mxu0 0.0
        %3887 = vmatpush1.xpose.msra.mxu0 %v3856
        %3888 = vmatprep.subr.mxu0 0.0
        %3889 = vmatpush1.xpose.msra.mxu0 %v3854
        %3890 = vmatprep.subr.mxu0 0.0
        %3891 = vmatpush2.xpose.msra.mxu0 0.0
        %3892 = vmatprep.subr.mxu0 0.0
        %3893 = vmatpush2.xpose.msra.mxu0 0.0
        %3894 = vmatprep.subr.mxu0 0.0
        %3895 = vmatpush2.xpose.msra.mxu0 0.0
        %3896 = vmatprep.subr.mxu0 0.0
        %3897 = vmatpush2.xpose.msra.mxu0 0.0
        %3898 = vmatprep.subr.mxu0 0.0
        %3899 = vmatpush2.xpose.msra.mxu0 0.0
        %3900 = vmatprep.subr.mxu0 0.0
        %3901 = vmatpush2.xpose.msra.mxu0 0.0
        %3902 = vmatprep.subr.mxu0 0.0
        %3903 = vmatpush2.xpose.msra.mxu0 0.0
        %3904 = vmatprep.subr.mxu0 0.0
        %3905 = vmatpush2.xpose.msra.mxu0 0.0
        %3906 = vmatprep.subr.mxu0 0.0
        %3907 = vmatpush2.xpose.msra.mxu0 0.0
        %3908 = vmatprep.subr.mxu0 0.0
        %3909 = vmatpush2.xpose.msra.mxu0 0.0
        %3910 = vmatprep.subr.mxu0 0.0
        %3911 = vmatpush2.xpose.msra.mxu0 0.0
        %3912 = vmatprep.subr.mxu0 0.0
        %3913 = vmatpush2.xpose.msra.mxu0 0.0
        %3914 = vmatprep.subr.mxu0 0.0
        %3915 = vmatpush2.xpose.msra.mxu0 0.0
        %3916 = vmatprep.subr.mxu0 0.0
        %3917 = vmatpush2.xpose.msra.mxu0 0.0
        %3918 = vmatprep.subr.mxu0 0.0
        %3919 = vmatpush2.xpose.msra.mxu0 0.0
        %3920 = vmatprep.subr.mxu0 0.0
        %3921 = vmatpush2.xpose.msra.mxu0 0.0
        %3922 = vmatprep.mubr.f32.mxu0 0.0
        %3923 = vmatmul.mubr.f32.gmra.mxu0 %v3850
        %v3924 = vpop.f32.mrf.mxu0
        %v3925 = vadd.f32 0.0, %v3924
        %v3926 = vpop.f32.mrf.mxu0
        %3927 = vmatprep.mubr.f32.mxu0 0.0
        %3928 = vmatmul.mubr.f32.gmra.mxu0 %v3852
        %v3929 = vpop.f32.mrf.mxu0
        %v3930 = vadd.f32 0.0, %v3929
        %v3931 = vpop.f32.mrf.mxu0
        %3932 = vdwg.mxu0
        %v3933 = vsel %vm1525, %v1242, 0
        %v3935 = vsel %vm1525, %v1244, 0
        %v3937 = vsel %vm1525, %v1354, 0
        %v3939 = vsel %vm1525, %v1356, 0
        %3941 = vmatprep.subr.mxu0 0.0
        %3942 = vmatpush1.xpose.msra.mxu0 0.0
        %3943 = vmatprep.subr.mxu0 0.0
        %3944 = vmatpush1.xpose.msra.mxu0 0.0
        %3945 = vmatprep.subr.mxu0 0.0
        %3946 = vmatpush1.xpose.msra.mxu0 0.0
        %3947 = vmatprep.subr.mxu0 0.0
        %3948 = vmatpush1.xpose.msra.mxu0 0.0
        %3949 = vmatprep.subr.mxu0 0.0
        %3950 = vmatpush1.xpose.msra.mxu0 0.0
        %3951 = vmatprep.subr.mxu0 0.0
        %3952 = vmatpush1.xpose.msra.mxu0 0.0
        %3953 = vmatprep.subr.mxu0 0.0
        %3954 = vmatpush1.xpose.msra.mxu0 0.0
        %3955 = vmatprep.subr.mxu0 0.0
        %3956 = vmatpush1.xpose.msra.mxu0 0.0
        %3957 = vmatprep.subr.mxu0 0.0
        %3958 = vmatpush1.xpose.msra.mxu0 0.0
        %3959 = vmatprep.subr.mxu0 0.0
        %3960 = vmatpush1.xpose.msra.mxu0 0.0
        %3961 = vmatprep.subr.mxu0 0.0
        %3962 = vmatpush1.xpose.msra.mxu0 0.0
        %3963 = vmatprep.subr.mxu0 0.0
        %3964 = vmatpush1.xpose.msra.mxu0 0.0
        %3965 = vmatprep.subr.mxu0 0.0
        %3966 = vmatpush1.xpose.msra.mxu0 0.0
        %3967 = vmatprep.subr.mxu0 0.0
        %3968 = vmatpush1.xpose.msra.mxu0 0.0
        %3969 = vmatprep.subr.mxu0 0.0
        %3970 = vmatpush1.xpose.msra.mxu0 %v3939
        %3971 = vmatprep.subr.mxu0 0.0
        %3972 = vmatpush1.xpose.msra.mxu0 %v3937
        %3973 = vmatprep.subr.mxu0 0.0
        %3974 = vmatpush2.xpose.msra.mxu0 0.0
        %3975 = vmatprep.subr.mxu0 0.0
        %3976 = vmatpush2.xpose.msra.mxu0 0.0
        %3977 = vmatprep.subr.mxu0 0.0
        %3978 = vmatpush2.xpose.msra.mxu0 0.0
        %3979 = vmatprep.subr.mxu0 0.0
        %3980 = vmatpush2.xpose.msra.mxu0 0.0
        %3981 = vmatprep.subr.mxu0 0.0
        %3982 = vmatpush2.xpose.msra.mxu0 0.0
        %3983 = vmatprep.subr.mxu0 0.0
        %3984 = vmatpush2.xpose.msra.mxu0 0.0
        %3985 = vmatprep.subr.mxu0 0.0
        %3986 = vmatpush2.xpose.msra.mxu0 0.0
        %3987 = vmatprep.subr.mxu0 0.0
        %3988 = vmatpush2.xpose.msra.mxu0 0.0
        %3989 = vmatprep.subr.mxu0 0.0
        %3990 = vmatpush2.xpose.msra.mxu0 0.0
        %3991 = vmatprep.subr.mxu0 0.0
        %3992 = vmatpush2.xpose.msra.mxu0 0.0
        %3993 = vmatprep.subr.mxu0 0.0
        %3994 = vmatpush2.xpose.msra.mxu0 0.0
        %3995 = vmatprep.subr.mxu0 0.0
        %3996 = vmatpush2.xpose.msra.mxu0 0.0
        %3997 = vmatprep.subr.mxu0 0.0
        %3998 = vmatpush2.xpose.msra.mxu0 0.0
        %3999 = vmatprep.subr.mxu0 0.0
        %4000 = vmatpush2.xpose.msra.mxu0 0.0
        %4001 = vmatprep.subr.mxu0 0.0
        %4002 = vmatpush2.xpose.msra.mxu0 0.0
        %4003 = vmatprep.subr.mxu0 0.0
        %4004 = vmatpush2.xpose.msra.mxu0 0.0
        %4005 = vmatprep.mubr.f32.mxu0 0.0
        %4006 = vmatmul.mubr.f32.gmra.mxu0 %v3933
        %v4007 = vpop.f32.mrf.mxu0
        %v4008 = vadd.f32 0.0, %v4007
        %v4009 = vpop.f32.mrf.mxu0
        %4010 = vmatprep.mubr.f32.mxu0 0.0
        %4011 = vmatmul.mubr.f32.gmra.mxu0 %v3935
        %v4012 = vpop.f32.mrf.mxu0
        %v4013 = vadd.f32 0.0, %v4012
        %v4014 = vpop.f32.mrf.mxu0
        %4015 = vdwg.mxu0
        %v4016 = vsel %vm1525, %v1246, 0
        %v4018 = vsel %vm1525, %v1248, 0
        %v4020 = vsel %vm1525, %v1358, 0
        %v4022 = vsel %vm1525, %v1360, 0
        %4024 = vmatprep.subr.mxu0 0.0
        %4025 = vmatpush1.xpose.msra.mxu0 0.0
        %4026 = vmatprep.subr.mxu0 0.0
        %4027 = vmatpush1.xpose.msra.mxu0 0.0
        %4028 = vmatprep.subr.mxu0 0.0
        %4029 = vmatpush1.xpose.msra.mxu0 0.0
        %4030 = vmatprep.subr.mxu0 0.0
        %4031 = vmatpush1.xpose.msra.mxu0 0.0
        %4032 = vmatprep.subr.mxu0 0.0
        %4033 = vmatpush1.xpose.msra.mxu0 0.0
        %4034 = vmatprep.subr.mxu0 0.0
        %4035 = vmatpush1.xpose.msra.mxu0 0.0
        %4036 = vmatprep.subr.mxu0 0.0
        %4037 = vmatpush1.xpose.msra.mxu0 0.0
        %4038 = vmatprep.subr.mxu0 0.0
        %4039 = vmatpush1.xpose.msra.mxu0 0.0
        %4040 = vmatprep.subr.mxu0 0.0
        %4041 = vmatpush1.xpose.msra.mxu0 0.0
        %4042 = vmatprep.subr.mxu0 0.0
        %4043 = vmatpush1.xpose.msra.mxu0 0.0
        %4044 = vmatprep.subr.mxu0 0.0
        %4045 = vmatpush1.xpose.msra.mxu0 0.0
        %4046 = vmatprep.subr.mxu0 0.0
        %4047 = vmatpush1.xpose.msra.mxu0 0.0
        %4048 = vmatprep.subr.mxu0 0.0
        %4049 = vmatpush1.xpose.msra.mxu0 0.0
        %4050 = vmatprep.subr.mxu0 0.0
        %4051 = vmatpush1.xpose.msra.mxu0 0.0
        %4052 = vmatprep.subr.mxu0 0.0
        %4053 = vmatpush1.xpose.msra.mxu0 %v4022
        %4054 = vmatprep.subr.mxu0 0.0
        %4055 = vmatpush1.xpose.msra.mxu0 %v4020
        %4056 = vmatprep.subr.mxu0 0.0
        %4057 = vmatpush2.xpose.msra.mxu0 0.0
        %4058 = vmatprep.subr.mxu0 0.0
        %4059 = vmatpush2.xpose.msra.mxu0 0.0
        %4060 = vmatprep.subr.mxu0 0.0
        %4061 = vmatpush2.xpose.msra.mxu0 0.0
        %4062 = vmatprep.subr.mxu0 0.0
        %4063 = vmatpush2.xpose.msra.mxu0 0.0
        %4064 = vmatprep.subr.mxu0 0.0
        %4065 = vmatpush2.xpose.msra.mxu0 0.0
        %4066 = vmatprep.subr.mxu0 0.0
        %4067 = vmatpush2.xpose.msra.mxu0 0.0
        %4068 = vmatprep.subr.mxu0 0.0
        %4069 = vmatpush2.xpose.msra.mxu0 0.0
        %4070 = vmatprep.subr.mxu0 0.0
        %4071 = vmatpush2.xpose.msra.mxu0 0.0
        %4072 = vmatprep.subr.mxu0 0.0
        %4073 = vmatpush2.xpose.msra.mxu0 0.0
        %4074 = vmatprep.subr.mxu0 0.0
        %4075 = vmatpush2.xpose.msra.mxu0 0.0
        %4076 = vmatprep.subr.mxu0 0.0
        %4077 = vmatpush2.xpose.msra.mxu0 0.0
        %4078 = vmatprep.subr.mxu0 0.0
        %4079 = vmatpush2.xpose.msra.mxu0 0.0
        %4080 = vmatprep.subr.mxu0 0.0
        %4081 = vmatpush2.xpose.msra.mxu0 0.0
        %4082 = vmatprep.subr.mxu0 0.0
        %4083 = vmatpush2.xpose.msra.mxu0 0.0
        %4084 = vmatprep.subr.mxu0 0.0
        %4085 = vmatpush2.xpose.msra.mxu0 0.0
        %4086 = vmatprep.subr.mxu0 0.0
        %4087 = vmatpush2.xpose.msra.mxu0 0.0
        %4088 = vmatprep.mubr.f32.mxu0 0.0
        %4089 = vmatmul.mubr.f32.gmra.mxu0 %v4016
        %v4090 = vpop.f32.mrf.mxu0
        %v4091 = vadd.f32 0.0, %v4090
        %v4092 = vpop.f32.mrf.mxu0
        %4093 = vmatprep.mubr.f32.mxu0 0.0
        %4094 = vmatmul.mubr.f32.gmra.mxu0 %v4018
        %v4095 = vpop.f32.mrf.mxu0
        %v4096 = vadd.f32 0.0, %v4095
        %v4097 = vpop.f32.mrf.mxu0
        %4098 = vdwg.mxu0
        %v4099 = vsel %vm1525, %v1250, 0
        %v4101 = vsel %vm1525, %v1252, 0
        %v4103 = vsel %vm1525, %v1362, 0
        %v4105 = vsel %vm1525, %v1364, 0
        %4107 = vmatprep.subr.mxu0 0.0
        %4108 = vmatpush1.xpose.msra.mxu0 0.0
        %4109 = vmatprep.subr.mxu0 0.0
        %4110 = vmatpush1.xpose.msra.mxu0 0.0
        %4111 = vmatprep.subr.mxu0 0.0
        %4112 = vmatpush1.xpose.msra.mxu0 0.0
        %4113 = vmatprep.subr.mxu0 0.0
        %4114 = vmatpush1.xpose.msra.mxu0 0.0
        %4115 = vmatprep.subr.mxu0 0.0
        %4116 = vmatpush1.xpose.msra.mxu0 0.0
        %4117 = vmatprep.subr.mxu0 0.0
        %4118 = vmatpush1.xpose.msra.mxu0 0.0
        %4119 = vmatprep.subr.mxu0 0.0
        %4120 = vmatpush1.xpose.msra.mxu0 0.0
        %4121 = vmatprep.subr.mxu0 0.0
        %4122 = vmatpush1.xpose.msra.mxu0 0.0
        %4123 = vmatprep.subr.mxu0 0.0
        %4124 = vmatpush1.xpose.msra.mxu0 0.0
        %4125 = vmatprep.subr.mxu0 0.0
        %4126 = vmatpush1.xpose.msra.mxu0 0.0
        %4127 = vmatprep.subr.mxu0 0.0
        %4128 = vmatpush1.xpose.msra.mxu0 0.0
        %4129 = vmatprep.subr.mxu0 0.0
        %4130 = vmatpush1.xpose.msra.mxu0 0.0
        %4131 = vmatprep.subr.mxu0 0.0
        %4132 = vmatpush1.xpose.msra.mxu0 0.0
        %4133 = vmatprep.subr.mxu0 0.0
        %4134 = vmatpush1.xpose.msra.mxu0 0.0
        %4135 = vmatprep.subr.mxu0 0.0
        %4136 = vmatpush1.xpose.msra.mxu0 %v4105
        %4137 = vmatprep.subr.mxu0 0.0
        %4138 = vmatpush1.xpose.msra.mxu0 %v4103
        %4139 = vmatprep.subr.mxu0 0.0
        %4140 = vmatpush2.xpose.msra.mxu0 0.0
        %4141 = vmatprep.subr.mxu0 0.0
        %4142 = vmatpush2.xpose.msra.mxu0 0.0
        %4143 = vmatprep.subr.mxu0 0.0
        %4144 = vmatpush2.xpose.msra.mxu0 0.0
        %4145 = vmatprep.subr.mxu0 0.0
        %4146 = vmatpush2.xpose.msra.mxu0 0.0
        %4147 = vmatprep.subr.mxu0 0.0
        %4148 = vmatpush2.xpose.msra.mxu0 0.0
        %4149 = vmatprep.subr.mxu0 0.0
        %4150 = vmatpush2.xpose.msra.mxu0 0.0
        %4151 = vmatprep.subr.mxu0 0.0
        %4152 = vmatpush2.xpose.msra.mxu0 0.0
        %4153 = vmatprep.subr.mxu0 0.0
        %4154 = vmatpush2.xpose.msra.mxu0 0.0
        %4155 = vmatprep.subr.mxu0 0.0
        %4156 = vmatpush2.xpose.msra.mxu0 0.0
        %4157 = vmatprep.subr.mxu0 0.0
        %4158 = vmatpush2.xpose.msra.mxu0 0.0
        %4159 = vmatprep.subr.mxu0 0.0
        %4160 = vmatpush2.xpose.msra.mxu0 0.0
        %4161 = vmatprep.subr.mxu0 0.0
        %4162 = vmatpush2.xpose.msra.mxu0 0.0
        %4163 = vmatprep.subr.mxu0 0.0
        %4164 = vmatpush2.xpose.msra.mxu0 0.0
        %4165 = vmatprep.subr.mxu0 0.0
        %4166 = vmatpush2.xpose.msra.mxu0 0.0
        %4167 = vmatprep.subr.mxu0 0.0
        %4168 = vmatpush2.xpose.msra.mxu0 0.0
        %4169 = vmatprep.subr.mxu0 0.0
        %4170 = vmatpush2.xpose.msra.mxu0 0.0
        %4171 = vmatprep.mubr.f32.mxu0 0.0
        %4172 = vmatmul.mubr.f32.gmra.mxu0 %v4099
        %v4173 = vpop.f32.mrf.mxu0
        %v4174 = vadd.f32 0.0, %v4173
        %v4175 = vpop.f32.mrf.mxu0
        %4176 = vmatprep.mubr.f32.mxu0 0.0
        %4177 = vmatmul.mubr.f32.gmra.mxu0 %v4101
        %v4178 = vpop.f32.mrf.mxu0
        %v4179 = vadd.f32 0.0, %v4178
        %v4180 = vpop.f32.mrf.mxu0
        %4181 = vdwg.mxu0
        %vm4182 = vcmask 130048
        %v4183 = vsel %vm4182, %v1601, -inf
        %4184 = vmax.xlane.f32.xlu0 %v4183
        %v4185 = vpop.xlane.xlu0 %4184
        %v4186 = vsel %vm4182, %v1606, -inf
        %4187 = vmax.xlane.f32.xlu0 %v4186
        %v4188 = vpop.xlane.xlu0 %4187
        %v4189 = vsel %vm4182, %v1684, -inf
        %4190 = vmax.xlane.f32.xlu0 %v4189
        %v4191 = vpop.xlane.xlu0 %4190
        %v4192 = vsel %vm4182, %v1689, -inf
        %4193 = vmax.xlane.f32.xlu0 %v4192
        %v4194 = vpop.xlane.xlu0 %4193
        %v4195 = vsel %vm4182, %v1767, -inf
        %4196 = vmax.xlane.f32.xlu0 %v4195
        %v4197 = vpop.xlane.xlu0 %4196
        %v4198 = vsel %vm4182, %v1772, -inf
        %4199 = vmax.xlane.f32.xlu0 %v4198
        %v4200 = vpop.xlane.xlu0 %4199
        %v4201 = vsel %vm4182, %v1850, -inf
        %4202 = vmax.xlane.f32.xlu0 %v4201
        %v4203 = vpop.xlane.xlu0 %4202
        %v4204 = vsel %vm4182, %v1855, -inf
        %4205 = vmax.xlane.f32.xlu0 %v4204
        %v4206 = vpop.xlane.xlu0 %4205
        %v4207 = vsel %vm4182, %v1933, -inf
        %4208 = vmax.xlane.f32.xlu0 %v4207
        %v4209 = vpop.xlane.xlu0 %4208
        %v4210 = vsel %vm4182, %v1938, -inf
        %4211 = vmax.xlane.f32.xlu0 %v4210
        %v4212 = vpop.xlane.xlu0 %4211
        %v4213 = vsel %vm4182, %v2016, -inf
        %4214 = vmax.xlane.f32.xlu0 %v4213
        %v4215 = vpop.xlane.xlu0 %4214
        %v4216 = vsel %vm4182, %v2021, -inf
        %4217 = vmax.xlane.f32.xlu0 %v4216
        %v4218 = vpop.xlane.xlu0 %4217
        %v4219 = vsel %vm4182, %v2099, -inf
        %4220 = vmax.xlane.f32.xlu0 %v4219
        %v4221 = vpop.xlane.xlu0 %4220
        %v4222 = vsel %vm4182, %v2104, -inf
        %4223 = vmax.xlane.f32.xlu0 %v4222
        %v4224 = vpop.xlane.xlu0 %4223
        %v4225 = vsel %vm4182, %v2182, -inf
        %4226 = vmax.xlane.f32.xlu0 %v4225
        %v4227 = vpop.xlane.xlu0 %4226
        %v4228 = vsel %vm4182, %v2187, -inf
        %4229 = vmax.xlane.f32.xlu0 %v4228
        %v4230 = vpop.xlane.xlu0 %4229
        %v4231 = vsel %vm4182, %v2265, -inf
        %4232 = vmax.xlane.f32.xlu0 %v4231
        %v4233 = vpop.xlane.xlu0 %4232
        %v4234 = vsel %vm4182, %v2270, -inf
        %4235 = vmax.xlane.f32.xlu0 %v4234
        %v4236 = vpop.xlane.xlu0 %4235
        %v4237 = vsel %vm4182, %v2348, -inf
        %4238 = vmax.xlane.f32.xlu0 %v4237
        %v4239 = vpop.xlane.xlu0 %4238
        %v4240 = vsel %vm4182, %v2353, -inf
        %4241 = vmax.xlane.f32.xlu0 %v4240
        %v4242 = vpop.xlane.xlu0 %4241
        %v4243 = vsel %vm4182, %v2431, -inf
        %4244 = vmax.xlane.f32.xlu0 %v4243
        %v4245 = vpop.xlane.xlu0 %4244
        %v4246 = vsel %vm4182, %v2436, -inf
        %4247 = vmax.xlane.f32.xlu0 %v4246
        %v4248 = vpop.xlane.xlu0 %4247
        %v4249 = vsel %vm4182, %v2514, -inf
        %4250 = vmax.xlane.f32.xlu0 %v4249
        %v4251 = vpop.xlane.xlu0 %4250
        %v4252 = vsel %vm4182, %v2519, -inf
        %4253 = vmax.xlane.f32.xlu0 %v4252
        %v4254 = vpop.xlane.xlu0 %4253
        %v4255 = vsel %vm4182, %v2597, -inf
        %4256 = vmax.xlane.f32.xlu0 %v4255
        %v4257 = vpop.xlane.xlu0 %4256
        %v4258 = vsel %vm4182, %v2602, -inf
        %4259 = vmax.xlane.f32.xlu0 %v4258
        %v4260 = vpop.xlane.xlu0 %4259
        %v4261 = vsel %vm4182, %v2680, -inf
        %4262 = vmax.xlane.f32.xlu0 %v4261
        %v4263 = vpop.xlane.xlu0 %4262
        %v4264 = vsel %vm4182, %v2685, -inf
        %4265 = vmax.xlane.f32.xlu0 %v4264
        %v4266 = vpop.xlane.xlu0 %4265
        %v4267 = vsel %vm4182, %v2763, -inf
        %4268 = vmax.xlane.f32.xlu0 %v4267
        %v4269 = vpop.xlane.xlu0 %4268
        %v4270 = vsel %vm4182, %v2768, -inf
        %4271 = vmax.xlane.f32.xlu0 %v4270
        %v4272 = vpop.xlane.xlu0 %4271
        %v4273 = vsel %vm4182, %v2846, -inf
        %4274 = vmax.xlane.f32.xlu0 %v4273
        %v4275 = vpop.xlane.xlu0 %4274
        %v4276 = vsel %vm4182, %v2851, -inf
        %4277 = vmax.xlane.f32.xlu0 %v4276
        %v4278 = vpop.xlane.xlu0 %4277
        %v4279 = vsel %vm4182, %v2929, -inf
        %4280 = vmax.xlane.f32.xlu0 %v4279
        %v4281 = vpop.xlane.xlu0 %4280
        %v4282 = vsel %vm4182, %v2934, -inf
        %4283 = vmax.xlane.f32.xlu0 %v4282
        %v4284 = vpop.xlane.xlu0 %4283
        %v4285 = vsel %vm4182, %v3012, -inf
        %4286 = vmax.xlane.f32.xlu0 %v4285
        %v4287 = vpop.xlane.xlu0 %4286
        %v4288 = vsel %vm4182, %v3017, -inf
        %4289 = vmax.xlane.f32.xlu0 %v4288
        %v4290 = vpop.xlane.xlu0 %4289
        %v4291 = vsel %vm4182, %v3095, -inf
        %4292 = vmax.xlane.f32.xlu0 %v4291
        %v4293 = vpop.xlane.xlu0 %4292
        %v4294 = vsel %vm4182, %v3100, -inf
        %4295 = vmax.xlane.f32.xlu0 %v4294
        %v4296 = vpop.xlane.xlu0 %4295
        %v4297 = vsel %vm4182, %v3178, -inf
        %4298 = vmax.xlane.f32.xlu0 %v4297
        %v4299 = vpop.xlane.xlu0 %4298
        %v4300 = vsel %vm4182, %v3183, -inf
        %4301 = vmax.xlane.f32.xlu0 %v4300
        %v4302 = vpop.xlane.xlu0 %4301
        %v4303 = vsel %vm4182, %v3261, -inf
        %4304 = vmax.xlane.f32.xlu0 %v4303
        %v4305 = vpop.xlane.xlu0 %4304
        %v4306 = vsel %vm4182, %v3266, -inf
        %4307 = vmax.xlane.f32.xlu0 %v4306
        %v4308 = vpop.xlane.xlu0 %4307
        %v4309 = vsel %vm4182, %v3344, -inf
        %4310 = vmax.xlane.f32.xlu0 %v4309
        %v4311 = vpop.xlane.xlu0 %4310
        %v4312 = vsel %vm4182, %v3349, -inf
        %4313 = vmax.xlane.f32.xlu0 %v4312
        %v4314 = vpop.xlane.xlu0 %4313
        %v4315 = vsel %vm4182, %v3427, -inf
        %4316 = vmax.xlane.f32.xlu0 %v4315
        %v4317 = vpop.xlane.xlu0 %4316
        %v4318 = vsel %vm4182, %v3432, -inf
        %4319 = vmax.xlane.f32.xlu0 %v4318
        %v4320 = vpop.xlane.xlu0 %4319
        %v4321 = vsel %vm4182, %v3510, -inf
        %4322 = vmax.xlane.f32.xlu0 %v4321
        %v4323 = vpop.xlane.xlu0 %4322
        %v4324 = vsel %vm4182, %v3515, -inf
        %4325 = vmax.xlane.f32.xlu0 %v4324
        %v4326 = vpop.xlane.xlu0 %4325
        %v4327 = vsel %vm4182, %v3593, -inf
        %4328 = vmax.xlane.f32.xlu0 %v4327
        %v4329 = vpop.xlane.xlu0 %4328
        %v4330 = vsel %vm4182, %v3598, -inf
        %4331 = vmax.xlane.f32.xlu0 %v4330
        %v4332 = vpop.xlane.xlu0 %4331
        %v4333 = vsel %vm4182, %v3676, -inf
        %4334 = vmax.xlane.f32.xlu0 %v4333
        %v4335 = vpop.xlane.xlu0 %4334
        %v4336 = vsel %vm4182, %v3681, -inf
        %4337 = vmax.xlane.f32.xlu0 %v4336
        %v4338 = vpop.xlane.xlu0 %4337
        %v4339 = vsel %vm4182, %v3759, -inf
        %4340 = vmax.xlane.f32.xlu0 %v4339
        %v4341 = vpop.xlane.xlu0 %4340
        %v4342 = vsel %vm4182, %v3764, -inf
        %4343 = vmax.xlane.f32.xlu0 %v4342
        %v4344 = vpop.xlane.xlu0 %4343
        %v4345 = vsel %vm4182, %v3842, -inf
        %4346 = vmax.xlane.f32.xlu0 %v4345
        %v4347 = vpop.xlane.xlu0 %4346
        %v4348 = vsel %vm4182, %v3847, -inf
        %4349 = vmax.xlane.f32.xlu0 %v4348
        %v4350 = vpop.xlane.xlu0 %4349
        %v4351 = vsel %vm4182, %v3925, -inf
        %4352 = vmax.xlane.f32.xlu0 %v4351
        %v4353 = vpop.xlane.xlu0 %4352
        %v4354 = vsel %vm4182, %v3930, -inf
        %4355 = vmax.xlane.f32.xlu0 %v4354
        %v4356 = vpop.xlane.xlu0 %4355
        %v4357 = vsel %vm4182, %v4008, -inf
        %4358 = vmax.xlane.f32.xlu0 %v4357
        %v4359 = vpop.xlane.xlu0 %4358
        %v4360 = vsel %vm4182, %v4013, -inf
        %4361 = vmax.xlane.f32.xlu0 %v4360
        %v4362 = vpop.xlane.xlu0 %4361
        %v4363 = vsel %vm4182, %v4091, -inf
        %4364 = vmax.xlane.f32.xlu0 %v4363
        %v4365 = vpop.xlane.xlu0 %4364
        %v4366 = vsel %vm4182, %v4096, -inf
        %4367 = vmax.xlane.f32.xlu0 %v4366
        %v4368 = vpop.xlane.xlu0 %4367
        %v4369 = vsel %vm4182, %v4174, -inf
        %4370 = vmax.xlane.f32.xlu0 %v4369
        %v4371 = vpop.xlane.xlu0 %4370
        %v4372 = vsel %vm4182, %v4179, -inf
        %4373 = vmax.xlane.f32.xlu0 %v4372
        %v4374 = vpop.xlane.xlu0 %4373
        %v4375 = vsub.f32 %v1601, %v4185
        %v4376 = vsub.f32 %v1606, %v4188
        %v4377 = vsub.f32 %v1684, %v4191
        %v4378 = vsub.f32 %v1689, %v4194
        %v4379 = vsub.f32 %v1767, %v4197
        %v4380 = vsub.f32 %v1772, %v4200
        %v4381 = vsub.f32 %v1850, %v4203
        %v4382 = vsub.f32 %v1855, %v4206
        %v4383 = vsub.f32 %v1933, %v4209
        %v4384 = vsub.f32 %v1938, %v4212
        %v4385 = vsub.f32 %v2016, %v4215
        %v4386 = vsub.f32 %v2021, %v4218
        %v4387 = vsub.f32 %v2099, %v4221
        %v4388 = vsub.f32 %v2104, %v4224
        %v4389 = vsub.f32 %v2182, %v4227
        %v4390 = vsub.f32 %v2187, %v4230
        %v4391 = vsub.f32 %v2265, %v4233
        %v4392 = vsub.f32 %v2270, %v4236
        %v4393 = vsub.f32 %v2348, %v4239
        %v4394 = vsub.f32 %v2353, %v4242
        %v4395 = vsub.f32 %v2431, %v4245
        %v4396 = vsub.f32 %v2436, %v4248
        %v4397 = vsub.f32 %v2514, %v4251
        %v4398 = vsub.f32 %v2519, %v4254
        %v4399 = vsub.f32 %v2597, %v4257
        %v4400 = vsub.f32 %v2602, %v4260
        %v4401 = vsub.f32 %v2680, %v4263
        %v4402 = vsub.f32 %v2685, %v4266
        %v4403 = vsub.f32 %v2763, %v4269
        %v4404 = vsub.f32 %v2768, %v4272
        %v4405 = vsub.f32 %v2846, %v4275
        %v4406 = vsub.f32 %v2851, %v4278
        %v4407 = vsub.f32 %v2929, %v4281
        %v4408 = vsub.f32 %v2934, %v4284
        %v4409 = vsub.f32 %v3012, %v4287
        %v4410 = vsub.f32 %v3017, %v4290
        %v4411 = vsub.f32 %v3095, %v4293
        %v4412 = vsub.f32 %v3100, %v4296
        %v4413 = vsub.f32 %v3178, %v4299
        %v4414 = vsub.f32 %v3183, %v4302
        %v4415 = vsub.f32 %v3261, %v4305
        %v4416 = vsub.f32 %v3266, %v4308
        %v4417 = vsub.f32 %v3344, %v4311
        %v4418 = vsub.f32 %v3349, %v4314
        %v4419 = vsub.f32 %v3427, %v4317
        %v4420 = vsub.f32 %v3432, %v4320
        %v4421 = vsub.f32 %v3510, %v4323
        %v4422 = vsub.f32 %v3515, %v4326
        %v4423 = vsub.f32 %v3593, %v4329
        %v4424 = vsub.f32 %v3598, %v4332
        %v4425 = vsub.f32 %v3676, %v4335
        %v4426 = vsub.f32 %v3681, %v4338
        %v4427 = vsub.f32 %v3759, %v4341
        %v4428 = vsub.f32 %v3764, %v4344
        %v4429 = vsub.f32 %v3842, %v4347
        %v4430 = vsub.f32 %v3847, %v4350
        %v4431 = vsub.f32 %v3925, %v4353
        %v4432 = vsub.f32 %v3930, %v4356
        %v4433 = vsub.f32 %v4008, %v4359
        %v4434 = vsub.f32 %v4013, %v4362
        %v4435 = vsub.f32 %v4091, %v4365
        %v4436 = vsub.f32 %v4096, %v4368
        %v4437 = vsub.f32 %v4174, %v4371
        %v4438 = vsub.f32 %v4179, %v4374
        %v4439 = vmul.f32 %v4375, 1.442695
        %v4440 = vpow.pop %v4439
        %v4441 = vmul.f32 %v4376, 1.442695
        %v4442 = vpow.pop %v4441
        %v4443 = vmul.f32 %v4377, 1.442695
        %v4444 = vpow.pop %v4443
        %v4445 = vmul.f32 %v4378, 1.442695
        %v4446 = vpow.pop %v4445
        %v4447 = vmul.f32 %v4379, 1.442695
        %v4448 = vpow.pop %v4447
        %v4449 = vmul.f32 %v4380, 1.442695
        %v4450 = vpow.pop %v4449
        %v4451 = vmul.f32 %v4381, 1.442695
        %v4452 = vpow.pop %v4451
        %v4453 = vmul.f32 %v4382, 1.442695
        %v4454 = vpow.pop %v4453
        %v4455 = vmul.f32 %v4383, 1.442695
        %v4456 = vpow.pop %v4455
        %v4457 = vmul.f32 %v4384, 1.442695
        %v4458 = vpow.pop %v4457
        %v4459 = vmul.f32 %v4385, 1.442695
        %v4460 = vpow.pop %v4459
        %v4461 = vmul.f32 %v4386, 1.442695
        %v4462 = vpow.pop %v4461
        %v4463 = vmul.f32 %v4387, 1.442695
        %v4464 = vpow.pop %v4463
        %v4465 = vmul.f32 %v4388, 1.442695
        %v4466 = vpow.pop %v4465
        %v4467 = vmul.f32 %v4389, 1.442695
        %v4468 = vpow.pop %v4467
        %v4469 = vmul.f32 %v4390, 1.442695
        %v4470 = vpow.pop %v4469
        %v4471 = vmul.f32 %v4391, 1.442695
        %v4472 = vpow.pop %v4471
        %v4473 = vmul.f32 %v4392, 1.442695
        %v4474 = vpow.pop %v4473
        %v4475 = vmul.f32 %v4393, 1.442695
        %v4476 = vpow.pop %v4475
        %v4477 = vmul.f32 %v4394, 1.442695
        %v4478 = vpow.pop %v4477
        %v4479 = vmul.f32 %v4395, 1.442695
        %v4480 = vpow.pop %v4479
        %v4481 = vmul.f32 %v4396, 1.442695
        %v4482 = vpow.pop %v4481
        %v4483 = vmul.f32 %v4397, 1.442695
        %v4484 = vpow.pop %v4483
        %v4485 = vmul.f32 %v4398, 1.442695
        %v4486 = vpow.pop %v4485
        %v4487 = vmul.f32 %v4399, 1.442695
        %v4488 = vpow.pop %v4487
        %v4489 = vmul.f32 %v4400, 1.442695
        %v4490 = vpow.pop %v4489
        %v4491 = vmul.f32 %v4401, 1.442695
        %v4492 = vpow.pop %v4491
        %v4493 = vmul.f32 %v4402, 1.442695
        %v4494 = vpow.pop %v4493
        %v4495 = vmul.f32 %v4403, 1.442695
        %v4496 = vpow.pop %v4495
        %v4497 = vmul.f32 %v4404, 1.442695
        %v4498 = vpow.pop %v4497
        %v4499 = vmul.f32 %v4405, 1.442695
        %v4500 = vpow.pop %v4499
        %v4501 = vmul.f32 %v4406, 1.442695
        %v4502 = vpow.pop %v4501
        %v4503 = vmul.f32 %v4407, 1.442695
        %v4504 = vpow.pop %v4503
        %v4505 = vmul.f32 %v4408, 1.442695
        %v4506 = vpow.pop %v4505
        %v4507 = vmul.f32 %v4409, 1.442695
        %v4508 = vpow.pop %v4507
        %v4509 = vmul.f32 %v4410, 1.442695
        %v4510 = vpow.pop %v4509
        %v4511 = vmul.f32 %v4411, 1.442695
        %v4512 = vpow.pop %v4511
        %v4513 = vmul.f32 %v4412, 1.442695
        %v4514 = vpow.pop %v4513
        %v4515 = vmul.f32 %v4413, 1.442695
        %v4516 = vpow.pop %v4515
        %v4517 = vmul.f32 %v4414, 1.442695
        %v4518 = vpow.pop %v4517
        %v4519 = vmul.f32 %v4415, 1.442695
        %v4520 = vpow.pop %v4519
        %v4521 = vmul.f32 %v4416, 1.442695
        %v4522 = vpow.pop %v4521
        %v4523 = vmul.f32 %v4417, 1.442695
        %v4524 = vpow.pop %v4523
        %v4525 = vmul.f32 %v4418, 1.442695
        %v4526 = vpow.pop %v4525
        %v4527 = vmul.f32 %v4419, 1.442695
        %v4528 = vpow.pop %v4527
        %v4529 = vmul.f32 %v4420, 1.442695
        %v4530 = vpow.pop %v4529
        %v4531 = vmul.f32 %v4421, 1.442695
        %v4532 = vpow.pop %v4531
        %v4533 = vmul.f32 %v4422, 1.442695
        %v4534 = vpow.pop %v4533
        %v4535 = vmul.f32 %v4423, 1.442695
        %v4536 = vpow.pop %v4535
        %v4537 = vmul.f32 %v4424, 1.442695
        %v4538 = vpow.pop %v4537
        %v4539 = vmul.f32 %v4425, 1.442695
        %v4540 = vpow.pop %v4539
        %v4541 = vmul.f32 %v4426, 1.442695
        %v4542 = vpow.pop %v4541
        %v4543 = vmul.f32 %v4427, 1.442695
        %v4544 = vpow.pop %v4543
        %v4545 = vmul.f32 %v4428, 1.442695
        %v4546 = vpow.pop %v4545
        %v4547 = vmul.f32 %v4429, 1.442695
        %v4548 = vpow.pop %v4547
        %v4549 = vmul.f32 %v4430, 1.442695
        %v4550 = vpow.pop %v4549
        %v4551 = vmul.f32 %v4431, 1.442695
        %v4552 = vpow.pop %v4551
        %v4553 = vmul.f32 %v4432, 1.442695
        %v4554 = vpow.pop %v4553
        %v4555 = vmul.f32 %v4433, 1.442695
        %v4556 = vpow.pop %v4555
        %v4557 = vmul.f32 %v4434, 1.442695
        %v4558 = vpow.pop %v4557
        %v4559 = vmul.f32 %v4435, 1.442695
        %v4560 = vpow.pop %v4559
        %v4561 = vmul.f32 %v4436, 1.442695
        %v4562 = vpow.pop %v4561
        %v4563 = vmul.f32 %v4437, 1.442695
        %v4564 = vpow.pop %v4563
        %v4565 = vmul.f32 %v4438, 1.442695
        %v4566 = vpow.pop %v4565
        %v4567 = vsel %vm4182, %v4440, 0.0
        %4568 = vadd.xlane.f32.xlu0 %v4567
        %v4569 = vpop.xlane.xlu0 %4568
        %v4570 = vsel %vm4182, %v4442, 0.0
        %4571 = vadd.xlane.f32.xlu0 %v4570
        %v4572 = vpop.xlane.xlu0 %4571
        %v4573 = vsel %vm4182, %v4444, 0.0
        %4574 = vadd.xlane.f32.xlu0 %v4573
        %v4575 = vpop.xlane.xlu0 %4574
        %v4576 = vsel %vm4182, %v4446, 0.0
        %4577 = vadd.xlane.f32.xlu0 %v4576
        %v4578 = vpop.xlane.xlu0 %4577
        %v4579 = vsel %vm4182, %v4448, 0.0
        %4580 = vadd.xlane.f32.xlu0 %v4579
        %v4581 = vpop.xlane.xlu0 %4580
        %v4582 = vsel %vm4182, %v4450, 0.0
        %4583 = vadd.xlane.f32.xlu0 %v4582
        %v4584 = vpop.xlane.xlu0 %4583
        %v4585 = vsel %vm4182, %v4452, 0.0
        %4586 = vadd.xlane.f32.xlu0 %v4585
        %v4587 = vpop.xlane.xlu0 %4586
        %v4588 = vsel %vm4182, %v4454, 0.0
        %4589 = vadd.xlane.f32.xlu0 %v4588
        %v4590 = vpop.xlane.xlu0 %4589
        %v4591 = vsel %vm4182, %v4456, 0.0
        %4592 = vadd.xlane.f32.xlu0 %v4591
        %v4593 = vpop.xlane.xlu0 %4592
        %v4594 = vsel %vm4182, %v4458, 0.0
        %4595 = vadd.xlane.f32.xlu0 %v4594
        %v4596 = vpop.xlane.xlu0 %4595
        %v4597 = vsel %vm4182, %v4460, 0.0
        %4598 = vadd.xlane.f32.xlu0 %v4597
        %v4599 = vpop.xlane.xlu0 %4598
        %v4600 = vsel %vm4182, %v4462, 0.0
        %4601 = vadd.xlane.f32.xlu0 %v4600
        %v4602 = vpop.xlane.xlu0 %4601
        %v4603 = vsel %vm4182, %v4464, 0.0
        %4604 = vadd.xlane.f32.xlu0 %v4603
        %v4605 = vpop.xlane.xlu0 %4604
        %v4606 = vsel %vm4182, %v4466, 0.0
        %4607 = vadd.xlane.f32.xlu0 %v4606
        %v4608 = vpop.xlane.xlu0 %4607
        %v4609 = vsel %vm4182, %v4468, 0.0
        %4610 = vadd.xlane.f32.xlu0 %v4609
        %v4611 = vpop.xlane.xlu0 %4610
        %v4612 = vsel %vm4182, %v4470, 0.0
        %4613 = vadd.xlane.f32.xlu0 %v4612
        %v4614 = vpop.xlane.xlu0 %4613
        %v4615 = vsel %vm4182, %v4472, 0.0
        %4616 = vadd.xlane.f32.xlu0 %v4615
        %v4617 = vpop.xlane.xlu0 %4616
        %v4618 = vsel %vm4182, %v4474, 0.0
        %4619 = vadd.xlane.f32.xlu0 %v4618
        %v4620 = vpop.xlane.xlu0 %4619
        %v4621 = vsel %vm4182, %v4476, 0.0
        %4622 = vadd.xlane.f32.xlu0 %v4621
        %v4623 = vpop.xlane.xlu0 %4622
        %v4624 = vsel %vm4182, %v4478, 0.0
        %4625 = vadd.xlane.f32.xlu0 %v4624
        %v4626 = vpop.xlane.xlu0 %4625
        %v4627 = vsel %vm4182, %v4480, 0.0
        %4628 = vadd.xlane.f32.xlu0 %v4627
        %v4629 = vpop.xlane.xlu0 %4628
        %v4630 = vsel %vm4182, %v4482, 0.0
        %4631 = vadd.xlane.f32.xlu0 %v4630
        %v4632 = vpop.xlane.xlu0 %4631
        %v4633 = vsel %vm4182, %v4484, 0.0
        %4634 = vadd.xlane.f32.xlu0 %v4633
        %v4635 = vpop.xlane.xlu0 %4634
        %v4636 = vsel %vm4182, %v4486, 0.0
        %4637 = vadd.xlane.f32.xlu0 %v4636
        %v4638 = vpop.xlane.xlu0 %4637
        %v4639 = vsel %vm4182, %v4488, 0.0
        %4640 = vadd.xlane.f32.xlu0 %v4639
        %v4641 = vpop.xlane.xlu0 %4640
        %v4642 = vsel %vm4182, %v4490, 0.0
        %4643 = vadd.xlane.f32.xlu0 %v4642
        %v4644 = vpop.xlane.xlu0 %4643
        %v4645 = vsel %vm4182, %v4492, 0.0
        %4646 = vadd.xlane.f32.xlu0 %v4645
        %v4647 = vpop.xlane.xlu0 %4646
        %v4648 = vsel %vm4182, %v4494, 0.0
        %4649 = vadd.xlane.f32.xlu0 %v4648
        %v4650 = vpop.xlane.xlu0 %4649
        %v4651 = vsel %vm4182, %v4496, 0.0
        %4652 = vadd.xlane.f32.xlu0 %v4651
        %v4653 = vpop.xlane.xlu0 %4652
        %v4654 = vsel %vm4182, %v4498, 0.0
        %4655 = vadd.xlane.f32.xlu0 %v4654
        %v4656 = vpop.xlane.xlu0 %4655
        %v4657 = vsel %vm4182, %v4500, 0.0
        %4658 = vadd.xlane.f32.xlu0 %v4657
        %v4659 = vpop.xlane.xlu0 %4658
        %v4660 = vsel %vm4182, %v4502, 0.0
        %4661 = vadd.xlane.f32.xlu0 %v4660
        %v4662 = vpop.xlane.xlu0 %4661
        %v4663 = vsel %vm4182, %v4504, 0.0
        %4664 = vadd.xlane.f32.xlu0 %v4663
        %v4665 = vpop.xlane.xlu0 %4664
        %v4666 = vsel %vm4182, %v4506, 0.0
        %4667 = vadd.xlane.f32.xlu0 %v4666
        %v4668 = vpop.xlane.xlu0 %4667
        %v4669 = vsel %vm4182, %v4508, 0.0
        %4670 = vadd.xlane.f32.xlu0 %v4669
        %v4671 = vpop.xlane.xlu0 %4670
        %v4672 = vsel %vm4182, %v4510, 0.0
        %4673 = vadd.xlane.f32.xlu0 %v4672
        %v4674 = vpop.xlane.xlu0 %4673
        %v4675 = vsel %vm4182, %v4512, 0.0
        %4676 = vadd.xlane.f32.xlu0 %v4675
        %v4677 = vpop.xlane.xlu0 %4676
        %v4678 = vsel %vm4182, %v4514, 0.0
        %4679 = vadd.xlane.f32.xlu0 %v4678
        %v4680 = vpop.xlane.xlu0 %4679
        %v4681 = vsel %vm4182, %v4516, 0.0
        %4682 = vadd.xlane.f32.xlu0 %v4681
        %v4683 = vpop.xlane.xlu0 %4682
        %v4684 = vsel %vm4182, %v4518, 0.0
        %4685 = vadd.xlane.f32.xlu0 %v4684
        %v4686 = vpop.xlane.xlu0 %4685
        %v4687 = vsel %vm4182, %v4520, 0.0
        %4688 = vadd.xlane.f32.xlu0 %v4687
        %v4689 = vpop.xlane.xlu0 %4688
        %v4690 = vsel %vm4182, %v4522, 0.0
        %4691 = vadd.xlane.f32.xlu0 %v4690
        %v4692 = vpop.xlane.xlu0 %4691
        %v4693 = vsel %vm4182, %v4524, 0.0
        %4694 = vadd.xlane.f32.xlu0 %v4693
        %v4695 = vpop.xlane.xlu0 %4694
        %v4696 = vsel %vm4182, %v4526, 0.0
        %4697 = vadd.xlane.f32.xlu0 %v4696
        %v4698 = vpop.xlane.xlu0 %4697
        %v4699 = vsel %vm4182, %v4528, 0.0
        %4700 = vadd.xlane.f32.xlu0 %v4699
        %v4701 = vpop.xlane.xlu0 %4700
        %v4702 = vsel %vm4182, %v4530, 0.0
        %4703 = vadd.xlane.f32.xlu0 %v4702
        %v4704 = vpop.xlane.xlu0 %4703
        %v4705 = vsel %vm4182, %v4532, 0.0
        %4706 = vadd.xlane.f32.xlu0 %v4705
        %v4707 = vpop.xlane.xlu0 %4706
        %v4708 = vsel %vm4182, %v4534, 0.0
        %4709 = vadd.xlane.f32.xlu0 %v4708
        %v4710 = vpop.xlane.xlu0 %4709
        %v4711 = vsel %vm4182, %v4536, 0.0
        %4712 = vadd.xlane.f32.xlu0 %v4711
        %v4713 = vpop.xlane.xlu0 %4712
        %v4714 = vsel %vm4182, %v4538, 0.0
        %4715 = vadd.xlane.f32.xlu0 %v4714
        %v4716 = vpop.xlane.xlu0 %4715
        %v4717 = vsel %vm4182, %v4540, 0.0
        %4718 = vadd.xlane.f32.xlu0 %v4717
        %v4719 = vpop.xlane.xlu0 %4718
        %v4720 = vsel %vm4182, %v4542, 0.0
        %4721 = vadd.xlane.f32.xlu0 %v4720
        %v4722 = vpop.xlane.xlu0 %4721
        %v4723 = vsel %vm4182, %v4544, 0.0
        %4724 = vadd.xlane.f32.xlu0 %v4723
        %v4725 = vpop.xlane.xlu0 %4724
        %v4726 = vsel %vm4182, %v4546, 0.0
        %4727 = vadd.xlane.f32.xlu0 %v4726
        %v4728 = vpop.xlane.xlu0 %4727
        %v4729 = vsel %vm4182, %v4548, 0.0
        %4730 = vadd.xlane.f32.xlu0 %v4729
        %v4731 = vpop.xlane.xlu0 %4730
        %v4732 = vsel %vm4182, %v4550, 0.0
        %4733 = vadd.xlane.f32.xlu0 %v4732
        %v4734 = vpop.xlane.xlu0 %4733
        %v4735 = vsel %vm4182, %v4552, 0.0
        %4736 = vadd.xlane.f32.xlu0 %v4735
        %v4737 = vpop.xlane.xlu0 %4736
        %v4738 = vsel %vm4182, %v4554, 0.0
        %4739 = vadd.xlane.f32.xlu0 %v4738
        %v4740 = vpop.xlane.xlu0 %4739
        %v4741 = vsel %vm4182, %v4556, 0.0
        %4742 = vadd.xlane.f32.xlu0 %v4741
        %v4743 = vpop.xlane.xlu0 %4742
        %v4744 = vsel %vm4182, %v4558, 0.0
        %4745 = vadd.xlane.f32.xlu0 %v4744
        %v4746 = vpop.xlane.xlu0 %4745
        %v4747 = vsel %vm4182, %v4560, 0.0
        %4748 = vadd.xlane.f32.xlu0 %v4747
        %v4749 = vpop.xlane.xlu0 %4748
        %v4750 = vsel %vm4182, %v4562, 0.0
        %4751 = vadd.xlane.f32.xlu0 %v4750
        %v4752 = vpop.xlane.xlu0 %4751
        %v4753 = vsel %vm4182, %v4564, 0.0
        %4754 = vadd.xlane.f32.xlu0 %v4753
        %v4755 = vpop.xlane.xlu0 %4754
        %v4756 = vsel %vm4182, %v4566, 0.0
        %4757 = vadd.xlane.f32.xlu0 %v4756
        %v4758 = vpop.xlane.xlu0 %4757
        %v4759 = vrcp.pop %v4569
        %v4760 = vmul.f32 %v4440, %v4759
        %v4761 = vrcp.pop %v4572
        %v4762 = vmul.f32 %v4442, %v4761
        %v4763 = vrcp.pop %v4575
        %v4764 = vmul.f32 %v4444, %v4763
        %v4765 = vrcp.pop %v4578
        %v4766 = vmul.f32 %v4446, %v4765
        %v4767 = vrcp.pop %v4581
        %v4768 = vmul.f32 %v4448, %v4767
        %v4769 = vrcp.pop %v4584
        %v4770 = vmul.f32 %v4450, %v4769
        %v4771 = vrcp.pop %v4587
        %v4772 = vmul.f32 %v4452, %v4771
        %v4773 = vrcp.pop %v4590
        %v4774 = vmul.f32 %v4454, %v4773
        %v4775 = vrcp.pop %v4593
        %v4776 = vmul.f32 %v4456, %v4775
        %v4777 = vrcp.pop %v4596
        %v4778 = vmul.f32 %v4458, %v4777
        %v4779 = vrcp.pop %v4599
        %v4780 = vmul.f32 %v4460, %v4779
        %v4781 = vrcp.pop %v4602
        %v4782 = vmul.f32 %v4462, %v4781
        %v4783 = vrcp.pop %v4605
        %v4784 = vmul.f32 %v4464, %v4783
        %v4785 = vrcp.pop %v4608
        %v4786 = vmul.f32 %v4466, %v4785
        %v4787 = vrcp.pop %v4611
        %v4788 = vmul.f32 %v4468, %v4787
        %v4789 = vrcp.pop %v4614
        %v4790 = vmul.f32 %v4470, %v4789
        %v4791 = vrcp.pop %v4617
        %v4792 = vmul.f32 %v4472, %v4791
        %v4793 = vrcp.pop %v4620
        %v4794 = vmul.f32 %v4474, %v4793
        %v4795 = vrcp.pop %v4623
        %v4796 = vmul.f32 %v4476, %v4795
        %v4797 = vrcp.pop %v4626
        %v4798 = vmul.f32 %v4478, %v4797
        %v4799 = vrcp.pop %v4629
        %v4800 = vmul.f32 %v4480, %v4799
        %v4801 = vrcp.pop %v4632
        %v4802 = vmul.f32 %v4482, %v4801
        %v4803 = vrcp.pop %v4635
        %v4804 = vmul.f32 %v4484, %v4803
        %v4805 = vrcp.pop %v4638
        %v4806 = vmul.f32 %v4486, %v4805
        %v4807 = vrcp.pop %v4641
        %v4808 = vmul.f32 %v4488, %v4807
        %v4809 = vrcp.pop %v4644
        %v4810 = vmul.f32 %v4490, %v4809
        %v4811 = vrcp.pop %v4647
        %v4812 = vmul.f32 %v4492, %v4811
        %v4813 = vrcp.pop %v4650
        %v4814 = vmul.f32 %v4494, %v4813
        %v4815 = vrcp.pop %v4653
        %v4816 = vmul.f32 %v4496, %v4815
        %v4817 = vrcp.pop %v4656
        %v4818 = vmul.f32 %v4498, %v4817
        %v4819 = vrcp.pop %v4659
        %v4820 = vmul.f32 %v4500, %v4819
        %v4821 = vrcp.pop %v4662
        %v4822 = vmul.f32 %v4502, %v4821
        %v4823 = vrcp.pop %v4665
        %v4824 = vmul.f32 %v4504, %v4823
        %v4825 = vrcp.pop %v4668
        %v4826 = vmul.f32 %v4506, %v4825
        %v4827 = vrcp.pop %v4671
        %v4828 = vmul.f32 %v4508, %v4827
        %v4829 = vrcp.pop %v4674
        %v4830 = vmul.f32 %v4510, %v4829
        %v4831 = vrcp.pop %v4677
        %v4832 = vmul.f32 %v4512, %v4831
        %v4833 = vrcp.pop %v4680
        %v4834 = vmul.f32 %v4514, %v4833
        %v4835 = vrcp.pop %v4683
        %v4836 = vmul.f32 %v4516, %v4835
        %v4837 = vrcp.pop %v4686
        %v4838 = vmul.f32 %v4518, %v4837
        %v4839 = vrcp.pop %v4689
        %v4840 = vmul.f32 %v4520, %v4839
        %v4841 = vrcp.pop %v4692
        %v4842 = vmul.f32 %v4522, %v4841
        %v4843 = vrcp.pop %v4695
        %v4844 = vmul.f32 %v4524, %v4843
        %v4845 = vrcp.pop %v4698
        %v4846 = vmul.f32 %v4526, %v4845
        %v4847 = vrcp.pop %v4701
        %v4848 = vmul.f32 %v4528, %v4847
        %v4849 = vrcp.pop %v4704
        %v4850 = vmul.f32 %v4530, %v4849
        %v4851 = vrcp.pop %v4707
        %v4852 = vmul.f32 %v4532, %v4851
        %v4853 = vrcp.pop %v4710
        %v4854 = vmul.f32 %v4534, %v4853
        %v4855 = vrcp.pop %v4713
        %v4856 = vmul.f32 %v4536, %v4855
        %v4857 = vrcp.pop %v4716
        %v4858 = vmul.f32 %v4538, %v4857
        %v4859 = vrcp.pop %v4719
        %v4860 = vmul.f32 %v4540, %v4859
        %v4861 = vrcp.pop %v4722
        %v4862 = vmul.f32 %v4542, %v4861
        %v4863 = vrcp.pop %v4725
        %v4864 = vmul.f32 %v4544, %v4863
        %v4865 = vrcp.pop %v4728
        %v4866 = vmul.f32 %v4546, %v4865
        %v4867 = vrcp.pop %v4731
        %v4868 = vmul.f32 %v4548, %v4867
        %v4869 = vrcp.pop %v4734
        %v4870 = vmul.f32 %v4550, %v4869
        %v4871 = vrcp.pop %v4737
        %v4872 = vmul.f32 %v4552, %v4871
        %v4873 = vrcp.pop %v4740
        %v4874 = vmul.f32 %v4554, %v4873
        %v4875 = vrcp.pop %v4743
        %v4876 = vmul.f32 %v4556, %v4875
        %v4877 = vrcp.pop %v4746
        %v4878 = vmul.f32 %v4558, %v4877
        %v4879 = vrcp.pop %v4749
        %v4880 = vmul.f32 %v4560, %v4879
        %v4881 = vrcp.pop %v4752
        %v4882 = vmul.f32 %v4562, %v4881
        %v4883 = vrcp.pop %v4755
        %v4884 = vmul.f32 %v4564, %v4883
        %v4885 = vrcp.pop %v4758
        %v4886 = vmul.f32 %v4566, %v4885
        %v4888 = vsel %vm4182, %v4760, 0
        %v4891 = vsel %vm4182, %v4762, 0
        %4893 = vmatprep.subr.mxu0 0.0
        %4894 = vmatpush1.msra.mxu0 0.0
        %4895 = vmatprep.subr.mxu0 0.0
        %4896 = vmatpush1.msra.mxu0 0.0
        %4897 = vmatprep.subr.mxu0 0.0
        %4898 = vmatpush1.msra.mxu0 0.0
        %4899 = vmatprep.subr.mxu0 0.0
        %4900 = vmatpush1.msra.mxu0 0.0
        %4901 = vmatprep.subr.mxu0 0.0
        %4902 = vmatpush1.msra.mxu0 0.0
        %4903 = vmatprep.subr.mxu0 0.0
        %4904 = vmatpush1.msra.mxu0 0.0
        %4905 = vmatprep.subr.mxu0 0.0
        %4906 = vmatpush1.msra.mxu0 0.0
        %4907 = vmatprep.subr.mxu0 0.0
        %4908 = vmatpush1.msra.mxu0 0.0
        %4909 = vmatprep.subr.mxu0 0.0
        %4910 = vmatpush1.msra.mxu0 0.0
        %4911 = vmatprep.subr.mxu0 0.0
        %4912 = vmatpush1.msra.mxu0 0.0
        %4913 = vmatprep.subr.mxu0 0.0
        %4914 = vmatpush1.msra.mxu0 0.0
        %4915 = vmatprep.subr.mxu0 0.0
        %4916 = vmatpush1.msra.mxu0 0.0
        %4917 = vmatprep.subr.mxu0 0.0
        %4918 = vmatpush1.msra.mxu0 0.0
        %4919 = vmatprep.subr.mxu0 0.0
        %4920 = vmatpush1.msra.mxu0 0.0
        %4921 = vmatprep.subr.mxu0 0.0
        %4922 = vmatpush1.msra.mxu0 %v1068
        %4923 = vmatprep.subr.mxu0 0.0
        %4924 = vmatpush1.msra.mxu0 %v1063
        %4925 = vmatprep.subr.mxu0 0.0
        %4926 = vmatpush2.msra.mxu0 0.0
        %4927 = vmatprep.subr.mxu0 0.0
        %4928 = vmatpush2.msra.mxu0 0.0
        %4929 = vmatprep.subr.mxu0 0.0
        %4930 = vmatpush2.msra.mxu0 0.0
        %4931 = vmatprep.subr.mxu0 0.0
        %4932 = vmatpush2.msra.mxu0 0.0
        %4933 = vmatprep.subr.mxu0 0.0
        %4934 = vmatpush2.msra.mxu0 0.0
        %4935 = vmatprep.subr.mxu0 0.0
        %4936 = vmatpush2.msra.mxu0 0.0
        %4937 = vmatprep.subr.mxu0 0.0
        %4938 = vmatpush2.msra.mxu0 0.0
        %4939 = vmatprep.subr.mxu0 0.0
        %4940 = vmatpush2.msra.mxu0 0.0
        %4941 = vmatprep.subr.mxu0 0.0
        %4942 = vmatpush2.msra.mxu0 0.0
        %4943 = vmatprep.subr.mxu0 0.0
        %4944 = vmatpush2.msra.mxu0 0.0
        %4945 = vmatprep.subr.mxu0 0.0
        %4946 = vmatpush2.msra.mxu0 0.0
        %4947 = vmatprep.subr.mxu0 0.0
        %4948 = vmatpush2.msra.mxu0 0.0
        %4949 = vmatprep.subr.mxu0 0.0
        %4950 = vmatpush2.msra.mxu0 0.0
        %4951 = vmatprep.subr.mxu0 0.0
        %4952 = vmatpush2.msra.mxu0 0.0
        %4953 = vmatprep.subr.mxu0 0.0
        %4954 = vmatpush2.msra.mxu0 0.0
        %4955 = vmatprep.subr.mxu0 0.0
        %4956 = vmatpush2.msra.mxu0 0.0
        %4957 = vmatprep.mubr.f32.mxu0 0.0
        %4958 = vmatmul.mubr.f32.gmra.mxu0 %v4888
        %v4959 = vpop.f32.mrf.mxu0
        %v4960 = vadd.f32 0.0, %v4959
        %v4961 = vpop.f32.mrf.mxu0
        %4962 = vmatprep.mubr.f32.mxu0 0.0
        %4963 = vmatmul.mubr.f32.gmra.mxu0 %v4891
        %v4964 = vpop.f32.mrf.mxu0
        %v4965 = vadd.f32 0.0, %v4964
        %v4966 = vpop.f32.mrf.mxu0
        %4967 = vdwg.mxu0
        %v4969 = vsel %vm4182, %v4764, 0
        %v4972 = vsel %vm4182, %v4766, 0
        %4974 = vmatprep.subr.mxu0 0.0
        %4975 = vmatpush1.msra.mxu0 0.0
        %4976 = vmatprep.subr.mxu0 0.0
        %4977 = vmatpush1.msra.mxu0 0.0
        %4978 = vmatprep.subr.mxu0 0.0
        %4979 = vmatpush1.msra.mxu0 0.0
        %4980 = vmatprep.subr.mxu0 0.0
        %4981 = vmatpush1.msra.mxu0 0.0
        %4982 = vmatprep.subr.mxu0 0.0
        %4983 = vmatpush1.msra.mxu0 0.0
        %4984 = vmatprep.subr.mxu0 0.0
        %4985 = vmatpush1.msra.mxu0 0.0
        %4986 = vmatprep.subr.mxu0 0.0
        %4987 = vmatpush1.msra.mxu0 0.0
        %4988 = vmatprep.subr.mxu0 0.0
        %4989 = vmatpush1.msra.mxu0 0.0
        %4990 = vmatprep.subr.mxu0 0.0
        %4991 = vmatpush1.msra.mxu0 0.0
        %4992 = vmatprep.subr.mxu0 0.0
        %4993 = vmatpush1.msra.mxu0 0.0
        %4994 = vmatprep.subr.mxu0 0.0
        %4995 = vmatpush1.msra.mxu0 0.0
        %4996 = vmatprep.subr.mxu0 0.0
        %4997 = vmatpush1.msra.mxu0 0.0
        %4998 = vmatprep.subr.mxu0 0.0
        %4999 = vmatpush1.msra.mxu0 0.0
        %5000 = vmatprep.subr.mxu0 0.0
        %5001 = vmatpush1.msra.mxu0 0.0
        %5002 = vmatprep.subr.mxu0 0.0
        %5003 = vmatpush1.msra.mxu0 %v1078
        %5004 = vmatprep.subr.mxu0 0.0
        %5005 = vmatpush1.msra.mxu0 %v1073
        %5006 = vmatprep.subr.mxu0 0.0
        %5007 = vmatpush2.msra.mxu0 0.0
        %5008 = vmatprep.subr.mxu0 0.0
        %5009 = vmatpush2.msra.mxu0 0.0
        %5010 = vmatprep.subr.mxu0 0.0
        %5011 = vmatpush2.msra.mxu0 0.0
        %5012 = vmatprep.subr.mxu0 0.0
        %5013 = vmatpush2.msra.mxu0 0.0
        %5014 = vmatprep.subr.mxu0 0.0
        %5015 = vmatpush2.msra.mxu0 0.0
        %5016 = vmatprep.subr.mxu0 0.0
        %5017 = vmatpush2.msra.mxu0 0.0
        %5018 = vmatprep.subr.mxu0 0.0
        %5019 = vmatpush2.msra.mxu0 0.0
        %5020 = vmatprep.subr.mxu0 0.0
        %5021 = vmatpush2.msra.mxu0 0.0
        %5022 = vmatprep.subr.mxu0 0.0
        %5023 = vmatpush2.msra.mxu0 0.0
        %5024 = vmatprep.subr.mxu0 0.0
        %5025 = vmatpush2.msra.mxu0 0.0
        %5026 = vmatprep.subr.mxu0 0.0
        %5027 = vmatpush2.msra.mxu0 0.0
        %5028 = vmatprep.subr.mxu0 0.0
        %5029 = vmatpush2.msra.mxu0 0.0
        %5030 = vmatprep.subr.mxu0 0.0
        %5031 = vmatpush2.msra.mxu0 0.0
        %5032 = vmatprep.subr.mxu0 0.0
        %5033 = vmatpush2.msra.mxu0 0.0
        %5034 = vmatprep.subr.mxu0 0.0
        %5035 = vmatpush2.msra.mxu0 0.0
        %5036 = vmatprep.subr.mxu0 0.0
        %5037 = vmatpush2.msra.mxu0 0.0
        %5038 = vmatprep.mubr.f32.mxu0 0.0
        %5039 = vmatmul.mubr.f32.gmra.mxu0 %v4969
        %v5040 = vpop.f32.mrf.mxu0
        %v5041 = vadd.f32 0.0, %v5040
        %v5042 = vpop.f32.mrf.mxu0
        %5043 = vmatprep.mubr.f32.mxu0 0.0
        %5044 = vmatmul.mubr.f32.gmra.mxu0 %v4972
        %v5045 = vpop.f32.mrf.mxu0
        %v5046 = vadd.f32 0.0, %v5045
        %v5047 = vpop.f32.mrf.mxu0
        %5048 = vdwg.mxu0
        %v5050 = vsel %vm4182, %v4768, 0
        %v5053 = vsel %vm4182, %v4770, 0
        %5055 = vmatprep.subr.mxu0 0.0
        %5056 = vmatpush1.msra.mxu0 0.0
        %5057 = vmatprep.subr.mxu0 0.0
        %5058 = vmatpush1.msra.mxu0 0.0
        %5059 = vmatprep.subr.mxu0 0.0
        %5060 = vmatpush1.msra.mxu0 0.0
        %5061 = vmatprep.subr.mxu0 0.0
        %5062 = vmatpush1.msra.mxu0 0.0
        %5063 = vmatprep.subr.mxu0 0.0
        %5064 = vmatpush1.msra.mxu0 0.0
        %5065 = vmatprep.subr.mxu0 0.0
        %5066 = vmatpush1.msra.mxu0 0.0
        %5067 = vmatprep.subr.mxu0 0.0
        %5068 = vmatpush1.msra.mxu0 0.0
        %5069 = vmatprep.subr.mxu0 0.0
        %5070 = vmatpush1.msra.mxu0 0.0
        %5071 = vmatprep.subr.mxu0 0.0
        %5072 = vmatpush1.msra.mxu0 0.0
        %5073 = vmatprep.subr.mxu0 0.0
        %5074 = vmatpush1.msra.mxu0 0.0
        %5075 = vmatprep.subr.mxu0 0.0
        %5076 = vmatpush1.msra.mxu0 0.0
        %5077 = vmatprep.subr.mxu0 0.0
        %5078 = vmatpush1.msra.mxu0 0.0
        %5079 = vmatprep.subr.mxu0 0.0
        %5080 = vmatpush1.msra.mxu0 0.0
        %5081 = vmatprep.subr.mxu0 0.0
        %5082 = vmatpush1.msra.mxu0 0.0
        %5083 = vmatprep.subr.mxu0 0.0
        %5084 = vmatpush1.msra.mxu0 %v1088
        %5085 = vmatprep.subr.mxu0 0.0
        %5086 = vmatpush1.msra.mxu0 %v1083
        %5087 = vmatprep.subr.mxu0 0.0
        %5088 = vmatpush2.msra.mxu0 0.0
        %5089 = vmatprep.subr.mxu0 0.0
        %5090 = vmatpush2.msra.mxu0 0.0
        %5091 = vmatprep.subr.mxu0 0.0
        %5092 = vmatpush2.msra.mxu0 0.0
        %5093 = vmatprep.subr.mxu0 0.0
        %5094 = vmatpush2.msra.mxu0 0.0
        %5095 = vmatprep.subr.mxu0 0.0
        %5096 = vmatpush2.msra.mxu0 0.0
        %5097 = vmatprep.subr.mxu0 0.0
        %5098 = vmatpush2.msra.mxu0 0.0
        %5099 = vmatprep.subr.mxu0 0.0
        %5100 = vmatpush2.msra.mxu0 0.0
        %5101 = vmatprep.subr.mxu0 0.0
        %5102 = vmatpush2.msra.mxu0 0.0
        %5103 = vmatprep.subr.mxu0 0.0
        %5104 = vmatpush2.msra.mxu0 0.0
        %5105 = vmatprep.subr.mxu0 0.0
        %5106 = vmatpush2.msra.mxu0 0.0
        %5107 = vmatprep.subr.mxu0 0.0
        %5108 = vmatpush2.msra.mxu0 0.0
        %5109 = vmatprep.subr.mxu0 0.0
        %5110 = vmatpush2.msra.mxu0 0.0
        %5111 = vmatprep.subr.mxu0 0.0
        %5112 = vmatpush2.msra.mxu0 0.0
        %5113 = vmatprep.subr.mxu0 0.0
        %5114 = vmatpush2.msra.mxu0 0.0
        %5115 = vmatprep.subr.mxu0 0.0
        %5116 = vmatpush2.msra.mxu0 0.0
        %5117 = vmatprep.subr.mxu0 0.0
        %5118 = vmatpush2.msra.mxu0 0.0
        %5119 = vmatprep.mubr.f32.mxu0 0.0
        %5120 = vmatmul.mubr.f32.gmra.mxu0 %v5050
        %v5121 = vpop.f32.mrf.mxu0
        %v5122 = vadd.f32 0.0, %v5121
        %v5123 = vpop.f32.mrf.mxu0
        %5124 = vmatprep.mubr.f32.mxu0 0.0
        %5125 = vmatmul.mubr.f32.gmra.mxu0 %v5053
        %v5126 = vpop.f32.mrf.mxu0
        %v5127 = vadd.f32 0.0, %v5126
        %v5128 = vpop.f32.mrf.mxu0
        %5129 = vdwg.mxu0
        %v5131 = vsel %vm4182, %v4772, 0
        %v5134 = vsel %vm4182, %v4774, 0
        %5136 = vmatprep.subr.mxu0 0.0
        %5137 = vmatpush1.msra.mxu0 0.0
        %5138 = vmatprep.subr.mxu0 0.0
        %5139 = vmatpush1.msra.mxu0 0.0
        %5140 = vmatprep.subr.mxu0 0.0
        %5141 = vmatpush1.msra.mxu0 0.0
        %5142 = vmatprep.subr.mxu0 0.0
        %5143 = vmatpush1.msra.mxu0 0.0
        %5144 = vmatprep.subr.mxu0 0.0
        %5145 = vmatpush1.msra.mxu0 0.0
        %5146 = vmatprep.subr.mxu0 0.0
        %5147 = vmatpush1.msra.mxu0 0.0
        %5148 = vmatprep.subr.mxu0 0.0
        %5149 = vmatpush1.msra.mxu0 0.0
        %5150 = vmatprep.subr.mxu0 0.0
        %5151 = vmatpush1.msra.mxu0 0.0
        %5152 = vmatprep.subr.mxu0 0.0
        %5153 = vmatpush1.msra.mxu0 0.0
        %5154 = vmatprep.subr.mxu0 0.0
        %5155 = vmatpush1.msra.mxu0 0.0
        %5156 = vmatprep.subr.mxu0 0.0
        %5157 = vmatpush1.msra.mxu0 0.0
        %5158 = vmatprep.subr.mxu0 0.0
        %5159 = vmatpush1.msra.mxu0 0.0
        %5160 = vmatprep.subr.mxu0 0.0
        %5161 = vmatpush1.msra.mxu0 0.0
        %5162 = vmatprep.subr.mxu0 0.0
        %5163 = vmatpush1.msra.mxu0 0.0
        %5164 = vmatprep.subr.mxu0 0.0
        %5165 = vmatpush1.msra.mxu0 %v1098
        %5166 = vmatprep.subr.mxu0 0.0
        %5167 = vmatpush1.msra.mxu0 %v1093
        %5168 = vmatprep.subr.mxu0 0.0
        %5169 = vmatpush2.msra.mxu0 0.0
        %5170 = vmatprep.subr.mxu0 0.0
        %5171 = vmatpush2.msra.mxu0 0.0
        %5172 = vmatprep.subr.mxu0 0.0
        %5173 = vmatpush2.msra.mxu0 0.0
        %5174 = vmatprep.subr.mxu0 0.0
        %5175 = vmatpush2.msra.mxu0 0.0
        %5176 = vmatprep.subr.mxu0 0.0
        %5177 = vmatpush2.msra.mxu0 0.0
        %5178 = vmatprep.subr.mxu0 0.0
        %5179 = vmatpush2.msra.mxu0 0.0
        %5180 = vmatprep.subr.mxu0 0.0
        %5181 = vmatpush2.msra.mxu0 0.0
        %5182 = vmatprep.subr.mxu0 0.0
        %5183 = vmatpush2.msra.mxu0 0.0
        %5184 = vmatprep.subr.mxu0 0.0
        %5185 = vmatpush2.msra.mxu0 0.0
        %5186 = vmatprep.subr.mxu0 0.0
        %5187 = vmatpush2.msra.mxu0 0.0
        %5188 = vmatprep.subr.mxu0 0.0
        %5189 = vmatpush2.msra.mxu0 0.0
        %5190 = vmatprep.subr.mxu0 0.0
        %5191 = vmatpush2.msra.mxu0 0.0
        %5192 = vmatprep.subr.mxu0 0.0
        %5193 = vmatpush2.msra.mxu0 0.0
        %5194 = vmatprep.subr.mxu0 0.0
        %5195 = vmatpush2.msra.mxu0 0.0
        %5196 = vmatprep.subr.mxu0 0.0
        %5197 = vmatpush2.msra.mxu0 0.0
        %5198 = vmatprep.subr.mxu0 0.0
        %5199 = vmatpush2.msra.mxu0 0.0
        %5200 = vmatprep.mubr.f32.mxu0 0.0
        %5201 = vmatmul.mubr.f32.gmra.mxu0 %v5131
        %v5202 = vpop.f32.mrf.mxu0
        %v5203 = vadd.f32 0.0, %v5202
        %v5204 = vpop.f32.mrf.mxu0
        %5205 = vmatprep.mubr.f32.mxu0 0.0
        %5206 = vmatmul.mubr.f32.gmra.mxu0 %v5134
        %v5207 = vpop.f32.mrf.mxu0
        %v5208 = vadd.f32 0.0, %v5207
        %v5209 = vpop.f32.mrf.mxu0
        %5210 = vdwg.mxu0
        %v5212 = vsel %vm4182, %v4776, 0
        %v5215 = vsel %vm4182, %v4778, 0
        %5217 = vmatprep.subr.mxu0 0.0
        %5218 = vmatpush1.msra.mxu0 0.0
        %5219 = vmatprep.subr.mxu0 0.0
        %5220 = vmatpush1.msra.mxu0 0.0
        %5221 = vmatprep.subr.mxu0 0.0
        %5222 = vmatpush1.msra.mxu0 0.0
        %5223 = vmatprep.subr.mxu0 0.0
        %5224 = vmatpush1.msra.mxu0 0.0
        %5225 = vmatprep.subr.mxu0 0.0
        %5226 = vmatpush1.msra.mxu0 0.0
        %5227 = vmatprep.subr.mxu0 0.0
        %5228 = vmatpush1.msra.mxu0 0.0
        %5229 = vmatprep.subr.mxu0 0.0
        %5230 = vmatpush1.msra.mxu0 0.0
        %5231 = vmatprep.subr.mxu0 0.0
        %5232 = vmatpush1.msra.mxu0 0.0
        %5233 = vmatprep.subr.mxu0 0.0
        %5234 = vmatpush1.msra.mxu0 0.0
        %5235 = vmatprep.subr.mxu0 0.0
        %5236 = vmatpush1.msra.mxu0 0.0
        %5237 = vmatprep.subr.mxu0 0.0
        %5238 = vmatpush1.msra.mxu0 0.0
        %5239 = vmatprep.subr.mxu0 0.0
        %5240 = vmatpush1.msra.mxu0 0.0
        %5241 = vmatprep.subr.mxu0 0.0
        %5242 = vmatpush1.msra.mxu0 0.0
        %5243 = vmatprep.subr.mxu0 0.0
        %5244 = vmatpush1.msra.mxu0 0.0
        %5245 = vmatprep.subr.mxu0 0.0
        %5246 = vmatpush1.msra.mxu0 %v1108
        %5247 = vmatprep.subr.mxu0 0.0
        %5248 = vmatpush1.msra.mxu0 %v1103
        %5249 = vmatprep.subr.mxu0 0.0
        %5250 = vmatpush2.msra.mxu0 0.0
        %5251 = vmatprep.subr.mxu0 0.0
        %5252 = vmatpush2.msra.mxu0 0.0
        %5253 = vmatprep.subr.mxu0 0.0
        %5254 = vmatpush2.msra.mxu0 0.0
        %5255 = vmatprep.subr.mxu0 0.0
        %5256 = vmatpush2.msra.mxu0 0.0
        %5257 = vmatprep.subr.mxu0 0.0
        %5258 = vmatpush2.msra.mxu0 0.0
        %5259 = vmatprep.subr.mxu0 0.0
        %5260 = vmatpush2.msra.mxu0 0.0
        %5261 = vmatprep.subr.mxu0 0.0
        %5262 = vmatpush2.msra.mxu0 0.0
        %5263 = vmatprep.subr.mxu0 0.0
        %5264 = vmatpush2.msra.mxu0 0.0
        %5265 = vmatprep.subr.mxu0 0.0
        %5266 = vmatpush2.msra.mxu0 0.0
        %5267 = vmatprep.subr.mxu0 0.0
        %5268 = vmatpush2.msra.mxu0 0.0
        %5269 = vmatprep.subr.mxu0 0.0
        %5270 = vmatpush2.msra.mxu0 0.0
        %5271 = vmatprep.subr.mxu0 0.0
        %5272 = vmatpush2.msra.mxu0 0.0
        %5273 = vmatprep.subr.mxu0 0.0
        %5274 = vmatpush2.msra.mxu0 0.0
        %5275 = vmatprep.subr.mxu0 0.0
        %5276 = vmatpush2.msra.mxu0 0.0
        %5277 = vmatprep.subr.mxu0 0.0
        %5278 = vmatpush2.msra.mxu0 0.0
        %5279 = vmatprep.subr.mxu0 0.0
        %5280 = vmatpush2.msra.mxu0 0.0
        %5281 = vmatprep.mubr.f32.mxu0 0.0
        %5282 = vmatmul.mubr.f32.gmra.mxu0 %v5212
        %v5283 = vpop.f32.mrf.mxu0
        %v5284 = vadd.f32 0.0, %v5283
        %v5285 = vpop.f32.mrf.mxu0
        %5286 = vmatprep.mubr.f32.mxu0 0.0
        %5287 = vmatmul.mubr.f32.gmra.mxu0 %v5215
        %v5288 = vpop.f32.mrf.mxu0
        %v5289 = vadd.f32 0.0, %v5288
        %v5290 = vpop.f32.mrf.mxu0
        %5291 = vdwg.mxu0
        %v5293 = vsel %vm4182, %v4780, 0
        %v5296 = vsel %vm4182, %v4782, 0
        %5298 = vmatprep.subr.mxu0 0.0
        %5299 = vmatpush1.msra.mxu0 0.0
        %5300 = vmatprep.subr.mxu0 0.0
        %5301 = vmatpush1.msra.mxu0 0.0
        %5302 = vmatprep.subr.mxu0 0.0
        %5303 = vmatpush1.msra.mxu0 0.0
        %5304 = vmatprep.subr.mxu0 0.0
        %5305 = vmatpush1.msra.mxu0 0.0
        %5306 = vmatprep.subr.mxu0 0.0
        %5307 = vmatpush1.msra.mxu0 0.0
        %5308 = vmatprep.subr.mxu0 0.0
        %5309 = vmatpush1.msra.mxu0 0.0
        %5310 = vmatprep.subr.mxu0 0.0
        %5311 = vmatpush1.msra.mxu0 0.0
        %5312 = vmatprep.subr.mxu0 0.0
        %5313 = vmatpush1.msra.mxu0 0.0
        %5314 = vmatprep.subr.mxu0 0.0
        %5315 = vmatpush1.msra.mxu0 0.0
        %5316 = vmatprep.subr.mxu0 0.0
        %5317 = vmatpush1.msra.mxu0 0.0
        %5318 = vmatprep.subr.mxu0 0.0
        %5319 = vmatpush1.msra.mxu0 0.0
        %5320 = vmatprep.subr.mxu0 0.0
        %5321 = vmatpush1.msra.mxu0 0.0
        %5322 = vmatprep.subr.mxu0 0.0
        %5323 = vmatpush1.msra.mxu0 0.0
        %5324 = vmatprep.subr.mxu0 0.0
        %5325 = vmatpush1.msra.mxu0 0.0
        %5326 = vmatprep.subr.mxu0 0.0
        %5327 = vmatpush1.msra.mxu0 %v1118
        %5328 = vmatprep.subr.mxu0 0.0
        %5329 = vmatpush1.msra.mxu0 %v1113
        %5330 = vmatprep.subr.mxu0 0.0
        %5331 = vmatpush2.msra.mxu0 0.0
        %5332 = vmatprep.subr.mxu0 0.0
        %5333 = vmatpush2.msra.mxu0 0.0
        %5334 = vmatprep.subr.mxu0 0.0
        %5335 = vmatpush2.msra.mxu0 0.0
        %5336 = vmatprep.subr.mxu0 0.0
        %5337 = vmatpush2.msra.mxu0 0.0
        %5338 = vmatprep.subr.mxu0 0.0
        %5339 = vmatpush2.msra.mxu0 0.0
        %5340 = vmatprep.subr.mxu0 0.0
        %5341 = vmatpush2.msra.mxu0 0.0
        %5342 = vmatprep.subr.mxu0 0.0
        %5343 = vmatpush2.msra.mxu0 0.0
        %5344 = vmatprep.subr.mxu0 0.0
        %5345 = vmatpush2.msra.mxu0 0.0
        %5346 = vmatprep.subr.mxu0 0.0
        %5347 = vmatpush2.msra.mxu0 0.0
        %5348 = vmatprep.subr.mxu0 0.0
        %5349 = vmatpush2.msra.mxu0 0.0
        %5350 = vmatprep.subr.mxu0 0.0
        %5351 = vmatpush2.msra.mxu0 0.0
        %5352 = vmatprep.subr.mxu0 0.0
        %5353 = vmatpush2.msra.mxu0 0.0
        %5354 = vmatprep.subr.mxu0 0.0
        %5355 = vmatpush2.msra.mxu0 0.0
        %5356 = vmatprep.subr.mxu0 0.0
        %5357 = vmatpush2.msra.mxu0 0.0
        %5358 = vmatprep.subr.mxu0 0.0
        %5359 = vmatpush2.msra.mxu0 0.0
        %5360 = vmatprep.subr.mxu0 0.0
        %5361 = vmatpush2.msra.mxu0 0.0
        %5362 = vmatprep.mubr.f32.mxu0 0.0
        %5363 = vmatmul.mubr.f32.gmra.mxu0 %v5293
        %v5364 = vpop.f32.mrf.mxu0
        %v5365 = vadd.f32 0.0, %v5364
        %v5366 = vpop.f32.mrf.mxu0
        %5367 = vmatprep.mubr.f32.mxu0 0.0
        %5368 = vmatmul.mubr.f32.gmra.mxu0 %v5296
        %v5369 = vpop.f32.mrf.mxu0
        %v5370 = vadd.f32 0.0, %v5369
        %v5371 = vpop.f32.mrf.mxu0
        %5372 = vdwg.mxu0
        %v5374 = vsel %vm4182, %v4784, 0
        %v5377 = vsel %vm4182, %v4786, 0
        %5379 = vmatprep.subr.mxu0 0.0
        %5380 = vmatpush1.msra.mxu0 0.0
        %5381 = vmatprep.subr.mxu0 0.0
        %5382 = vmatpush1.msra.mxu0 0.0
        %5383 = vmatprep.subr.mxu0 0.0
        %5384 = vmatpush1.msra.mxu0 0.0
        %5385 = vmatprep.subr.mxu0 0.0
        %5386 = vmatpush1.msra.mxu0 0.0
        %5387 = vmatprep.subr.mxu0 0.0
        %5388 = vmatpush1.msra.mxu0 0.0
        %5389 = vmatprep.subr.mxu0 0.0
        %5390 = vmatpush1.msra.mxu0 0.0
        %5391 = vmatprep.subr.mxu0 0.0
        %5392 = vmatpush1.msra.mxu0 0.0
        %5393 = vmatprep.subr.mxu0 0.0
        %5394 = vmatpush1.msra.mxu0 0.0
        %5395 = vmatprep.subr.mxu0 0.0
        %5396 = vmatpush1.msra.mxu0 0.0
        %5397 = vmatprep.subr.mxu0 0.0
        %5398 = vmatpush1.msra.mxu0 0.0
        %5399 = vmatprep.subr.mxu0 0.0
        %5400 = vmatpush1.msra.mxu0 0.0
        %5401 = vmatprep.subr.mxu0 0.0
        %5402 = vmatpush1.msra.mxu0 0.0
        %5403 = vmatprep.subr.mxu0 0.0
        %5404 = vmatpush1.msra.mxu0 0.0
        %5405 = vmatprep.subr.mxu0 0.0
        %5406 = vmatpush1.msra.mxu0 0.0
        %5407 = vmatprep.subr.mxu0 0.0
        %5408 = vmatpush1.msra.mxu0 %v1128
        %5409 = vmatprep.subr.mxu0 0.0
        %5410 = vmatpush1.msra.mxu0 %v1123
        %5411 = vmatprep.subr.mxu0 0.0
        %5412 = vmatpush2.msra.mxu0 0.0
        %5413 = vmatprep.subr.mxu0 0.0
        %5414 = vmatpush2.msra.mxu0 0.0
        %5415 = vmatprep.subr.mxu0 0.0
        %5416 = vmatpush2.msra.mxu0 0.0
        %5417 = vmatprep.subr.mxu0 0.0
        %5418 = vmatpush2.msra.mxu0 0.0
        %5419 = vmatprep.subr.mxu0 0.0
        %5420 = vmatpush2.msra.mxu0 0.0
        %5421 = vmatprep.subr.mxu0 0.0
        %5422 = vmatpush2.msra.mxu0 0.0
        %5423 = vmatprep.subr.mxu0 0.0
        %5424 = vmatpush2.msra.mxu0 0.0
        %5425 = vmatprep.subr.mxu0 0.0
        %5426 = vmatpush2.msra.mxu0 0.0
        %5427 = vmatprep.subr.mxu0 0.0
        %5428 = vmatpush2.msra.mxu0 0.0
        %5429 = vmatprep.subr.mxu0 0.0
        %5430 = vmatpush2.msra.mxu0 0.0
        %5431 = vmatprep.subr.mxu0 0.0
        %5432 = vmatpush2.msra.mxu0 0.0
        %5433 = vmatprep.subr.mxu0 0.0
        %5434 = vmatpush2.msra.mxu0 0.0
        %5435 = vmatprep.subr.mxu0 0.0
        %5436 = vmatpush2.msra.mxu0 0.0
        %5437 = vmatprep.subr.mxu0 0.0
        %5438 = vmatpush2.msra.mxu0 0.0
        %5439 = vmatprep.subr.mxu0 0.0
        %5440 = vmatpush2.msra.mxu0 0.0
        %5441 = vmatprep.subr.mxu0 0.0
        %5442 = vmatpush2.msra.mxu0 0.0
        %5443 = vmatprep.mubr.f32.mxu0 0.0
        %5444 = vmatmul.mubr.f32.gmra.mxu0 %v5374
        %v5445 = vpop.f32.mrf.mxu0
        %v5446 = vadd.f32 0.0, %v5445
        %v5447 = vpop.f32.mrf.mxu0
        %5448 = vmatprep.mubr.f32.mxu0 0.0
        %5449 = vmatmul.mubr.f32.gmra.mxu0 %v5377
        %v5450 = vpop.f32.mrf.mxu0
        %v5451 = vadd.f32 0.0, %v5450
        %v5452 = vpop.f32.mrf.mxu0
        %5453 = vdwg.mxu0
        %v5455 = vsel %vm4182, %v4788, 0
        %v5458 = vsel %vm4182, %v4790, 0
        %5460 = vmatprep.subr.mxu0 0.0
        %5461 = vmatpush1.msra.mxu0 0.0
        %5462 = vmatprep.subr.mxu0 0.0
        %5463 = vmatpush1.msra.mxu0 0.0
        %5464 = vmatprep.subr.mxu0 0.0
        %5465 = vmatpush1.msra.mxu0 0.0
        %5466 = vmatprep.subr.mxu0 0.0
        %5467 = vmatpush1.msra.mxu0 0.0
        %5468 = vmatprep.subr.mxu0 0.0
        %5469 = vmatpush1.msra.mxu0 0.0
        %5470 = vmatprep.subr.mxu0 0.0
        %5471 = vmatpush1.msra.mxu0 0.0
        %5472 = vmatprep.subr.mxu0 0.0
        %5473 = vmatpush1.msra.mxu0 0.0
        %5474 = vmatprep.subr.mxu0 0.0
        %5475 = vmatpush1.msra.mxu0 0.0
        %5476 = vmatprep.subr.mxu0 0.0
        %5477 = vmatpush1.msra.mxu0 0.0
        %5478 = vmatprep.subr.mxu0 0.0
        %5479 = vmatpush1.msra.mxu0 0.0
        %5480 = vmatprep.subr.mxu0 0.0
        %5481 = vmatpush1.msra.mxu0 0.0
        %5482 = vmatprep.subr.mxu0 0.0
        %5483 = vmatpush1.msra.mxu0 0.0
        %5484 = vmatprep.subr.mxu0 0.0
        %5485 = vmatpush1.msra.mxu0 0.0
        %5486 = vmatprep.subr.mxu0 0.0
        %5487 = vmatpush1.msra.mxu0 0.0
        %5488 = vmatprep.subr.mxu0 0.0
        %5489 = vmatpush1.msra.mxu0 %v1138
        %5490 = vmatprep.subr.mxu0 0.0
        %5491 = vmatpush1.msra.mxu0 %v1133
        %5492 = vmatprep.subr.mxu0 0.0
        %5493 = vmatpush2.msra.mxu0 0.0
        %5494 = vmatprep.subr.mxu0 0.0
        %5495 = vmatpush2.msra.mxu0 0.0
        %5496 = vmatprep.subr.mxu0 0.0
        %5497 = vmatpush2.msra.mxu0 0.0
        %5498 = vmatprep.subr.mxu0 0.0
        %5499 = vmatpush2.msra.mxu0 0.0
        %5500 = vmatprep.subr.mxu0 0.0
        %5501 = vmatpush2.msra.mxu0 0.0
        %5502 = vmatprep.subr.mxu0 0.0
        %5503 = vmatpush2.msra.mxu0 0.0
        %5504 = vmatprep.subr.mxu0 0.0
        %5505 = vmatpush2.msra.mxu0 0.0
        %5506 = vmatprep.subr.mxu0 0.0
        %5507 = vmatpush2.msra.mxu0 0.0
        %5508 = vmatprep.subr.mxu0 0.0
        %5509 = vmatpush2.msra.mxu0 0.0
        %5510 = vmatprep.subr.mxu0 0.0
        %5511 = vmatpush2.msra.mxu0 0.0
        %5512 = vmatprep.subr.mxu0 0.0
        %5513 = vmatpush2.msra.mxu0 0.0
        %5514 = vmatprep.subr.mxu0 0.0
        %5515 = vmatpush2.msra.mxu0 0.0
        %5516 = vmatprep.subr.mxu0 0.0
        %5517 = vmatpush2.msra.mxu0 0.0
        %5518 = vmatprep.subr.mxu0 0.0
        %5519 = vmatpush2.msra.mxu0 0.0
        %5520 = vmatprep.subr.mxu0 0.0
        %5521 = vmatpush2.msra.mxu0 0.0
        %5522 = vmatprep.subr.mxu0 0.0
        %5523 = vmatpush2.msra.mxu0 0.0
        %5524 = vmatprep.mubr.f32.mxu0 0.0
        %5525 = vmatmul.mubr.f32.gmra.mxu0 %v5455
        %v5526 = vpop.f32.mrf.mxu0
        %v5527 = vadd.f32 0.0, %v5526
        %v5528 = vpop.f32.mrf.mxu0
        %5529 = vmatprep.mubr.f32.mxu0 0.0
        %5530 = vmatmul.mubr.f32.gmra.mxu0 %v5458
        %v5531 = vpop.f32.mrf.mxu0
        %v5532 = vadd.f32 0.0, %v5531
        %v5533 = vpop.f32.mrf.mxu0
        %5534 = vdwg.mxu0
        %v5536 = vsel %vm4182, %v4792, 0
        %v5539 = vsel %vm4182, %v4794, 0
        %5541 = vmatprep.subr.mxu0 0.0
        %5542 = vmatpush1.msra.mxu0 0.0
        %5543 = vmatprep.subr.mxu0 0.0
        %5544 = vmatpush1.msra.mxu0 0.0
        %5545 = vmatprep.subr.mxu0 0.0
        %5546 = vmatpush1.msra.mxu0 0.0
        %5547 = vmatprep.subr.mxu0 0.0
        %5548 = vmatpush1.msra.mxu0 0.0
        %5549 = vmatprep.subr.mxu0 0.0
        %5550 = vmatpush1.msra.mxu0 0.0
        %5551 = vmatprep.subr.mxu0 0.0
        %5552 = vmatpush1.msra.mxu0 0.0
        %5553 = vmatprep.subr.mxu0 0.0
        %5554 = vmatpush1.msra.mxu0 0.0
        %5555 = vmatprep.subr.mxu0 0.0
        %5556 = vmatpush1.msra.mxu0 0.0
        %5557 = vmatprep.subr.mxu0 0.0
        %5558 = vmatpush1.msra.mxu0 0.0
        %5559 = vmatprep.subr.mxu0 0.0
        %5560 = vmatpush1.msra.mxu0 0.0
        %5561 = vmatprep.subr.mxu0 0.0
        %5562 = vmatpush1.msra.mxu0 0.0
        %5563 = vmatprep.subr.mxu0 0.0
        %5564 = vmatpush1.msra.mxu0 0.0
        %5565 = vmatprep.subr.mxu0 0.0
        %5566 = vmatpush1.msra.mxu0 0.0
        %5567 = vmatprep.subr.mxu0 0.0
        %5568 = vmatpush1.msra.mxu0 0.0
        %5569 = vmatprep.subr.mxu0 0.0
        %5570 = vmatpush1.msra.mxu0 %v1384
        %5571 = vmatprep.subr.mxu0 0.0
        %5572 = vmatpush1.msra.mxu0 %v1382
        %5573 = vmatprep.subr.mxu0 0.0
        %5574 = vmatpush2.msra.mxu0 0.0
        %5575 = vmatprep.subr.mxu0 0.0
        %5576 = vmatpush2.msra.mxu0 0.0
        %5577 = vmatprep.subr.mxu0 0.0
        %5578 = vmatpush2.msra.mxu0 0.0
        %5579 = vmatprep.subr.mxu0 0.0
        %5580 = vmatpush2.msra.mxu0 0.0
        %5581 = vmatprep.subr.mxu0 0.0
        %5582 = vmatpush2.msra.mxu0 0.0
        %5583 = vmatprep.subr.mxu0 0.0
        %5584 = vmatpush2.msra.mxu0 0.0
        %5585 = vmatprep.subr.mxu0 0.0
        %5586 = vmatpush2.msra.mxu0 0.0
        %5587 = vmatprep.subr.mxu0 0.0
        %5588 = vmatpush2.msra.mxu0 0.0
        %5589 = vmatprep.subr.mxu0 0.0
        %5590 = vmatpush2.msra.mxu0 0.0
        %5591 = vmatprep.subr.mxu0 0.0
        %5592 = vmatpush2.msra.mxu0 0.0
        %5593 = vmatprep.subr.mxu0 0.0
        %5594 = vmatpush2.msra.mxu0 0.0
        %5595 = vmatprep.subr.mxu0 0.0
        %5596 = vmatpush2.msra.mxu0 0.0
        %5597 = vmatprep.subr.mxu0 0.0
        %5598 = vmatpush2.msra.mxu0 0.0
        %5599 = vmatprep.subr.mxu0 0.0
        %5600 = vmatpush2.msra.mxu0 0.0
        %5601 = vmatprep.subr.mxu0 0.0
        %5602 = vmatpush2.msra.mxu0 0.0
        %5603 = vmatprep.subr.mxu0 0.0
        %5604 = vmatpush2.msra.mxu0 0.0
        %5605 = vmatprep.mubr.f32.mxu0 0.0
        %5606 = vmatmul.mubr.f32.gmra.mxu0 %v5536
        %v5607 = vpop.f32.mrf.mxu0
        %v5608 = vadd.f32 0.0, %v5607
        %v5609 = vpop.f32.mrf.mxu0
        %5610 = vmatprep.mubr.f32.mxu0 0.0
        %5611 = vmatmul.mubr.f32.gmra.mxu0 %v5539
        %v5612 = vpop.f32.mrf.mxu0
        %v5613 = vadd.f32 0.0, %v5612
        %v5614 = vpop.f32.mrf.mxu0
        %5615 = vdwg.mxu0
        %v5617 = vsel %vm4182, %v4796, 0
        %v5620 = vsel %vm4182, %v4798, 0
        %5622 = vmatprep.subr.mxu0 0.0
        %5623 = vmatpush1.msra.mxu0 0.0
        %5624 = vmatprep.subr.mxu0 0.0
        %5625 = vmatpush1.msra.mxu0 0.0
        %5626 = vmatprep.subr.mxu0 0.0
        %5627 = vmatpush1.msra.mxu0 0.0
        %5628 = vmatprep.subr.mxu0 0.0
        %5629 = vmatpush1.msra.mxu0 0.0
        %5630 = vmatprep.subr.mxu0 0.0
        %5631 = vmatpush1.msra.mxu0 0.0
        %5632 = vmatprep.subr.mxu0 0.0
        %5633 = vmatpush1.msra.mxu0 0.0
        %5634 = vmatprep.subr.mxu0 0.0
        %5635 = vmatpush1.msra.mxu0 0.0
        %5636 = vmatprep.subr.mxu0 0.0
        %5637 = vmatpush1.msra.mxu0 0.0
        %5638 = vmatprep.subr.mxu0 0.0
        %5639 = vmatpush1.msra.mxu0 0.0
        %5640 = vmatprep.subr.mxu0 0.0
        %5641 = vmatpush1.msra.mxu0 0.0
        %5642 = vmatprep.subr.mxu0 0.0
        %5643 = vmatpush1.msra.mxu0 0.0
        %5644 = vmatprep.subr.mxu0 0.0
        %5645 = vmatpush1.msra.mxu0 0.0
        %5646 = vmatprep.subr.mxu0 0.0
        %5647 = vmatpush1.msra.mxu0 0.0
        %5648 = vmatprep.subr.mxu0 0.0
        %5649 = vmatpush1.msra.mxu0 0.0
        %5650 = vmatprep.subr.mxu0 0.0
        %5651 = vmatpush1.msra.mxu0 %v1388
        %5652 = vmatprep.subr.mxu0 0.0
        %5653 = vmatpush1.msra.mxu0 %v1386
        %5654 = vmatprep.subr.mxu0 0.0
        %5655 = vmatpush2.msra.mxu0 0.0
        %5656 = vmatprep.subr.mxu0 0.0
        %5657 = vmatpush2.msra.mxu0 0.0
        %5658 = vmatprep.subr.mxu0 0.0
        %5659 = vmatpush2.msra.mxu0 0.0
        %5660 = vmatprep.subr.mxu0 0.0
        %5661 = vmatpush2.msra.mxu0 0.0
        %5662 = vmatprep.subr.mxu0 0.0
        %5663 = vmatpush2.msra.mxu0 0.0
        %5664 = vmatprep.subr.mxu0 0.0
        %5665 = vmatpush2.msra.mxu0 0.0
        %5666 = vmatprep.subr.mxu0 0.0
        %5667 = vmatpush2.msra.mxu0 0.0
        %5668 = vmatprep.subr.mxu0 0.0
        %5669 = vmatpush2.msra.mxu0 0.0
        %5670 = vmatprep.subr.mxu0 0.0
        %5671 = vmatpush2.msra.mxu0 0.0
        %5672 = vmatprep.subr.mxu0 0.0
        %5673 = vmatpush2.msra.mxu0 0.0
        %5674 = vmatprep.subr.mxu0 0.0
        %5675 = vmatpush2.msra.mxu0 0.0
        %5676 = vmatprep.subr.mxu0 0.0
        %5677 = vmatpush2.msra.mxu0 0.0
        %5678 = vmatprep.subr.mxu0 0.0
        %5679 = vmatpush2.msra.mxu0 0.0
        %5680 = vmatprep.subr.mxu0 0.0
        %5681 = vmatpush2.msra.mxu0 0.0
        %5682 = vmatprep.subr.mxu0 0.0
        %5683 = vmatpush2.msra.mxu0 0.0
        %5684 = vmatprep.subr.mxu0 0.0
        %5685 = vmatpush2.msra.mxu0 0.0
        %5686 = vmatprep.mubr.f32.mxu0 0.0
        %5687 = vmatmul.mubr.f32.gmra.mxu0 %v5617
        %v5688 = vpop.f32.mrf.mxu0
        %v5689 = vadd.f32 0.0, %v5688
        %v5690 = vpop.f32.mrf.mxu0
        %5691 = vmatprep.mubr.f32.mxu0 0.0
        %5692 = vmatmul.mubr.f32.gmra.mxu0 %v5620
        %v5693 = vpop.f32.mrf.mxu0
        %v5694 = vadd.f32 0.0, %v5693
        %v5695 = vpop.f32.mrf.mxu0
        %5696 = vdwg.mxu0
        %v5698 = vsel %vm4182, %v4800, 0
        %v5701 = vsel %vm4182, %v4802, 0
        %5703 = vmatprep.subr.mxu0 0.0
        %5704 = vmatpush1.msra.mxu0 0.0
        %5705 = vmatprep.subr.mxu0 0.0
        %5706 = vmatpush1.msra.mxu0 0.0
        %5707 = vmatprep.subr.mxu0 0.0
        %5708 = vmatpush1.msra.mxu0 0.0
        %5709 = vmatprep.subr.mxu0 0.0
        %5710 = vmatpush1.msra.mxu0 0.0
        %5711 = vmatprep.subr.mxu0 0.0
        %5712 = vmatpush1.msra.mxu0 0.0
        %5713 = vmatprep.subr.mxu0 0.0
        %5714 = vmatpush1.msra.mxu0 0.0
        %5715 = vmatprep.subr.mxu0 0.0
        %5716 = vmatpush1.msra.mxu0 0.0
        %5717 = vmatprep.subr.mxu0 0.0
        %5718 = vmatpush1.msra.mxu0 0.0
        %5719 = vmatprep.subr.mxu0 0.0
        %5720 = vmatpush1.msra.mxu0 0.0
        %5721 = vmatprep.subr.mxu0 0.0
        %5722 = vmatpush1.msra.mxu0 0.0
        %5723 = vmatprep.subr.mxu0 0.0
        %5724 = vmatpush1.msra.mxu0 0.0
        %5725 = vmatprep.subr.mxu0 0.0
        %5726 = vmatpush1.msra.mxu0 0.0
        %5727 = vmatprep.subr.mxu0 0.0
        %5728 = vmatpush1.msra.mxu0 0.0
        %5729 = vmatprep.subr.mxu0 0.0
        %5730 = vmatpush1.msra.mxu0 0.0
        %5731 = vmatprep.subr.mxu0 0.0
        %5732 = vmatpush1.msra.mxu0 %v1392
        %5733 = vmatprep.subr.mxu0 0.0
        %5734 = vmatpush1.msra.mxu0 %v1390
        %5735 = vmatprep.subr.mxu0 0.0
        %5736 = vmatpush2.msra.mxu0 0.0
        %5737 = vmatprep.subr.mxu0 0.0
        %5738 = vmatpush2.msra.mxu0 0.0
        %5739 = vmatprep.subr.mxu0 0.0
        %5740 = vmatpush2.msra.mxu0 0.0
        %5741 = vmatprep.subr.mxu0 0.0
        %5742 = vmatpush2.msra.mxu0 0.0
        %5743 = vmatprep.subr.mxu0 0.0
        %5744 = vmatpush2.msra.mxu0 0.0
        %5745 = vmatprep.subr.mxu0 0.0
        %5746 = vmatpush2.msra.mxu0 0.0
        %5747 = vmatprep.subr.mxu0 0.0
        %5748 = vmatpush2.msra.mxu0 0.0
        %5749 = vmatprep.subr.mxu0 0.0
        %5750 = vmatpush2.msra.mxu0 0.0
        %5751 = vmatprep.subr.mxu0 0.0
        %5752 = vmatpush2.msra.mxu0 0.0
        %5753 = vmatprep.subr.mxu0 0.0
        %5754 = vmatpush2.msra.mxu0 0.0
        %5755 = vmatprep.subr.mxu0 0.0
        %5756 = vmatpush2.msra.mxu0 0.0
        %5757 = vmatprep.subr.mxu0 0.0
        %5758 = vmatpush2.msra.mxu0 0.0
        %5759 = vmatprep.subr.mxu0 0.0
        %5760 = vmatpush2.msra.mxu0 0.0
        %5761 = vmatprep.subr.mxu0 0.0
        %5762 = vmatpush2.msra.mxu0 0.0
        %5763 = vmatprep.subr.mxu0 0.0
        %5764 = vmatpush2.msra.mxu0 0.0
        %5765 = vmatprep.subr.mxu0 0.0
        %5766 = vmatpush2.msra.mxu0 0.0
        %5767 = vmatprep.mubr.f32.mxu0 0.0
        %5768 = vmatmul.mubr.f32.gmra.mxu0 %v5698
        %v5769 = vpop.f32.mrf.mxu0
        %v5770 = vadd.f32 0.0, %v5769
        %v5771 = vpop.f32.mrf.mxu0
        %5772 = vmatprep.mubr.f32.mxu0 0.0
        %5773 = vmatmul.mubr.f32.gmra.mxu0 %v5701
        %v5774 = vpop.f32.mrf.mxu0
        %v5775 = vadd.f32 0.0, %v5774
        %v5776 = vpop.f32.mrf.mxu0
        %5777 = vdwg.mxu0
        %v5779 = vsel %vm4182, %v4804, 0
        %v5782 = vsel %vm4182, %v4806, 0
        %5784 = vmatprep.subr.mxu0 0.0
        %5785 = vmatpush1.msra.mxu0 0.0
        %5786 = vmatprep.subr.mxu0 0.0
        %5787 = vmatpush1.msra.mxu0 0.0
        %5788 = vmatprep.subr.mxu0 0.0
        %5789 = vmatpush1.msra.mxu0 0.0
        %5790 = vmatprep.subr.mxu0 0.0
        %5791 = vmatpush1.msra.mxu0 0.0
        %5792 = vmatprep.subr.mxu0 0.0
        %5793 = vmatpush1.msra.mxu0 0.0
        %5794 = vmatprep.subr.mxu0 0.0
        %5795 = vmatpush1.msra.mxu0 0.0
        %5796 = vmatprep.subr.mxu0 0.0
        %5797 = vmatpush1.msra.mxu0 0.0
        %5798 = vmatprep.subr.mxu0 0.0
        %5799 = vmatpush1.msra.mxu0 0.0
        %5800 = vmatprep.subr.mxu0 0.0
        %5801 = vmatpush1.msra.mxu0 0.0
        %5802 = vmatprep.subr.mxu0 0.0
        %5803 = vmatpush1.msra.mxu0 0.0
        %5804 = vmatprep.subr.mxu0 0.0
        %5805 = vmatpush1.msra.mxu0 0.0
        %5806 = vmatprep.subr.mxu0 0.0
        %5807 = vmatpush1.msra.mxu0 0.0
        %5808 = vmatprep.subr.mxu0 0.0
        %5809 = vmatpush1.msra.mxu0 0.0
        %5810 = vmatprep.subr.mxu0 0.0
        %5811 = vmatpush1.msra.mxu0 0.0
        %5812 = vmatprep.subr.mxu0 0.0
        %5813 = vmatpush1.msra.mxu0 %v1396
        %5814 = vmatprep.subr.mxu0 0.0
        %5815 = vmatpush1.msra.mxu0 %v1394
        %5816 = vmatprep.subr.mxu0 0.0
        %5817 = vmatpush2.msra.mxu0 0.0
        %5818 = vmatprep.subr.mxu0 0.0
        %5819 = vmatpush2.msra.mxu0 0.0
        %5820 = vmatprep.subr.mxu0 0.0
        %5821 = vmatpush2.msra.mxu0 0.0
        %5822 = vmatprep.subr.mxu0 0.0
        %5823 = vmatpush2.msra.mxu0 0.0
        %5824 = vmatprep.subr.mxu0 0.0
        %5825 = vmatpush2.msra.mxu0 0.0
        %5826 = vmatprep.subr.mxu0 0.0
        %5827 = vmatpush2.msra.mxu0 0.0
        %5828 = vmatprep.subr.mxu0 0.0
        %5829 = vmatpush2.msra.mxu0 0.0
        %5830 = vmatprep.subr.mxu0 0.0
        %5831 = vmatpush2.msra.mxu0 0.0
        %5832 = vmatprep.subr.mxu0 0.0
        %5833 = vmatpush2.msra.mxu0 0.0
        %5834 = vmatprep.subr.mxu0 0.0
        %5835 = vmatpush2.msra.mxu0 0.0
        %5836 = vmatprep.subr.mxu0 0.0
        %5837 = vmatpush2.msra.mxu0 0.0
        %5838 = vmatprep.subr.mxu0 0.0
        %5839 = vmatpush2.msra.mxu0 0.0
        %5840 = vmatprep.subr.mxu0 0.0
        %5841 = vmatpush2.msra.mxu0 0.0
        %5842 = vmatprep.subr.mxu0 0.0
        %5843 = vmatpush2.msra.mxu0 0.0
        %5844 = vmatprep.subr.mxu0 0.0
        %5845 = vmatpush2.msra.mxu0 0.0
        %5846 = vmatprep.subr.mxu0 0.0
        %5847 = vmatpush2.msra.mxu0 0.0
        %5848 = vmatprep.mubr.f32.mxu0 0.0
        %5849 = vmatmul.mubr.f32.gmra.mxu0 %v5779
        %v5850 = vpop.f32.mrf.mxu0
        %v5851 = vadd.f32 0.0, %v5850
        %v5852 = vpop.f32.mrf.mxu0
        %5853 = vmatprep.mubr.f32.mxu0 0.0
        %5854 = vmatmul.mubr.f32.gmra.mxu0 %v5782
        %v5855 = vpop.f32.mrf.mxu0
        %v5856 = vadd.f32 0.0, %v5855
        %v5857 = vpop.f32.mrf.mxu0
        %5858 = vdwg.mxu0
        %v5860 = vsel %vm4182, %v4808, 0
        %v5863 = vsel %vm4182, %v4810, 0
        %5865 = vmatprep.subr.mxu0 0.0
        %5866 = vmatpush1.msra.mxu0 0.0
        %5867 = vmatprep.subr.mxu0 0.0
        %5868 = vmatpush1.msra.mxu0 0.0
        %5869 = vmatprep.subr.mxu0 0.0
        %5870 = vmatpush1.msra.mxu0 0.0
        %5871 = vmatprep.subr.mxu0 0.0
        %5872 = vmatpush1.msra.mxu0 0.0
        %5873 = vmatprep.subr.mxu0 0.0
        %5874 = vmatpush1.msra.mxu0 0.0
        %5875 = vmatprep.subr.mxu0 0.0
        %5876 = vmatpush1.msra.mxu0 0.0
        %5877 = vmatprep.subr.mxu0 0.0
        %5878 = vmatpush1.msra.mxu0 0.0
        %5879 = vmatprep.subr.mxu0 0.0
        %5880 = vmatpush1.msra.mxu0 0.0
        %5881 = vmatprep.subr.mxu0 0.0
        %5882 = vmatpush1.msra.mxu0 0.0
        %5883 = vmatprep.subr.mxu0 0.0
        %5884 = vmatpush1.msra.mxu0 0.0
        %5885 = vmatprep.subr.mxu0 0.0
        %5886 = vmatpush1.msra.mxu0 0.0
        %5887 = vmatprep.subr.mxu0 0.0
        %5888 = vmatpush1.msra.mxu0 0.0
        %5889 = vmatprep.subr.mxu0 0.0
        %5890 = vmatpush1.msra.mxu0 0.0
        %5891 = vmatprep.subr.mxu0 0.0
        %5892 = vmatpush1.msra.mxu0 0.0
        %5893 = vmatprep.subr.mxu0 0.0
        %5894 = vmatpush1.msra.mxu0 %v1400
        %5895 = vmatprep.subr.mxu0 0.0
        %5896 = vmatpush1.msra.mxu0 %v1398
        %5897 = vmatprep.subr.mxu0 0.0
        %5898 = vmatpush2.msra.mxu0 0.0
        %5899 = vmatprep.subr.mxu0 0.0
        %5900 = vmatpush2.msra.mxu0 0.0
        %5901 = vmatprep.subr.mxu0 0.0
        %5902 = vmatpush2.msra.mxu0 0.0
        %5903 = vmatprep.subr.mxu0 0.0
        %5904 = vmatpush2.msra.mxu0 0.0
        %5905 = vmatprep.subr.mxu0 0.0
        %5906 = vmatpush2.msra.mxu0 0.0
        %5907 = vmatprep.subr.mxu0 0.0
        %5908 = vmatpush2.msra.mxu0 0.0
        %5909 = vmatprep.subr.mxu0 0.0
        %5910 = vmatpush2.msra.mxu0 0.0
        %5911 = vmatprep.subr.mxu0 0.0
        %5912 = vmatpush2.msra.mxu0 0.0
        %5913 = vmatprep.subr.mxu0 0.0
        %5914 = vmatpush2.msra.mxu0 0.0
        %5915 = vmatprep.subr.mxu0 0.0
        %5916 = vmatpush2.msra.mxu0 0.0
        %5917 = vmatprep.subr.mxu0 0.0
        %5918 = vmatpush2.msra.mxu0 0.0
        %5919 = vmatprep.subr.mxu0 0.0
        %5920 = vmatpush2.msra.mxu0 0.0
        %5921 = vmatprep.subr.mxu0 0.0
        %5922 = vmatpush2.msra.mxu0 0.0
        %5923 = vmatprep.subr.mxu0 0.0
        %5924 = vmatpush2.msra.mxu0 0.0
        %5925 = vmatprep.subr.mxu0 0.0
        %5926 = vmatpush2.msra.mxu0 0.0
        %5927 = vmatprep.subr.mxu0 0.0
        %5928 = vmatpush2.msra.mxu0 0.0
        %5929 = vmatprep.mubr.f32.mxu0 0.0
        %5930 = vmatmul.mubr.f32.gmra.mxu0 %v5860
        %v5931 = vpop.f32.mrf.mxu0
        %v5932 = vadd.f32 0.0, %v5931
        %v5933 = vpop.f32.mrf.mxu0
        %5934 = vmatprep.mubr.f32.mxu0 0.0
        %5935 = vmatmul.mubr.f32.gmra.mxu0 %v5863
        %v5936 = vpop.f32.mrf.mxu0
        %v5937 = vadd.f32 0.0, %v5936
        %v5938 = vpop.f32.mrf.mxu0
        %5939 = vdwg.mxu0
        %v5941 = vsel %vm4182, %v4812, 0
        %v5944 = vsel %vm4182, %v4814, 0
        %5946 = vmatprep.subr.mxu0 0.0
        %5947 = vmatpush1.msra.mxu0 0.0
        %5948 = vmatprep.subr.mxu0 0.0
        %5949 = vmatpush1.msra.mxu0 0.0
        %5950 = vmatprep.subr.mxu0 0.0
        %5951 = vmatpush1.msra.mxu0 0.0
        %5952 = vmatprep.subr.mxu0 0.0
        %5953 = vmatpush1.msra.mxu0 0.0
        %5954 = vmatprep.subr.mxu0 0.0
        %5955 = vmatpush1.msra.mxu0 0.0
        %5956 = vmatprep.subr.mxu0 0.0
        %5957 = vmatpush1.msra.mxu0 0.0
        %5958 = vmatprep.subr.mxu0 0.0
        %5959 = vmatpush1.msra.mxu0 0.0
        %5960 = vmatprep.subr.mxu0 0.0
        %5961 = vmatpush1.msra.mxu0 0.0
        %5962 = vmatprep.subr.mxu0 0.0
        %5963 = vmatpush1.msra.mxu0 0.0
        %5964 = vmatprep.subr.mxu0 0.0
        %5965 = vmatpush1.msra.mxu0 0.0
        %5966 = vmatprep.subr.mxu0 0.0
        %5967 = vmatpush1.msra.mxu0 0.0
        %5968 = vmatprep.subr.mxu0 0.0
        %5969 = vmatpush1.msra.mxu0 0.0
        %5970 = vmatprep.subr.mxu0 0.0
        %5971 = vmatpush1.msra.mxu0 0.0
        %5972 = vmatprep.subr.mxu0 0.0
        %5973 = vmatpush1.msra.mxu0 0.0
        %5974 = vmatprep.subr.mxu0 0.0
        %5975 = vmatpush1.msra.mxu0 %v1404
        %5976 = vmatprep.subr.mxu0 0.0
        %5977 = vmatpush1.msra.mxu0 %v1402
        %5978 = vmatprep.subr.mxu0 0.0
        %5979 = vmatpush2.msra.mxu0 0.0
        %5980 = vmatprep.subr.mxu0 0.0
        %5981 = vmatpush2.msra.mxu0 0.0
        %5982 = vmatprep.subr.mxu0 0.0
        %5983 = vmatpush2.msra.mxu0 0.0
        %5984 = vmatprep.subr.mxu0 0.0
        %5985 = vmatpush2.msra.mxu0 0.0
        %5986 = vmatprep.subr.mxu0 0.0
        %5987 = vmatpush2.msra.mxu0 0.0
        %5988 = vmatprep.subr.mxu0 0.0
        %5989 = vmatpush2.msra.mxu0 0.0
        %5990 = vmatprep.subr.mxu0 0.0
        %5991 = vmatpush2.msra.mxu0 0.0
        %5992 = vmatprep.subr.mxu0 0.0
        %5993 = vmatpush2.msra.mxu0 0.0
        %5994 = vmatprep.subr.mxu0 0.0
        %5995 = vmatpush2.msra.mxu0 0.0
        %5996 = vmatprep.subr.mxu0 0.0
        %5997 = vmatpush2.msra.mxu0 0.0
        %5998 = vmatprep.subr.mxu0 0.0
        %5999 = vmatpush2.msra.mxu0 0.0
        %6000 = vmatprep.subr.mxu0 0.0
        %6001 = vmatpush2.msra.mxu0 0.0
        %6002 = vmatprep.subr.mxu0 0.0
        %6003 = vmatpush2.msra.mxu0 0.0
        %6004 = vmatprep.subr.mxu0 0.0
        %6005 = vmatpush2.msra.mxu0 0.0
        %6006 = vmatprep.subr.mxu0 0.0
        %6007 = vmatpush2.msra.mxu0 0.0
        %6008 = vmatprep.subr.mxu0 0.0
        %6009 = vmatpush2.msra.mxu0 0.0
        %6010 = vmatprep.mubr.f32.mxu0 0.0
        %6011 = vmatmul.mubr.f32.gmra.mxu0 %v5941
        %v6012 = vpop.f32.mrf.mxu0
        %v6013 = vadd.f32 0.0, %v6012
        %v6014 = vpop.f32.mrf.mxu0
        %6015 = vmatprep.mubr.f32.mxu0 0.0
        %6016 = vmatmul.mubr.f32.gmra.mxu0 %v5944
        %v6017 = vpop.f32.mrf.mxu0
        %v6018 = vadd.f32 0.0, %v6017
        %v6019 = vpop.f32.mrf.mxu0
        %6020 = vdwg.mxu0
        %v6022 = vsel %vm4182, %v4816, 0
        %v6025 = vsel %vm4182, %v4818, 0
        %6027 = vmatprep.subr.mxu0 0.0
        %6028 = vmatpush1.msra.mxu0 0.0
        %6029 = vmatprep.subr.mxu0 0.0
        %6030 = vmatpush1.msra.mxu0 0.0
        %6031 = vmatprep.subr.mxu0 0.0
        %6032 = vmatpush1.msra.mxu0 0.0
        %6033 = vmatprep.subr.mxu0 0.0
        %6034 = vmatpush1.msra.mxu0 0.0
        %6035 = vmatprep.subr.mxu0 0.0
        %6036 = vmatpush1.msra.mxu0 0.0
        %6037 = vmatprep.subr.mxu0 0.0
        %6038 = vmatpush1.msra.mxu0 0.0
        %6039 = vmatprep.subr.mxu0 0.0
        %6040 = vmatpush1.msra.mxu0 0.0
        %6041 = vmatprep.subr.mxu0 0.0
        %6042 = vmatpush1.msra.mxu0 0.0
        %6043 = vmatprep.subr.mxu0 0.0
        %6044 = vmatpush1.msra.mxu0 0.0
        %6045 = vmatprep.subr.mxu0 0.0
        %6046 = vmatpush1.msra.mxu0 0.0
        %6047 = vmatprep.subr.mxu0 0.0
        %6048 = vmatpush1.msra.mxu0 0.0
        %6049 = vmatprep.subr.mxu0 0.0
        %6050 = vmatpush1.msra.mxu0 0.0
        %6051 = vmatprep.subr.mxu0 0.0
        %6052 = vmatpush1.msra.mxu0 0.0
        %6053 = vmatprep.subr.mxu0 0.0
        %6054 = vmatpush1.msra.mxu0 0.0
        %6055 = vmatprep.subr.mxu0 0.0
        %6056 = vmatpush1.msra.mxu0 %v1408
        %6057 = vmatprep.subr.mxu0 0.0
        %6058 = vmatpush1.msra.mxu0 %v1406
        %6059 = vmatprep.subr.mxu0 0.0
        %6060 = vmatpush2.msra.mxu0 0.0
        %6061 = vmatprep.subr.mxu0 0.0
        %6062 = vmatpush2.msra.mxu0 0.0
        %6063 = vmatprep.subr.mxu0 0.0
        %6064 = vmatpush2.msra.mxu0 0.0
        %6065 = vmatprep.subr.mxu0 0.0
        %6066 = vmatpush2.msra.mxu0 0.0
        %6067 = vmatprep.subr.mxu0 0.0
        %6068 = vmatpush2.msra.mxu0 0.0
        %6069 = vmatprep.subr.mxu0 0.0
        %6070 = vmatpush2.msra.mxu0 0.0
        %6071 = vmatprep.subr.mxu0 0.0
        %6072 = vmatpush2.msra.mxu0 0.0
        %6073 = vmatprep.subr.mxu0 0.0
        %6074 = vmatpush2.msra.mxu0 0.0
        %6075 = vmatprep.subr.mxu0 0.0
        %6076 = vmatpush2.msra.mxu0 0.0
        %6077 = vmatprep.subr.mxu0 0.0
        %6078 = vmatpush2.msra.mxu0 0.0
        %6079 = vmatprep.subr.mxu0 0.0
        %6080 = vmatpush2.msra.mxu0 0.0
        %6081 = vmatprep.subr.mxu0 0.0
        %6082 = vmatpush2.msra.mxu0 0.0
        %6083 = vmatprep.subr.mxu0 0.0
        %6084 = vmatpush2.msra.mxu0 0.0
        %6085 = vmatprep.subr.mxu0 0.0
        %6086 = vmatpush2.msra.mxu0 0.0
        %6087 = vmatprep.subr.mxu0 0.0
        %6088 = vmatpush2.msra.mxu0 0.0
        %6089 = vmatprep.subr.mxu0 0.0
        %6090 = vmatpush2.msra.mxu0 0.0
        %6091 = vmatprep.mubr.f32.mxu0 0.0
        %6092 = vmatmul.mubr.f32.gmra.mxu0 %v6022
        %v6093 = vpop.f32.mrf.mxu0
        %v6094 = vadd.f32 0.0, %v6093
        %v6095 = vpop.f32.mrf.mxu0
        %6096 = vmatprep.mubr.f32.mxu0 0.0
        %6097 = vmatmul.mubr.f32.gmra.mxu0 %v6025
        %v6098 = vpop.f32.mrf.mxu0
        %v6099 = vadd.f32 0.0, %v6098
        %v6100 = vpop.f32.mrf.mxu0
        %6101 = vdwg.mxu0
        %v6103 = vsel %vm4182, %v4820, 0
        %v6106 = vsel %vm4182, %v4822, 0
        %6108 = vmatprep.subr.mxu0 0.0
        %6109 = vmatpush1.msra.mxu0 0.0
        %6110 = vmatprep.subr.mxu0 0.0
        %6111 = vmatpush1.msra.mxu0 0.0
        %6112 = vmatprep.subr.mxu0 0.0
        %6113 = vmatpush1.msra.mxu0 0.0
        %6114 = vmatprep.subr.mxu0 0.0
        %6115 = vmatpush1.msra.mxu0 0.0
        %6116 = vmatprep.subr.mxu0 0.0
        %6117 = vmatpush1.msra.mxu0 0.0
        %6118 = vmatprep.subr.mxu0 0.0
        %6119 = vmatpush1.msra.mxu0 0.0
        %6120 = vmatprep.subr.mxu0 0.0
        %6121 = vmatpush1.msra.mxu0 0.0
        %6122 = vmatprep.subr.mxu0 0.0
        %6123 = vmatpush1.msra.mxu0 0.0
        %6124 = vmatprep.subr.mxu0 0.0
        %6125 = vmatpush1.msra.mxu0 0.0
        %6126 = vmatprep.subr.mxu0 0.0
        %6127 = vmatpush1.msra.mxu0 0.0
        %6128 = vmatprep.subr.mxu0 0.0
        %6129 = vmatpush1.msra.mxu0 0.0
        %6130 = vmatprep.subr.mxu0 0.0
        %6131 = vmatpush1.msra.mxu0 0.0
        %6132 = vmatprep.subr.mxu0 0.0
        %6133 = vmatpush1.msra.mxu0 0.0
        %6134 = vmatprep.subr.mxu0 0.0
        %6135 = vmatpush1.msra.mxu0 0.0
        %6136 = vmatprep.subr.mxu0 0.0
        %6137 = vmatpush1.msra.mxu0 %v1412
        %6138 = vmatprep.subr.mxu0 0.0
        %6139 = vmatpush1.msra.mxu0 %v1410
        %6140 = vmatprep.subr.mxu0 0.0
        %6141 = vmatpush2.msra.mxu0 0.0
        %6142 = vmatprep.subr.mxu0 0.0
        %6143 = vmatpush2.msra.mxu0 0.0
        %6144 = vmatprep.subr.mxu0 0.0
        %6145 = vmatpush2.msra.mxu0 0.0
        %6146 = vmatprep.subr.mxu0 0.0
        %6147 = vmatpush2.msra.mxu0 0.0
        %6148 = vmatprep.subr.mxu0 0.0
        %6149 = vmatpush2.msra.mxu0 0.0
        %6150 = vmatprep.subr.mxu0 0.0
        %6151 = vmatpush2.msra.mxu0 0.0
        %6152 = vmatprep.subr.mxu0 0.0
        %6153 = vmatpush2.msra.mxu0 0.0
        %6154 = vmatprep.subr.mxu0 0.0
        %6155 = vmatpush2.msra.mxu0 0.0
        %6156 = vmatprep.subr.mxu0 0.0
        %6157 = vmatpush2.msra.mxu0 0.0
        %6158 = vmatprep.subr.mxu0 0.0
        %6159 = vmatpush2.msra.mxu0 0.0
        %6160 = vmatprep.subr.mxu0 0.0
        %6161 = vmatpush2.msra.mxu0 0.0
        %6162 = vmatprep.subr.mxu0 0.0
        %6163 = vmatpush2.msra.mxu0 0.0
        %6164 = vmatprep.subr.mxu0 0.0
        %6165 = vmatpush2.msra.mxu0 0.0
        %6166 = vmatprep.subr.mxu0 0.0
        %6167 = vmatpush2.msra.mxu0 0.0
        %6168 = vmatprep.subr.mxu0 0.0
        %6169 = vmatpush2.msra.mxu0 0.0
        %6170 = vmatprep.subr.mxu0 0.0
        %6171 = vmatpush2.msra.mxu0 0.0
        %6172 = vmatprep.mubr.f32.mxu0 0.0
        %6173 = vmatmul.mubr.f32.gmra.mxu0 %v6103
        %v6174 = vpop.f32.mrf.mxu0
        %v6175 = vadd.f32 0.0, %v6174
        %v6176 = vpop.f32.mrf.mxu0
        %6177 = vmatprep.mubr.f32.mxu0 0.0
        %6178 = vmatmul.mubr.f32.gmra.mxu0 %v6106
        %v6179 = vpop.f32.mrf.mxu0
        %v6180 = vadd.f32 0.0, %v6179
        %v6181 = vpop.f32.mrf.mxu0
        %6182 = vdwg.mxu0
        %v6184 = vsel %vm4182, %v4824, 0
        %v6187 = vsel %vm4182, %v4826, 0
        %6189 = vmatprep.subr.mxu0 0.0
        %6190 = vmatpush1.msra.mxu0 0.0
        %6191 = vmatprep.subr.mxu0 0.0
        %6192 = vmatpush1.msra.mxu0 0.0
        %6193 = vmatprep.subr.mxu0 0.0
        %6194 = vmatpush1.msra.mxu0 0.0
        %6195 = vmatprep.subr.mxu0 0.0
        %6196 = vmatpush1.msra.mxu0 0.0
        %6197 = vmatprep.subr.mxu0 0.0
        %6198 = vmatpush1.msra.mxu0 0.0
        %6199 = vmatprep.subr.mxu0 0.0
        %6200 = vmatpush1.msra.mxu0 0.0
        %6201 = vmatprep.subr.mxu0 0.0
        %6202 = vmatpush1.msra.mxu0 0.0
        %6203 = vmatprep.subr.mxu0 0.0
        %6204 = vmatpush1.msra.mxu0 0.0
        %6205 = vmatprep.subr.mxu0 0.0
        %6206 = vmatpush1.msra.mxu0 0.0
        %6207 = vmatprep.subr.mxu0 0.0
        %6208 = vmatpush1.msra.mxu0 0.0
        %6209 = vmatprep.subr.mxu0 0.0
        %6210 = vmatpush1.msra.mxu0 0.0
        %6211 = vmatprep.subr.mxu0 0.0
        %6212 = vmatpush1.msra.mxu0 0.0
        %6213 = vmatprep.subr.mxu0 0.0
        %6214 = vmatpush1.msra.mxu0 0.0
        %6215 = vmatprep.subr.mxu0 0.0
        %6216 = vmatpush1.msra.mxu0 0.0
        %6217 = vmatprep.subr.mxu0 0.0
        %6218 = vmatpush1.msra.mxu0 %v1432
        %6219 = vmatprep.subr.mxu0 0.0
        %6220 = vmatpush1.msra.mxu0 %v1430
        %6221 = vmatprep.subr.mxu0 0.0
        %6222 = vmatpush2.msra.mxu0 0.0
        %6223 = vmatprep.subr.mxu0 0.0
        %6224 = vmatpush2.msra.mxu0 0.0
        %6225 = vmatprep.subr.mxu0 0.0
        %6226 = vmatpush2.msra.mxu0 0.0
        %6227 = vmatprep.subr.mxu0 0.0
        %6228 = vmatpush2.msra.mxu0 0.0
        %6229 = vmatprep.subr.mxu0 0.0
        %6230 = vmatpush2.msra.mxu0 0.0
        %6231 = vmatprep.subr.mxu0 0.0
        %6232 = vmatpush2.msra.mxu0 0.0
        %6233 = vmatprep.subr.mxu0 0.0
        %6234 = vmatpush2.msra.mxu0 0.0
        %6235 = vmatprep.subr.mxu0 0.0
        %6236 = vmatpush2.msra.mxu0 0.0
        %6237 = vmatprep.subr.mxu0 0.0
        %6238 = vmatpush2.msra.mxu0 0.0
        %6239 = vmatprep.subr.mxu0 0.0
        %6240 = vmatpush2.msra.mxu0 0.0
        %6241 = vmatprep.subr.mxu0 0.0
        %6242 = vmatpush2.msra.mxu0 0.0
        %6243 = vmatprep.subr.mxu0 0.0
        %6244 = vmatpush2.msra.mxu0 0.0
        %6245 = vmatprep.subr.mxu0 0.0
        %6246 = vmatpush2.msra.mxu0 0.0
        %6247 = vmatprep.subr.mxu0 0.0
        %6248 = vmatpush2.msra.mxu0 0.0
        %6249 = vmatprep.subr.mxu0 0.0
        %6250 = vmatpush2.msra.mxu0 0.0
        %6251 = vmatprep.subr.mxu0 0.0
        %6252 = vmatpush2.msra.mxu0 0.0
        %6253 = vmatprep.mubr.f32.mxu0 0.0
        %6254 = vmatmul.mubr.f32.gmra.mxu0 %v6184
        %v6255 = vpop.f32.mrf.mxu0
        %v6256 = vadd.f32 0.0, %v6255
        %v6257 = vpop.f32.mrf.mxu0
        %6258 = vmatprep.mubr.f32.mxu0 0.0
        %6259 = vmatmul.mubr.f32.gmra.mxu0 %v6187
        %v6260 = vpop.f32.mrf.mxu0
        %v6261 = vadd.f32 0.0, %v6260
        %v6262 = vpop.f32.mrf.mxu0
        %6263 = vdwg.mxu0
        %v6265 = vsel %vm4182, %v4828, 0
        %v6268 = vsel %vm4182, %v4830, 0
        %6270 = vmatprep.subr.mxu0 0.0
        %6271 = vmatpush1.msra.mxu0 0.0
        %6272 = vmatprep.subr.mxu0 0.0
        %6273 = vmatpush1.msra.mxu0 0.0
        %6274 = vmatprep.subr.mxu0 0.0
        %6275 = vmatpush1.msra.mxu0 0.0
        %6276 = vmatprep.subr.mxu0 0.0
        %6277 = vmatpush1.msra.mxu0 0.0
        %6278 = vmatprep.subr.mxu0 0.0
        %6279 = vmatpush1.msra.mxu0 0.0
        %6280 = vmatprep.subr.mxu0 0.0
        %6281 = vmatpush1.msra.mxu0 0.0
        %6282 = vmatprep.subr.mxu0 0.0
        %6283 = vmatpush1.msra.mxu0 0.0
        %6284 = vmatprep.subr.mxu0 0.0
        %6285 = vmatpush1.msra.mxu0 0.0
        %6286 = vmatprep.subr.mxu0 0.0
        %6287 = vmatpush1.msra.mxu0 0.0
        %6288 = vmatprep.subr.mxu0 0.0
        %6289 = vmatpush1.msra.mxu0 0.0
        %6290 = vmatprep.subr.mxu0 0.0
        %6291 = vmatpush1.msra.mxu0 0.0
        %6292 = vmatprep.subr.mxu0 0.0
        %6293 = vmatpush1.msra.mxu0 0.0
        %6294 = vmatprep.subr.mxu0 0.0
        %6295 = vmatpush1.msra.mxu0 0.0
        %6296 = vmatprep.subr.mxu0 0.0
        %6297 = vmatpush1.msra.mxu0 0.0
        %6298 = vmatprep.subr.mxu0 0.0
        %6299 = vmatpush1.msra.mxu0 %v1436
        %6300 = vmatprep.subr.mxu0 0.0
        %6301 = vmatpush1.msra.mxu0 %v1434
        %6302 = vmatprep.subr.mxu0 0.0
        %6303 = vmatpush2.msra.mxu0 0.0
        %6304 = vmatprep.subr.mxu0 0.0
        %6305 = vmatpush2.msra.mxu0 0.0
        %6306 = vmatprep.subr.mxu0 0.0
        %6307 = vmatpush2.msra.mxu0 0.0
        %6308 = vmatprep.subr.mxu0 0.0
        %6309 = vmatpush2.msra.mxu0 0.0
        %6310 = vmatprep.subr.mxu0 0.0
        %6311 = vmatpush2.msra.mxu0 0.0
        %6312 = vmatprep.subr.mxu0 0.0
        %6313 = vmatpush2.msra.mxu0 0.0
        %6314 = vmatprep.subr.mxu0 0.0
        %6315 = vmatpush2.msra.mxu0 0.0
        %6316 = vmatprep.subr.mxu0 0.0
        %6317 = vmatpush2.msra.mxu0 0.0
        %6318 = vmatprep.subr.mxu0 0.0
        %6319 = vmatpush2.msra.mxu0 0.0
        %6320 = vmatprep.subr.mxu0 0.0
        %6321 = vmatpush2.msra.mxu0 0.0
        %6322 = vmatprep.subr.mxu0 0.0
        %6323 = vmatpush2.msra.mxu0 0.0
        %6324 = vmatprep.subr.mxu0 0.0
        %6325 = vmatpush2.msra.mxu0 0.0
        %6326 = vmatprep.subr.mxu0 0.0
        %6327 = vmatpush2.msra.mxu0 0.0
        %6328 = vmatprep.subr.mxu0 0.0
        %6329 = vmatpush2.msra.mxu0 0.0
        %6330 = vmatprep.subr.mxu0 0.0
        %6331 = vmatpush2.msra.mxu0 0.0
        %6332 = vmatprep.subr.mxu0 0.0
        %6333 = vmatpush2.msra.mxu0 0.0
        %6334 = vmatprep.mubr.f32.mxu0 0.0
        %6335 = vmatmul.mubr.f32.gmra.mxu0 %v6265
        %v6336 = vpop.f32.mrf.mxu0
        %v6337 = vadd.f32 0.0, %v6336
        %v6338 = vpop.f32.mrf.mxu0
        %6339 = vmatprep.mubr.f32.mxu0 0.0
        %6340 = vmatmul.mubr.f32.gmra.mxu0 %v6268
        %v6341 = vpop.f32.mrf.mxu0
        %v6342 = vadd.f32 0.0, %v6341
        %v6343 = vpop.f32.mrf.mxu0
        %6344 = vdwg.mxu0
        %v6346 = vsel %vm4182, %v4832, 0
        %v6349 = vsel %vm4182, %v4834, 0
        %6351 = vmatprep.subr.mxu0 0.0
        %6352 = vmatpush1.msra.mxu0 0.0
        %6353 = vmatprep.subr.mxu0 0.0
        %6354 = vmatpush1.msra.mxu0 0.0
        %6355 = vmatprep.subr.mxu0 0.0
        %6356 = vmatpush1.msra.mxu0 0.0
        %6357 = vmatprep.subr.mxu0 0.0
        %6358 = vmatpush1.msra.mxu0 0.0
        %6359 = vmatprep.subr.mxu0 0.0
        %6360 = vmatpush1.msra.mxu0 0.0
        %6361 = vmatprep.subr.mxu0 0.0
        %6362 = vmatpush1.msra.mxu0 0.0
        %6363 = vmatprep.subr.mxu0 0.0
        %6364 = vmatpush1.msra.mxu0 0.0
        %6365 = vmatprep.subr.mxu0 0.0
        %6366 = vmatpush1.msra.mxu0 0.0
        %6367 = vmatprep.subr.mxu0 0.0
        %6368 = vmatpush1.msra.mxu0 0.0
        %6369 = vmatprep.subr.mxu0 0.0
        %6370 = vmatpush1.msra.mxu0 0.0
        %6371 = vmatprep.subr.mxu0 0.0
        %6372 = vmatpush1.msra.mxu0 0.0
        %6373 = vmatprep.subr.mxu0 0.0
        %6374 = vmatpush1.msra.mxu0 0.0
        %6375 = vmatprep.subr.mxu0 0.0
        %6376 = vmatpush1.msra.mxu0 0.0
        %6377 = vmatprep.subr.mxu0 0.0
        %6378 = vmatpush1.msra.mxu0 0.0
        %6379 = vmatprep.subr.mxu0 0.0
        %6380 = vmatpush1.msra.mxu0 %v1440
        %6381 = vmatprep.subr.mxu0 0.0
        %6382 = vmatpush1.msra.mxu0 %v1438
        %6383 = vmatprep.subr.mxu0 0.0
        %6384 = vmatpush2.msra.mxu0 0.0
        %6385 = vmatprep.subr.mxu0 0.0
        %6386 = vmatpush2.msra.mxu0 0.0
        %6387 = vmatprep.subr.mxu0 0.0
        %6388 = vmatpush2.msra.mxu0 0.0
        %6389 = vmatprep.subr.mxu0 0.0
        %6390 = vmatpush2.msra.mxu0 0.0
        %6391 = vmatprep.subr.mxu0 0.0
        %6392 = vmatpush2.msra.mxu0 0.0
        %6393 = vmatprep.subr.mxu0 0.0
        %6394 = vmatpush2.msra.mxu0 0.0
        %6395 = vmatprep.subr.mxu0 0.0
        %6396 = vmatpush2.msra.mxu0 0.0
        %6397 = vmatprep.subr.mxu0 0.0
        %6398 = vmatpush2.msra.mxu0 0.0
        %6399 = vmatprep.subr.mxu0 0.0
        %6400 = vmatpush2.msra.mxu0 0.0
        %6401 = vmatprep.subr.mxu0 0.0
        %6402 = vmatpush2.msra.mxu0 0.0
        %6403 = vmatprep.subr.mxu0 0.0
        %6404 = vmatpush2.msra.mxu0 0.0
        %6405 = vmatprep.subr.mxu0 0.0
        %6406 = vmatpush2.msra.mxu0 0.0
        %6407 = vmatprep.subr.mxu0 0.0
        %6408 = vmatpush2.msra.mxu0 0.0
        %6409 = vmatprep.subr.mxu0 0.0
        %6410 = vmatpush2.msra.mxu0 0.0
        %6411 = vmatprep.subr.mxu0 0.0
        %6412 = vmatpush2.msra.mxu0 0.0
        %6413 = vmatprep.subr.mxu0 0.0
        %6414 = vmatpush2.msra.mxu0 0.0
        %6415 = vmatprep.mubr.f32.mxu0 0.0
        %6416 = vmatmul.mubr.f32.gmra.mxu0 %v6346
        %v6417 = vpop.f32.mrf.mxu0
        %v6418 = vadd.f32 0.0, %v6417
        %v6419 = vpop.f32.mrf.mxu0
        %6420 = vmatprep.mubr.f32.mxu0 0.0
        %6421 = vmatmul.mubr.f32.gmra.mxu0 %v6349
        %v6422 = vpop.f32.mrf.mxu0
        %v6423 = vadd.f32 0.0, %v6422
        %v6424 = vpop.f32.mrf.mxu0
        %6425 = vdwg.mxu0
        %v6427 = vsel %vm4182, %v4836, 0
        %v6430 = vsel %vm4182, %v4838, 0
        %6432 = vmatprep.subr.mxu0 0.0
        %6433 = vmatpush1.msra.mxu0 0.0
        %6434 = vmatprep.subr.mxu0 0.0
        %6435 = vmatpush1.msra.mxu0 0.0
        %6436 = vmatprep.subr.mxu0 0.0
        %6437 = vmatpush1.msra.mxu0 0.0
        %6438 = vmatprep.subr.mxu0 0.0
        %6439 = vmatpush1.msra.mxu0 0.0
        %6440 = vmatprep.subr.mxu0 0.0
        %6441 = vmatpush1.msra.mxu0 0.0
        %6442 = vmatprep.subr.mxu0 0.0
        %6443 = vmatpush1.msra.mxu0 0.0
        %6444 = vmatprep.subr.mxu0 0.0
        %6445 = vmatpush1.msra.mxu0 0.0
        %6446 = vmatprep.subr.mxu0 0.0
        %6447 = vmatpush1.msra.mxu0 0.0
        %6448 = vmatprep.subr.mxu0 0.0
        %6449 = vmatpush1.msra.mxu0 0.0
        %6450 = vmatprep.subr.mxu0 0.0
        %6451 = vmatpush1.msra.mxu0 0.0
        %6452 = vmatprep.subr.mxu0 0.0
        %6453 = vmatpush1.msra.mxu0 0.0
        %6454 = vmatprep.subr.mxu0 0.0
        %6455 = vmatpush1.msra.mxu0 0.0
        %6456 = vmatprep.subr.mxu0 0.0
        %6457 = vmatpush1.msra.mxu0 0.0
        %6458 = vmatprep.subr.mxu0 0.0
        %6459 = vmatpush1.msra.mxu0 0.0
        %6460 = vmatprep.subr.mxu0 0.0
        %6461 = vmatpush1.msra.mxu0 %v1444
        %6462 = vmatprep.subr.mxu0 0.0
        %6463 = vmatpush1.msra.mxu0 %v1442
        %6464 = vmatprep.subr.mxu0 0.0
        %6465 = vmatpush2.msra.mxu0 0.0
        %6466 = vmatprep.subr.mxu0 0.0
        %6467 = vmatpush2.msra.mxu0 0.0
        %6468 = vmatprep.subr.mxu0 0.0
        %6469 = vmatpush2.msra.mxu0 0.0
        %6470 = vmatprep.subr.mxu0 0.0
        %6471 = vmatpush2.msra.mxu0 0.0
        %6472 = vmatprep.subr.mxu0 0.0
        %6473 = vmatpush2.msra.mxu0 0.0
        %6474 = vmatprep.subr.mxu0 0.0
        %6475 = vmatpush2.msra.mxu0 0.0
        %6476 = vmatprep.subr.mxu0 0.0
        %6477 = vmatpush2.msra.mxu0 0.0
        %6478 = vmatprep.subr.mxu0 0.0
        %6479 = vmatpush2.msra.mxu0 0.0
        %6480 = vmatprep.subr.mxu0 0.0
        %6481 = vmatpush2.msra.mxu0 0.0
        %6482 = vmatprep.subr.mxu0 0.0
        %6483 = vmatpush2.msra.mxu0 0.0
        %6484 = vmatprep.subr.mxu0 0.0
        %6485 = vmatpush2.msra.mxu0 0.0
        %6486 = vmatprep.subr.mxu0 0.0
        %6487 = vmatpush2.msra.mxu0 0.0
        %6488 = vmatprep.subr.mxu0 0.0
        %6489 = vmatpush2.msra.mxu0 0.0
        %6490 = vmatprep.subr.mxu0 0.0
        %6491 = vmatpush2.msra.mxu0 0.0
        %6492 = vmatprep.subr.mxu0 0.0
        %6493 = vmatpush2.msra.mxu0 0.0
        %6494 = vmatprep.subr.mxu0 0.0
        %6495 = vmatpush2.msra.mxu0 0.0
        %6496 = vmatprep.mubr.f32.mxu0 0.0
        %6497 = vmatmul.mubr.f32.gmra.mxu0 %v6427
        %v6498 = vpop.f32.mrf.mxu0
        %v6499 = vadd.f32 0.0, %v6498
        %v6500 = vpop.f32.mrf.mxu0
        %6501 = vmatprep.mubr.f32.mxu0 0.0
        %6502 = vmatmul.mubr.f32.gmra.mxu0 %v6430
        %v6503 = vpop.f32.mrf.mxu0
        %v6504 = vadd.f32 0.0, %v6503
        %v6505 = vpop.f32.mrf.mxu0
        %6506 = vdwg.mxu0
        %v6508 = vsel %vm4182, %v4840, 0
        %v6511 = vsel %vm4182, %v4842, 0
        %6513 = vmatprep.subr.mxu0 0.0
        %6514 = vmatpush1.msra.mxu0 0.0
        %6515 = vmatprep.subr.mxu0 0.0
        %6516 = vmatpush1.msra.mxu0 0.0
        %6517 = vmatprep.subr.mxu0 0.0
        %6518 = vmatpush1.msra.mxu0 0.0
        %6519 = vmatprep.subr.mxu0 0.0
        %6520 = vmatpush1.msra.mxu0 0.0
        %6521 = vmatprep.subr.mxu0 0.0
        %6522 = vmatpush1.msra.mxu0 0.0
        %6523 = vmatprep.subr.mxu0 0.0
        %6524 = vmatpush1.msra.mxu0 0.0
        %6525 = vmatprep.subr.mxu0 0.0
        %6526 = vmatpush1.msra.mxu0 0.0
        %6527 = vmatprep.subr.mxu0 0.0
        %6528 = vmatpush1.msra.mxu0 0.0
        %6529 = vmatprep.subr.mxu0 0.0
        %6530 = vmatpush1.msra.mxu0 0.0
        %6531 = vmatprep.subr.mxu0 0.0
        %6532 = vmatpush1.msra.mxu0 0.0
        %6533 = vmatprep.subr.mxu0 0.0
        %6534 = vmatpush1.msra.mxu0 0.0
        %6535 = vmatprep.subr.mxu0 0.0
        %6536 = vmatpush1.msra.mxu0 0.0
        %6537 = vmatprep.subr.mxu0 0.0
        %6538 = vmatpush1.msra.mxu0 0.0
        %6539 = vmatprep.subr.mxu0 0.0
        %6540 = vmatpush1.msra.mxu0 0.0
        %6541 = vmatprep.subr.mxu0 0.0
        %6542 = vmatpush1.msra.mxu0 %v1448
        %6543 = vmatprep.subr.mxu0 0.0
        %6544 = vmatpush1.msra.mxu0 %v1446
        %6545 = vmatprep.subr.mxu0 0.0
        %6546 = vmatpush2.msra.mxu0 0.0
        %6547 = vmatprep.subr.mxu0 0.0
        %6548 = vmatpush2.msra.mxu0 0.0
        %6549 = vmatprep.subr.mxu0 0.0
        %6550 = vmatpush2.msra.mxu0 0.0
        %6551 = vmatprep.subr.mxu0 0.0
        %6552 = vmatpush2.msra.mxu0 0.0
        %6553 = vmatprep.subr.mxu0 0.0
        %6554 = vmatpush2.msra.mxu0 0.0
        %6555 = vmatprep.subr.mxu0 0.0
        %6556 = vmatpush2.msra.mxu0 0.0
        %6557 = vmatprep.subr.mxu0 0.0
        %6558 = vmatpush2.msra.mxu0 0.0
        %6559 = vmatprep.subr.mxu0 0.0
        %6560 = vmatpush2.msra.mxu0 0.0
        %6561 = vmatprep.subr.mxu0 0.0
        %6562 = vmatpush2.msra.mxu0 0.0
        %6563 = vmatprep.subr.mxu0 0.0
        %6564 = vmatpush2.msra.mxu0 0.0
        %6565 = vmatprep.subr.mxu0 0.0
        %6566 = vmatpush2.msra.mxu0 0.0
        %6567 = vmatprep.subr.mxu0 0.0
        %6568 = vmatpush2.msra.mxu0 0.0
        %6569 = vmatprep.subr.mxu0 0.0
        %6570 = vmatpush2.msra.mxu0 0.0
        %6571 = vmatprep.subr.mxu0 0.0
        %6572 = vmatpush2.msra.mxu0 0.0
        %6573 = vmatprep.subr.mxu0 0.0
        %6574 = vmatpush2.msra.mxu0 0.0
        %6575 = vmatprep.subr.mxu0 0.0
        %6576 = vmatpush2.msra.mxu0 0.0
        %6577 = vmatprep.mubr.f32.mxu0 0.0
        %6578 = vmatmul.mubr.f32.gmra.mxu0 %v6508
        %v6579 = vpop.f32.mrf.mxu0
        %v6580 = vadd.f32 0.0, %v6579
        %v6581 = vpop.f32.mrf.mxu0
        %6582 = vmatprep.mubr.f32.mxu0 0.0
        %6583 = vmatmul.mubr.f32.gmra.mxu0 %v6511
        %v6584 = vpop.f32.mrf.mxu0
        %v6585 = vadd.f32 0.0, %v6584
        %v6586 = vpop.f32.mrf.mxu0
        %6587 = vdwg.mxu0
        %v6589 = vsel %vm4182, %v4844, 0
        %v6592 = vsel %vm4182, %v4846, 0
        %6594 = vmatprep.subr.mxu0 0.0
        %6595 = vmatpush1.msra.mxu0 0.0
        %6596 = vmatprep.subr.mxu0 0.0
        %6597 = vmatpush1.msra.mxu0 0.0
        %6598 = vmatprep.subr.mxu0 0.0
        %6599 = vmatpush1.msra.mxu0 0.0
        %6600 = vmatprep.subr.mxu0 0.0
        %6601 = vmatpush1.msra.mxu0 0.0
        %6602 = vmatprep.subr.mxu0 0.0
        %6603 = vmatpush1.msra.mxu0 0.0
        %6604 = vmatprep.subr.mxu0 0.0
        %6605 = vmatpush1.msra.mxu0 0.0
        %6606 = vmatprep.subr.mxu0 0.0
        %6607 = vmatpush1.msra.mxu0 0.0
        %6608 = vmatprep.subr.mxu0 0.0
        %6609 = vmatpush1.msra.mxu0 0.0
        %6610 = vmatprep.subr.mxu0 0.0
        %6611 = vmatpush1.msra.mxu0 0.0
        %6612 = vmatprep.subr.mxu0 0.0
        %6613 = vmatpush1.msra.mxu0 0.0
        %6614 = vmatprep.subr.mxu0 0.0
        %6615 = vmatpush1.msra.mxu0 0.0
        %6616 = vmatprep.subr.mxu0 0.0
        %6617 = vmatpush1.msra.mxu0 0.0
        %6618 = vmatprep.subr.mxu0 0.0
        %6619 = vmatpush1.msra.mxu0 0.0
        %6620 = vmatprep.subr.mxu0 0.0
        %6621 = vmatpush1.msra.mxu0 0.0
        %6622 = vmatprep.subr.mxu0 0.0
        %6623 = vmatpush1.msra.mxu0 %v1452
        %6624 = vmatprep.subr.mxu0 0.0
        %6625 = vmatpush1.msra.mxu0 %v1450
        %6626 = vmatprep.subr.mxu0 0.0
        %6627 = vmatpush2.msra.mxu0 0.0
        %6628 = vmatprep.subr.mxu0 0.0
        %6629 = vmatpush2.msra.mxu0 0.0
        %6630 = vmatprep.subr.mxu0 0.0
        %6631 = vmatpush2.msra.mxu0 0.0
        %6632 = vmatprep.subr.mxu0 0.0
        %6633 = vmatpush2.msra.mxu0 0.0
        %6634 = vmatprep.subr.mxu0 0.0
        %6635 = vmatpush2.msra.mxu0 0.0
        %6636 = vmatprep.subr.mxu0 0.0
        %6637 = vmatpush2.msra.mxu0 0.0
        %6638 = vmatprep.subr.mxu0 0.0
        %6639 = vmatpush2.msra.mxu0 0.0
        %6640 = vmatprep.subr.mxu0 0.0
        %6641 = vmatpush2.msra.mxu0 0.0
        %6642 = vmatprep.subr.mxu0 0.0
        %6643 = vmatpush2.msra.mxu0 0.0
        %6644 = vmatprep.subr.mxu0 0.0
        %6645 = vmatpush2.msra.mxu0 0.0
        %6646 = vmatprep.subr.mxu0 0.0
        %6647 = vmatpush2.msra.mxu0 0.0
        %6648 = vmatprep.subr.mxu0 0.0
        %6649 = vmatpush2.msra.mxu0 0.0
        %6650 = vmatprep.subr.mxu0 0.0
        %6651 = vmatpush2.msra.mxu0 0.0
        %6652 = vmatprep.subr.mxu0 0.0
        %6653 = vmatpush2.msra.mxu0 0.0
        %6654 = vmatprep.subr.mxu0 0.0
        %6655 = vmatpush2.msra.mxu0 0.0
        %6656 = vmatprep.subr.mxu0 0.0
        %6657 = vmatpush2.msra.mxu0 0.0
        %6658 = vmatprep.mubr.f32.mxu0 0.0
        %6659 = vmatmul.mubr.f32.gmra.mxu0 %v6589
        %v6660 = vpop.f32.mrf.mxu0
        %v6661 = vadd.f32 0.0, %v6660
        %v6662 = vpop.f32.mrf.mxu0
        %6663 = vmatprep.mubr.f32.mxu0 0.0
        %6664 = vmatmul.mubr.f32.gmra.mxu0 %v6592
        %v6665 = vpop.f32.mrf.mxu0
        %v6666 = vadd.f32 0.0, %v6665
        %v6667 = vpop.f32.mrf.mxu0
        %6668 = vdwg.mxu0
        %v6670 = vsel %vm4182, %v4848, 0
        %v6673 = vsel %vm4182, %v4850, 0
        %6675 = vmatprep.subr.mxu0 0.0
        %6676 = vmatpush1.msra.mxu0 0.0
        %6677 = vmatprep.subr.mxu0 0.0
        %6678 = vmatpush1.msra.mxu0 0.0
        %6679 = vmatprep.subr.mxu0 0.0
        %6680 = vmatpush1.msra.mxu0 0.0
        %6681 = vmatprep.subr.mxu0 0.0
        %6682 = vmatpush1.msra.mxu0 0.0
        %6683 = vmatprep.subr.mxu0 0.0
        %6684 = vmatpush1.msra.mxu0 0.0
        %6685 = vmatprep.subr.mxu0 0.0
        %6686 = vmatpush1.msra.mxu0 0.0
        %6687 = vmatprep.subr.mxu0 0.0
        %6688 = vmatpush1.msra.mxu0 0.0
        %6689 = vmatprep.subr.mxu0 0.0
        %6690 = vmatpush1.msra.mxu0 0.0
        %6691 = vmatprep.subr.mxu0 0.0
        %6692 = vmatpush1.msra.mxu0 0.0
        %6693 = vmatprep.subr.mxu0 0.0
        %6694 = vmatpush1.msra.mxu0 0.0
        %6695 = vmatprep.subr.mxu0 0.0
        %6696 = vmatpush1.msra.mxu0 0.0
        %6697 = vmatprep.subr.mxu0 0.0
        %6698 = vmatpush1.msra.mxu0 0.0
        %6699 = vmatprep.subr.mxu0 0.0
        %6700 = vmatpush1.msra.mxu0 0.0
        %6701 = vmatprep.subr.mxu0 0.0
        %6702 = vmatpush1.msra.mxu0 0.0
        %6703 = vmatprep.subr.mxu0 0.0
        %6704 = vmatpush1.msra.mxu0 %v1456
        %6705 = vmatprep.subr.mxu0 0.0
        %6706 = vmatpush1.msra.mxu0 %v1454
        %6707 = vmatprep.subr.mxu0 0.0
        %6708 = vmatpush2.msra.mxu0 0.0
        %6709 = vmatprep.subr.mxu0 0.0
        %6710 = vmatpush2.msra.mxu0 0.0
        %6711 = vmatprep.subr.mxu0 0.0
        %6712 = vmatpush2.msra.mxu0 0.0
        %6713 = vmatprep.subr.mxu0 0.0
        %6714 = vmatpush2.msra.mxu0 0.0
        %6715 = vmatprep.subr.mxu0 0.0
        %6716 = vmatpush2.msra.mxu0 0.0
        %6717 = vmatprep.subr.mxu0 0.0
        %6718 = vmatpush2.msra.mxu0 0.0
        %6719 = vmatprep.subr.mxu0 0.0
        %6720 = vmatpush2.msra.mxu0 0.0
        %6721 = vmatprep.subr.mxu0 0.0
        %6722 = vmatpush2.msra.mxu0 0.0
        %6723 = vmatprep.subr.mxu0 0.0
        %6724 = vmatpush2.msra.mxu0 0.0
        %6725 = vmatprep.subr.mxu0 0.0
        %6726 = vmatpush2.msra.mxu0 0.0
        %6727 = vmatprep.subr.mxu0 0.0
        %6728 = vmatpush2.msra.mxu0 0.0
        %6729 = vmatprep.subr.mxu0 0.0
        %6730 = vmatpush2.msra.mxu0 0.0
        %6731 = vmatprep.subr.mxu0 0.0
        %6732 = vmatpush2.msra.mxu0 0.0
        %6733 = vmatprep.subr.mxu0 0.0
        %6734 = vmatpush2.msra.mxu0 0.0
        %6735 = vmatprep.subr.mxu0 0.0
        %6736 = vmatpush2.msra.mxu0 0.0
        %6737 = vmatprep.subr.mxu0 0.0
        %6738 = vmatpush2.msra.mxu0 0.0
        %6739 = vmatprep.mubr.f32.mxu0 0.0
        %6740 = vmatmul.mubr.f32.gmra.mxu0 %v6670
        %v6741 = vpop.f32.mrf.mxu0
        %v6742 = vadd.f32 0.0, %v6741
        %v6743 = vpop.f32.mrf.mxu0
        %6744 = vmatprep.mubr.f32.mxu0 0.0
        %6745 = vmatmul.mubr.f32.gmra.mxu0 %v6673
        %v6746 = vpop.f32.mrf.mxu0
        %v6747 = vadd.f32 0.0, %v6746
        %v6748 = vpop.f32.mrf.mxu0
        %6749 = vdwg.mxu0
        %v6751 = vsel %vm4182, %v4852, 0
        %v6754 = vsel %vm4182, %v4854, 0
        %6756 = vmatprep.subr.mxu0 0.0
        %6757 = vmatpush1.msra.mxu0 0.0
        %6758 = vmatprep.subr.mxu0 0.0
        %6759 = vmatpush1.msra.mxu0 0.0
        %6760 = vmatprep.subr.mxu0 0.0
        %6761 = vmatpush1.msra.mxu0 0.0
        %6762 = vmatprep.subr.mxu0 0.0
        %6763 = vmatpush1.msra.mxu0 0.0
        %6764 = vmatprep.subr.mxu0 0.0
        %6765 = vmatpush1.msra.mxu0 0.0
        %6766 = vmatprep.subr.mxu0 0.0
        %6767 = vmatpush1.msra.mxu0 0.0
        %6768 = vmatprep.subr.mxu0 0.0
        %6769 = vmatpush1.msra.mxu0 0.0
        %6770 = vmatprep.subr.mxu0 0.0
        %6771 = vmatpush1.msra.mxu0 0.0
        %6772 = vmatprep.subr.mxu0 0.0
        %6773 = vmatpush1.msra.mxu0 0.0
        %6774 = vmatprep.subr.mxu0 0.0
        %6775 = vmatpush1.msra.mxu0 0.0
        %6776 = vmatprep.subr.mxu0 0.0
        %6777 = vmatpush1.msra.mxu0 0.0
        %6778 = vmatprep.subr.mxu0 0.0
        %6779 = vmatpush1.msra.mxu0 0.0
        %6780 = vmatprep.subr.mxu0 0.0
        %6781 = vmatpush1.msra.mxu0 0.0
        %6782 = vmatprep.subr.mxu0 0.0
        %6783 = vmatpush1.msra.mxu0 0.0
        %6784 = vmatprep.subr.mxu0 0.0
        %6785 = vmatpush1.msra.mxu0 %v1460
        %6786 = vmatprep.subr.mxu0 0.0
        %6787 = vmatpush1.msra.mxu0 %v1458
        %6788 = vmatprep.subr.mxu0 0.0
        %6789 = vmatpush2.msra.mxu0 0.0
        %6790 = vmatprep.subr.mxu0 0.0
        %6791 = vmatpush2.msra.mxu0 0.0
        %6792 = vmatprep.subr.mxu0 0.0
        %6793 = vmatpush2.msra.mxu0 0.0
        %6794 = vmatprep.subr.mxu0 0.0
        %6795 = vmatpush2.msra.mxu0 0.0
        %6796 = vmatprep.subr.mxu0 0.0
        %6797 = vmatpush2.msra.mxu0 0.0
        %6798 = vmatprep.subr.mxu0 0.0
        %6799 = vmatpush2.msra.mxu0 0.0
        %6800 = vmatprep.subr.mxu0 0.0
        %6801 = vmatpush2.msra.mxu0 0.0
        %6802 = vmatprep.subr.mxu0 0.0
        %6803 = vmatpush2.msra.mxu0 0.0
        %6804 = vmatprep.subr.mxu0 0.0
        %6805 = vmatpush2.msra.mxu0 0.0
        %6806 = vmatprep.subr.mxu0 0.0
        %6807 = vmatpush2.msra.mxu0 0.0
        %6808 = vmatprep.subr.mxu0 0.0
        %6809 = vmatpush2.msra.mxu0 0.0
        %6810 = vmatprep.subr.mxu0 0.0
        %6811 = vmatpush2.msra.mxu0 0.0
        %6812 = vmatprep.subr.mxu0 0.0
        %6813 = vmatpush2.msra.mxu0 0.0
        %6814 = vmatprep.subr.mxu0 0.0
        %6815 = vmatpush2.msra.mxu0 0.0
        %6816 = vmatprep.subr.mxu0 0.0
        %6817 = vmatpush2.msra.mxu0 0.0
        %6818 = vmatprep.subr.mxu0 0.0
        %6819 = vmatpush2.msra.mxu0 0.0
        %6820 = vmatprep.mubr.f32.mxu0 0.0
        %6821 = vmatmul.mubr.f32.gmra.mxu0 %v6751
        %v6822 = vpop.f32.mrf.mxu0
        %v6823 = vadd.f32 0.0, %v6822
        %v6824 = vpop.f32.mrf.mxu0
        %6825 = vmatprep.mubr.f32.mxu0 0.0
        %6826 = vmatmul.mubr.f32.gmra.mxu0 %v6754
        %v6827 = vpop.f32.mrf.mxu0
        %v6828 = vadd.f32 0.0, %v6827
        %v6829 = vpop.f32.mrf.mxu0
        %6830 = vdwg.mxu0
        %v6832 = vsel %vm4182, %v4856, 0
        %v6835 = vsel %vm4182, %v4858, 0
        %6837 = vmatprep.subr.mxu0 0.0
        %6838 = vmatpush1.msra.mxu0 0.0
        %6839 = vmatprep.subr.mxu0 0.0
        %6840 = vmatpush1.msra.mxu0 0.0
        %6841 = vmatprep.subr.mxu0 0.0
        %6842 = vmatpush1.msra.mxu0 0.0
        %6843 = vmatprep.subr.mxu0 0.0
        %6844 = vmatpush1.msra.mxu0 0.0
        %6845 = vmatprep.subr.mxu0 0.0
        %6846 = vmatpush1.msra.mxu0 0.0
        %6847 = vmatprep.subr.mxu0 0.0
        %6848 = vmatpush1.msra.mxu0 0.0
        %6849 = vmatprep.subr.mxu0 0.0
        %6850 = vmatpush1.msra.mxu0 0.0
        %6851 = vmatprep.subr.mxu0 0.0
        %6852 = vmatpush1.msra.mxu0 0.0
        %6853 = vmatprep.subr.mxu0 0.0
        %6854 = vmatpush1.msra.mxu0 0.0
        %6855 = vmatprep.subr.mxu0 0.0
        %6856 = vmatpush1.msra.mxu0 0.0
        %6857 = vmatprep.subr.mxu0 0.0
        %6858 = vmatpush1.msra.mxu0 0.0
        %6859 = vmatprep.subr.mxu0 0.0
        %6860 = vmatpush1.msra.mxu0 0.0
        %6861 = vmatprep.subr.mxu0 0.0
        %6862 = vmatpush1.msra.mxu0 0.0
        %6863 = vmatprep.subr.mxu0 0.0
        %6864 = vmatpush1.msra.mxu0 0.0
        %6865 = vmatprep.subr.mxu0 0.0
        %6866 = vmatpush1.msra.mxu0 %v1480
        %6867 = vmatprep.subr.mxu0 0.0
        %6868 = vmatpush1.msra.mxu0 %v1478
        %6869 = vmatprep.subr.mxu0 0.0
        %6870 = vmatpush2.msra.mxu0 0.0
        %6871 = vmatprep.subr.mxu0 0.0
        %6872 = vmatpush2.msra.mxu0 0.0
        %6873 = vmatprep.subr.mxu0 0.0
        %6874 = vmatpush2.msra.mxu0 0.0
        %6875 = vmatprep.subr.mxu0 0.0
        %6876 = vmatpush2.msra.mxu0 0.0
        %6877 = vmatprep.subr.mxu0 0.0
        %6878 = vmatpush2.msra.mxu0 0.0
        %6879 = vmatprep.subr.mxu0 0.0
        %6880 = vmatpush2.msra.mxu0 0.0
        %6881 = vmatprep.subr.mxu0 0.0
        %6882 = vmatpush2.msra.mxu0 0.0
        %6883 = vmatprep.subr.mxu0 0.0
        %6884 = vmatpush2.msra.mxu0 0.0
        %6885 = vmatprep.subr.mxu0 0.0
        %6886 = vmatpush2.msra.mxu0 0.0
        %6887 = vmatprep.subr.mxu0 0.0
        %6888 = vmatpush2.msra.mxu0 0.0
        %6889 = vmatprep.subr.mxu0 0.0
        %6890 = vmatpush2.msra.mxu0 0.0
        %6891 = vmatprep.subr.mxu0 0.0
        %6892 = vmatpush2.msra.mxu0 0.0
        %6893 = vmatprep.subr.mxu0 0.0
        %6894 = vmatpush2.msra.mxu0 0.0
        %6895 = vmatprep.subr.mxu0 0.0
        %6896 = vmatpush2.msra.mxu0 0.0
        %6897 = vmatprep.subr.mxu0 0.0
        %6898 = vmatpush2.msra.mxu0 0.0
        %6899 = vmatprep.subr.mxu0 0.0
        %6900 = vmatpush2.msra.mxu0 0.0
        %6901 = vmatprep.mubr.f32.mxu0 0.0
        %6902 = vmatmul.mubr.f32.gmra.mxu0 %v6832
        %v6903 = vpop.f32.mrf.mxu0
        %v6904 = vadd.f32 0.0, %v6903
        %v6905 = vpop.f32.mrf.mxu0
        %6906 = vmatprep.mubr.f32.mxu0 0.0
        %6907 = vmatmul.mubr.f32.gmra.mxu0 %v6835
        %v6908 = vpop.f32.mrf.mxu0
        %v6909 = vadd.f32 0.0, %v6908
        %v6910 = vpop.f32.mrf.mxu0
        %6911 = vdwg.mxu0
        %v6913 = vsel %vm4182, %v4860, 0
        %v6916 = vsel %vm4182, %v4862, 0
        %6918 = vmatprep.subr.mxu0 0.0
        %6919 = vmatpush1.msra.mxu0 0.0
        %6920 = vmatprep.subr.mxu0 0.0
        %6921 = vmatpush1.msra.mxu0 0.0
        %6922 = vmatprep.subr.mxu0 0.0
        %6923 = vmatpush1.msra.mxu0 0.0
        %6924 = vmatprep.subr.mxu0 0.0
        %6925 = vmatpush1.msra.mxu0 0.0
        %6926 = vmatprep.subr.mxu0 0.0
        %6927 = vmatpush1.msra.mxu0 0.0
        %6928 = vmatprep.subr.mxu0 0.0
        %6929 = vmatpush1.msra.mxu0 0.0
        %6930 = vmatprep.subr.mxu0 0.0
        %6931 = vmatpush1.msra.mxu0 0.0
        %6932 = vmatprep.subr.mxu0 0.0
        %6933 = vmatpush1.msra.mxu0 0.0
        %6934 = vmatprep.subr.mxu0 0.0
        %6935 = vmatpush1.msra.mxu0 0.0
        %6936 = vmatprep.subr.mxu0 0.0
        %6937 = vmatpush1.msra.mxu0 0.0
        %6938 = vmatprep.subr.mxu0 0.0
        %6939 = vmatpush1.msra.mxu0 0.0
        %6940 = vmatprep.subr.mxu0 0.0
        %6941 = vmatpush1.msra.mxu0 0.0
        %6942 = vmatprep.subr.mxu0 0.0
        %6943 = vmatpush1.msra.mxu0 0.0
        %6944 = vmatprep.subr.mxu0 0.0
        %6945 = vmatpush1.msra.mxu0 0.0
        %6946 = vmatprep.subr.mxu0 0.0
        %6947 = vmatpush1.msra.mxu0 %v1484
        %6948 = vmatprep.subr.mxu0 0.0
        %6949 = vmatpush1.msra.mxu0 %v1482
        %6950 = vmatprep.subr.mxu0 0.0
        %6951 = vmatpush2.msra.mxu0 0.0
        %6952 = vmatprep.subr.mxu0 0.0
        %6953 = vmatpush2.msra.mxu0 0.0
        %6954 = vmatprep.subr.mxu0 0.0
        %6955 = vmatpush2.msra.mxu0 0.0
        %6956 = vmatprep.subr.mxu0 0.0
        %6957 = vmatpush2.msra.mxu0 0.0
        %6958 = vmatprep.subr.mxu0 0.0
        %6959 = vmatpush2.msra.mxu0 0.0
        %6960 = vmatprep.subr.mxu0 0.0
        %6961 = vmatpush2.msra.mxu0 0.0
        %6962 = vmatprep.subr.mxu0 0.0
        %6963 = vmatpush2.msra.mxu0 0.0
        %6964 = vmatprep.subr.mxu0 0.0
        %6965 = vmatpush2.msra.mxu0 0.0
        %6966 = vmatprep.subr.mxu0 0.0
        %6967 = vmatpush2.msra.mxu0 0.0
        %6968 = vmatprep.subr.mxu0 0.0
        %6969 = vmatpush2.msra.mxu0 0.0
        %6970 = vmatprep.subr.mxu0 0.0
        %6971 = vmatpush2.msra.mxu0 0.0
        %6972 = vmatprep.subr.mxu0 0.0
        %6973 = vmatpush2.msra.mxu0 0.0
        %6974 = vmatprep.subr.mxu0 0.0
        %6975 = vmatpush2.msra.mxu0 0.0
        %6976 = vmatprep.subr.mxu0 0.0
        %6977 = vmatpush2.msra.mxu0 0.0
        %6978 = vmatprep.subr.mxu0 0.0
        %6979 = vmatpush2.msra.mxu0 0.0
        %6980 = vmatprep.subr.mxu0 0.0
        %6981 = vmatpush2.msra.mxu0 0.0
        %6982 = vmatprep.mubr.f32.mxu0 0.0
        %6983 = vmatmul.mubr.f32.gmra.mxu0 %v6913
        %v6984 = vpop.f32.mrf.mxu0
        %v6985 = vadd.f32 0.0, %v6984
        %v6986 = vpop.f32.mrf.mxu0
        %6987 = vmatprep.mubr.f32.mxu0 0.0
        %6988 = vmatmul.mubr.f32.gmra.mxu0 %v6916
        %v6989 = vpop.f32.mrf.mxu0
        %v6990 = vadd.f32 0.0, %v6989
        %v6991 = vpop.f32.mrf.mxu0
        %6992 = vdwg.mxu0
        %v6994 = vsel %vm4182, %v4864, 0
        %v6997 = vsel %vm4182, %v4866, 0
        %6999 = vmatprep.subr.mxu0 0.0
        %7000 = vmatpush1.msra.mxu0 0.0
        %7001 = vmatprep.subr.mxu0 0.0
        %7002 = vmatpush1.msra.mxu0 0.0
        %7003 = vmatprep.subr.mxu0 0.0
        %7004 = vmatpush1.msra.mxu0 0.0
        %7005 = vmatprep.subr.mxu0 0.0
        %7006 = vmatpush1.msra.mxu0 0.0
        %7007 = vmatprep.subr.mxu0 0.0
        %7008 = vmatpush1.msra.mxu0 0.0
        %7009 = vmatprep.subr.mxu0 0.0
        %7010 = vmatpush1.msra.mxu0 0.0
        %7011 = vmatprep.subr.mxu0 0.0
        %7012 = vmatpush1.msra.mxu0 0.0
        %7013 = vmatprep.subr.mxu0 0.0
        %7014 = vmatpush1.msra.mxu0 0.0
        %7015 = vmatprep.subr.mxu0 0.0
        %7016 = vmatpush1.msra.mxu0 0.0
        %7017 = vmatprep.subr.mxu0 0.0
        %7018 = vmatpush1.msra.mxu0 0.0
        %7019 = vmatprep.subr.mxu0 0.0
        %7020 = vmatpush1.msra.mxu0 0.0
        %7021 = vmatprep.subr.mxu0 0.0
        %7022 = vmatpush1.msra.mxu0 0.0
        %7023 = vmatprep.subr.mxu0 0.0
        %7024 = vmatpush1.msra.mxu0 0.0
        %7025 = vmatprep.subr.mxu0 0.0
        %7026 = vmatpush1.msra.mxu0 0.0
        %7027 = vmatprep.subr.mxu0 0.0
        %7028 = vmatpush1.msra.mxu0 %v1488
        %7029 = vmatprep.subr.mxu0 0.0
        %7030 = vmatpush1.msra.mxu0 %v1486
        %7031 = vmatprep.subr.mxu0 0.0
        %7032 = vmatpush2.msra.mxu0 0.0
        %7033 = vmatprep.subr.mxu0 0.0
        %7034 = vmatpush2.msra.mxu0 0.0
        %7035 = vmatprep.subr.mxu0 0.0
        %7036 = vmatpush2.msra.mxu0 0.0
        %7037 = vmatprep.subr.mxu0 0.0
        %7038 = vmatpush2.msra.mxu0 0.0
        %7039 = vmatprep.subr.mxu0 0.0
        %7040 = vmatpush2.msra.mxu0 0.0
        %7041 = vmatprep.subr.mxu0 0.0
        %7042 = vmatpush2.msra.mxu0 0.0
        %7043 = vmatprep.subr.mxu0 0.0
        %7044 = vmatpush2.msra.mxu0 0.0
        %7045 = vmatprep.subr.mxu0 0.0
        %7046 = vmatpush2.msra.mxu0 0.0
        %7047 = vmatprep.subr.mxu0 0.0
        %7048 = vmatpush2.msra.mxu0 0.0
        %7049 = vmatprep.subr.mxu0 0.0
        %7050 = vmatpush2.msra.mxu0 0.0
        %7051 = vmatprep.subr.mxu0 0.0
        %7052 = vmatpush2.msra.mxu0 0.0
        %7053 = vmatprep.subr.mxu0 0.0
        %7054 = vmatpush2.msra.mxu0 0.0
        %7055 = vmatprep.subr.mxu0 0.0
        %7056 = vmatpush2.msra.mxu0 0.0
        %7057 = vmatprep.subr.mxu0 0.0
        %7058 = vmatpush2.msra.mxu0 0.0
        %7059 = vmatprep.subr.mxu0 0.0
        %7060 = vmatpush2.msra.mxu0 0.0
        %7061 = vmatprep.subr.mxu0 0.0
        %7062 = vmatpush2.msra.mxu0 0.0
        %7063 = vmatprep.mubr.f32.mxu0 0.0
        %7064 = vmatmul.mubr.f32.gmra.mxu0 %v6994
        %v7065 = vpop.f32.mrf.mxu0
        %v7066 = vadd.f32 0.0, %v7065
        %v7067 = vpop.f32.mrf.mxu0
        %7068 = vmatprep.mubr.f32.mxu0 0.0
        %7069 = vmatmul.mubr.f32.gmra.mxu0 %v6997
        %v7070 = vpop.f32.mrf.mxu0
        %v7071 = vadd.f32 0.0, %v7070
        %v7072 = vpop.f32.mrf.mxu0
        %7073 = vdwg.mxu0
        %v7075 = vsel %vm4182, %v4868, 0
        %v7078 = vsel %vm4182, %v4870, 0
        %7080 = vmatprep.subr.mxu0 0.0
        %7081 = vmatpush1.msra.mxu0 0.0
        %7082 = vmatprep.subr.mxu0 0.0
        %7083 = vmatpush1.msra.mxu0 0.0
        %7084 = vmatprep.subr.mxu0 0.0
        %7085 = vmatpush1.msra.mxu0 0.0
        %7086 = vmatprep.subr.mxu0 0.0
        %7087 = vmatpush1.msra.mxu0 0.0
        %7088 = vmatprep.subr.mxu0 0.0
        %7089 = vmatpush1.msra.mxu0 0.0
        %7090 = vmatprep.subr.mxu0 0.0
        %7091 = vmatpush1.msra.mxu0 0.0
        %7092 = vmatprep.subr.mxu0 0.0
        %7093 = vmatpush1.msra.mxu0 0.0
        %7094 = vmatprep.subr.mxu0 0.0
        %7095 = vmatpush1.msra.mxu0 0.0
        %7096 = vmatprep.subr.mxu0 0.0
        %7097 = vmatpush1.msra.mxu0 0.0
        %7098 = vmatprep.subr.mxu0 0.0
        %7099 = vmatpush1.msra.mxu0 0.0
        %7100 = vmatprep.subr.mxu0 0.0
        %7101 = vmatpush1.msra.mxu0 0.0
        %7102 = vmatprep.subr.mxu0 0.0
        %7103 = vmatpush1.msra.mxu0 0.0
        %7104 = vmatprep.subr.mxu0 0.0
        %7105 = vmatpush1.msra.mxu0 0.0
        %7106 = vmatprep.subr.mxu0 0.0
        %7107 = vmatpush1.msra.mxu0 0.0
        %7108 = vmatprep.subr.mxu0 0.0
        %7109 = vmatpush1.msra.mxu0 %v1492
        %7110 = vmatprep.subr.mxu0 0.0
        %7111 = vmatpush1.msra.mxu0 %v1490
        %7112 = vmatprep.subr.mxu0 0.0
        %7113 = vmatpush2.msra.mxu0 0.0
        %7114 = vmatprep.subr.mxu0 0.0
        %7115 = vmatpush2.msra.mxu0 0.0
        %7116 = vmatprep.subr.mxu0 0.0
        %7117 = vmatpush2.msra.mxu0 0.0
        %7118 = vmatprep.subr.mxu0 0.0
        %7119 = vmatpush2.msra.mxu0 0.0
        %7120 = vmatprep.subr.mxu0 0.0
        %7121 = vmatpush2.msra.mxu0 0.0
        %7122 = vmatprep.subr.mxu0 0.0
        %7123 = vmatpush2.msra.mxu0 0.0
        %7124 = vmatprep.subr.mxu0 0.0
        %7125 = vmatpush2.msra.mxu0 0.0
        %7126 = vmatprep.subr.mxu0 0.0
        %7127 = vmatpush2.msra.mxu0 0.0
        %7128 = vmatprep.subr.mxu0 0.0
        %7129 = vmatpush2.msra.mxu0 0.0
        %7130 = vmatprep.subr.mxu0 0.0
        %7131 = vmatpush2.msra.mxu0 0.0
        %7132 = vmatprep.subr.mxu0 0.0
        %7133 = vmatpush2.msra.mxu0 0.0
        %7134 = vmatprep.subr.mxu0 0.0
        %7135 = vmatpush2.msra.mxu0 0.0
        %7136 = vmatprep.subr.mxu0 0.0
        %7137 = vmatpush2.msra.mxu0 0.0
        %7138 = vmatprep.subr.mxu0 0.0
        %7139 = vmatpush2.msra.mxu0 0.0
        %7140 = vmatprep.subr.mxu0 0.0
        %7141 = vmatpush2.msra.mxu0 0.0
        %7142 = vmatprep.subr.mxu0 0.0
        %7143 = vmatpush2.msra.mxu0 0.0
        %7144 = vmatprep.mubr.f32.mxu0 0.0
        %7145 = vmatmul.mubr.f32.gmra.mxu0 %v7075
        %v7146 = vpop.f32.mrf.mxu0
        %v7147 = vadd.f32 0.0, %v7146
        %v7148 = vpop.f32.mrf.mxu0
        %7149 = vmatprep.mubr.f32.mxu0 0.0
        %7150 = vmatmul.mubr.f32.gmra.mxu0 %v7078
        %v7151 = vpop.f32.mrf.mxu0
        %v7152 = vadd.f32 0.0, %v7151
        %v7153 = vpop.f32.mrf.mxu0
        %7154 = vdwg.mxu0
        %v7156 = vsel %vm4182, %v4872, 0
        %v7159 = vsel %vm4182, %v4874, 0
        %7161 = vmatprep.subr.mxu0 0.0
        %7162 = vmatpush1.msra.mxu0 0.0
        %7163 = vmatprep.subr.mxu0 0.0
        %7164 = vmatpush1.msra.mxu0 0.0
        %7165 = vmatprep.subr.mxu0 0.0
        %7166 = vmatpush1.msra.mxu0 0.0
        %7167 = vmatprep.subr.mxu0 0.0
        %7168 = vmatpush1.msra.mxu0 0.0
        %7169 = vmatprep.subr.mxu0 0.0
        %7170 = vmatpush1.msra.mxu0 0.0
        %7171 = vmatprep.subr.mxu0 0.0
        %7172 = vmatpush1.msra.mxu0 0.0
        %7173 = vmatprep.subr.mxu0 0.0
        %7174 = vmatpush1.msra.mxu0 0.0
        %7175 = vmatprep.subr.mxu0 0.0
        %7176 = vmatpush1.msra.mxu0 0.0
        %7177 = vmatprep.subr.mxu0 0.0
        %7178 = vmatpush1.msra.mxu0 0.0
        %7179 = vmatprep.subr.mxu0 0.0
        %7180 = vmatpush1.msra.mxu0 0.0
        %7181 = vmatprep.subr.mxu0 0.0
        %7182 = vmatpush1.msra.mxu0 0.0
        %7183 = vmatprep.subr.mxu0 0.0
        %7184 = vmatpush1.msra.mxu0 0.0
        %7185 = vmatprep.subr.mxu0 0.0
        %7186 = vmatpush1.msra.mxu0 0.0
        %7187 = vmatprep.subr.mxu0 0.0
        %7188 = vmatpush1.msra.mxu0 0.0
        %7189 = vmatprep.subr.mxu0 0.0
        %7190 = vmatpush1.msra.mxu0 %v1496
        %7191 = vmatprep.subr.mxu0 0.0
        %7192 = vmatpush1.msra.mxu0 %v1494
        %7193 = vmatprep.subr.mxu0 0.0
        %7194 = vmatpush2.msra.mxu0 0.0
        %7195 = vmatprep.subr.mxu0 0.0
        %7196 = vmatpush2.msra.mxu0 0.0
        %7197 = vmatprep.subr.mxu0 0.0
        %7198 = vmatpush2.msra.mxu0 0.0
        %7199 = vmatprep.subr.mxu0 0.0
        %7200 = vmatpush2.msra.mxu0 0.0
        %7201 = vmatprep.subr.mxu0 0.0
        %7202 = vmatpush2.msra.mxu0 0.0
        %7203 = vmatprep.subr.mxu0 0.0
        %7204 = vmatpush2.msra.mxu0 0.0
        %7205 = vmatprep.subr.mxu0 0.0
        %7206 = vmatpush2.msra.mxu0 0.0
        %7207 = vmatprep.subr.mxu0 0.0
        %7208 = vmatpush2.msra.mxu0 0.0
        %7209 = vmatprep.subr.mxu0 0.0
        %7210 = vmatpush2.msra.mxu0 0.0
        %7211 = vmatprep.subr.mxu0 0.0
        %7212 = vmatpush2.msra.mxu0 0.0
        %7213 = vmatprep.subr.mxu0 0.0
        %7214 = vmatpush2.msra.mxu0 0.0
        %7215 = vmatprep.subr.mxu0 0.0
        %7216 = vmatpush2.msra.mxu0 0.0
        %7217 = vmatprep.subr.mxu0 0.0
        %7218 = vmatpush2.msra.mxu0 0.0
        %7219 = vmatprep.subr.mxu0 0.0
        %7220 = vmatpush2.msra.mxu0 0.0
        %7221 = vmatprep.subr.mxu0 0.0
        %7222 = vmatpush2.msra.mxu0 0.0
        %7223 = vmatprep.subr.mxu0 0.0
        %7224 = vmatpush2.msra.mxu0 0.0
        %7225 = vmatprep.mubr.f32.mxu0 0.0
        %7226 = vmatmul.mubr.f32.gmra.mxu0 %v7156
        %v7227 = vpop.f32.mrf.mxu0
        %v7228 = vadd.f32 0.0, %v7227
        %v7229 = vpop.f32.mrf.mxu0
        %7230 = vmatprep.mubr.f32.mxu0 0.0
        %7231 = vmatmul.mubr.f32.gmra.mxu0 %v7159
        %v7232 = vpop.f32.mrf.mxu0
        %v7233 = vadd.f32 0.0, %v7232
        %v7234 = vpop.f32.mrf.mxu0
        %7235 = vdwg.mxu0
        %v7237 = vsel %vm4182, %v4876, 0
        %v7240 = vsel %vm4182, %v4878, 0
        %7242 = vmatprep.subr.mxu0 0.0
        %7243 = vmatpush1.msra.mxu0 0.0
        %7244 = vmatprep.subr.mxu0 0.0
        %7245 = vmatpush1.msra.mxu0 0.0
        %7246 = vmatprep.subr.mxu0 0.0
        %7247 = vmatpush1.msra.mxu0 0.0
        %7248 = vmatprep.subr.mxu0 0.0
        %7249 = vmatpush1.msra.mxu0 0.0
        %7250 = vmatprep.subr.mxu0 0.0
        %7251 = vmatpush1.msra.mxu0 0.0
        %7252 = vmatprep.subr.mxu0 0.0
        %7253 = vmatpush1.msra.mxu0 0.0
        %7254 = vmatprep.subr.mxu0 0.0
        %7255 = vmatpush1.msra.mxu0 0.0
        %7256 = vmatprep.subr.mxu0 0.0
        %7257 = vmatpush1.msra.mxu0 0.0
        %7258 = vmatprep.subr.mxu0 0.0
        %7259 = vmatpush1.msra.mxu0 0.0
        %7260 = vmatprep.subr.mxu0 0.0
        %7261 = vmatpush1.msra.mxu0 0.0
        %7262 = vmatprep.subr.mxu0 0.0
        %7263 = vmatpush1.msra.mxu0 0.0
        %7264 = vmatprep.subr.mxu0 0.0
        %7265 = vmatpush1.msra.mxu0 0.0
        %7266 = vmatprep.subr.mxu0 0.0
        %7267 = vmatpush1.msra.mxu0 0.0
        %7268 = vmatprep.subr.mxu0 0.0
        %7269 = vmatpush1.msra.mxu0 0.0
        %7270 = vmatprep.subr.mxu0 0.0
        %7271 = vmatpush1.msra.mxu0 %v1500
        %7272 = vmatprep.subr.mxu0 0.0
        %7273 = vmatpush1.msra.mxu0 %v1498
        %7274 = vmatprep.subr.mxu0 0.0
        %7275 = vmatpush2.msra.mxu0 0.0
        %7276 = vmatprep.subr.mxu0 0.0
        %7277 = vmatpush2.msra.mxu0 0.0
        %7278 = vmatprep.subr.mxu0 0.0
        %7279 = vmatpush2.msra.mxu0 0.0
        %7280 = vmatprep.subr.mxu0 0.0
        %7281 = vmatpush2.msra.mxu0 0.0
        %7282 = vmatprep.subr.mxu0 0.0
        %7283 = vmatpush2.msra.mxu0 0.0
        %7284 = vmatprep.subr.mxu0 0.0
        %7285 = vmatpush2.msra.mxu0 0.0
        %7286 = vmatprep.subr.mxu0 0.0
        %7287 = vmatpush2.msra.mxu0 0.0
        %7288 = vmatprep.subr.mxu0 0.0
        %7289 = vmatpush2.msra.mxu0 0.0
        %7290 = vmatprep.subr.mxu0 0.0
        %7291 = vmatpush2.msra.mxu0 0.0
        %7292 = vmatprep.subr.mxu0 0.0
        %7293 = vmatpush2.msra.mxu0 0.0
        %7294 = vmatprep.subr.mxu0 0.0
        %7295 = vmatpush2.msra.mxu0 0.0
        %7296 = vmatprep.subr.mxu0 0.0
        %7297 = vmatpush2.msra.mxu0 0.0
        %7298 = vmatprep.subr.mxu0 0.0
        %7299 = vmatpush2.msra.mxu0 0.0
        %7300 = vmatprep.subr.mxu0 0.0
        %7301 = vmatpush2.msra.mxu0 0.0
        %7302 = vmatprep.subr.mxu0 0.0
        %7303 = vmatpush2.msra.mxu0 0.0
        %7304 = vmatprep.subr.mxu0 0.0
        %7305 = vmatpush2.msra.mxu0 0.0
        %7306 = vmatprep.mubr.f32.mxu0 0.0
        %7307 = vmatmul.mubr.f32.gmra.mxu0 %v7237
        %v7308 = vpop.f32.mrf.mxu0
        %v7309 = vadd.f32 0.0, %v7308
        %v7310 = vpop.f32.mrf.mxu0
        %7311 = vmatprep.mubr.f32.mxu0 0.0
        %7312 = vmatmul.mubr.f32.gmra.mxu0 %v7240
        %v7313 = vpop.f32.mrf.mxu0
        %v7314 = vadd.f32 0.0, %v7313
        %v7315 = vpop.f32.mrf.mxu0
        %7316 = vdwg.mxu0
        %v7318 = vsel %vm4182, %v4880, 0
        %v7321 = vsel %vm4182, %v4882, 0
        %7323 = vmatprep.subr.mxu0 0.0
        %7324 = vmatpush1.msra.mxu0 0.0
        %7325 = vmatprep.subr.mxu0 0.0
        %7326 = vmatpush1.msra.mxu0 0.0
        %7327 = vmatprep.subr.mxu0 0.0
        %7328 = vmatpush1.msra.mxu0 0.0
        %7329 = vmatprep.subr.mxu0 0.0
        %7330 = vmatpush1.msra.mxu0 0.0
        %7331 = vmatprep.subr.mxu0 0.0
        %7332 = vmatpush1.msra.mxu0 0.0
        %7333 = vmatprep.subr.mxu0 0.0
        %7334 = vmatpush1.msra.mxu0 0.0
        %7335 = vmatprep.subr.mxu0 0.0
        %7336 = vmatpush1.msra.mxu0 0.0
        %7337 = vmatprep.subr.mxu0 0.0
        %7338 = vmatpush1.msra.mxu0 0.0
        %7339 = vmatprep.subr.mxu0 0.0
        %7340 = vmatpush1.msra.mxu0 0.0
        %7341 = vmatprep.subr.mxu0 0.0
        %7342 = vmatpush1.msra.mxu0 0.0
        %7343 = vmatprep.subr.mxu0 0.0
        %7344 = vmatpush1.msra.mxu0 0.0
        %7345 = vmatprep.subr.mxu0 0.0
        %7346 = vmatpush1.msra.mxu0 0.0
        %7347 = vmatprep.subr.mxu0 0.0
        %7348 = vmatpush1.msra.mxu0 0.0
        %7349 = vmatprep.subr.mxu0 0.0
        %7350 = vmatpush1.msra.mxu0 0.0
        %7351 = vmatprep.subr.mxu0 0.0
        %7352 = vmatpush1.msra.mxu0 %v1504
        %7353 = vmatprep.subr.mxu0 0.0
        %7354 = vmatpush1.msra.mxu0 %v1502
        %7355 = vmatprep.subr.mxu0 0.0
        %7356 = vmatpush2.msra.mxu0 0.0
        %7357 = vmatprep.subr.mxu0 0.0
        %7358 = vmatpush2.msra.mxu0 0.0
        %7359 = vmatprep.subr.mxu0 0.0
        %7360 = vmatpush2.msra.mxu0 0.0
        %7361 = vmatprep.subr.mxu0 0.0
        %7362 = vmatpush2.msra.mxu0 0.0
        %7363 = vmatprep.subr.mxu0 0.0
        %7364 = vmatpush2.msra.mxu0 0.0
        %7365 = vmatprep.subr.mxu0 0.0
        %7366 = vmatpush2.msra.mxu0 0.0
        %7367 = vmatprep.subr.mxu0 0.0
        %7368 = vmatpush2.msra.mxu0 0.0
        %7369 = vmatprep.subr.mxu0 0.0
        %7370 = vmatpush2.msra.mxu0 0.0
        %7371 = vmatprep.subr.mxu0 0.0
        %7372 = vmatpush2.msra.mxu0 0.0
        %7373 = vmatprep.subr.mxu0 0.0
        %7374 = vmatpush2.msra.mxu0 0.0
        %7375 = vmatprep.subr.mxu0 0.0
        %7376 = vmatpush2.msra.mxu0 0.0
        %7377 = vmatprep.subr.mxu0 0.0
        %7378 = vmatpush2.msra.mxu0 0.0
        %7379 = vmatprep.subr.mxu0 0.0
        %7380 = vmatpush2.msra.mxu0 0.0
        %7381 = vmatprep.subr.mxu0 0.0
        %7382 = vmatpush2.msra.mxu0 0.0
        %7383 = vmatprep.subr.mxu0 0.0
        %7384 = vmatpush2.msra.mxu0 0.0
        %7385 = vmatprep.subr.mxu0 0.0
        %7386 = vmatpush2.msra.mxu0 0.0
        %7387 = vmatprep.mubr.f32.mxu0 0.0
        %7388 = vmatmul.mubr.f32.gmra.mxu0 %v7318
        %v7389 = vpop.f32.mrf.mxu0
        %v7390 = vadd.f32 0.0, %v7389
        %v7391 = vpop.f32.mrf.mxu0
        %7392 = vmatprep.mubr.f32.mxu0 0.0
        %7393 = vmatmul.mubr.f32.gmra.mxu0 %v7321
        %v7394 = vpop.f32.mrf.mxu0
        %v7395 = vadd.f32 0.0, %v7394
        %v7396 = vpop.f32.mrf.mxu0
        %7397 = vdwg.mxu0
        %v7399 = vsel %vm4182, %v4884, 0
        %v7402 = vsel %vm4182, %v4886, 0
        %7404 = vmatprep.subr.mxu0 0.0
        %7405 = vmatpush1.msra.mxu0 0.0
        %7406 = vmatprep.subr.mxu0 0.0
        %7407 = vmatpush1.msra.mxu0 0.0
        %7408 = vmatprep.subr.mxu0 0.0
        %7409 = vmatpush1.msra.mxu0 0.0
        %7410 = vmatprep.subr.mxu0 0.0
        %7411 = vmatpush1.msra.mxu0 0.0
        %7412 = vmatprep.subr.mxu0 0.0
        %7413 = vmatpush1.msra.mxu0 0.0
        %7414 = vmatprep.subr.mxu0 0.0
        %7415 = vmatpush1.msra.mxu0 0.0
        %7416 = vmatprep.subr.mxu0 0.0
        %7417 = vmatpush1.msra.mxu0 0.0
        %7418 = vmatprep.subr.mxu0 0.0
        %7419 = vmatpush1.msra.mxu0 0.0
        %7420 = vmatprep.subr.mxu0 0.0
        %7421 = vmatpush1.msra.mxu0 0.0
        %7422 = vmatprep.subr.mxu0 0.0
        %7423 = vmatpush1.msra.mxu0 0.0
        %7424 = vmatprep.subr.mxu0 0.0
        %7425 = vmatpush1.msra.mxu0 0.0
        %7426 = vmatprep.subr.mxu0 0.0
        %7427 = vmatpush1.msra.mxu0 0.0
        %7428 = vmatprep.subr.mxu0 0.0
        %7429 = vmatpush1.msra.mxu0 0.0
        %7430 = vmatprep.subr.mxu0 0.0
        %7431 = vmatpush1.msra.mxu0 0.0
        %7432 = vmatprep.subr.mxu0 0.0
        %7433 = vmatpush1.msra.mxu0 %v1508
        %7434 = vmatprep.subr.mxu0 0.0
        %7435 = vmatpush1.msra.mxu0 %v1506
        %7436 = vmatprep.subr.mxu0 0.0
        %7437 = vmatpush2.msra.mxu0 0.0
        %7438 = vmatprep.subr.mxu0 0.0
        %7439 = vmatpush2.msra.mxu0 0.0
        %7440 = vmatprep.subr.mxu0 0.0
        %7441 = vmatpush2.msra.mxu0 0.0
        %7442 = vmatprep.subr.mxu0 0.0
        %7443 = vmatpush2.msra.mxu0 0.0
        %7444 = vmatprep.subr.mxu0 0.0
        %7445 = vmatpush2.msra.mxu0 0.0
        %7446 = vmatprep.subr.mxu0 0.0
        %7447 = vmatpush2.msra.mxu0 0.0
        %7448 = vmatprep.subr.mxu0 0.0
        %7449 = vmatpush2.msra.mxu0 0.0
        %7450 = vmatprep.subr.mxu0 0.0
        %7451 = vmatpush2.msra.mxu0 0.0
        %7452 = vmatprep.subr.mxu0 0.0
        %7453 = vmatpush2.msra.mxu0 0.0
        %7454 = vmatprep.subr.mxu0 0.0
        %7455 = vmatpush2.msra.mxu0 0.0
        %7456 = vmatprep.subr.mxu0 0.0
        %7457 = vmatpush2.msra.mxu0 0.0
        %7458 = vmatprep.subr.mxu0 0.0
        %7459 = vmatpush2.msra.mxu0 0.0
        %7460 = vmatprep.subr.mxu0 0.0
        %7461 = vmatpush2.msra.mxu0 0.0
        %7462 = vmatprep.subr.mxu0 0.0
        %7463 = vmatpush2.msra.mxu0 0.0
        %7464 = vmatprep.subr.mxu0 0.0
        %7465 = vmatpush2.msra.mxu0 0.0
        %7466 = vmatprep.subr.mxu0 0.0
        %7467 = vmatpush2.msra.mxu0 0.0
        %7468 = vmatprep.mubr.f32.mxu0 0.0
        %7469 = vmatmul.mubr.f32.gmra.mxu0 %v7399
        %v7470 = vpop.f32.mrf.mxu0
        %v7471 = vadd.f32 0.0, %v7470
        %v7472 = vpop.f32.mrf.mxu0
        %7473 = vmatprep.mubr.f32.mxu0 0.0
        %7474 = vmatmul.mubr.f32.gmra.mxu0 %v7402
        %v7475 = vpop.f32.mrf.mxu0
        %v7476 = vadd.f32 0.0, %v7475
        %v7477 = vpop.f32.mrf.mxu0
        %7478 = vdwg.mxu0
        %7495 = vrot.lane.b32.xlu0 %v5608, 32
        %v7496 = vpop.permute.xlu0 %7495
        %7497 = vrot.lane.b32.xlu0 %v5613, 32
        %v7498 = vpop.permute.xlu0 %7497
        %7499 = vrot.lane.b32.xlu0 %v5689, 32
        %v7500 = vpop.permute.xlu0 %7499
        %7501 = vrot.lane.b32.xlu0 %v5694, 32
        %v7502 = vpop.permute.xlu0 %7501
        %7503 = vrot.lane.b32.xlu0 %v5770, 32
        %v7504 = vpop.permute.xlu0 %7503
        %7505 = vrot.lane.b32.xlu0 %v5775, 32
        %v7506 = vpop.permute.xlu0 %7505
        %7507 = vrot.lane.b32.xlu0 %v5851, 32
        %v7508 = vpop.permute.xlu0 %7507
        %7509 = vrot.lane.b32.xlu0 %v5856, 32
        %v7510 = vpop.permute.xlu0 %7509
        %7511 = vrot.lane.b32.xlu0 %v5932, 32
        %v7512 = vpop.permute.xlu0 %7511
        %7513 = vrot.lane.b32.xlu0 %v5937, 32
        %v7514 = vpop.permute.xlu0 %7513
        %7515 = vrot.lane.b32.xlu0 %v6013, 32
        %v7516 = vpop.permute.xlu0 %7515
        %7517 = vrot.lane.b32.xlu0 %v6018, 32
        %v7518 = vpop.permute.xlu0 %7517
        %7519 = vrot.lane.b32.xlu0 %v6094, 32
        %v7520 = vpop.permute.xlu0 %7519
        %7521 = vrot.lane.b32.xlu0 %v6099, 32
        %v7522 = vpop.permute.xlu0 %7521
        %7523 = vrot.lane.b32.xlu0 %v6175, 32
        %v7524 = vpop.permute.xlu0 %7523
        %7525 = vrot.lane.b32.xlu0 %v6180, 32
        %v7526 = vpop.permute.xlu0 %7525
        %7559 = vrot.lane.b32.xlu0 %v6256, 64
        %v7560 = vpop.permute.xlu0 %7559
        %7561 = vrot.lane.b32.xlu0 %v6261, 64
        %v7562 = vpop.permute.xlu0 %7561
        %7563 = vrot.lane.b32.xlu0 %v6337, 64
        %v7564 = vpop.permute.xlu0 %7563
        %7565 = vrot.lane.b32.xlu0 %v6342, 64
        %v7566 = vpop.permute.xlu0 %7565
        %7567 = vrot.lane.b32.xlu0 %v6418, 64
        %v7568 = vpop.permute.xlu0 %7567
        %7569 = vrot.lane.b32.xlu0 %v6423, 64
        %v7570 = vpop.permute.xlu0 %7569
        %7571 = vrot.lane.b32.xlu0 %v6499, 64
        %v7572 = vpop.permute.xlu0 %7571
        %7573 = vrot.lane.b32.xlu0 %v6504, 64
        %v7574 = vpop.permute.xlu0 %7573
        %7575 = vrot.lane.b32.xlu0 %v6580, 64
        %v7576 = vpop.permute.xlu0 %7575
        %7577 = vrot.lane.b32.xlu0 %v6585, 64
        %v7578 = vpop.permute.xlu0 %7577
        %7579 = vrot.lane.b32.xlu0 %v6661, 64
        %v7580 = vpop.permute.xlu0 %7579
        %7581 = vrot.lane.b32.xlu0 %v6666, 64
        %v7582 = vpop.permute.xlu0 %7581
        %7583 = vrot.lane.b32.xlu0 %v6742, 64
        %v7584 = vpop.permute.xlu0 %7583
        %7585 = vrot.lane.b32.xlu0 %v6747, 64
        %v7586 = vpop.permute.xlu0 %7585
        %7587 = vrot.lane.b32.xlu0 %v6823, 64
        %v7588 = vpop.permute.xlu0 %7587
        %7589 = vrot.lane.b32.xlu0 %v6828, 64
        %v7590 = vpop.permute.xlu0 %7589
        %7623 = vrot.lane.b32.xlu0 %v6904, 96
        %v7624 = vpop.permute.xlu0 %7623
        %7625 = vrot.lane.b32.xlu0 %v6909, 96
        %v7626 = vpop.permute.xlu0 %7625
        %7627 = vrot.lane.b32.xlu0 %v6985, 96
        %v7628 = vpop.permute.xlu0 %7627
        %7629 = vrot.lane.b32.xlu0 %v6990, 96
        %v7630 = vpop.permute.xlu0 %7629
        %7631 = vrot.lane.b32.xlu0 %v7066, 96
        %v7632 = vpop.permute.xlu0 %7631
        %7633 = vrot.lane.b32.xlu0 %v7071, 96
        %v7634 = vpop.permute.xlu0 %7633
        %7635 = vrot.lane.b32.xlu0 %v7147, 96
        %v7636 = vpop.permute.xlu0 %7635
        %7637 = vrot.lane.b32.xlu0 %v7152, 96
        %v7638 = vpop.permute.xlu0 %7637
        %7639 = vrot.lane.b32.xlu0 %v7228, 96
        %v7640 = vpop.permute.xlu0 %7639
        %7641 = vrot.lane.b32.xlu0 %v7233, 96
        %v7642 = vpop.permute.xlu0 %7641
        %7643 = vrot.lane.b32.xlu0 %v7309, 96
        %v7644 = vpop.permute.xlu0 %7643
        %7645 = vrot.lane.b32.xlu0 %v7314, 96
        %v7646 = vpop.permute.xlu0 %7645
        %7647 = vrot.lane.b32.xlu0 %v7390, 96
        %v7648 = vpop.permute.xlu0 %7647
        %7649 = vrot.lane.b32.xlu0 %v7395, 96
        %v7650 = vpop.permute.xlu0 %7649
        %7651 = vrot.lane.b32.xlu0 %v7471, 96
        %v7652 = vpop.permute.xlu0 %7651
        %7653 = vrot.lane.b32.xlu0 %v7476, 96
        %v7654 = vpop.permute.xlu0 %7653
        %v7671 = vsel %vm1525, %v4960, %v7496
        %v7672 = vsel %vm1525, %v4965, %v7498
        %v7673 = vsel %vm1525, %v5041, %v7500
        %v7674 = vsel %vm1525, %v5046, %v7502
        %v7675 = vsel %vm1525, %v5122, %v7504
        %v7676 = vsel %vm1525, %v5127, %v7506
        %v7677 = vsel %vm1525, %v5203, %v7508
        %v7678 = vsel %vm1525, %v5208, %v7510
        %v7679 = vsel %vm1525, %v5284, %v7512
        %v7680 = vsel %vm1525, %v5289, %v7514
        %v7681 = vsel %vm1525, %v5365, %v7516
        %v7682 = vsel %vm1525, %v5370, %v7518
        %v7683 = vsel %vm1525, %v5446, %v7520
        %v7684 = vsel %vm1525, %v5451, %v7522
        %v7685 = vsel %vm1525, %v5527, %v7524
        %v7686 = vsel %vm1525, %v5532, %v7526
        %vm7687 = vcmask 523264
        %v7688 = vsel %vm7687, %v7671, %v7560
        %v7689 = vsel %vm7687, %v7672, %v7562
        %v7690 = vsel %vm7687, %v7673, %v7564
        %v7691 = vsel %vm7687, %v7674, %v7566
        %v7692 = vsel %vm7687, %v7675, %v7568
        %v7693 = vsel %vm7687, %v7676, %v7570
        %v7694 = vsel %vm7687, %v7677, %v7572
        %v7695 = vsel %vm7687, %v7678, %v7574
        %v7696 = vsel %vm7687, %v7679, %v7576
        %v7697 = vsel %vm7687, %v7680, %v7578
        %v7698 = vsel %vm7687, %v7681, %v7580
        %v7699 = vsel %vm7687, %v7682, %v7582
        %v7700 = vsel %vm7687, %v7683, %v7584
        %v7701 = vsel %vm7687, %v7684, %v7586
        %v7702 = vsel %vm7687, %v7685, %v7588
        %v7703 = vsel %vm7687, %v7686, %v7590
        %vm7704 = vcmask 785408
        %v7705 = vsel %vm7704, %v7688, %v7624
        %v7706 = vsel %vm7704, %v7689, %v7626
        %v7707 = vsel %vm7704, %v7690, %v7628
        %v7708 = vsel %vm7704, %v7691, %v7630
        %v7709 = vsel %vm7704, %v7692, %v7632
        %v7710 = vsel %vm7704, %v7693, %v7634
        %v7711 = vsel %vm7704, %v7694, %v7636
        %v7712 = vsel %vm7704, %v7695, %v7638
        %v7713 = vsel %vm7704, %v7696, %v7640
        %v7714 = vsel %vm7704, %v7697, %v7642
        %v7715 = vsel %vm7704, %v7698, %v7644
        %v7716 = vsel %vm7704, %v7699, %v7646
        %v7717 = vsel %vm7704, %v7700, %v7648
        %v7718 = vsel %vm7704, %v7701, %v7650
        %v7719 = vsel %vm7704, %v7702, %v7652
        %v7720 = vsel %vm7704, %v7703, %v7654
        %s7721 = scalar_lea.vmem %s7, %s614
        %v7722 = vld [vmem:[%s7721] sm:$0xff]
        %v7723 = vld [vmem:[%s7721 + $0x8] sm:$0xff]
        %v7724 = vld [vmem:[%s7721 + $0x10] sm:$0xff]
        %v7725 = vld [vmem:[%s7721 + $0x18] sm:$0xff]
        %v7726 = vld [vmem:[%s7721 + $0x20] sm:$0xff]
        %v7727 = vld [vmem:[%s7721 + $0x28] sm:$0xff]
        %v7728 = vld [vmem:[%s7721 + $0x30] sm:$0xff]
        %v7729 = vld [vmem:[%s7721 + $0x38] sm:$0xff]
        %v7730 = vld [vmem:[%s7721 + $0x40] sm:$0xff]
        %v7731 = vld [vmem:[%s7721 + $0x48] sm:$0xff]
        %v7732 = vld [vmem:[%s7721 + $0x50] sm:$0xff]
        %v7733 = vld [vmem:[%s7721 + $0x58] sm:$0xff]
        %v7734 = vld [vmem:[%s7721 + $0x60] sm:$0xff]
        %v7735 = vld [vmem:[%s7721 + $0x68] sm:$0xff]
        %v7736 = vld [vmem:[%s7721 + $0x70] sm:$0xff]
        %v7737 = vld [vmem:[%s7721 + $0x78] sm:$0xff]
        %s7738 = scalar_lea.vmem %s8, %s36
        %v7739 = vld [vmem:[%s7738] sm:$0x1]
        %v7741 = vlaneseq
        %v7742 = vshrl.u32 %v7741, 7
        %v7743 = vsub.s32 0, %v7742
        %v7744 = vrot.slane %v7739, %v7743
        %7746 = vmatprep.subr.mxu0 0.0
        %7747 = vmatpush1.msra.mxu0 %v7737
        %7748 = vmatprep.subr.mxu0 0.0
        %7749 = vmatpush1.msra.mxu0 %v7736
        %7750 = vmatprep.subr.mxu0 0.0
        %7751 = vmatpush1.msra.mxu0 %v7735
        %7752 = vmatprep.subr.mxu0 0.0
        %7753 = vmatpush1.msra.mxu0 %v7734
        %7754 = vmatprep.subr.mxu0 0.0
        %7755 = vmatpush1.msra.mxu0 %v7733
        %7756 = vmatprep.subr.mxu0 0.0
        %7757 = vmatpush1.msra.mxu0 %v7732
        %7758 = vmatprep.subr.mxu0 0.0
        %7759 = vmatpush1.msra.mxu0 %v7731
        %7760 = vmatprep.subr.mxu0 0.0
        %7761 = vmatpush1.msra.mxu0 %v7730
        %7762 = vmatprep.subr.mxu0 0.0
        %7763 = vmatpush1.msra.mxu0 %v7729
        %7764 = vmatprep.subr.mxu0 0.0
        %7765 = vmatpush1.msra.mxu0 %v7728
        %7766 = vmatprep.subr.mxu0 0.0
        %7767 = vmatpush1.msra.mxu0 %v7727
        %7768 = vmatprep.subr.mxu0 0.0
        %7769 = vmatpush1.msra.mxu0 %v7726
        %7770 = vmatprep.subr.mxu0 0.0
        %7771 = vmatpush1.msra.mxu0 %v7725
        %7772 = vmatprep.subr.mxu0 0.0
        %7773 = vmatpush1.msra.mxu0 %v7724
        %7774 = vmatprep.subr.mxu0 0.0
        %7775 = vmatpush1.msra.mxu0 %v7723
        %7776 = vmatprep.subr.mxu0 0.0
        %7777 = vmatpush1.msra.mxu0 %v7722
        %7778 = vmatprep.subr.mxu0 0.0
        %7779 = vmatpush2.msra.mxu0 0.0
        %7780 = vmatprep.subr.mxu0 0.0
        %7781 = vmatpush2.msra.mxu0 0.0
        %7782 = vmatprep.subr.mxu0 0.0
        %7783 = vmatpush2.msra.mxu0 0.0
        %7784 = vmatprep.subr.mxu0 0.0
        %7785 = vmatpush2.msra.mxu0 0.0
        %7786 = vmatprep.subr.mxu0 0.0
        %7787 = vmatpush2.msra.mxu0 0.0
        %7788 = vmatprep.subr.mxu0 0.0
        %7789 = vmatpush2.msra.mxu0 0.0
        %7790 = vmatprep.subr.mxu0 0.0
        %7791 = vmatpush2.msra.mxu0 0.0
        %7792 = vmatprep.subr.mxu0 0.0
        %7793 = vmatpush2.msra.mxu0 0.0
        %7794 = vmatprep.subr.mxu0 0.0
        %7795 = vmatpush2.msra.mxu0 0.0
        %7796 = vmatprep.subr.mxu0 0.0
        %7797 = vmatpush2.msra.mxu0 0.0
        %7798 = vmatprep.subr.mxu0 0.0
        %7799 = vmatpush2.msra.mxu0 0.0
        %7800 = vmatprep.subr.mxu0 0.0
        %7801 = vmatpush2.msra.mxu0 0.0
        %7802 = vmatprep.subr.mxu0 0.0
        %7803 = vmatpush2.msra.mxu0 0.0
        %7804 = vmatprep.subr.mxu0 0.0
        %7805 = vmatpush2.msra.mxu0 0.0
        %7806 = vmatprep.subr.mxu0 0.0
        %7807 = vmatpush2.msra.mxu0 0.0
        %7808 = vmatprep.subr.mxu0 0.0
        %7809 = vmatpush2.msra.mxu0 0.0
        %7810 = vmatprep.mubr.f32.mxu0 0.0
        %7811 = vmatmul.mubr.f32.gmra.mxu0 %v7705
        %v7812 = vpop.f32.mrf.mxu0
        %v7813 = vadd.f32 %v7744, %v7812
        %v7814 = vpop.f32.mrf.mxu0
        %7815 = vmatprep.mubr.f32.mxu0 0.0
        %7816 = vmatmul.mubr.f32.gmra.mxu0 %v7706
        %v7817 = vpop.f32.mrf.mxu0
        %v7818 = vadd.f32 %v7744, %v7817
        %v7819 = vpop.f32.mrf.mxu0
        %7820 = vmatprep.mubr.f32.mxu0 0.0
        %7821 = vmatmul.mubr.f32.gmra.mxu0 %v7707
        %v7822 = vpop.f32.mrf.mxu0
        %v7823 = vadd.f32 %v7744, %v7822
        %v7824 = vpop.f32.mrf.mxu0
        %7825 = vmatprep.mubr.f32.mxu0 0.0
        %7826 = vmatmul.mubr.f32.gmra.mxu0 %v7708
        %v7827 = vpop.f32.mrf.mxu0
        %v7828 = vadd.f32 %v7744, %v7827
        %v7829 = vpop.f32.mrf.mxu0
        %7830 = vmatprep.mubr.f32.mxu0 0.0
        %7831 = vmatmul.mubr.f32.gmra.mxu0 %v7709
        %v7832 = vpop.f32.mrf.mxu0
        %v7833 = vadd.f32 %v7744, %v7832
        %v7834 = vpop.f32.mrf.mxu0
        %7835 = vmatprep.mubr.f32.mxu0 0.0
        %7836 = vmatmul.mubr.f32.gmra.mxu0 %v7710
        %v7837 = vpop.f32.mrf.mxu0
        %v7838 = vadd.f32 %v7744, %v7837
        %v7839 = vpop.f32.mrf.mxu0
        %7840 = vmatprep.mubr.f32.mxu0 0.0
        %7841 = vmatmul.mubr.f32.gmra.mxu0 %v7711
        %v7842 = vpop.f32.mrf.mxu0
        %v7843 = vadd.f32 %v7744, %v7842
        %v7844 = vpop.f32.mrf.mxu0
        %7845 = vmatprep.mubr.f32.mxu0 0.0
        %7846 = vmatmul.mubr.f32.gmra.mxu0 %v7712
        %v7847 = vpop.f32.mrf.mxu0
        %v7848 = vadd.f32 %v7744, %v7847
        %v7849 = vpop.f32.mrf.mxu0
        %7850 = vmatprep.mubr.f32.mxu0 0.0
        %7851 = vmatmul.mubr.f32.gmra.mxu0 %v7713
        %v7852 = vpop.f32.mrf.mxu0
        %v7853 = vadd.f32 %v7744, %v7852
        %v7854 = vpop.f32.mrf.mxu0
        %7855 = vmatprep.mubr.f32.mxu0 0.0
        %7856 = vmatmul.mubr.f32.gmra.mxu0 %v7714
        %v7857 = vpop.f32.mrf.mxu0
        %v7858 = vadd.f32 %v7744, %v7857
        %v7859 = vpop.f32.mrf.mxu0
        %7860 = vmatprep.mubr.f32.mxu0 0.0
        %7861 = vmatmul.mubr.f32.gmra.mxu0 %v7715
        %v7862 = vpop.f32.mrf.mxu0
        %v7863 = vadd.f32 %v7744, %v7862
        %v7864 = vpop.f32.mrf.mxu0
        %7865 = vmatprep.mubr.f32.mxu0 0.0
        %7866 = vmatmul.mubr.f32.gmra.mxu0 %v7716
        %v7867 = vpop.f32.mrf.mxu0
        %v7868 = vadd.f32 %v7744, %v7867
        %v7869 = vpop.f32.mrf.mxu0
        %7870 = vmatprep.mubr.f32.mxu0 0.0
        %7871 = vmatmul.mubr.f32.gmra.mxu0 %v7717
        %v7872 = vpop.f32.mrf.mxu0
        %v7873 = vadd.f32 %v7744, %v7872
        %v7874 = vpop.f32.mrf.mxu0
        %7875 = vmatprep.mubr.f32.mxu0 0.0
        %7876 = vmatmul.mubr.f32.gmra.mxu0 %v7718
        %v7877 = vpop.f32.mrf.mxu0
        %v7878 = vadd.f32 %v7744, %v7877
        %v7879 = vpop.f32.mrf.mxu0
        %7880 = vmatprep.mubr.f32.mxu0 0.0
        %7881 = vmatmul.mubr.f32.gmra.mxu0 %v7719
        %v7882 = vpop.f32.mrf.mxu0
        %v7883 = vadd.f32 %v7744, %v7882
        %v7884 = vpop.f32.mrf.mxu0
        %7885 = vmatprep.mubr.f32.mxu0 0.0
        %7886 = vmatmul.mubr.f32.gmra.mxu0 %v7720
        %v7887 = vpop.f32.mrf.mxu0
        %v7888 = vadd.f32 %v7744, %v7887
        %v7889 = vpop.f32.mrf.mxu0
        %7890 = vdwg.mxu0
        %v7891 = vadd.f32 %v598, %v7813
        %v7892 = vadd.f32 %v599, %v7818
        %v7893 = vadd.f32 %v600, %v7823
        %v7894 = vadd.f32 %v601, %v7828
        %v7895 = vadd.f32 %v602, %v7833
        %v7896 = vadd.f32 %v603, %v7838
        %v7897 = vadd.f32 %v604, %v7843
        %v7898 = vadd.f32 %v605, %v7848
        %v7899 = vadd.f32 %v606, %v7853
        %v7900 = vadd.f32 %v607, %v7858
        %v7901 = vadd.f32 %v608, %v7863
        %v7902 = vadd.f32 %v609, %v7868
        %v7903 = vadd.f32 %v610, %v7873
        %v7904 = vadd.f32 %v611, %v7878
        %v7905 = vadd.f32 %v612, %v7883
        %v7906 = vadd.f32 %v613, %v7888
        %7907 = vadd.xlane.f32.xlu0 %v7891
        %v7908 = vpop.xlane.xlu0 %7907
        %7909 = vadd.xlane.f32.xlu0 %v7892
        %v7910 = vpop.xlane.xlu0 %7909
        %7911 = vadd.xlane.f32.xlu0 %v7893
        %v7912 = vpop.xlane.xlu0 %7911
        %7913 = vadd.xlane.f32.xlu0 %v7894
        %v7914 = vpop.xlane.xlu0 %7913
        %7915 = vadd.xlane.f32.xlu0 %v7895
        %v7916 = vpop.xlane.xlu0 %7915
        %7917 = vadd.xlane.f32.xlu0 %v7896
        %v7918 = vpop.xlane.xlu0 %7917
        %7919 = vadd.xlane.f32.xlu0 %v7897
        %v7920 = vpop.xlane.xlu0 %7919
        %7921 = vadd.xlane.f32.xlu0 %v7898
        %v7922 = vpop.xlane.xlu0 %7921
        %7923 = vadd.xlane.f32.xlu0 %v7899
        %v7924 = vpop.xlane.xlu0 %7923
        %7925 = vadd.xlane.f32.xlu0 %v7900
        %v7926 = vpop.xlane.xlu0 %7925
        %7927 = vadd.xlane.f32.xlu0 %v7901
        %v7928 = vpop.xlane.xlu0 %7927
        %7929 = vadd.xlane.f32.xlu0 %v7902
        %v7930 = vpop.xlane.xlu0 %7929
        %7931 = vadd.xlane.f32.xlu0 %v7903
        %v7932 = vpop.xlane.xlu0 %7931
        %7933 = vadd.xlane.f32.xlu0 %v7904
        %v7934 = vpop.xlane.xlu0 %7933
        %7935 = vadd.xlane.f32.xlu0 %v7905
        %v7936 = vpop.xlane.xlu0 %7935
        %7937 = vadd.xlane.f32.xlu0 %v7906
        %v7938 = vpop.xlane.xlu0 %7937
        %v7939 = vrcp.pop 128.0
        %v7940 = vmul.f32 %v7908, %v7939
        %v7941 = vmul.f32 %v7910, %v7939
        %v7942 = vmul.f32 %v7912, %v7939
        %v7943 = vmul.f32 %v7914, %v7939
        %v7944 = vmul.f32 %v7916, %v7939
        %v7945 = vmul.f32 %v7918, %v7939
        %v7946 = vmul.f32 %v7920, %v7939
        %v7947 = vmul.f32 %v7922, %v7939
        %v7948 = vmul.f32 %v7924, %v7939
        %v7949 = vmul.f32 %v7926, %v7939
        %v7950 = vmul.f32 %v7928, %v7939
        %v7951 = vmul.f32 %v7930, %v7939
        %v7952 = vmul.f32 %v7932, %v7939
        %v7953 = vmul.f32 %v7934, %v7939
        %v7954 = vmul.f32 %v7936, %v7939
        %v7955 = vmul.f32 %v7938, %v7939
        %v7956 = vsub.f32 %v7891, %v7940
        %v7957 = vsub.f32 %v7892, %v7941
        %v7958 = vsub.f32 %v7893, %v7942
        %v7959 = vsub.f32 %v7894, %v7943
        %v7960 = vsub.f32 %v7895, %v7944
        %v7961 = vsub.f32 %v7896, %v7945
        %v7962 = vsub.f32 %v7897, %v7946
        %v7963 = vsub.f32 %v7898, %v7947
        %v7964 = vsub.f32 %v7899, %v7948
        %v7965 = vsub.f32 %v7900, %v7949
        %v7966 = vsub.f32 %v7901, %v7950
        %v7967 = vsub.f32 %v7902, %v7951
        %v7968 = vsub.f32 %v7903, %v7952
        %v7969 = vsub.f32 %v7904, %v7953
        %v7970 = vsub.f32 %v7905, %v7954
        %v7971 = vsub.f32 %v7906, %v7955
        %v7972 = vmul.f32 %v7956, %v7956
        %v7973 = vmul.f32 %v7957, %v7957
        %v7974 = vmul.f32 %v7958, %v7958
        %v7975 = vmul.f32 %v7959, %v7959
        %v7976 = vmul.f32 %v7960, %v7960
        %v7977 = vmul.f32 %v7961, %v7961
        %v7978 = vmul.f32 %v7962, %v7962
        %v7979 = vmul.f32 %v7963, %v7963
        %v7980 = vmul.f32 %v7964, %v7964
        %v7981 = vmul.f32 %v7965, %v7965
        %v7982 = vmul.f32 %v7966, %v7966
        %v7983 = vmul.f32 %v7967, %v7967
        %v7984 = vmul.f32 %v7968, %v7968
        %v7985 = vmul.f32 %v7969, %v7969
        %v7986 = vmul.f32 %v7970, %v7970
        %v7987 = vmul.f32 %v7971, %v7971
        %7988 = vadd.xlane.f32.xlu0 %v7972
        %v7989 = vpop.xlane.xlu0 %7988
        %7990 = vadd.xlane.f32.xlu0 %v7973
        %v7991 = vpop.xlane.xlu0 %7990
        %7992 = vadd.xlane.f32.xlu0 %v7974
        %v7993 = vpop.xlane.xlu0 %7992
        %7994 = vadd.xlane.f32.xlu0 %v7975
        %v7995 = vpop.xlane.xlu0 %7994
        %7996 = vadd.xlane.f32.xlu0 %v7976
        %v7997 = vpop.xlane.xlu0 %7996
        %7998 = vadd.xlane.f32.xlu0 %v7977
        %v7999 = vpop.xlane.xlu0 %7998
        %8000 = vadd.xlane.f32.xlu0 %v7978
        %v8001 = vpop.xlane.xlu0 %8000
        %8002 = vadd.xlane.f32.xlu0 %v7979
        %v8003 = vpop.xlane.xlu0 %8002
        %8004 = vadd.xlane.f32.xlu0 %v7980
        %v8005 = vpop.xlane.xlu0 %8004
        %8006 = vadd.xlane.f32.xlu0 %v7981
        %v8007 = vpop.xlane.xlu0 %8006
        %8008 = vadd.xlane.f32.xlu0 %v7982
        %v8009 = vpop.xlane.xlu0 %8008
        %8010 = vadd.xlane.f32.xlu0 %v7983
        %v8011 = vpop.xlane.xlu0 %8010
        %8012 = vadd.xlane.f32.xlu0 %v7984
        %v8013 = vpop.xlane.xlu0 %8012
        %8014 = vadd.xlane.f32.xlu0 %v7985
        %v8015 = vpop.xlane.xlu0 %8014
        %8016 = vadd.xlane.f32.xlu0 %v7986
        %v8017 = vpop.xlane.xlu0 %8016
        %8018 = vadd.xlane.f32.xlu0 %v7987
        %v8019 = vpop.xlane.xlu0 %8018
        %v8020 = vmul.f32 %v7989, %v7939
        %v8021 = vmul.f32 %v7991, %v7939
        %v8022 = vmul.f32 %v7993, %v7939
        %v8023 = vmul.f32 %v7995, %v7939
        %v8024 = vmul.f32 %v7997, %v7939
        %v8025 = vmul.f32 %v7999, %v7939
        %v8026 = vmul.f32 %v8001, %v7939
        %v8027 = vmul.f32 %v8003, %v7939
        %v8028 = vmul.f32 %v8005, %v7939
        %v8029 = vmul.f32 %v8007, %v7939
        %v8030 = vmul.f32 %v8009, %v7939
        %v8031 = vmul.f32 %v8011, %v7939
        %v8032 = vmul.f32 %v8013, %v7939
        %v8033 = vmul.f32 %v8015, %v7939
        %v8034 = vmul.f32 %v8017, %v7939
        %v8035 = vmul.f32 %v8019, %v7939
        %v8036 = vadd.f32 %v8020, 1e-05
        %v8037 = vadd.f32 %v8021, 1e-05
        %v8038 = vadd.f32 %v8022, 1e-05
        %v8039 = vadd.f32 %v8023, 1e-05
        %v8040 = vadd.f32 %v8024, 1e-05
        %v8041 = vadd.f32 %v8025, 1e-05
        %v8042 = vadd.f32 %v8026, 1e-05
        %v8043 = vadd.f32 %v8027, 1e-05
        %v8044 = vadd.f32 %v8028, 1e-05
        %v8045 = vadd.f32 %v8029, 1e-05
        %v8046 = vadd.f32 %v8030, 1e-05
        %v8047 = vadd.f32 %v8031, 1e-05
        %v8048 = vadd.f32 %v8032, 1e-05
        %v8049 = vadd.f32 %v8033, 1e-05
        %v8050 = vadd.f32 %v8034, 1e-05
        %v8051 = vadd.f32 %v8035, 1e-05
        %v8052 = vrsqrt.pop %v8036
        %v8053 = vrsqrt.pop %v8037
        %v8054 = vrsqrt.pop %v8038
        %v8055 = vrsqrt.pop %v8039
        %v8056 = vrsqrt.pop %v8040
        %v8057 = vrsqrt.pop %v8041
        %v8058 = vrsqrt.pop %v8042
        %v8059 = vrsqrt.pop %v8043
        %v8060 = vrsqrt.pop %v8044
        %v8061 = vrsqrt.pop %v8045
        %v8062 = vrsqrt.pop %v8046
        %v8063 = vrsqrt.pop %v8047
        %v8064 = vrsqrt.pop %v8048
        %v8065 = vrsqrt.pop %v8049
        %v8066 = vrsqrt.pop %v8050
        %v8067 = vrsqrt.pop %v8051
        %v8068 = vmul.f32 %v7956, %v8052
        %v8069 = vmul.f32 %v7957, %v8053
        %v8070 = vmul.f32 %v7958, %v8054
        %v8071 = vmul.f32 %v7959, %v8055
        %v8072 = vmul.f32 %v7960, %v8056
        %v8073 = vmul.f32 %v7961, %v8057
        %v8074 = vmul.f32 %v7962, %v8058
        %v8075 = vmul.f32 %v7963, %v8059
        %v8076 = vmul.f32 %v7964, %v8060
        %v8077 = vmul.f32 %v7965, %v8061
        %v8078 = vmul.f32 %v7966, %v8062
        %v8079 = vmul.f32 %v7967, %v8063
        %v8080 = vmul.f32 %v7968, %v8064
        %v8081 = vmul.f32 %v7969, %v8065
        %v8082 = vmul.f32 %v7970, %v8066
        %v8083 = vmul.f32 %v7971, %v8067
        %s8084 = scalar_lea.vmem %s9, %s36
        %v8085 = vld [vmem:[%s8084] sm:$0x1]
        %v8087 = vlaneseq
        %v8088 = vshrl.u32 %v8087, 7
        %v8089 = vsub.s32 0, %v8088
        %v8090 = vrot.slane %v8085, %v8089
        %v8092 = vmul.f32 %v8068, %v8090
        %v8093 = vmul.f32 %v8069, %v8090
        %v8094 = vmul.f32 %v8070, %v8090
        %v8095 = vmul.f32 %v8071, %v8090
        %v8096 = vmul.f32 %v8072, %v8090
        %v8097 = vmul.f32 %v8073, %v8090
        %v8098 = vmul.f32 %v8074, %v8090
        %v8099 = vmul.f32 %v8075, %v8090
        %v8100 = vmul.f32 %v8076, %v8090
        %v8101 = vmul.f32 %v8077, %v8090
        %v8102 = vmul.f32 %v8078, %v8090
        %v8103 = vmul.f32 %v8079, %v8090
        %v8104 = vmul.f32 %v8080, %v8090
        %v8105 = vmul.f32 %v8081, %v8090
        %v8106 = vmul.f32 %v8082, %v8090
        %v8107 = vmul.f32 %v8083, %v8090
        %s8108 = scalar_lea.vmem %s10, %s36
        %v8109 = vld [vmem:[%s8108] sm:$0x1]
        %v8111 = vlaneseq
        %v8112 = vshrl.u32 %v8111, 7
        %v8113 = vsub.s32 0, %v8112
        %v8114 = vrot.slane %v8109, %v8113
        %v8116 = vadd.f32 %v8092, %v8114
        %v8117 = vadd.f32 %v8093, %v8114
        %v8118 = vadd.f32 %v8094, %v8114
        %v8119 = vadd.f32 %v8095, %v8114
        %v8120 = vadd.f32 %v8096, %v8114
        %v8121 = vadd.f32 %v8097, %v8114
        %v8122 = vadd.f32 %v8098, %v8114
        %v8123 = vadd.f32 %v8099, %v8114
        %v8124 = vadd.f32 %v8100, %v8114
        %v8125 = vadd.f32 %v8101, %v8114
        %v8126 = vadd.f32 %v8102, %v8114
        %v8127 = vadd.f32 %v8103, %v8114
        %v8128 = vadd.f32 %v8104, %v8114
        %v8129 = vadd.f32 %v8105, %v8114
        %v8130 = vadd.f32 %v8106, %v8114
        %v8131 = vadd.f32 %v8107, %v8114
        %s8132 = smul.u32 %s36, 32
        %s8133 = smul.addr %s8132, 8
        %s8134 = scalar_lea.vmem %s11, %s8133
        %v8135 = vld [vmem:[%s8134] sm:$0xff]
        %v8136 = vld [vmem:[%s8134 + $0x8] sm:$0xff]
        %v8137 = vld [vmem:[%s8134 + $0x10] sm:$0xff]
        %v8138 = vld [vmem:[%s8134 + $0x18] sm:$0xff]
        %v8139 = vld [vmem:[%s8134 + $0x20] sm:$0xff]
        %v8140 = vld [vmem:[%s8134 + $0x28] sm:$0xff]
        %v8141 = vld [vmem:[%s8134 + $0x30] sm:$0xff]
        %v8142 = vld [vmem:[%s8134 + $0x38] sm:$0xff]
        %v8143 = vld [vmem:[%s8134 + $0x40] sm:$0xff]
        %v8144 = vld [vmem:[%s8134 + $0x48] sm:$0xff]
        %v8145 = vld [vmem:[%s8134 + $0x50] sm:$0xff]
        %v8146 = vld [vmem:[%s8134 + $0x58] sm:$0xff]
        %v8147 = vld [vmem:[%s8134 + $0x60] sm:$0xff]
        %v8148 = vld [vmem:[%s8134 + $0x68] sm:$0xff]
        %v8149 = vld [vmem:[%s8134 + $0x70] sm:$0xff]
        %v8150 = vld [vmem:[%s8134 + $0x78] sm:$0xff]
        %v8151 = vld [vmem:[%s8134 + $0x80] sm:$0xff]
        %v8152 = vld [vmem:[%s8134 + $0x88] sm:$0xff]
        %v8153 = vld [vmem:[%s8134 + $0x90] sm:$0xff]
        %v8154 = vld [vmem:[%s8134 + $0x98] sm:$0xff]
        %v8155 = vld [vmem:[%s8134 + $0xa0] sm:$0xff]
        %v8156 = vld [vmem:[%s8134 + $0xa8] sm:$0xff]
        %v8157 = vld [vmem:[%s8134 + $0xb0] sm:$0xff]
        %v8158 = vld [vmem:[%s8134 + $0xb8] sm:$0xff]
        %v8159 = vld [vmem:[%s8134 + $0xc0] sm:$0xff]
        %v8160 = vld [vmem:[%s8134 + $0xc8] sm:$0xff]
        %v8161 = vld [vmem:[%s8134 + $0xd0] sm:$0xff]
        %v8162 = vld [vmem:[%s8134 + $0xd8] sm:$0xff]
        %v8163 = vld [vmem:[%s8134 + $0xe0] sm:$0xff]
        %v8164 = vld [vmem:[%s8134 + $0xe8] sm:$0xff]
        %v8165 = vld [vmem:[%s8134 + $0xf0] sm:$0xff]
        %v8166 = vld [vmem:[%s8134 + $0xf8] sm:$0xff]
        %s8167 = smul.u32 %s36, 2
        %s8168 = scalar_lea.vmem %s12, %s8167
        %v8169 = vld [vmem:[%s8168] sm:$0x3]
        %v8171 = vlaneseq
        %v8172 = vshrl.u32 %v8171, 7
        %v8173 = vsub.s32 0, %v8172
        %v8174 = vrot.slane %v8169, %v8173
        %v8175 = vlaneseq
        %v8176 = vshrl.u32 %v8175, 7
        %v8177 = vsub.s32 1, %v8176
        %v8178 = vrot.slane %v8169, %v8177
        %8181 = vmatprep.subr.mxu0 %v8166
        %8182 = vmatpush1.msra.mxu0 %v8165
        %8183 = vmatprep.subr.mxu0 %v8164
        %8184 = vmatpush1.msra.mxu0 %v8163
        %8185 = vmatprep.subr.mxu0 %v8162
        %8186 = vmatpush1.msra.mxu0 %v8161
        %8187 = vmatprep.subr.mxu0 %v8160
        %8188 = vmatpush1.msra.mxu0 %v8159
        %8189 = vmatprep.subr.mxu0 %v8158
        %8190 = vmatpush1.msra.mxu0 %v8157
        %8191 = vmatprep.subr.mxu0 %v8156
        %8192 = vmatpush1.msra.mxu0 %v8155
        %8193 = vmatprep.subr.mxu0 %v8154
        %8194 = vmatpush1.msra.mxu0 %v8153
        %8195 = vmatprep.subr.mxu0 %v8152
        %8196 = vmatpush1.msra.mxu0 %v8151
        %8197 = vmatprep.subr.mxu0 %v8150
        %8198 = vmatpush1.msra.mxu0 %v8149
        %8199 = vmatprep.subr.mxu0 %v8148
        %8200 = vmatpush1.msra.mxu0 %v8147
        %8201 = vmatprep.subr.mxu0 %v8146
        %8202 = vmatpush1.msra.mxu0 %v8145
        %8203 = vmatprep.subr.mxu0 %v8144
        %8204 = vmatpush1.msra.mxu0 %v8143
        %8205 = vmatprep.subr.mxu0 %v8142
        %8206 = vmatpush1.msra.mxu0 %v8141
        %8207 = vmatprep.subr.mxu0 %v8140
        %8208 = vmatpush1.msra.mxu0 %v8139
        %8209 = vmatprep.subr.mxu0 %v8138
        %8210 = vmatpush1.msra.mxu0 %v8137
        %8211 = vmatprep.subr.mxu0 %v8136
        %8212 = vmatpush1.msra.mxu0 %v8135
        %8213 = vmatprep.subr.mxu0 0.0
        %8214 = vmatpush2.msra.mxu0 0.0
        %8215 = vmatprep.subr.mxu0 0.0
        %8216 = vmatpush2.msra.mxu0 0.0
        %8217 = vmatprep.subr.mxu0 0.0
        %8218 = vmatpush2.msra.mxu0 0.0
        %8219 = vmatprep.subr.mxu0 0.0
        %8220 = vmatpush2.msra.mxu0 0.0
        %8221 = vmatprep.subr.mxu0 0.0
        %8222 = vmatpush2.msra.mxu0 0.0
        %8223 = vmatprep.subr.mxu0 0.0
        %8224 = vmatpush2.msra.mxu0 0.0
        %8225 = vmatprep.subr.mxu0 0.0
        %8226 = vmatpush2.msra.mxu0 0.0
        %8227 = vmatprep.subr.mxu0 0.0
        %8228 = vmatpush2.msra.mxu0 0.0
        %8229 = vmatprep.subr.mxu0 0.0
        %8230 = vmatpush2.msra.mxu0 0.0
        %8231 = vmatprep.subr.mxu0 0.0
        %8232 = vmatpush2.msra.mxu0 0.0
        %8233 = vmatprep.subr.mxu0 0.0
        %8234 = vmatpush2.msra.mxu0 0.0
        %8235 = vmatprep.subr.mxu0 0.0
        %8236 = vmatpush2.msra.mxu0 0.0
        %8237 = vmatprep.subr.mxu0 0.0
        %8238 = vmatpush2.msra.mxu0 0.0
        %8239 = vmatprep.subr.mxu0 0.0
        %8240 = vmatpush2.msra.mxu0 0.0
        %8241 = vmatprep.subr.mxu0 0.0
        %8242 = vmatpush2.msra.mxu0 0.0
        %8243 = vmatprep.subr.mxu0 0.0
        %8244 = vmatpush2.msra.mxu0 0.0
        %8245 = vmatprep.mubr.f32.mxu0 0.0
        %8246 = vmatmul.mubr.f32.gmra.mxu0 %v8116
        %v8247 = vpop.f32.mrf.mxu0
        %v8248 = vadd.f32 %v8174, %v8247
        %v8249 = vpop.f32.mrf.mxu0
        %v8250 = vadd.f32 %v8178, %v8249
        %8251 = vmatprep.mubr.f32.mxu0 0.0
        %8252 = vmatmul.mubr.f32.gmra.mxu0 %v8117
        %v8253 = vpop.f32.mrf.mxu0
        %v8254 = vadd.f32 %v8174, %v8253
        %v8255 = vpop.f32.mrf.mxu0
        %v8256 = vadd.f32 %v8178, %v8255
        %8257 = vmatprep.mubr.f32.mxu0 0.0
        %8258 = vmatmul.mubr.f32.gmra.mxu0 %v8118
        %v8259 = vpop.f32.mrf.mxu0
        %v8260 = vadd.f32 %v8174, %v8259
        %v8261 = vpop.f32.mrf.mxu0
        %v8262 = vadd.f32 %v8178, %v8261
        %8263 = vmatprep.mubr.f32.mxu0 0.0
        %8264 = vmatmul.mubr.f32.gmra.mxu0 %v8119
        %v8265 = vpop.f32.mrf.mxu0
        %v8266 = vadd.f32 %v8174, %v8265
        %v8267 = vpop.f32.mrf.mxu0
        %v8268 = vadd.f32 %v8178, %v8267
        %8269 = vmatprep.mubr.f32.mxu0 0.0
        %8270 = vmatmul.mubr.f32.gmra.mxu0 %v8120
        %v8271 = vpop.f32.mrf.mxu0
        %v8272 = vadd.f32 %v8174, %v8271
        %v8273 = vpop.f32.mrf.mxu0
        %v8274 = vadd.f32 %v8178, %v8273
        %8275 = vmatprep.mubr.f32.mxu0 0.0
        %8276 = vmatmul.mubr.f32.gmra.mxu0 %v8121
        %v8277 = vpop.f32.mrf.mxu0
        %v8278 = vadd.f32 %v8174, %v8277
        %v8279 = vpop.f32.mrf.mxu0
        %v8280 = vadd.f32 %v8178, %v8279
        %8281 = vmatprep.mubr.f32.mxu0 0.0
        %8282 = vmatmul.mubr.f32.gmra.mxu0 %v8122
        %v8283 = vpop.f32.mrf.mxu0
        %v8284 = vadd.f32 %v8174, %v8283
        %v8285 = vpop.f32.mrf.mxu0
        %v8286 = vadd.f32 %v8178, %v8285
        %8287 = vmatprep.mubr.f32.mxu0 0.0
        %8288 = vmatmul.mubr.f32.gmra.mxu0 %v8123
        %v8289 = vpop.f32.mrf.mxu0
        %v8290 = vadd.f32 %v8174, %v8289
        %v8291 = vpop.f32.mrf.mxu0
        %v8292 = vadd.f32 %v8178, %v8291
        %8293 = vmatprep.mubr.f32.mxu0 0.0
        %8294 = vmatmul.mubr.f32.gmra.mxu0 %v8124
        %v8295 = vpop.f32.mrf.mxu0
        %v8296 = vadd.f32 %v8174, %v8295
        %v8297 = vpop.f32.mrf.mxu0
        %v8298 = vadd.f32 %v8178, %v8297
        %8299 = vmatprep.mubr.f32.mxu0 0.0
        %8300 = vmatmul.mubr.f32.gmra.mxu0 %v8125
        %v8301 = vpop.f32.mrf.mxu0
        %v8302 = vadd.f32 %v8174, %v8301
        %v8303 = vpop.f32.mrf.mxu0
        %v8304 = vadd.f32 %v8178, %v8303
        %8305 = vmatprep.mubr.f32.mxu0 0.0
        %8306 = vmatmul.mubr.f32.gmra.mxu0 %v8126
        %v8307 = vpop.f32.mrf.mxu0
        %v8308 = vadd.f32 %v8174, %v8307
        %v8309 = vpop.f32.mrf.mxu0
        %v8310 = vadd.f32 %v8178, %v8309
        %8311 = vmatprep.mubr.f32.mxu0 0.0
        %8312 = vmatmul.mubr.f32.gmra.mxu0 %v8127
        %v8313 = vpop.f32.mrf.mxu0
        %v8314 = vadd.f32 %v8174, %v8313
        %v8315 = vpop.f32.mrf.mxu0
        %v8316 = vadd.f32 %v8178, %v8315
        %8317 = vmatprep.mubr.f32.mxu0 0.0
        %8318 = vmatmul.mubr.f32.gmra.mxu0 %v8128
        %v8319 = vpop.f32.mrf.mxu0
        %v8320 = vadd.f32 %v8174, %v8319
        %v8321 = vpop.f32.mrf.mxu0
        %v8322 = vadd.f32 %v8178, %v8321
        %8323 = vmatprep.mubr.f32.mxu0 0.0
        %8324 = vmatmul.mubr.f32.gmra.mxu0 %v8129
        %v8325 = vpop.f32.mrf.mxu0
        %v8326 = vadd.f32 %v8174, %v8325
        %v8327 = vpop.f32.mrf.mxu0
        %v8328 = vadd.f32 %v8178, %v8327
        %8329 = vmatprep.mubr.f32.mxu0 0.0
        %8330 = vmatmul.mubr.f32.gmra.mxu0 %v8130
        %v8331 = vpop.f32.mrf.mxu0
        %v8332 = vadd.f32 %v8174, %v8331
        %v8333 = vpop.f32.mrf.mxu0
        %v8334 = vadd.f32 %v8178, %v8333
        %8335 = vmatprep.mubr.f32.mxu0 0.0
        %8336 = vmatmul.mubr.f32.gmra.mxu0 %v8131
        %v8337 = vpop.f32.mrf.mxu0
        %v8338 = vadd.f32 %v8174, %v8337
        %v8339 = vpop.f32.mrf.mxu0
        %v8340 = vadd.f32 %v8178, %v8339
        %8341 = vdwg.mxu0
        %v8342 = vmax.f32 %v8248, 0.0
        %v8343 = vmax.f32 %v8250, 0.0
        %v8344 = vmax.f32 %v8254, 0.0
        %v8345 = vmax.f32 %v8256, 0.0
        %v8346 = vmax.f32 %v8260, 0.0
        %v8347 = vmax.f32 %v8262, 0.0
        %v8348 = vmax.f32 %v8266, 0.0
        %v8349 = vmax.f32 %v8268, 0.0
        %v8350 = vmax.f32 %v8272, 0.0
        %v8351 = vmax.f32 %v8274, 0.0
        %v8352 = vmax.f32 %v8278, 0.0
        %v8353 = vmax.f32 %v8280, 0.0
        %v8354 = vmax.f32 %v8284, 0.0
        %v8355 = vmax.f32 %v8286, 0.0
        %v8356 = vmax.f32 %v8290, 0.0
        %v8357 = vmax.f32 %v8292, 0.0
        %v8358 = vmax.f32 %v8296, 0.0
        %v8359 = vmax.f32 %v8298, 0.0
        %v8360 = vmax.f32 %v8302, 0.0
        %v8361 = vmax.f32 %v8304, 0.0
        %v8362 = vmax.f32 %v8308, 0.0
        %v8363 = vmax.f32 %v8310, 0.0
        %v8364 = vmax.f32 %v8314, 0.0
        %v8365 = vmax.f32 %v8316, 0.0
        %v8366 = vmax.f32 %v8320, 0.0
        %v8367 = vmax.f32 %v8322, 0.0
        %v8368 = vmax.f32 %v8326, 0.0
        %v8369 = vmax.f32 %v8328, 0.0
        %v8370 = vmax.f32 %v8332, 0.0
        %v8371 = vmax.f32 %v8334, 0.0
        %v8372 = vmax.f32 %v8338, 0.0
        %v8373 = vmax.f32 %v8340, 0.0
        %s8374 = smul.u32 %s36, 256
        %s8375 = scalar_lea.vmem %s13, %s8374
        %v8376 = vld [vmem:[%s8375] sm:$0xff]
        %v8377 = vld [vmem:[%s8375 + $0x8] sm:$0xff]
        %v8378 = vld [vmem:[%s8375 + $0x10] sm:$0xff]
        %v8379 = vld [vmem:[%s8375 + $0x18] sm:$0xff]
        %v8380 = vld [vmem:[%s8375 + $0x20] sm:$0xff]
        %v8381 = vld [vmem:[%s8375 + $0x28] sm:$0xff]
        %v8382 = vld [vmem:[%s8375 + $0x30] sm:$0xff]
        %v8383 = vld [vmem:[%s8375 + $0x38] sm:$0xff]
        %v8384 = vld [vmem:[%s8375 + $0x40] sm:$0xff]
        %v8385 = vld [vmem:[%s8375 + $0x48] sm:$0xff]
        %v8386 = vld [vmem:[%s8375 + $0x50] sm:$0xff]
        %v8387 = vld [vmem:[%s8375 + $0x58] sm:$0xff]
        %v8388 = vld [vmem:[%s8375 + $0x60] sm:$0xff]
        %v8389 = vld [vmem:[%s8375 + $0x68] sm:$0xff]
        %v8390 = vld [vmem:[%s8375 + $0x70] sm:$0xff]
        %v8391 = vld [vmem:[%s8375 + $0x78] sm:$0xff]
        %v8392 = vld [vmem:[%s8375 + $0x80] sm:$0xff]
        %v8393 = vld [vmem:[%s8375 + $0x88] sm:$0xff]
        %v8394 = vld [vmem:[%s8375 + $0x90] sm:$0xff]
        %v8395 = vld [vmem:[%s8375 + $0x98] sm:$0xff]
        %v8396 = vld [vmem:[%s8375 + $0xa0] sm:$0xff]
        %v8397 = vld [vmem:[%s8375 + $0xa8] sm:$0xff]
        %v8398 = vld [vmem:[%s8375 + $0xb0] sm:$0xff]
        %v8399 = vld [vmem:[%s8375 + $0xb8] sm:$0xff]
        %v8400 = vld [vmem:[%s8375 + $0xc0] sm:$0xff]
        %v8401 = vld [vmem:[%s8375 + $0xc8] sm:$0xff]
        %v8402 = vld [vmem:[%s8375 + $0xd0] sm:$0xff]
        %v8403 = vld [vmem:[%s8375 + $0xd8] sm:$0xff]
        %v8404 = vld [vmem:[%s8375 + $0xe0] sm:$0xff]
        %v8405 = vld [vmem:[%s8375 + $0xe8] sm:$0xff]
        %v8406 = vld [vmem:[%s8375 + $0xf0] sm:$0xff]
        %v8407 = vld [vmem:[%s8375 + $0xf8] sm:$0xff]
        %s8408 = scalar_lea.vmem %s14, %s36
        %v8409 = vld [vmem:[%s8408] sm:$0x1]
        %v8411 = vlaneseq
        %v8412 = vshrl.u32 %v8411, 7
        %v8413 = vsub.s32 0, %v8412
        %v8414 = vrot.slane %v8409, %v8413
        %8416 = vmatprep.subr.mxu0 0.0
        %8417 = vmatpush1.msra.mxu0 %v8391
        %8418 = vmatprep.subr.mxu0 0.0
        %8419 = vmatpush1.msra.mxu0 %v8390
        %8420 = vmatprep.subr.mxu0 0.0
        %8421 = vmatpush1.msra.mxu0 %v8389
        %8422 = vmatprep.subr.mxu0 0.0
        %8423 = vmatpush1.msra.mxu0 %v8388
        %8424 = vmatprep.subr.mxu0 0.0
        %8425 = vmatpush1.msra.mxu0 %v8387
        %8426 = vmatprep.subr.mxu0 0.0
        %8427 = vmatpush1.msra.mxu0 %v8386
        %8428 = vmatprep.subr.mxu0 0.0
        %8429 = vmatpush1.msra.mxu0 %v8385
        %8430 = vmatprep.subr.mxu0 0.0
        %8431 = vmatpush1.msra.mxu0 %v8384
        %8432 = vmatprep.subr.mxu0 0.0
        %8433 = vmatpush1.msra.mxu0 %v8383
        %8434 = vmatprep.subr.mxu0 0.0
        %8435 = vmatpush1.msra.mxu0 %v8382
        %8436 = vmatprep.subr.mxu0 0.0
        %8437 = vmatpush1.msra.mxu0 %v8381
        %8438 = vmatprep.subr.mxu0 0.0
        %8439 = vmatpush1.msra.mxu0 %v8380
        %8440 = vmatprep.subr.mxu0 0.0
        %8441 = vmatpush1.msra.mxu0 %v8379
        %8442 = vmatprep.subr.mxu0 0.0
        %8443 = vmatpush1.msra.mxu0 %v8378
        %8444 = vmatprep.subr.mxu0 0.0
        %8445 = vmatpush1.msra.mxu0 %v8377
        %8446 = vmatprep.subr.mxu0 0.0
        %8447 = vmatpush1.msra.mxu0 %v8376
        %8448 = vmatprep.subr.mxu0 0.0
        %8449 = vmatpush2.msra.mxu0 %v8407
        %8450 = vmatprep.subr.mxu0 0.0
        %8451 = vmatpush2.msra.mxu0 %v8406
        %8452 = vmatprep.subr.mxu0 0.0
        %8453 = vmatpush2.msra.mxu0 %v8405
        %8454 = vmatprep.subr.mxu0 0.0
        %8455 = vmatpush2.msra.mxu0 %v8404
        %8456 = vmatprep.subr.mxu0 0.0
        %8457 = vmatpush2.msra.mxu0 %v8403
        %8458 = vmatprep.subr.mxu0 0.0
        %8459 = vmatpush2.msra.mxu0 %v8402
        %8460 = vmatprep.subr.mxu0 0.0
        %8461 = vmatpush2.msra.mxu0 %v8401
        %8462 = vmatprep.subr.mxu0 0.0
        %8463 = vmatpush2.msra.mxu0 %v8400
        %8464 = vmatprep.subr.mxu0 0.0
        %8465 = vmatpush2.msra.mxu0 %v8399
        %8466 = vmatprep.subr.mxu0 0.0
        %8467 = vmatpush2.msra.mxu0 %v8398
        %8468 = vmatprep.subr.mxu0 0.0
        %8469 = vmatpush2.msra.mxu0 %v8397
        %8470 = vmatprep.subr.mxu0 0.0
        %8471 = vmatpush2.msra.mxu0 %v8396
        %8472 = vmatprep.subr.mxu0 0.0
        %8473 = vmatpush2.msra.mxu0 %v8395
        %8474 = vmatprep.subr.mxu0 0.0
        %8475 = vmatpush2.msra.mxu0 %v8394
        %8476 = vmatprep.subr.mxu0 0.0
        %8477 = vmatpush2.msra.mxu0 %v8393
        %8478 = vmatprep.subr.mxu0 0.0
        %8479 = vmatpush2.msra.mxu0 %v8392
        %8480 = vmatprep.mubr.f32.mxu0 %v8343
        %8481 = vmatmul.mubr.f32.gmra.mxu0 %v8342
        %v8482 = vpop.f32.mrf.mxu0
        %v8483 = vadd.f32 %v8414, %v8482
        %v8484 = vpop.f32.mrf.mxu0
        %8485 = vmatprep.mubr.f32.mxu0 %v8345
        %8486 = vmatmul.mubr.f32.gmra.mxu0 %v8344
        %v8487 = vpop.f32.mrf.mxu0
        %v8488 = vadd.f32 %v8414, %v8487
        %v8489 = vpop.f32.mrf.mxu0
        %8490 = vmatprep.mubr.f32.mxu0 %v8347
        %8491 = vmatmul.mubr.f32.gmra.mxu0 %v8346
        %v8492 = vpop.f32.mrf.mxu0
        %v8493 = vadd.f32 %v8414, %v8492
        %v8494 = vpop.f32.mrf.mxu0
        %8495 = vmatprep.mubr.f32.mxu0 %v8349
        %8496 = vmatmul.mubr.f32.gmra.mxu0 %v8348
        %v8497 = vpop.f32.mrf.mxu0
        %v8498 = vadd.f32 %v8414, %v8497
        %v8499 = vpop.f32.mrf.mxu0
        %8500 = vmatprep.mubr.f32.mxu0 %v8351
        %8501 = vmatmul.mubr.f32.gmra.mxu0 %v8350
        %v8502 = vpop.f32.mrf.mxu0
        %v8503 = vadd.f32 %v8414, %v8502
        %v8504 = vpop.f32.mrf.mxu0
        %8505 = vmatprep.mubr.f32.mxu0 %v8353
        %8506 = vmatmul.mubr.f32.gmra.mxu0 %v8352
        %v8507 = vpop.f32.mrf.mxu0
        %v8508 = vadd.f32 %v8414, %v8507
        %v8509 = vpop.f32.mrf.mxu0
        %8510 = vmatprep.mubr.f32.mxu0 %v8355
        %8511 = vmatmul.mubr.f32.gmra.mxu0 %v8354
        %v8512 = vpop.f32.mrf.mxu0
        %v8513 = vadd.f32 %v8414, %v8512
        %v8514 = vpop.f32.mrf.mxu0
        %8515 = vmatprep.mubr.f32.mxu0 %v8357
        %8516 = vmatmul.mubr.f32.gmra.mxu0 %v8356
        %v8517 = vpop.f32.mrf.mxu0
        %v8518 = vadd.f32 %v8414, %v8517
        %v8519 = vpop.f32.mrf.mxu0
        %8520 = vmatprep.mubr.f32.mxu0 %v8359
        %8521 = vmatmul.mubr.f32.gmra.mxu0 %v8358
        %v8522 = vpop.f32.mrf.mxu0
        %v8523 = vadd.f32 %v8414, %v8522
        %v8524 = vpop.f32.mrf.mxu0
        %8525 = vmatprep.mubr.f32.mxu0 %v8361
        %8526 = vmatmul.mubr.f32.gmra.mxu0 %v8360
        %v8527 = vpop.f32.mrf.mxu0
        %v8528 = vadd.f32 %v8414, %v8527
        %v8529 = vpop.f32.mrf.mxu0
        %8530 = vmatprep.mubr.f32.mxu0 %v8363
        %8531 = vmatmul.mubr.f32.gmra.mxu0 %v8362
        %v8532 = vpop.f32.mrf.mxu0
        %v8533 = vadd.f32 %v8414, %v8532
        %v8534 = vpop.f32.mrf.mxu0
        %8535 = vmatprep.mubr.f32.mxu0 %v8365
        %8536 = vmatmul.mubr.f32.gmra.mxu0 %v8364
        %v8537 = vpop.f32.mrf.mxu0
        %v8538 = vadd.f32 %v8414, %v8537
        %v8539 = vpop.f32.mrf.mxu0
        %8540 = vmatprep.mubr.f32.mxu0 %v8367
        %8541 = vmatmul.mubr.f32.gmra.mxu0 %v8366
        %v8542 = vpop.f32.mrf.mxu0
        %v8543 = vadd.f32 %v8414, %v8542
        %v8544 = vpop.f32.mrf.mxu0
        %8545 = vmatprep.mubr.f32.mxu0 %v8369
        %8546 = vmatmul.mubr.f32.gmra.mxu0 %v8368
        %v8547 = vpop.f32.mrf.mxu0
        %v8548 = vadd.f32 %v8414, %v8547
        %v8549 = vpop.f32.mrf.mxu0
        %8550 = vmatprep.mubr.f32.mxu0 %v8371
        %8551 = vmatmul.mubr.f32.gmra.mxu0 %v8370
        %v8552 = vpop.f32.mrf.mxu0
        %v8553 = vadd.f32 %v8414, %v8552
        %v8554 = vpop.f32.mrf.mxu0
        %8555 = vmatprep.mubr.f32.mxu0 %v8373
        %8556 = vmatmul.mubr.f32.gmra.mxu0 %v8372
        %v8557 = vpop.f32.mrf.mxu0
        %v8558 = vadd.f32 %v8414, %v8557
        %v8559 = vpop.f32.mrf.mxu0
        %8560 = vdwg.mxu0
        %v8561 = vadd.f32 %v8116, %v8483
        %v8562 = vadd.f32 %v8117, %v8488
        %v8563 = vadd.f32 %v8118, %v8493
        %v8564 = vadd.f32 %v8119, %v8498
        %v8565 = vadd.f32 %v8120, %v8503
        %v8566 = vadd.f32 %v8121, %v8508
        %v8567 = vadd.f32 %v8122, %v8513
        %v8568 = vadd.f32 %v8123, %v8518
        %v8569 = vadd.f32 %v8124, %v8523
        %v8570 = vadd.f32 %v8125, %v8528
        %v8571 = vadd.f32 %v8126, %v8533
        %v8572 = vadd.f32 %v8127, %v8538
        %v8573 = vadd.f32 %v8128, %v8543
        %v8574 = vadd.f32 %v8129, %v8548
        %v8575 = vadd.f32 %v8130, %v8553
        %v8576 = vadd.f32 %v8131, %v8558
        %8577 = vadd.xlane.f32.xlu0 %v8561
        %v8578 = vpop.xlane.xlu0 %8577
        %8579 = vadd.xlane.f32.xlu0 %v8562
        %v8580 = vpop.xlane.xlu0 %8579
        %8581 = vadd.xlane.f32.xlu0 %v8563
        %v8582 = vpop.xlane.xlu0 %8581
        %8583 = vadd.xlane.f32.xlu0 %v8564
        %v8584 = vpop.xlane.xlu0 %8583
        %8585 = vadd.xlane.f32.xlu0 %v8565
        %v8586 = vpop.xlane.xlu0 %8585
        %8587 = vadd.xlane.f32.xlu0 %v8566
        %v8588 = vpop.xlane.xlu0 %8587
        %8589 = vadd.xlane.f32.xlu0 %v8567
        %v8590 = vpop.xlane.xlu0 %8589
        %8591 = vadd.xlane.f32.xlu0 %v8568
        %v8592 = vpop.xlane.xlu0 %8591
        %8593 = vadd.xlane.f32.xlu0 %v8569
        %v8594 = vpop.xlane.xlu0 %8593
        %8595 = vadd.xlane.f32.xlu0 %v8570
        %v8596 = vpop.xlane.xlu0 %8595
        %8597 = vadd.xlane.f32.xlu0 %v8571
        %v8598 = vpop.xlane.xlu0 %8597
        %8599 = vadd.xlane.f32.xlu0 %v8572
        %v8600 = vpop.xlane.xlu0 %8599
        %8601 = vadd.xlane.f32.xlu0 %v8573
        %v8602 = vpop.xlane.xlu0 %8601
        %8603 = vadd.xlane.f32.xlu0 %v8574
        %v8604 = vpop.xlane.xlu0 %8603
        %8605 = vadd.xlane.f32.xlu0 %v8575
        %v8606 = vpop.xlane.xlu0 %8605
        %8607 = vadd.xlane.f32.xlu0 %v8576
        %v8608 = vpop.xlane.xlu0 %8607
        %v8609 = vmul.f32 %v8578, %v7939
        %v8610 = vmul.f32 %v8580, %v7939
        %v8611 = vmul.f32 %v8582, %v7939
        %v8612 = vmul.f32 %v8584, %v7939
        %v8613 = vmul.f32 %v8586, %v7939
        %v8614 = vmul.f32 %v8588, %v7939
        %v8615 = vmul.f32 %v8590, %v7939
        %v8616 = vmul.f32 %v8592, %v7939
        %v8617 = vmul.f32 %v8594, %v7939
        %v8618 = vmul.f32 %v8596, %v7939
        %v8619 = vmul.f32 %v8598, %v7939
        %v8620 = vmul.f32 %v8600, %v7939
        %v8621 = vmul.f32 %v8602, %v7939
        %v8622 = vmul.f32 %v8604, %v7939
        %v8623 = vmul.f32 %v8606, %v7939
        %v8624 = vmul.f32 %v8608, %v7939
        %v8625 = vsub.f32 %v8561, %v8609
        %v8626 = vsub.f32 %v8562, %v8610
        %v8627 = vsub.f32 %v8563, %v8611
        %v8628 = vsub.f32 %v8564, %v8612
        %v8629 = vsub.f32 %v8565, %v8613
        %v8630 = vsub.f32 %v8566, %v8614
        %v8631 = vsub.f32 %v8567, %v8615
        %v8632 = vsub.f32 %v8568, %v8616
        %v8633 = vsub.f32 %v8569, %v8617
        %v8634 = vsub.f32 %v8570, %v8618
        %v8635 = vsub.f32 %v8571, %v8619
        %v8636 = vsub.f32 %v8572, %v8620
        %v8637 = vsub.f32 %v8573, %v8621
        %v8638 = vsub.f32 %v8574, %v8622
        %v8639 = vsub.f32 %v8575, %v8623
        %v8640 = vsub.f32 %v8576, %v8624
        %v8641 = vmul.f32 %v8625, %v8625
        %v8642 = vmul.f32 %v8626, %v8626
        %v8643 = vmul.f32 %v8627, %v8627
        %v8644 = vmul.f32 %v8628, %v8628
        %v8645 = vmul.f32 %v8629, %v8629
        %v8646 = vmul.f32 %v8630, %v8630
        %v8647 = vmul.f32 %v8631, %v8631
        %v8648 = vmul.f32 %v8632, %v8632
        %v8649 = vmul.f32 %v8633, %v8633
        %v8650 = vmul.f32 %v8634, %v8634
        %v8651 = vmul.f32 %v8635, %v8635
        %v8652 = vmul.f32 %v8636, %v8636
        %v8653 = vmul.f32 %v8637, %v8637
        %v8654 = vmul.f32 %v8638, %v8638
        %v8655 = vmul.f32 %v8639, %v8639
        %v8656 = vmul.f32 %v8640, %v8640
        %8657 = vadd.xlane.f32.xlu0 %v8641
        %v8658 = vpop.xlane.xlu0 %8657
        %8659 = vadd.xlane.f32.xlu0 %v8642
        %v8660 = vpop.xlane.xlu0 %8659
        %8661 = vadd.xlane.f32.xlu0 %v8643
        %v8662 = vpop.xlane.xlu0 %8661
        %8663 = vadd.xlane.f32.xlu0 %v8644
        %v8664 = vpop.xlane.xlu0 %8663
        %8665 = vadd.xlane.f32.xlu0 %v8645
        %v8666 = vpop.xlane.xlu0 %8665
        %8667 = vadd.xlane.f32.xlu0 %v8646
        %v8668 = vpop.xlane.xlu0 %8667
        %8669 = vadd.xlane.f32.xlu0 %v8647
        %v8670 = vpop.xlane.xlu0 %8669
        %8671 = vadd.xlane.f32.xlu0 %v8648
        %v8672 = vpop.xlane.xlu0 %8671
        %8673 = vadd.xlane.f32.xlu0 %v8649
        %v8674 = vpop.xlane.xlu0 %8673
        %8675 = vadd.xlane.f32.xlu0 %v8650
        %v8676 = vpop.xlane.xlu0 %8675
        %8677 = vadd.xlane.f32.xlu0 %v8651
        %v8678 = vpop.xlane.xlu0 %8677
        %8679 = vadd.xlane.f32.xlu0 %v8652
        %v8680 = vpop.xlane.xlu0 %8679
        %8681 = vadd.xlane.f32.xlu0 %v8653
        %v8682 = vpop.xlane.xlu0 %8681
        %8683 = vadd.xlane.f32.xlu0 %v8654
        %v8684 = vpop.xlane.xlu0 %8683
        %8685 = vadd.xlane.f32.xlu0 %v8655
        %v8686 = vpop.xlane.xlu0 %8685
        %8687 = vadd.xlane.f32.xlu0 %v8656
        %v8688 = vpop.xlane.xlu0 %8687
        %v8689 = vmul.f32 %v8658, %v7939
        %v8690 = vmul.f32 %v8660, %v7939
        %v8691 = vmul.f32 %v8662, %v7939
        %v8692 = vmul.f32 %v8664, %v7939
        %v8693 = vmul.f32 %v8666, %v7939
        %v8694 = vmul.f32 %v8668, %v7939
        %v8695 = vmul.f32 %v8670, %v7939
        %v8696 = vmul.f32 %v8672, %v7939
        %v8697 = vmul.f32 %v8674, %v7939
        %v8698 = vmul.f32 %v8676, %v7939
        %v8699 = vmul.f32 %v8678, %v7939
        %v8700 = vmul.f32 %v8680, %v7939
        %v8701 = vmul.f32 %v8682, %v7939
        %v8702 = vmul.f32 %v8684, %v7939
        %v8703 = vmul.f32 %v8686, %v7939
        %v8704 = vmul.f32 %v8688, %v7939
        %v8705 = vadd.f32 %v8689, 1e-05
        %v8706 = vadd.f32 %v8690, 1e-05
        %v8707 = vadd.f32 %v8691, 1e-05
        %v8708 = vadd.f32 %v8692, 1e-05
        %v8709 = vadd.f32 %v8693, 1e-05
        %v8710 = vadd.f32 %v8694, 1e-05
        %v8711 = vadd.f32 %v8695, 1e-05
        %v8712 = vadd.f32 %v8696, 1e-05
        %v8713 = vadd.f32 %v8697, 1e-05
        %v8714 = vadd.f32 %v8698, 1e-05
        %v8715 = vadd.f32 %v8699, 1e-05
        %v8716 = vadd.f32 %v8700, 1e-05
        %v8717 = vadd.f32 %v8701, 1e-05
        %v8718 = vadd.f32 %v8702, 1e-05
        %v8719 = vadd.f32 %v8703, 1e-05
        %v8720 = vadd.f32 %v8704, 1e-05
        %v8721 = vrsqrt.pop %v8705
        %v8722 = vrsqrt.pop %v8706
        %v8723 = vrsqrt.pop %v8707
        %v8724 = vrsqrt.pop %v8708
        %v8725 = vrsqrt.pop %v8709
        %v8726 = vrsqrt.pop %v8710
        %v8727 = vrsqrt.pop %v8711
        %v8728 = vrsqrt.pop %v8712
        %v8729 = vrsqrt.pop %v8713
        %v8730 = vrsqrt.pop %v8714
        %v8731 = vrsqrt.pop %v8715
        %v8732 = vrsqrt.pop %v8716
        %v8733 = vrsqrt.pop %v8717
        %v8734 = vrsqrt.pop %v8718
        %v8735 = vrsqrt.pop %v8719
        %v8736 = vrsqrt.pop %v8720
        %v8737 = vmul.f32 %v8625, %v8721
        %v8738 = vmul.f32 %v8626, %v8722
        %v8739 = vmul.f32 %v8627, %v8723
        %v8740 = vmul.f32 %v8628, %v8724
        %v8741 = vmul.f32 %v8629, %v8725
        %v8742 = vmul.f32 %v8630, %v8726
        %v8743 = vmul.f32 %v8631, %v8727
        %v8744 = vmul.f32 %v8632, %v8728
        %v8745 = vmul.f32 %v8633, %v8729
        %v8746 = vmul.f32 %v8634, %v8730
        %v8747 = vmul.f32 %v8635, %v8731
        %v8748 = vmul.f32 %v8636, %v8732
        %v8749 = vmul.f32 %v8637, %v8733
        %v8750 = vmul.f32 %v8638, %v8734
        %v8751 = vmul.f32 %v8639, %v8735
        %v8752 = vmul.f32 %v8640, %v8736
        %s8753 = scalar_lea.vmem %s15, %s36
        %v8754 = vld [vmem:[%s8753] sm:$0x1]
        %v8756 = vlaneseq
        %v8757 = vshrl.u32 %v8756, 7
        %v8758 = vsub.s32 0, %v8757
        %v8759 = vrot.slane %v8754, %v8758
        %v8761 = vmul.f32 %v8737, %v8759
        %v8762 = vmul.f32 %v8738, %v8759
        %v8763 = vmul.f32 %v8739, %v8759
        %v8764 = vmul.f32 %v8740, %v8759
        %v8765 = vmul.f32 %v8741, %v8759
        %v8766 = vmul.f32 %v8742, %v8759
        %v8767 = vmul.f32 %v8743, %v8759
        %v8768 = vmul.f32 %v8744, %v8759
        %v8769 = vmul.f32 %v8745, %v8759
        %v8770 = vmul.f32 %v8746, %v8759
        %v8771 = vmul.f32 %v8747, %v8759
        %v8772 = vmul.f32 %v8748, %v8759
        %v8773 = vmul.f32 %v8749, %v8759
        %v8774 = vmul.f32 %v8750, %v8759
        %v8775 = vmul.f32 %v8751, %v8759
        %v8776 = vmul.f32 %v8752, %v8759
        %s8777 = scalar_lea.vmem %s16, %s36
        %v8778 = vld [vmem:[%s8777] sm:$0x1]
        %v8780 = vlaneseq
        %v8781 = vshrl.u32 %v8780, 7
        %v8782 = vsub.s32 0, %v8781
        %v8783 = vrot.slane %v8778, %v8782
        %v8785 = vadd.f32 %v8761, %v8783
        %v8786 = vadd.f32 %v8762, %v8783
        %v8787 = vadd.f32 %v8763, %v8783
        %v8788 = vadd.f32 %v8764, %v8783
        %v8789 = vadd.f32 %v8765, %v8783
        %v8790 = vadd.f32 %v8766, %v8783
        %v8791 = vadd.f32 %v8767, %v8783
        %v8792 = vadd.f32 %v8768, %v8783
        %v8793 = vadd.f32 %v8769, %v8783
        %v8794 = vadd.f32 %v8770, %v8783
        %v8795 = vadd.f32 %v8771, %v8783
        %v8796 = vadd.f32 %v8772, %v8783
        %v8797 = vadd.f32 %v8773, %v8783
        %v8798 = vadd.f32 %v8774, %v8783
        %v8799 = vadd.f32 %v8775, %v8783
        %v8800 = vadd.f32 %v8776, %v8783
        %8801 = vst [vmem:[%s554] sm:$0xff] %v8785
        %8802 = vst [vmem:[%s554 + $0x8] sm:$0xff] %v8786
        %8803 = vst [vmem:[%s554 + $0x10] sm:$0xff] %v8787
        %8804 = vst [vmem:[%s554 + $0x18] sm:$0xff] %v8788
        %8805 = vst [vmem:[%s554 + $0x20] sm:$0xff] %v8789
        %8806 = vst [vmem:[%s554 + $0x28] sm:$0xff] %v8790
        %8807 = vst [vmem:[%s554 + $0x30] sm:$0xff] %v8791
        %8808 = vst [vmem:[%s554 + $0x38] sm:$0xff] %v8792
        %8809 = vst [vmem:[%s554 + $0x40] sm:$0xff] %v8793
        %8810 = vst [vmem:[%s554 + $0x48] sm:$0xff] %v8794
        %8811 = vst [vmem:[%s554 + $0x50] sm:$0xff] %v8795
        %8812 = vst [vmem:[%s554 + $0x58] sm:$0xff] %v8796
        %8813 = vst [vmem:[%s554 + $0x60] sm:$0xff] %v8797
        %8814 = vst [vmem:[%s554 + $0x68] sm:$0xff] %v8798
        %8815 = vst [vmem:[%s554 + $0x70] sm:$0xff] %v8799
        %8816 = vst [vmem:[%s554 + $0x78] sm:$0xff] %v8800
        %s8817 = sand.u32 %s413, 1
        %s8818 = scalar_lea.sflag [#allocation3], %s8817
        %s8819 = sand.u32 %s413, 1
        %s8820 = smul.addr %s8819, 128
        %s8821 = scalar_lea.vmem [#allocation2], %s8820
        // Predicated region
        $region93: #{encoder_forward_pallas.1} parent=87 // pred_check
          %p8822 = pneg %p423
        $region94: #{encoder_forward_pallas.1} parent=87 // pred_check_branch
          %8824 = sbr.rel (%p8822) target = $region96
        $region95: #{encoder_forward_pallas.1} parent=87 // pred_region
          %s8825 = smul.u32 16, %s35
          %s8827 = ssub.s32 2048, 2048
          %8828 = vsyncadd %s8818, %s8827
          %s8829 = smul.addr %s8825, 128
          %s8830 = scalar_lea.hbm %s17, %s8829
          %s8831 = sshll.u32 %s8821, 4
          %s8832 = int_to_ptr.vmem [resolvable:$true] %s8831
          %8837 = dma.vmem_to_hbm [thread:$0]  %s8832, 2048, %s8830, %s8818, 128, 128, 8
        $region96: #{encoder_forward_pallas.1} parent=87 // pred_fallthru
          _
      $region88: #{encoder_forward_pallas.1} parent=5 // pred_fallthru
        _
      %p8838 = scmp.le.s32.totalorder 2, %s26
      // Predicated region
      $region97: #{encoder_forward_pallas.1} parent=5 // pred_check
        %p8839 = pneg %p8838
      $region98: #{encoder_forward_pallas.1} parent=5 // pred_check_branch
        %8841 = sbr.rel (%p8839) target = $region100
      $region99: #{encoder_forward_pallas.1} parent=5 // pred_region
        %s8842 = ssub.s32 %s26, 2
        // Predicated region
        $region101: #{encoder_forward_pallas.1} parent=99 // pred_check
          %p8843 = pneg %p429
        $region102: #{encoder_forward_pallas.1} parent=99 // pred_check_branch
          %8845 = sbr.rel (%p8843) target = $region104
        $region103: #{encoder_forward_pallas.1} parent=99 // pred_region
          %s8846 = sand.u32 %s414, 1
          %s8847 = scalar_lea.sflag [#allocation3], %s8846
          %s8848 = sand.u32 %s414, 1
          %s8849 = smul.addr %s8848, 128
          %s8850 = scalar_lea.vmem [#allocation2], %s8849
          %8851 = dma.done %s8847, 2048
        $region104: #{encoder_forward_pallas.1} parent=99 // pred_fallthru
          _
      $region100: #{encoder_forward_pallas.1} parent=5 // pred_fallthru
        _
    $region6: #{encoder_forward_pallas.1} parent=1 // loop_footer
      %s30 = sadd.s32 1, %s26
    $region7: #{encoder_forward_pallas.1} parent=1 // loop_footer_branch
      %25 = sbr.rel target = $region3
    $region8: #{encoder_forward_pallas.1} parent=1 // loop_exit
      _
    %8852 = vsyncpa [#allocation3], 1
    %s8853 = scalar_lea.sflag [#allocation3], 1
    %8854 = vsyncpa %s8853, 1

</llo_original>
